<compile_context>
chip_gen: v6e
topology: v6e:2x2x1
jax: 0.10.0
libtpu: 0.0.40
codegen_flags: <defaults>
</compile_context>

<pallas_src>
import functools

import jax
import jax.numpy as jnp
from jax import lax
from jax.experimental import pallas as pl
from jax.experimental.pallas import tpu as pltpu


# ----------------------------------------------------------------------------
# Fused kernel: one batch element per grid step, everything VMEM-resident.
# ----------------------------------------------------------------------------
def _cross_attention_kernel(img_ref, src_ref,
                            kv_w_ref, kv_b_ref,
                            q_w_ref, q_b_ref,
                            proj_w_ref, proj_b_ref,
                            o_ref, *, num_heads, scale):
    img = img_ref[0]                       # (L, dim)
    src = src_ref[0]                       # (L, dim)
    dim = img.shape[-1]
    hd = dim // num_heads

    # --- fused projections (MXU matmuls, bias add fused into the same pass) --
    kv = jnp.dot(img, kv_w_ref[...], preferred_element_type=jnp.float32)
    kv = kv + kv_b_ref[...]                # (L, 2*dim)
    q = jnp.dot(src, q_w_ref[...], preferred_element_type=jnp.float32)
    q = (q + q_b_ref[...]) * scale         # (L, dim), pre-scaled once

    # Column layout of kv matches torch's reshape(B, L, 2, nh, hd):
    #   [0, dim)      -> keys,   head h at columns [h*hd, (h+1)*hd)
    #   [dim, 2*dim)  -> values, same per-head layout.
    k = kv[:, :dim]                        # (L, dim)
    v = kv[:, dim:]                        # (L, dim)

    # --- per-head attention via static slices (no transposes, no reshapes) ---
    # Contract the last dims directly instead of materializing k_h.T.
    contract_last = (((1,), (1,)), ((), ()))
    outs = []
    for h in range(num_heads):
        lo, hi = h * hd, (h + 1) * hd
        q_h = q[:, lo:hi]                  # (L, hd)
        k_h = k[:, lo:hi]                  # (L, hd)
        v_h = v[:, lo:hi]                  # (L, hd)

        s = lax.dot_general(q_h, k_h, contract_last,
                            preferred_element_type=jnp.float32)   # (L, L)
        s = s - jnp.max(s, axis=-1, keepdims=True)
        p = jnp.exp(s)
        denom = jnp.sum(p, axis=-1, keepdims=True)
        p = p * pl.reciprocal(denom, approx=True)
        outs.append(jnp.dot(p, v_h, preferred_element_type=jnp.float32))  # (L, hd)

    # Merge heads back to (L, dim); column order matches torch permute+reshape.
    x = jnp.concatenate(outs, axis=-1)     # (L, dim)

    # --- output projection ----------------------------------------------------
    out = jnp.dot(x, proj_w_ref[...], preferred_element_type=jnp.float32)
    out = out + proj_b_ref[...]
    o_ref[0] = out.astype(o_ref.dtype)


def cross_attention_forward(params, image, source, *, num_heads):
    B, H, W, dim = image.shape
    L = H * W
    head_dim = dim // num_heads
    scale = head_dim ** (-0.5)

    img = image.reshape(B, L, dim)         # metadata-only reshape
    src = source.reshape(B, L, dim)

    kern = functools.partial(_cross_attention_kernel,
                             num_heads=num_heads, scale=scale)

    batch_spec = pl.BlockSpec((1, L, dim), lambda b: (b, 0, 0))

    def full_spec(shape):
        n = len(shape)
        return pl.BlockSpec(shape, lambda b, _n=n: (0,) * _n)

    out = pl.pallas_call(
        kern,
        out_shape=jax.ShapeDtypeStruct((B, L, dim), image.dtype),
        grid=(B,),
        in_specs=[
            batch_spec,                         # image  (1, L, dim)
            batch_spec,                         # source (1, L, dim)
            full_spec((dim, 2 * dim)),          # kv_w
            full_spec((1, 2 * dim)),            # kv_b
            full_spec((dim, dim)),              # q_w
            full_spec((1, dim)),                # q_b
            full_spec((dim, dim)),              # proj_w
            full_spec((1, dim)),                # proj_b
        ],
        out_specs=batch_spec,
        compiler_params=pltpu.CompilerParams(
            dimension_semantics=("parallel",)),
    )(img, src,
      params["kv_w"], params["kv_b"].reshape(1, 2 * dim),
      params["q_w"], params["q_b"].reshape(1, dim),
      params["proj_w"], params["proj_b"].reshape(1, dim))

    return out.reshape(B, H, W, dim)


# ----------------------------------------------------------------------------
# Pure-JAX reference (for verification)
# ----------------------------------------------------------------------------
def cross_attention_ref(params, image, source, *, num_heads):
    B, H, W, dim = image.shape
    L = H * W
    head_dim = dim // num_heads
    scale = head_dim ** (-0.5)
    kv = image.reshape(B * L, dim) @ params["kv_w"] + params["kv_b"]
    q = source.reshape(B * L, dim) @ params["q_w"] + params["q_b"]
    kv = kv.reshape(B, L, 2, num_heads, head_dim)
    kv = jnp.transpose(kv, (2, 0, 3, 1, 4)).reshape(2, B * num_heads, L, head_dim)
    k, v = kv[0], kv[1]
    q = jnp.transpose(q.reshape(B, L, num_heads, head_dim), (0, 2, 1, 3))
    q = q.reshape(B * num_heads, L, head_dim)
    attn = jax.nn.softmax((q * scale) @ jnp.swapaxes(k, -2, -1), axis=-1)
    x = attn @ v
    x = jnp.transpose(x.reshape(B, num_heads, H, W, head_dim), (0, 2, 3, 1, 4))
    x = x.reshape(B * L, dim) @ params["proj_w"] + params["proj_b"]
    return x.reshape(B, H, W, dim)


def init_params(key, dim):
    ks = jax.random.split(key, 6)
    std = 0.02
    return {
        "kv_w": jax.random.normal(ks[0], (dim, 2 * dim), jnp.float32) * std,
        "kv_b": jax.random.normal(ks[1], (2 * dim,), jnp.float32) * std,
        "q_w": jax.random.normal(ks[2], (dim, dim), jnp.float32) * std,
        "q_b": jax.random.normal(ks[3], (dim,), jnp.float32) * std,
        "proj_w": jax.random.normal(ks[4], (dim, dim), jnp.float32) * std,
        "proj_b": jax.random.normal(ks[5], (dim,), jnp.float32) * std,
    }


if __name__ == "__main__":
    B, H, W, dim, num_heads = 2, 16, 16, 32, 8

    key = jax.random.PRNGKey(0)
    k_img, k_src, k_par = jax.random.split(key, 3)
    image = jax.random.normal(k_img, (B, H, W, dim), jnp.float32)
    source = jax.random.normal(k_src, (B, H, W, dim), jnp.float32)
    params = init_params(k_par, dim)

    out = cross_attention_forward(params, image, source, num_heads=num_heads)
    out = jax.block_until_ready(out)

    ref = cross_attention_ref(params, image, source, num_heads=num_heads)
    assert out.shape == (B, H, W, dim), out.shape
    err = float(jnp.max(jnp.abs(out - ref)))
    # small slack for approx (EUP) reciprocal in the softmax denominator
    assert err < 2e-4, err

    print("KERNEL_OK")
</pallas_src>

<mosaic_0001>
module attributes {stable_mosaic.version = 11 : i64} {
  func.func @_cross_attention_kernel(%arg0: i32, %arg1: memref<1x256x32xf32, #tpu.memory_space<vmem>>, %arg2: memref<1x256x32xf32, #tpu.memory_space<vmem>>, %arg3: memref<32x64xf32, #tpu.memory_space<vmem>>, %arg4: memref<1x64xf32, #tpu.memory_space<vmem>>, %arg5: memref<32x32xf32, #tpu.memory_space<vmem>>, %arg6: memref<1x32xf32, #tpu.memory_space<vmem>>, %arg7: memref<32x32xf32, #tpu.memory_space<vmem>>, %arg8: memref<1x32xf32, #tpu.memory_space<vmem>>, %arg9: memref<1x256x32xf32, #tpu.memory_space<vmem>>) attributes {dimension_semantics = [#tpu.dimension_semantics<parallel>], iteration_bounds = array<i64: 2>, scalar_prefetch = 0 : i64, scratch_operands = 0 : i64, tpu.core_type = #tpu.core_type<tc>, window_params = [{transform_indices = @transform_0, window_bounds = array<i64: 1, 256, 32>}, {transform_indices = @transform_1, window_bounds = array<i64: 1, 256, 32>}, {pipeline_mode = #tpu.pipeline_mode<synchronous>, transform_indices = @transform_2, window_bounds = array<i64: 32, 64>}, {pipeline_mode = #tpu.pipeline_mode<synchronous>, transform_indices = @transform_3, window_bounds = array<i64: 1, 64>}, {pipeline_mode = #tpu.pipeline_mode<synchronous>, transform_indices = @transform_4, window_bounds = array<i64: 32, 32>}, {pipeline_mode = #tpu.pipeline_mode<synchronous>, transform_indices = @transform_5, window_bounds = array<i64: 1, 32>}, {pipeline_mode = #tpu.pipeline_mode<synchronous>, transform_indices = @transform_6, window_bounds = array<i64: 32, 32>}, {pipeline_mode = #tpu.pipeline_mode<synchronous>, transform_indices = @transform_7, window_bounds = array<i64: 1, 32>}, {transform_indices = @transform_8, window_bounds = array<i64: 1, 256, 32>}]} {
    %c0 = arith.constant 0 : index
    %c0_0 = arith.constant 0 : index
    %c0_1 = arith.constant 0 : index
    %0 = vector.load %arg1[%c0, %c0_0, %c0_1] : memref<1x256x32xf32, #tpu.memory_space<vmem>>, vector<1x256x32xf32>
    %1 = vector.shape_cast %0 : vector<1x256x32xf32> to vector<256x32xf32>
    %c0_2 = arith.constant 0 : index
    %c0_3 = arith.constant 0 : index
    %c0_4 = arith.constant 0 : index
    %2 = vector.load %arg2[%c0_2, %c0_3, %c0_4] : memref<1x256x32xf32, #tpu.memory_space<vmem>>, vector<1x256x32xf32>
    %3 = vector.shape_cast %2 : vector<1x256x32xf32> to vector<256x32xf32>
    %c0_5 = arith.constant 0 : index
    %c0_6 = arith.constant 0 : index
    %4 = vector.load %arg3[%c0_5, %c0_6] : memref<32x64xf32, #tpu.memory_space<vmem>>, vector<32x64xf32>
    %cst = arith.constant dense<0.000000e+00> : vector<256x64xf32>
    %5 = tpu.matmul %1, %4, %cst {dimension_numbers = #tpu.dot_dimension_numbers<[1], [0], [0], [1], [0, 0, 1, 1], [], []>} : vector<256x32xf32>, vector<32x64xf32>, vector<256x64xf32> -> vector<256x64xf32>
    %c0_7 = arith.constant 0 : index
    %c0_8 = arith.constant 0 : index
    %6 = vector.load %arg4[%c0_7, %c0_8] : memref<1x64xf32, #tpu.memory_space<vmem>>, vector<1x64xf32>
    %7 = vector.broadcast %6 : vector<1x64xf32> to vector<256x64xf32>
    %8 = arith.addf %5, %7 : vector<256x64xf32>
    %c0_9 = arith.constant 0 : index
    %c0_10 = arith.constant 0 : index
    %9 = vector.load %arg5[%c0_9, %c0_10] : memref<32x32xf32, #tpu.memory_space<vmem>>, vector<32x32xf32>
    %cst_11 = arith.constant dense<0.000000e+00> : vector<256x32xf32>
    %10 = tpu.matmul %3, %9, %cst_11 {dimension_numbers = #tpu.dot_dimension_numbers<[1], [0], [0], [1], [0, 0, 1, 1], [], []>} : vector<256x32xf32>, vector<32x32xf32>, vector<256x32xf32> -> vector<256x32xf32>
    %c0_12 = arith.constant 0 : index
    %c0_13 = arith.constant 0 : index
    %11 = vector.load %arg6[%c0_12, %c0_13] : memref<1x32xf32, #tpu.memory_space<vmem>>, vector<1x32xf32>
    %12 = vector.broadcast %11 : vector<1x32xf32> to vector<256x32xf32>
    %13 = arith.addf %10, %12 : vector<256x32xf32>
    %cst_14 = arith.constant 5.000000e-01 : f32
    %14 = vector.broadcast %cst_14 : f32 to vector<256x32xf32>
    %15 = arith.mulf %13, %14 : vector<256x32xf32>
    %16 = vector.extract_strided_slice %8 {offsets = [0, 0], sizes = [256, 32], strides = [1, 1]} : vector<256x64xf32> to vector<256x32xf32>
    %17 = vector.extract_strided_slice %8 {offsets = [0, 32], sizes = [256, 32], strides = [1, 1]} : vector<256x64xf32> to vector<256x32xf32>
    %18 = vector.extract_strided_slice %15 {offsets = [0, 0], sizes = [256, 4], strides = [1, 1]} : vector<256x32xf32> to vector<256x4xf32>
    %19 = vector.extract_strided_slice %16 {offsets = [0, 0], sizes = [256, 4], strides = [1, 1]} : vector<256x32xf32> to vector<256x4xf32>
    %20 = vector.extract_strided_slice %17 {offsets = [0, 0], sizes = [256, 4], strides = [1, 1]} : vector<256x32xf32> to vector<256x4xf32>
    %cst_15 = arith.constant dense<0.000000e+00> : vector<256x256xf32>
    %21 = tpu.matmul %18, %19, %cst_15 {dimension_numbers = #tpu.dot_dimension_numbers<[1], [1], [0], [0], [0, 0, 1, 0], [], []>} : vector<256x4xf32>, vector<256x4xf32>, vector<256x256xf32> -> vector<256x256xf32>
    %cst_16 = arith.constant dense<0xFF800000> : vector<256xf32>
    %22 = vector.multi_reduction <maximumf>, %21, %cst_16 [1] : vector<256x256xf32> to vector<256xf32>
    %23 = vector.shape_cast %22 : vector<256xf32> to vector<256x1xf32>
    %24 = vector.broadcast %23 : vector<256x1xf32> to vector<256x256xf32>
    %25 = arith.subf %21, %24 : vector<256x256xf32>
    %26 = math.exp %25 : vector<256x256xf32>
    %cst_17 = arith.constant dense<0.000000e+00> : vector<256xf32>
    %27 = vector.multi_reduction <add>, %26, %cst_17 [1] : vector<256x256xf32> to vector<256xf32>
    %28 = vector.shape_cast %27 : vector<256xf32> to vector<256x1xf32>
    %29 = tpu.reciprocal %28 {approx = true} : vector<256x1xf32> -> vector<256x1xf32>
    %30 = vector.broadcast %29 : vector<256x1xf32> to vector<256x256xf32>
    %31 = arith.mulf %26, %30 : vector<256x256xf32>
    %cst_18 = arith.constant dense<0.000000e+00> : vector<256x4xf32>
    %32 = tpu.matmul %31, %20, %cst_18 {dimension_numbers = #tpu.dot_dimension_numbers<[1], [0], [0], [1], [0, 0, 1, 1], [], []>} : vector<256x256xf32>, vector<256x4xf32>, vector<256x4xf32> -> vector<256x4xf32>
    %33 = vector.extract_strided_slice %15 {offsets = [0, 4], sizes = [256, 4], strides = [1, 1]} : vector<256x32xf32> to vector<256x4xf32>
    %34 = vector.extract_strided_slice %16 {offsets = [0, 4], sizes = [256, 4], strides = [1, 1]} : vector<256x32xf32> to vector<256x4xf32>
    %35 = vector.extract_strided_slice %17 {offsets = [0, 4], sizes = [256, 4], strides = [1, 1]} : vector<256x32xf32> to vector<256x4xf32>
    %cst_19 = arith.constant dense<0.000000e+00> : vector<256x256xf32>
    %36 = tpu.matmul %33, %34, %cst_19 {dimension_numbers = #tpu.dot_dimension_numbers<[1], [1], [0], [0], [0, 0, 1, 0], [], []>} : vector<256x4xf32>, vector<256x4xf32>, vector<256x256xf32> -> vector<256x256xf32>
    %cst_20 = arith.constant dense<0xFF800000> : vector<256xf32>
    %37 = vector.multi_reduction <maximumf>, %36, %cst_20 [1] : vector<256x256xf32> to vector<256xf32>
    %38 = vector.shape_cast %37 : vector<256xf32> to vector<256x1xf32>
    %39 = vector.broadcast %38 : vector<256x1xf32> to vector<256x256xf32>
    %40 = arith.subf %36, %39 : vector<256x256xf32>
    %41 = math.exp %40 : vector<256x256xf32>
    %cst_21 = arith.constant dense<0.000000e+00> : vector<256xf32>
    %42 = vector.multi_reduction <add>, %41, %cst_21 [1] : vector<256x256xf32> to vector<256xf32>
    %43 = vector.shape_cast %42 : vector<256xf32> to vector<256x1xf32>
    %44 = tpu.reciprocal %43 {approx = true} : vector<256x1xf32> -> vector<256x1xf32>
    %45 = vector.broadcast %44 : vector<256x1xf32> to vector<256x256xf32>
    %46 = arith.mulf %41, %45 : vector<256x256xf32>
    %cst_22 = arith.constant dense<0.000000e+00> : vector<256x4xf32>
    %47 = tpu.matmul %46, %35, %cst_22 {dimension_numbers = #tpu.dot_dimension_numbers<[1], [0], [0], [1], [0, 0, 1, 1], [], []>} : vector<256x256xf32>, vector<256x4xf32>, vector<256x4xf32> -> vector<256x4xf32>
    %48 = vector.extract_strided_slice %15 {offsets = [0, 8], sizes = [256, 4], strides = [1, 1]} : vector<256x32xf32> to vector<256x4xf32>
    %49 = vector.extract_strided_slice %16 {offsets = [0, 8], sizes = [256, 4], strides = [1, 1]} : vector<256x32xf32> to vector<256x4xf32>
    %50 = vector.extract_strided_slice %17 {offsets = [0, 8], sizes = [256, 4], strides = [1, 1]} : vector<256x32xf32> to vector<256x4xf32>
    %cst_23 = arith.constant dense<0.000000e+00> : vector<256x256xf32>
    %51 = tpu.matmul %48, %49, %cst_23 {dimension_numbers = #tpu.dot_dimension_numbers<[1], [1], [0], [0], [0, 0, 1, 0], [], []>} : vector<256x4xf32>, vector<256x4xf32>, vector<256x256xf32> -> vector<256x256xf32>
    %cst_24 = arith.constant dense<0xFF800000> : vector<256xf32>
    %52 = vector.multi_reduction <maximumf>, %51, %cst_24 [1] : vector<256x256xf32> to vector<256xf32>
    %53 = vector.shape_cast %52 : vector<256xf32> to vector<256x1xf32>
    %54 = vector.broadcast %53 : vector<256x1xf32> to vector<256x256xf32>
    %55 = arith.subf %51, %54 : vector<256x256xf32>
    %56 = math.exp %55 : vector<256x256xf32>
    %cst_25 = arith.constant dense<0.000000e+00> : vector<256xf32>
    %57 = vector.multi_reduction <add>, %56, %cst_25 [1] : vector<256x256xf32> to vector<256xf32>
    %58 = vector.shape_cast %57 : vector<256xf32> to vector<256x1xf32>
    %59 = tpu.reciprocal %58 {approx = true} : vector<256x1xf32> -> vector<256x1xf32>
    %60 = vector.broadcast %59 : vector<256x1xf32> to vector<256x256xf32>
    %61 = arith.mulf %56, %60 : vector<256x256xf32>
    %cst_26 = arith.constant dense<0.000000e+00> : vector<256x4xf32>
    %62 = tpu.matmul %61, %50, %cst_26 {dimension_numbers = #tpu.dot_dimension_numbers<[1], [0], [0], [1], [0, 0, 1, 1], [], []>} : vector<256x256xf32>, vector<256x4xf32>, vector<256x4xf32> -> vector<256x4xf32>
    %63 = vector.extract_strided_slice %15 {offsets = [0, 12], sizes = [256, 4], strides = [1, 1]} : vector<256x32xf32> to vector<256x4xf32>
    %64 = vector.extract_strided_slice %16 {offsets = [0, 12], sizes = [256, 4], strides = [1, 1]} : vector<256x32xf32> to vector<256x4xf32>
    %65 = vector.extract_strided_slice %17 {offsets = [0, 12], sizes = [256, 4], strides = [1, 1]} : vector<256x32xf32> to vector<256x4xf32>
    %cst_27 = arith.constant dense<0.000000e+00> : vector<256x256xf32>
    %66 = tpu.matmul %63, %64, %cst_27 {dimension_numbers = #tpu.dot_dimension_numbers<[1], [1], [0], [0], [0, 0, 1, 0], [], []>} : vector<256x4xf32>, vector<256x4xf32>, vector<256x256xf32> -> vector<256x256xf32>
    %cst_28 = arith.constant dense<0xFF800000> : vector<256xf32>
    %67 = vector.multi_reduction <maximumf>, %66, %cst_28 [1] : vector<256x256xf32> to vector<256xf32>
    %68 = vector.shape_cast %67 : vector<256xf32> to vector<256x1xf32>
    %69 = vector.broadcast %68 : vector<256x1xf32> to vector<256x256xf32>
    %70 = arith.subf %66, %69 : vector<256x256xf32>
    %71 = math.exp %70 : vector<256x256xf32>
    %cst_29 = arith.constant dense<0.000000e+00> : vector<256xf32>
    %72 = vector.multi_reduction <add>, %71, %cst_29 [1] : vector<256x256xf32> to vector<256xf32>
    %73 = vector.shape_cast %72 : vector<256xf32> to vector<256x1xf32>
    %74 = tpu.reciprocal %73 {approx = true} : vector<256x1xf32> -> vector<256x1xf32>
    %75 = vector.broadcast %74 : vector<256x1xf32> to vector<256x256xf32>
    %76 = arith.mulf %71, %75 : vector<256x256xf32>
    %cst_30 = arith.constant dense<0.000000e+00> : vector<256x4xf32>
    %77 = tpu.matmul %76, %65, %cst_30 {dimension_numbers = #tpu.dot_dimension_numbers<[1], [0], [0], [1], [0, 0, 1, 1], [], []>} : vector<256x256xf32>, vector<256x4xf32>, vector<256x4xf32> -> vector<256x4xf32>
    %78 = vector.extract_strided_slice %15 {offsets = [0, 16], sizes = [256, 4], strides = [1, 1]} : vector<256x32xf32> to vector<256x4xf32>
    %79 = vector.extract_strided_slice %16 {offsets = [0, 16], sizes = [256, 4], strides = [1, 1]} : vector<256x32xf32> to vector<256x4xf32>
    %80 = vector.extract_strided_slice %17 {offsets = [0, 16], sizes = [256, 4], strides = [1, 1]} : vector<256x32xf32> to vector<256x4xf32>
    %cst_31 = arith.constant dense<0.000000e+00> : vector<256x256xf32>
    %81 = tpu.matmul %78, %79, %cst_31 {dimension_numbers = #tpu.dot_dimension_numbers<[1], [1], [0], [0], [0, 0, 1, 0], [], []>} : vector<256x4xf32>, vector<256x4xf32>, vector<256x256xf32> -> vector<256x256xf32>
    %cst_32 = arith.constant dense<0xFF800000> : vector<256xf32>
    %82 = vector.multi_reduction <maximumf>, %81, %cst_32 [1] : vector<256x256xf32> to vector<256xf32>
    %83 = vector.shape_cast %82 : vector<256xf32> to vector<256x1xf32>
    %84 = vector.broadcast %83 : vector<256x1xf32> to vector<256x256xf32>
    %85 = arith.subf %81, %84 : vector<256x256xf32>
    %86 = math.exp %85 : vector<256x256xf32>
    %cst_33 = arith.constant dense<0.000000e+00> : vector<256xf32>
    %87 = vector.multi_reduction <add>, %86, %cst_33 [1] : vector<256x256xf32> to vector<256xf32>
    %88 = vector.shape_cast %87 : vector<256xf32> to vector<256x1xf32>
    %89 = tpu.reciprocal %88 {approx = true} : vector<256x1xf32> -> vector<256x1xf32>
    %90 = vector.broadcast %89 : vector<256x1xf32> to vector<256x256xf32>
    %91 = arith.mulf %86, %90 : vector<256x256xf32>
    %cst_34 = arith.constant dense<0.000000e+00> : vector<256x4xf32>
    %92 = tpu.matmul %91, %80, %cst_34 {dimension_numbers = #tpu.dot_dimension_numbers<[1], [0], [0], [1], [0, 0, 1, 1], [], []>} : vector<256x256xf32>, vector<256x4xf32>, vector<256x4xf32> -> vector<256x4xf32>
    %93 = vector.extract_strided_slice %15 {offsets = [0, 20], sizes = [256, 4], strides = [1, 1]} : vector<256x32xf32> to vector<256x4xf32>
    %94 = vector.extract_strided_slice %16 {offsets = [0, 20], sizes = [256, 4], strides = [1, 1]} : vector<256x32xf32> to vector<256x4xf32>
    %95 = vector.extract_strided_slice %17 {offsets = [0, 20], sizes = [256, 4], strides = [1, 1]} : vector<256x32xf32> to vector<256x4xf32>
    %cst_35 = arith.constant dense<0.000000e+00> : vector<256x256xf32>
    %96 = tpu.matmul %93, %94, %cst_35 {dimension_numbers = #tpu.dot_dimension_numbers<[1], [1], [0], [0], [0, 0, 1, 0], [], []>} : vector<256x4xf32>, vector<256x4xf32>, vector<256x256xf32> -> vector<256x256xf32>
    %cst_36 = arith.constant dense<0xFF800000> : vector<256xf32>
    %97 = vector.multi_reduction <maximumf>, %96, %cst_36 [1] : vector<256x256xf32> to vector<256xf32>
    %98 = vector.shape_cast %97 : vector<256xf32> to vector<256x1xf32>
    %99 = vector.broadcast %98 : vector<256x1xf32> to vector<256x256xf32>
    %100 = arith.subf %96, %99 : vector<256x256xf32>
    %101 = math.exp %100 : vector<256x256xf32>
    %cst_37 = arith.constant dense<0.000000e+00> : vector<256xf32>
    %102 = vector.multi_reduction <add>, %101, %cst_37 [1] : vector<256x256xf32> to vector<256xf32>
    %103 = vector.shape_cast %102 : vector<256xf32> to vector<256x1xf32>
    %104 = tpu.reciprocal %103 {approx = true} : vector<256x1xf32> -> vector<256x1xf32>
    %105 = vector.broadcast %104 : vector<256x1xf32> to vector<256x256xf32>
    %106 = arith.mulf %101, %105 : vector<256x256xf32>
    %cst_38 = arith.constant dense<0.000000e+00> : vector<256x4xf32>
    %107 = tpu.matmul %106, %95, %cst_38 {dimension_numbers = #tpu.dot_dimension_numbers<[1], [0], [0], [1], [0, 0, 1, 1], [], []>} : vector<256x256xf32>, vector<256x4xf32>, vector<256x4xf32> -> vector<256x4xf32>
    %108 = vector.extract_strided_slice %15 {offsets = [0, 24], sizes = [256, 4], strides = [1, 1]} : vector<256x32xf32> to vector<256x4xf32>
    %109 = vector.extract_strided_slice %16 {offsets = [0, 24], sizes = [256, 4], strides = [1, 1]} : vector<256x32xf32> to vector<256x4xf32>
    %110 = vector.extract_strided_slice %17 {offsets = [0, 24], sizes = [256, 4], strides = [1, 1]} : vector<256x32xf32> to vector<256x4xf32>
    %cst_39 = arith.constant dense<0.000000e+00> : vector<256x256xf32>
    %111 = tpu.matmul %108, %109, %cst_39 {dimension_numbers = #tpu.dot_dimension_numbers<[1], [1], [0], [0], [0, 0, 1, 0], [], []>} : vector<256x4xf32>, vector<256x4xf32>, vector<256x256xf32> -> vector<256x256xf32>
    %cst_40 = arith.constant dense<0xFF800000> : vector<256xf32>
    %112 = vector.multi_reduction <maximumf>, %111, %cst_40 [1] : vector<256x256xf32> to vector<256xf32>
    %113 = vector.shape_cast %112 : vector<256xf32> to vector<256x1xf32>
    %114 = vector.broadcast %113 : vector<256x1xf32> to vector<256x256xf32>
    %115 = arith.subf %111, %114 : vector<256x256xf32>
    %116 = math.exp %115 : vector<256x256xf32>
    %cst_41 = arith.constant dense<0.000000e+00> : vector<256xf32>
    %117 = vector.multi_reduction <add>, %116, %cst_41 [1] : vector<256x256xf32> to vector<256xf32>
    %118 = vector.shape_cast %117 : vector<256xf32> to vector<256x1xf32>
    %119 = tpu.reciprocal %118 {approx = true} : vector<256x1xf32> -> vector<256x1xf32>
    %120 = vector.broadcast %119 : vector<256x1xf32> to vector<256x256xf32>
    %121 = arith.mulf %116, %120 : vector<256x256xf32>
    %cst_42 = arith.constant dense<0.000000e+00> : vector<256x4xf32>
    %122 = tpu.matmul %121, %110, %cst_42 {dimension_numbers = #tpu.dot_dimension_numbers<[1], [0], [0], [1], [0, 0, 1, 1], [], []>} : vector<256x256xf32>, vector<256x4xf32>, vector<256x4xf32> -> vector<256x4xf32>
    %123 = vector.extract_strided_slice %15 {offsets = [0, 28], sizes = [256, 4], strides = [1, 1]} : vector<256x32xf32> to vector<256x4xf32>
    %124 = vector.extract_strided_slice %16 {offsets = [0, 28], sizes = [256, 4], strides = [1, 1]} : vector<256x32xf32> to vector<256x4xf32>
    %125 = vector.extract_strided_slice %17 {offsets = [0, 28], sizes = [256, 4], strides = [1, 1]} : vector<256x32xf32> to vector<256x4xf32>
    %cst_43 = arith.constant dense<0.000000e+00> : vector<256x256xf32>
    %126 = tpu.matmul %123, %124, %cst_43 {dimension_numbers = #tpu.dot_dimension_numbers<[1], [1], [0], [0], [0, 0, 1, 0], [], []>} : vector<256x4xf32>, vector<256x4xf32>, vector<256x256xf32> -> vector<256x256xf32>
    %cst_44 = arith.constant dense<0xFF800000> : vector<256xf32>
    %127 = vector.multi_reduction <maximumf>, %126, %cst_44 [1] : vector<256x256xf32> to vector<256xf32>
    %128 = vector.shape_cast %127 : vector<256xf32> to vector<256x1xf32>
    %129 = vector.broadcast %128 : vector<256x1xf32> to vector<256x256xf32>
    %130 = arith.subf %126, %129 : vector<256x256xf32>
    %131 = math.exp %130 : vector<256x256xf32>
    %cst_45 = arith.constant dense<0.000000e+00> : vector<256xf32>
    %132 = vector.multi_reduction <add>, %131, %cst_45 [1] : vector<256x256xf32> to vector<256xf32>
    %133 = vector.shape_cast %132 : vector<256xf32> to vector<256x1xf32>
    %134 = tpu.reciprocal %133 {approx = true} : vector<256x1xf32> -> vector<256x1xf32>
    %135 = vector.broadcast %134 : vector<256x1xf32> to vector<256x256xf32>
    %136 = arith.mulf %131, %135 : vector<256x256xf32>
    %cst_46 = arith.constant dense<0.000000e+00> : vector<256x4xf32>
    %137 = tpu.matmul %136, %125, %cst_46 {dimension_numbers = #tpu.dot_dimension_numbers<[1], [0], [0], [1], [0, 0, 1, 1], [], []>} : vector<256x256xf32>, vector<256x4xf32>, vector<256x4xf32> -> vector<256x4xf32>
    %138 = tpu.concatenate %32, %47, %62, %77, %92, %107, %122, %137 in 1 : vector<256x4xf32>, vector<256x4xf32>, vector<256x4xf32>, vector<256x4xf32>, vector<256x4xf32>, vector<256x4xf32>, vector<256x4xf32>, vector<256x4xf32> -> vector<256x32xf32>
    %c0_47 = arith.constant 0 : index
    %c0_48 = arith.constant 0 : index
    %139 = vector.load %arg7[%c0_47, %c0_48] : memref<32x32xf32, #tpu.memory_space<vmem>>, vector<32x32xf32>
    %cst_49 = arith.constant dense<0.000000e+00> : vector<256x32xf32>
    %140 = tpu.matmul %138, %139, %cst_49 {dimension_numbers = #tpu.dot_dimension_numbers<[1], [0], [0], [1], [0, 0, 1, 1], [], []>} : vector<256x32xf32>, vector<32x32xf32>, vector<256x32xf32> -> vector<256x32xf32>
    %c0_50 = arith.constant 0 : index
    %c0_51 = arith.constant 0 : index
    %141 = vector.load %arg8[%c0_50, %c0_51] : memref<1x32xf32, #tpu.memory_space<vmem>>, vector<1x32xf32>
    %142 = vector.broadcast %141 : vector<1x32xf32> to vector<256x32xf32>
    %143 = arith.addf %140, %142 : vector<256x32xf32>
    %c0_52 = arith.constant 0 : index
    %c0_53 = arith.constant 0 : index
    %c0_54 = arith.constant 0 : index
    %144 = vector.load %arg9[%c0_52, %c0_53, %c0_54] : memref<1x256x32xf32, #tpu.memory_space<vmem>>, vector<1x256x32xf32>
    %145 = vector.shape_cast %144 : vector<1x256x32xf32> to vector<256x32xf32>
    %146 = vector.shape_cast %143 : vector<256x32xf32> to vector<1x256x32xf32>
    tpu.vector_store %arg9[%c0_52, %c0_53, %c0_54], %146 {strides = array<i32>} : memref<1x256x32xf32, #tpu.memory_space<vmem>>, vector<1x256x32xf32>,
    return
  }
  func.func @transform_0(%arg0: i32) -> (i32, i32, i32) {
    %c0_i32 = arith.constant 0 : i32
    %c0_i32_0 = arith.constant 0 : i32
    %c0_i32_1 = arith.constant 0 : i32
    return %arg0, %c0_i32, %c0_i32_0 : i32, i32, i32
  }
  func.func @transform_1(%arg0: i32) -> (i32, i32, i32) {
    %c0_i32 = arith.constant 0 : i32
    %c0_i32_0 = arith.constant 0 : i32
    %c0_i32_1 = arith.constant 0 : i32
    return %arg0, %c0_i32, %c0_i32_0 : i32, i32, i32
  }
  func.func @transform_2(%arg0: i32) -> (i32, i32) {
    %c0_i32 = arith.constant 0 : i32
    %c0_i32_0 = arith.constant 0 : i32
    %c0_i32_1 = arith.constant 0 : i32
    return %c0_i32, %c0_i32_0 : i32, i32
  }
  func.func @transform_3(%arg0: i32) -> (i32, i32) {
    %c0_i32 = arith.constant 0 : i32
    %c0_i32_0 = arith.constant 0 : i32
    %c0_i32_1 = arith.constant 0 : i32
    return %c0_i32, %c0_i32_0 : i32, i32
  }
  func.func @transform_4(%arg0: i32) -> (i32, i32) {
    %c0_i32 = arith.constant 0 : i32
    %c0_i32_0 = arith.constant 0 : i32
    %c0_i32_1 = arith.constant 0 : i32
    return %c0_i32, %c0_i32_0 : i32, i32
  }
  func.func @transform_5(%arg0: i32) -> (i32, i32) {
    %c0_i32 = arith.constant 0 : i32
    %c0_i32_0 = arith.constant 0 : i32
    %c0_i32_1 = arith.constant 0 : i32
    return %c0_i32, %c0_i32_0 : i32, i32
  }
  func.func @transform_6(%arg0: i32) -> (i32, i32) {
    %c0_i32 = arith.constant 0 : i32
    %c0_i32_0 = arith.constant 0 : i32
    %c0_i32_1 = arith.constant 0 : i32
    return %c0_i32, %c0_i32_0 : i32, i32
  }
  func.func @transform_7(%arg0: i32) -> (i32, i32) {
    %c0_i32 = arith.constant 0 : i32
    %c0_i32_0 = arith.constant 0 : i32
    %c0_i32_1 = arith.constant 0 : i32
    return %c0_i32, %c0_i32_0 : i32, i32
  }
  func.func @transform_8(%arg0: i32) -> (i32, i32, i32) {
    %c0_i32 = arith.constant 0 : i32
    %c0_i32_0 = arith.constant 0 : i32
    %c0_i32_1 = arith.constant 0 : i32
    return %arg0, %c0_i32, %c0_i32_0 : i32, i32, i32
  }
}

</mosaic_0001>

<llo_original>
// kernel: tpu_custom_call.1
$region0: #{tpu_custom_call.1}
  #allocation0 [shape = 'u32[]', space=smem, size = 0x4, offset = 0x4, fixed_abs, tag = 'smem constant byte address 0x4 - core index']
  #allocation1 [shape = 'u32[144,128]{1,0:T(1,128)}', space=vmem, size = 0x12000, scoped, tag = 'internal scratch']
  %s0 = inlined_call_operand.vmem [shape: f32[2,256,32], index: 0, kind: input, shape index: {}]
  %s1 = inlined_call_operand.vmem [shape: f32[2,256,32], index: 1, kind: input, shape index: {}]
  %s2 = inlined_call_operand.vmem [shape: f32[32,64], index: 2, kind: input, shape index: {}]
  %s3 = inlined_call_operand.vmem [shape: f32[1,64], index: 3, kind: input, shape index: {}]
  %s4 = inlined_call_operand.vmem [shape: f32[32,32], index: 4, kind: input, shape index: {}]
  %s5 = inlined_call_operand.vmem [shape: f32[1,32], index: 5, kind: input, shape index: {}]
  %s6 = inlined_call_operand.vmem [shape: f32[32,32], index: 6, kind: input, shape index: {}]
  %s7 = inlined_call_operand.vmem [shape: f32[1,32], index: 7, kind: input, shape index: {}]
  %s8 = inlined_call_operand.vmem [shape: f32[2,256,32], index: 8, kind: output, shape index: {}]
  %s9 = sld [smem:[#allocation0]]
  $region65: #{tpu_custom_call.1} parent=0
    _
  %s11 = ssub.s32 1, %s9
  %s12 = scalar_select 0, %s11, %s9
  loop: start=0, step=1, limit=4
  $region2: #{tpu_custom_call.1} parent=0 // loop_pre_header
    _
  $region3: #{tpu_custom_call.1} parent=0 // loop_header
    %s14 = sphi 0, %s18
    %p15 = scmp.ge.s32.totalorder %s14, 4
    %s24 = sphi 0, %s26
    %s27 = sphi 0, %s24
    %s28 = sphi 0, %s27
    %s44 = sphi 0, %s28
    %s50 = sphi 0, %s52
    %s53 = sphi 0, %s50
    %s54 = sphi 0, %s53
    %s70 = sphi 0, %s54
    %s74 = sphi 0, %s74
    %s76 = sphi 0, %s74
    %s77 = sphi 0, %s76
    %s91 = sphi 0, %s77
    %s95 = sphi 0, %s95
    %s97 = sphi 0, %s95
    %s98 = sphi 0, %s97
    %s112 = sphi 0, %s98
    %s116 = sphi 0, %s116
    %s118 = sphi 0, %s116
    %s119 = sphi 0, %s118
    %s133 = sphi 0, %s119
    %s137 = sphi 0, %s137
    %s139 = sphi 0, %s137
    %s140 = sphi 0, %s139
    %s154 = sphi 0, %s140
    %s158 = sphi 0, %s158
    %s160 = sphi 0, %s158
    %s161 = sphi 0, %s160
    %s175 = sphi 0, %s161
    %s179 = sphi 0, %s179
    %s181 = sphi 0, %s179
    %s182 = sphi 0, %s181
    %s196 = sphi 0, %s182
    %s202 = sphi 0, %s204
    %s205 = sphi 0, %s202
    %s206 = sphi 0, %s205
    %s222 = sphi 0, %s206
  $region4: #{tpu_custom_call.1} parent=0 // loop_header_branch
    %17 = sbr.rel (%p15) target = $region8
  $region5: #{tpu_custom_call.1} parent=0 // loop_body
    %s19 = ssub.s32 %s14, 1
    %s20 = ssub.s32 %s14, 2
    %s21 = sadd.s32 %s14, 1
    %s22 = ssub.s32 %s14, %s21
    %p23 = scmp.eq.s32.totalorder %s22, 0
    %s25 = sadd.s32 %s24, 1
    %s26 = scalar_select %p23, %s24, %s25
    %p29 = pneg %p23
    %p30 = scmp.eq.s32.totalorder %s14, 1
    %p31 = por %p29, %p30
    %p32 = scmp.ne.s32.totalorder %s24, %s27
    %p33 = scmp.eq.s32.totalorder %s14, 0
    %p34 = por %p32, %p33
    %p35 = scmp.ne.s32.totalorder %s24, %s27
    %p36 = scmp.eq.s32.totalorder %s19, 1
    %p37 = por %p35, %p36
    %p38 = scmp.ne.s32.totalorder %s27, %s28
    %p39 = scmp.eq.s32.totalorder %s19, 0
    %p40 = por %p38, %p39
    %p41 = scmp.ne.s32.totalorder %s27, %s28
    %p42 = scmp.eq.s32.totalorder %s20, 1
    %p43 = por %p41, %p42
    %p45 = scmp.ne.s32.totalorder %s28, %s44
    %p46 = scmp.eq.s32.totalorder %s20, 0
    %p47 = por %p45, %p46
    %s48 = ssub.s32 %s14, %s21
    %p49 = scmp.eq.s32.totalorder %s48, 0
    %s51 = sadd.s32 %s50, 1
    %s52 = scalar_select %p49, %s50, %s51
    %p55 = pneg %p49
    %p56 = scmp.eq.s32.totalorder %s14, 1
    %p57 = por %p55, %p56
    %p58 = scmp.ne.s32.totalorder %s50, %s53
    %p59 = scmp.eq.s32.totalorder %s14, 0
    %p60 = por %p58, %p59
    %p61 = scmp.ne.s32.totalorder %s50, %s53
    %p62 = scmp.eq.s32.totalorder %s19, 1
    %p63 = por %p61, %p62
    %p64 = scmp.ne.s32.totalorder %s53, %s54
    %p65 = scmp.eq.s32.totalorder %s19, 0
    %p66 = por %p64, %p65
    %p67 = scmp.ne.s32.totalorder %s53, %s54
    %p68 = scmp.eq.s32.totalorder %s20, 1
    %p69 = por %p67, %p68
    %p71 = scmp.ne.s32.totalorder %s54, %s70
    %p72 = scmp.eq.s32.totalorder %s20, 0
    %p73 = por %p71, %p72
    %s75 = sadd.s32 %s74, 1
    %p78 = scmp.eq.s32.totalorder %s14, 1
    %p79 = scmp.ne.s32.totalorder %s74, %s76
    %p80 = scmp.eq.s32.totalorder %s14, 0
    %p81 = por %p79, %p80
    %p82 = scmp.ne.s32.totalorder %s74, %s76
    %p83 = scmp.eq.s32.totalorder %s19, 1
    %p84 = por %p82, %p83
    %p85 = scmp.ne.s32.totalorder %s76, %s77
    %p86 = scmp.eq.s32.totalorder %s19, 0
    %p87 = por %p85, %p86
    %p88 = scmp.ne.s32.totalorder %s76, %s77
    %p89 = scmp.eq.s32.totalorder %s20, 1
    %p90 = por %p88, %p89
    %p92 = scmp.ne.s32.totalorder %s77, %s91
    %p93 = scmp.eq.s32.totalorder %s20, 0
    %p94 = por %p92, %p93
    %s96 = sadd.s32 %s95, 1
    %p99 = scmp.eq.s32.totalorder %s14, 1
    %p100 = scmp.ne.s32.totalorder %s95, %s97
    %p101 = scmp.eq.s32.totalorder %s14, 0
    %p102 = por %p100, %p101
    %p103 = scmp.ne.s32.totalorder %s95, %s97
    %p104 = scmp.eq.s32.totalorder %s19, 1
    %p105 = por %p103, %p104
    %p106 = scmp.ne.s32.totalorder %s97, %s98
    %p107 = scmp.eq.s32.totalorder %s19, 0
    %p108 = por %p106, %p107
    %p109 = scmp.ne.s32.totalorder %s97, %s98
    %p110 = scmp.eq.s32.totalorder %s20, 1
    %p111 = por %p109, %p110
    %p113 = scmp.ne.s32.totalorder %s98, %s112
    %p114 = scmp.eq.s32.totalorder %s20, 0
    %p115 = por %p113, %p114
    %s117 = sadd.s32 %s116, 1
    %p120 = scmp.eq.s32.totalorder %s14, 1
    %p121 = scmp.ne.s32.totalorder %s116, %s118
    %p122 = scmp.eq.s32.totalorder %s14, 0
    %p123 = por %p121, %p122
    %p124 = scmp.ne.s32.totalorder %s116, %s118
    %p125 = scmp.eq.s32.totalorder %s19, 1
    %p126 = por %p124, %p125
    %p127 = scmp.ne.s32.totalorder %s118, %s119
    %p128 = scmp.eq.s32.totalorder %s19, 0
    %p129 = por %p127, %p128
    %p130 = scmp.ne.s32.totalorder %s118, %s119
    %p131 = scmp.eq.s32.totalorder %s20, 1
    %p132 = por %p130, %p131
    %p134 = scmp.ne.s32.totalorder %s119, %s133
    %p135 = scmp.eq.s32.totalorder %s20, 0
    %p136 = por %p134, %p135
    %s138 = sadd.s32 %s137, 1
    %p141 = scmp.eq.s32.totalorder %s14, 1
    %p142 = scmp.ne.s32.totalorder %s137, %s139
    %p143 = scmp.eq.s32.totalorder %s14, 0
    %p144 = por %p142, %p143
    %p145 = scmp.ne.s32.totalorder %s137, %s139
    %p146 = scmp.eq.s32.totalorder %s19, 1
    %p147 = por %p145, %p146
    %p148 = scmp.ne.s32.totalorder %s139, %s140
    %p149 = scmp.eq.s32.totalorder %s19, 0
    %p150 = por %p148, %p149
    %p151 = scmp.ne.s32.totalorder %s139, %s140
    %p152 = scmp.eq.s32.totalorder %s20, 1
    %p153 = por %p151, %p152
    %p155 = scmp.ne.s32.totalorder %s140, %s154
    %p156 = scmp.eq.s32.totalorder %s20, 0
    %p157 = por %p155, %p156
    %s159 = sadd.s32 %s158, 1
    %p162 = scmp.eq.s32.totalorder %s14, 1
    %p163 = scmp.ne.s32.totalorder %s158, %s160
    %p164 = scmp.eq.s32.totalorder %s14, 0
    %p165 = por %p163, %p164
    %p166 = scmp.ne.s32.totalorder %s158, %s160
    %p167 = scmp.eq.s32.totalorder %s19, 1
    %p168 = por %p166, %p167
    %p169 = scmp.ne.s32.totalorder %s160, %s161
    %p170 = scmp.eq.s32.totalorder %s19, 0
    %p171 = por %p169, %p170
    %p172 = scmp.ne.s32.totalorder %s160, %s161
    %p173 = scmp.eq.s32.totalorder %s20, 1
    %p174 = por %p172, %p173
    %p176 = scmp.ne.s32.totalorder %s161, %s175
    %p177 = scmp.eq.s32.totalorder %s20, 0
    %p178 = por %p176, %p177
    %s180 = sadd.s32 %s179, 1
    %p183 = scmp.eq.s32.totalorder %s14, 1
    %p184 = scmp.ne.s32.totalorder %s179, %s181
    %p185 = scmp.eq.s32.totalorder %s14, 0
    %p186 = por %p184, %p185
    %p187 = scmp.ne.s32.totalorder %s179, %s181
    %p188 = scmp.eq.s32.totalorder %s19, 1
    %p189 = por %p187, %p188
    %p190 = scmp.ne.s32.totalorder %s181, %s182
    %p191 = scmp.eq.s32.totalorder %s19, 0
    %p192 = por %p190, %p191
    %p193 = scmp.ne.s32.totalorder %s181, %s182
    %p194 = scmp.eq.s32.totalorder %s20, 1
    %p195 = por %p193, %p194
    %p197 = scmp.ne.s32.totalorder %s182, %s196
    %p198 = scmp.eq.s32.totalorder %s20, 0
    %p199 = por %p197, %p198
    %s200 = ssub.s32 %s14, %s21
    %p201 = scmp.eq.s32.totalorder %s200, 0
    %s203 = sadd.s32 %s202, 1
    %s204 = scalar_select %p201, %s202, %s203
    %p207 = pneg %p201
    %p208 = scmp.eq.s32.totalorder %s14, 1
    %p209 = por %p207, %p208
    %p210 = scmp.ne.s32.totalorder %s202, %s205
    %p211 = scmp.eq.s32.totalorder %s14, 0
    %p212 = por %p210, %p211
    %p213 = scmp.ne.s32.totalorder %s202, %s205
    %p214 = scmp.eq.s32.totalorder %s19, 1
    %p215 = por %p213, %p214
    %p216 = scmp.ne.s32.totalorder %s205, %s206
    %p217 = scmp.eq.s32.totalorder %s19, 0
    %p218 = por %p216, %p217
    %p219 = scmp.ne.s32.totalorder %s205, %s206
    %p220 = scmp.eq.s32.totalorder %s20, 1
    %p221 = por %p219, %p220
    %p223 = scmp.ne.s32.totalorder %s206, %s222
    %p224 = scmp.eq.s32.totalorder %s20, 0
    %p225 = por %p223, %p224
    %p226 = scmp.le.s32.totalorder 1, %s14
    %p227 = scmp.lt.s32.totalorder %s14, 3
    %p228 = pnand %p226, %p227
    %p229 = pneg %p228
    // Predicated region
    $region9: #{tpu_custom_call.1} parent=5 // pred_check
      _
    $region10: #{tpu_custom_call.1} parent=5 // pred_check_branch
      %231 = sbr.rel (%p228) target = $region12
    $region11: #{tpu_custom_call.1} parent=5 // pred_region
      %s232 = ssub.s32 %s14, 1
      // Predicated region
      $region13: #{tpu_custom_call.1} parent=11 // pred_check
        %p233 = pneg %p87
      $region14: #{tpu_custom_call.1} parent=11 // pred_check_branch
        %235 = sbr.rel (%p233) target = $region16
      $region15: #{tpu_custom_call.1} parent=11 // pred_region
        _
      $region16: #{tpu_custom_call.1} parent=11 // pred_fallthru
        _
      // Predicated region
      $region17: #{tpu_custom_call.1} parent=11 // pred_check
        %p236 = pneg %p108
      $region18: #{tpu_custom_call.1} parent=11 // pred_check_branch
        %238 = sbr.rel (%p236) target = $region20
      $region19: #{tpu_custom_call.1} parent=11 // pred_region
        _
      $region20: #{tpu_custom_call.1} parent=11 // pred_fallthru
        _
      // Predicated region
      $region21: #{tpu_custom_call.1} parent=11 // pred_check
        %p239 = pneg %p129
      $region22: #{tpu_custom_call.1} parent=11 // pred_check_branch
        %241 = sbr.rel (%p239) target = $region24
      $region23: #{tpu_custom_call.1} parent=11 // pred_region
        _
      $region24: #{tpu_custom_call.1} parent=11 // pred_fallthru
        _
      // Predicated region
      $region25: #{tpu_custom_call.1} parent=11 // pred_check
        %p242 = pneg %p150
      $region26: #{tpu_custom_call.1} parent=11 // pred_check_branch
        %244 = sbr.rel (%p242) target = $region28
      $region27: #{tpu_custom_call.1} parent=11 // pred_region
        _
      $region28: #{tpu_custom_call.1} parent=11 // pred_fallthru
        _
      // Predicated region
      $region29: #{tpu_custom_call.1} parent=11 // pred_check
        %p245 = pneg %p171
      $region30: #{tpu_custom_call.1} parent=11 // pred_check_branch
        %247 = sbr.rel (%p245) target = $region32
      $region31: #{tpu_custom_call.1} parent=11 // pred_region
        _
      $region32: #{tpu_custom_call.1} parent=11 // pred_fallthru
        _
      // Predicated region
      $region33: #{tpu_custom_call.1} parent=11 // pred_check
        %p248 = pneg %p192
      $region34: #{tpu_custom_call.1} parent=11 // pred_check_branch
        %250 = sbr.rel (%p248) target = $region36
      $region35: #{tpu_custom_call.1} parent=11 // pred_region
        _
      $region36: #{tpu_custom_call.1} parent=11 // pred_fallthru
        _
    $region12: #{tpu_custom_call.1} parent=5 // pred_fallthru
      _
    %p251 = scmp.lt.s32.totalorder %s14, 2
    // Predicated region
    $region37: #{tpu_custom_call.1} parent=5 // pred_check
      %p252 = pneg %p251
    $region38: #{tpu_custom_call.1} parent=5 // pred_check_branch
      %254 = sbr.rel (%p252) target = $region40
    $region39: #{tpu_custom_call.1} parent=5 // pred_region
      // Predicated region
      $region41: #{tpu_custom_call.1} parent=39 // pred_check
        %p255 = pneg %p34
      $region42: #{tpu_custom_call.1} parent=39 // pred_check_branch
        %257 = sbr.rel (%p255) target = $region44
      $region43: #{tpu_custom_call.1} parent=39 // pred_region
        %p258 = scmp.lt.s32.totalorder %s14, 1
        %s259 = scalar_select %p258, %s14, 1
        %s260 = smul.addr %s259, 32
        %s261 = smul.addr %s260, 8
        %s262 = scalar_lea.vmem %s0, %s261
      $region44: #{tpu_custom_call.1} parent=39 // pred_fallthru
        _
      // Predicated region
      $region45: #{tpu_custom_call.1} parent=39 // pred_check
        %p263 = pneg %p60
      $region46: #{tpu_custom_call.1} parent=39 // pred_check_branch
        %265 = sbr.rel (%p263) target = $region48
      $region47: #{tpu_custom_call.1} parent=39 // pred_region
        %p266 = scmp.lt.s32.totalorder %s14, 1
        %s267 = scalar_select %p266, %s14, 1
        %s268 = smul.addr %s267, 32
        %s269 = smul.addr %s268, 8
        %s270 = scalar_lea.vmem %s1, %s269
      $region48: #{tpu_custom_call.1} parent=39 // pred_fallthru
        _
    $region40: #{tpu_custom_call.1} parent=5 // pred_fallthru
      _
    %p271 = scmp.le.s32.totalorder 1, %s14
    %p272 = scmp.lt.s32.totalorder %s14, 3
    %p273 = pnand %p271, %p272
    %p274 = pneg %p273
    // Predicated region
    $region49: #{tpu_custom_call.1} parent=5 // pred_check
      _
    $region50: #{tpu_custom_call.1} parent=5 // pred_check_branch
      %276 = sbr.rel (%p273) target = $region52
    $region51: #{tpu_custom_call.1} parent=5 // pred_region
      %s277 = ssub.s32 %s14, 1
      %p278 = scmp.lt.s32.totalorder %s19, 1
      %s279 = scalar_select %p278, %s19, 1
      %s280 = smul.addr %s279, 32
      %s281 = smul.addr %s280, 8
      %s282 = scalar_lea.vmem %s0, %s281
      %p283 = pneg %p40
      %p284 = pneg %p37
      %p285 = scmp.lt.s32.totalorder %s19, 1
      %s286 = scalar_select %p285, %s19, 1
      %s287 = smul.addr %s286, 32
      %s288 = smul.addr %s287, 8
      %s289 = scalar_lea.vmem %s1, %s288
      %p290 = pneg %p66
      %p291 = pneg %p63
      %p292 = pneg %p87
      %p293 = pneg %p84
      %p294 = pneg %p108
      %p295 = pneg %p105
      %p296 = pneg %p129
      %p297 = pneg %p126
      %p298 = pneg %p150
      %p299 = pneg %p147
      %p300 = pneg %p171
      %p301 = pneg %p168
      %p302 = pneg %p192
      %p303 = pneg %p189
      %p304 = pneg %p218
      %p305 = pneg %p215
      %p306 = scmp.lt.s32.totalorder %s19, 1
      %s307 = scalar_select %p306, %s19, 1
      %s308 = smul.addr %s307, 32
      %s309 = smul.addr %s308, 8
      %s310 = scalar_lea.vmem %s8, %s309
      %p311 = scmp.lt.s32.totalorder %s19, 1
      %s312 = scalar_select %p311, %s19, 1
      %s313 = smul.addr %s312, 32
      %s314 = smul.addr %s313, 8
      %s315 = scalar_lea.vmem %s0, %s314
      %p316 = scmp.lt.s32.totalorder %s19, 1
      %s317 = scalar_select %p316, %s19, 1
      %s318 = smul.addr %s317, 32
      %s319 = smul.addr %s318, 8
      %s320 = scalar_lea.vmem %s1, %s319
      %p321 = scmp.lt.s32.totalorder %s19, 1
      %s322 = scalar_select %p321, %s19, 1
      %s323 = smul.addr %s322, 32
      %s324 = smul.addr %s323, 8
      %s325 = scalar_lea.vmem %s8, %s324
      %v326 = vld [vmem:[%s315] sm:$0xff]
      %v327 = vld [vmem:[%s315 + $0x8] sm:$0xff]
      %v328 = vld [vmem:[%s315 + $0x10] sm:$0xff]
      %v329 = vld [vmem:[%s315 + $0x18] sm:$0xff]
      %v330 = vld [vmem:[%s315 + $0x20] sm:$0xff]
      %v331 = vld [vmem:[%s315 + $0x28] sm:$0xff]
      %v332 = vld [vmem:[%s315 + $0x30] sm:$0xff]
      %v333 = vld [vmem:[%s315 + $0x38] sm:$0xff]
      %v334 = vld [vmem:[%s315 + $0x40] sm:$0xff]
      %v335 = vld [vmem:[%s315 + $0x48] sm:$0xff]
      %v336 = vld [vmem:[%s315 + $0x50] sm:$0xff]
      %v337 = vld [vmem:[%s315 + $0x58] sm:$0xff]
      %v338 = vld [vmem:[%s315 + $0x60] sm:$0xff]
      %v339 = vld [vmem:[%s315 + $0x68] sm:$0xff]
      %v340 = vld [vmem:[%s315 + $0x70] sm:$0xff]
      %v341 = vld [vmem:[%s315 + $0x78] sm:$0xff]
      %v342 = vld [vmem:[%s315 + $0x80] sm:$0xff]
      %v343 = vld [vmem:[%s315 + $0x88] sm:$0xff]
      %v344 = vld [vmem:[%s315 + $0x90] sm:$0xff]
      %v345 = vld [vmem:[%s315 + $0x98] sm:$0xff]
      %v346 = vld [vmem:[%s315 + $0xa0] sm:$0xff]
      %v347 = vld [vmem:[%s315 + $0xa8] sm:$0xff]
      %v348 = vld [vmem:[%s315 + $0xb0] sm:$0xff]
      %v349 = vld [vmem:[%s315 + $0xb8] sm:$0xff]
      %v350 = vld [vmem:[%s315 + $0xc0] sm:$0xff]
      %v351 = vld [vmem:[%s315 + $0xc8] sm:$0xff]
      %v352 = vld [vmem:[%s315 + $0xd0] sm:$0xff]
      %v353 = vld [vmem:[%s315 + $0xd8] sm:$0xff]
      %v354 = vld [vmem:[%s315 + $0xe0] sm:$0xff]
      %v355 = vld [vmem:[%s315 + $0xe8] sm:$0xff]
      %v356 = vld [vmem:[%s315 + $0xf0] sm:$0xff]
      %v357 = vld [vmem:[%s315 + $0xf8] sm:$0xff]
      %v358 = vld [vmem:[%s320] sm:$0xff]
      %v359 = vld [vmem:[%s320 + $0x8] sm:$0xff]
      %v360 = vld [vmem:[%s320 + $0x10] sm:$0xff]
      %v361 = vld [vmem:[%s320 + $0x18] sm:$0xff]
      %v362 = vld [vmem:[%s320 + $0x20] sm:$0xff]
      %v363 = vld [vmem:[%s320 + $0x28] sm:$0xff]
      %v364 = vld [vmem:[%s320 + $0x30] sm:$0xff]
      %v365 = vld [vmem:[%s320 + $0x38] sm:$0xff]
      %v366 = vld [vmem:[%s320 + $0x40] sm:$0xff]
      %v367 = vld [vmem:[%s320 + $0x48] sm:$0xff]
      %v368 = vld [vmem:[%s320 + $0x50] sm:$0xff]
      %v369 = vld [vmem:[%s320 + $0x58] sm:$0xff]
      %v370 = vld [vmem:[%s320 + $0x60] sm:$0xff]
      %v371 = vld [vmem:[%s320 + $0x68] sm:$0xff]
      %v372 = vld [vmem:[%s320 + $0x70] sm:$0xff]
      %v373 = vld [vmem:[%s320 + $0x78] sm:$0xff]
      %v374 = vld [vmem:[%s320 + $0x80] sm:$0xff]
      %v375 = vld [vmem:[%s320 + $0x88] sm:$0xff]
      %v376 = vld [vmem:[%s320 + $0x90] sm:$0xff]
      %v377 = vld [vmem:[%s320 + $0x98] sm:$0xff]
      %v378 = vld [vmem:[%s320 + $0xa0] sm:$0xff]
      %v379 = vld [vmem:[%s320 + $0xa8] sm:$0xff]
      %v380 = vld [vmem:[%s320 + $0xb0] sm:$0xff]
      %v381 = vld [vmem:[%s320 + $0xb8] sm:$0xff]
      %v382 = vld [vmem:[%s320 + $0xc0] sm:$0xff]
      %v383 = vld [vmem:[%s320 + $0xc8] sm:$0xff]
      %v384 = vld [vmem:[%s320 + $0xd0] sm:$0xff]
      %v385 = vld [vmem:[%s320 + $0xd8] sm:$0xff]
      %v386 = vld [vmem:[%s320 + $0xe0] sm:$0xff]
      %v387 = vld [vmem:[%s320 + $0xe8] sm:$0xff]
      %v388 = vld [vmem:[%s320 + $0xf0] sm:$0xff]
      %v389 = vld [vmem:[%s320 + $0xf8] sm:$0xff]
      %v390 = vld [vmem:[%s2] sm:$0xff]
      %v391 = vld [vmem:[%s2 + $0x8] sm:$0xff]
      %v392 = vld [vmem:[%s2 + $0x10] sm:$0xff]
      %v393 = vld [vmem:[%s2 + $0x18] sm:$0xff]
      %v394 = vld [vmem:[%s3] sm:$0x1]
      %v396 = vlaneseq
      %v397 = vshrl.u32 %v396, 7
      %v398 = vsub.s32 0, %v397
      %v399 = vrot.slane %v394, %v398
      %vm401 = vcmask 261120
      %v403 = vsel %vm401, %v326, 0
      %v406 = vsel %vm401, %v327, 0
      %v409 = vsel %vm401, %v328, 0
      %v412 = vsel %vm401, %v329, 0
      %v415 = vsel %vm401, %v330, 0
      %v418 = vsel %vm401, %v331, 0
      %v421 = vsel %vm401, %v332, 0
      %v424 = vsel %vm401, %v333, 0
      %v427 = vsel %vm401, %v334, 0
      %v430 = vsel %vm401, %v335, 0
      %v433 = vsel %vm401, %v336, 0
      %v436 = vsel %vm401, %v337, 0
      %v439 = vsel %vm401, %v338, 0
      %v442 = vsel %vm401, %v339, 0
      %v445 = vsel %vm401, %v340, 0
      %v448 = vsel %vm401, %v341, 0
      %v451 = vsel %vm401, %v342, 0
      %v454 = vsel %vm401, %v343, 0
      %v457 = vsel %vm401, %v344, 0
      %v460 = vsel %vm401, %v345, 0
      %v463 = vsel %vm401, %v346, 0
      %v466 = vsel %vm401, %v347, 0
      %v469 = vsel %vm401, %v348, 0
      %v472 = vsel %vm401, %v349, 0
      %v475 = vsel %vm401, %v350, 0
      %v478 = vsel %vm401, %v351, 0
      %v481 = vsel %vm401, %v352, 0
      %v484 = vsel %vm401, %v353, 0
      %v487 = vsel %vm401, %v354, 0
      %v490 = vsel %vm401, %v355, 0
      %v493 = vsel %vm401, %v356, 0
      %v496 = vsel %vm401, %v357, 0
      %498 = vmatprep.subr.mxu0 0.0
      %499 = vmatpush1.msra.mxu0 0.0
      %500 = vmatprep.subr.mxu0 0.0
      %501 = vmatpush1.msra.mxu0 0.0
      %502 = vmatprep.subr.mxu0 0.0
      %503 = vmatpush1.msra.mxu0 0.0
      %504 = vmatprep.subr.mxu0 0.0
      %505 = vmatpush1.msra.mxu0 0.0
      %506 = vmatprep.subr.mxu0 0.0
      %507 = vmatpush1.msra.mxu0 0.0
      %508 = vmatprep.subr.mxu0 0.0
      %509 = vmatpush1.msra.mxu0 0.0
      %510 = vmatprep.subr.mxu0 0.0
      %511 = vmatpush1.msra.mxu0 0.0
      %512 = vmatprep.subr.mxu0 0.0
      %513 = vmatpush1.msra.mxu0 0.0
      %514 = vmatprep.subr.mxu0 0.0
      %515 = vmatpush1.msra.mxu0 0.0
      %516 = vmatprep.subr.mxu0 0.0
      %517 = vmatpush1.msra.mxu0 0.0
      %518 = vmatprep.subr.mxu0 0.0
      %519 = vmatpush1.msra.mxu0 0.0
      %520 = vmatprep.subr.mxu0 0.0
      %521 = vmatpush1.msra.mxu0 0.0
      %522 = vmatprep.subr.mxu0 0.0
      %523 = vmatpush1.msra.mxu0 %v393
      %524 = vmatprep.subr.mxu0 0.0
      %525 = vmatpush1.msra.mxu0 %v392
      %526 = vmatprep.subr.mxu0 0.0
      %527 = vmatpush1.msra.mxu0 %v391
      %528 = vmatprep.subr.mxu0 0.0
      %529 = vmatpush1.msra.mxu0 %v390
      %530 = vmatprep.subr.mxu0 0.0
      %531 = vmatpush2.msra.mxu0 0.0
      %532 = vmatprep.subr.mxu0 0.0
      %533 = vmatpush2.msra.mxu0 0.0
      %534 = vmatprep.subr.mxu0 0.0
      %535 = vmatpush2.msra.mxu0 0.0
      %536 = vmatprep.subr.mxu0 0.0
      %537 = vmatpush2.msra.mxu0 0.0
      %538 = vmatprep.subr.mxu0 0.0
      %539 = vmatpush2.msra.mxu0 0.0
      %540 = vmatprep.subr.mxu0 0.0
      %541 = vmatpush2.msra.mxu0 0.0
      %542 = vmatprep.subr.mxu0 0.0
      %543 = vmatpush2.msra.mxu0 0.0
      %544 = vmatprep.subr.mxu0 0.0
      %545 = vmatpush2.msra.mxu0 0.0
      %546 = vmatprep.subr.mxu0 0.0
      %547 = vmatpush2.msra.mxu0 0.0
      %548 = vmatprep.subr.mxu0 0.0
      %549 = vmatpush2.msra.mxu0 0.0
      %550 = vmatprep.subr.mxu0 0.0
      %551 = vmatpush2.msra.mxu0 0.0
      %552 = vmatprep.subr.mxu0 0.0
      %553 = vmatpush2.msra.mxu0 0.0
      %554 = vmatprep.subr.mxu0 0.0
      %555 = vmatpush2.msra.mxu0 0.0
      %556 = vmatprep.subr.mxu0 0.0
      %557 = vmatpush2.msra.mxu0 0.0
      %558 = vmatprep.subr.mxu0 0.0
      %559 = vmatpush2.msra.mxu0 0.0
      %560 = vmatprep.subr.mxu0 0.0
      %561 = vmatpush2.msra.mxu0 0.0
      %562 = vmatprep.mubr.f32.mxu0 0.0
      %563 = vmatmul.mubr.f32.gmra.mxu0 %v403
      %v564 = vpop.f32.mrf.mxu0
      %v565 = vadd.f32 %v399, %v564
      %v566 = vpop.f32.mrf.mxu0
      %567 = vmatprep.mubr.f32.mxu0 0.0
      %568 = vmatmul.mubr.f32.gmra.mxu0 %v406
      %v569 = vpop.f32.mrf.mxu0
      %v570 = vadd.f32 %v399, %v569
      %v571 = vpop.f32.mrf.mxu0
      %572 = vmatprep.mubr.f32.mxu0 0.0
      %573 = vmatmul.mubr.f32.gmra.mxu0 %v409
      %v574 = vpop.f32.mrf.mxu0
      %v575 = vadd.f32 %v399, %v574
      %v576 = vpop.f32.mrf.mxu0
      %577 = vmatprep.mubr.f32.mxu0 0.0
      %578 = vmatmul.mubr.f32.gmra.mxu0 %v412
      %v579 = vpop.f32.mrf.mxu0
      %v580 = vadd.f32 %v399, %v579
      %v581 = vpop.f32.mrf.mxu0
      %582 = vmatprep.mubr.f32.mxu0 0.0
      %583 = vmatmul.mubr.f32.gmra.mxu0 %v415
      %v584 = vpop.f32.mrf.mxu0
      %v585 = vadd.f32 %v399, %v584
      %v586 = vpop.f32.mrf.mxu0
      %587 = vmatprep.mubr.f32.mxu0 0.0
      %588 = vmatmul.mubr.f32.gmra.mxu0 %v418
      %v589 = vpop.f32.mrf.mxu0
      %v590 = vadd.f32 %v399, %v589
      %v591 = vpop.f32.mrf.mxu0
      %592 = vmatprep.mubr.f32.mxu0 0.0
      %593 = vmatmul.mubr.f32.gmra.mxu0 %v421
      %v594 = vpop.f32.mrf.mxu0
      %v595 = vadd.f32 %v399, %v594
      %v596 = vpop.f32.mrf.mxu0
      %597 = vmatprep.mubr.f32.mxu0 0.0
      %598 = vmatmul.mubr.f32.gmra.mxu0 %v424
      %v599 = vpop.f32.mrf.mxu0
      %v600 = vadd.f32 %v399, %v599
      %v601 = vpop.f32.mrf.mxu0
      %602 = vmatprep.mubr.f32.mxu0 0.0
      %603 = vmatmul.mubr.f32.gmra.mxu0 %v427
      %v604 = vpop.f32.mrf.mxu0
      %v605 = vadd.f32 %v399, %v604
      %v606 = vpop.f32.mrf.mxu0
      %607 = vmatprep.mubr.f32.mxu0 0.0
      %608 = vmatmul.mubr.f32.gmra.mxu0 %v430
      %v609 = vpop.f32.mrf.mxu0
      %v610 = vadd.f32 %v399, %v609
      %v611 = vpop.f32.mrf.mxu0
      %612 = vmatprep.mubr.f32.mxu0 0.0
      %613 = vmatmul.mubr.f32.gmra.mxu0 %v433
      %v614 = vpop.f32.mrf.mxu0
      %v615 = vadd.f32 %v399, %v614
      %v616 = vpop.f32.mrf.mxu0
      %617 = vmatprep.mubr.f32.mxu0 0.0
      %618 = vmatmul.mubr.f32.gmra.mxu0 %v436
      %v619 = vpop.f32.mrf.mxu0
      %v620 = vadd.f32 %v399, %v619
      %v621 = vpop.f32.mrf.mxu0
      %622 = vmatprep.mubr.f32.mxu0 0.0
      %623 = vmatmul.mubr.f32.gmra.mxu0 %v439
      %v624 = vpop.f32.mrf.mxu0
      %v625 = vadd.f32 %v399, %v624
      %v626 = vpop.f32.mrf.mxu0
      %627 = vmatprep.mubr.f32.mxu0 0.0
      %628 = vmatmul.mubr.f32.gmra.mxu0 %v442
      %v629 = vpop.f32.mrf.mxu0
      %v630 = vadd.f32 %v399, %v629
      %v631 = vpop.f32.mrf.mxu0
      %632 = vmatprep.mubr.f32.mxu0 0.0
      %633 = vmatmul.mubr.f32.gmra.mxu0 %v445
      %v634 = vpop.f32.mrf.mxu0
      %v635 = vadd.f32 %v399, %v634
      %v636 = vpop.f32.mrf.mxu0
      %637 = vmatprep.mubr.f32.mxu0 0.0
      %638 = vmatmul.mubr.f32.gmra.mxu0 %v448
      %v639 = vpop.f32.mrf.mxu0
      %v640 = vadd.f32 %v399, %v639
      %v641 = vpop.f32.mrf.mxu0
      %642 = vmatprep.mubr.f32.mxu0 0.0
      %643 = vmatmul.mubr.f32.gmra.mxu0 %v451
      %v644 = vpop.f32.mrf.mxu0
      %v645 = vadd.f32 %v399, %v644
      %v646 = vpop.f32.mrf.mxu0
      %647 = vmatprep.mubr.f32.mxu0 0.0
      %648 = vmatmul.mubr.f32.gmra.mxu0 %v454
      %v649 = vpop.f32.mrf.mxu0
      %v650 = vadd.f32 %v399, %v649
      %v651 = vpop.f32.mrf.mxu0
      %652 = vmatprep.mubr.f32.mxu0 0.0
      %653 = vmatmul.mubr.f32.gmra.mxu0 %v457
      %v654 = vpop.f32.mrf.mxu0
      %v655 = vadd.f32 %v399, %v654
      %v656 = vpop.f32.mrf.mxu0
      %657 = vmatprep.mubr.f32.mxu0 0.0
      %658 = vmatmul.mubr.f32.gmra.mxu0 %v460
      %v659 = vpop.f32.mrf.mxu0
      %v660 = vadd.f32 %v399, %v659
      %v661 = vpop.f32.mrf.mxu0
      %662 = vmatprep.mubr.f32.mxu0 0.0
      %663 = vmatmul.mubr.f32.gmra.mxu0 %v463
      %v664 = vpop.f32.mrf.mxu0
      %v665 = vadd.f32 %v399, %v664
      %v666 = vpop.f32.mrf.mxu0
      %667 = vmatprep.mubr.f32.mxu0 0.0
      %668 = vmatmul.mubr.f32.gmra.mxu0 %v466
      %v669 = vpop.f32.mrf.mxu0
      %v670 = vadd.f32 %v399, %v669
      %v671 = vpop.f32.mrf.mxu0
      %672 = vmatprep.mubr.f32.mxu0 0.0
      %673 = vmatmul.mubr.f32.gmra.mxu0 %v469
      %v674 = vpop.f32.mrf.mxu0
      %v675 = vadd.f32 %v399, %v674
      %v676 = vpop.f32.mrf.mxu0
      %677 = vmatprep.mubr.f32.mxu0 0.0
      %678 = vmatmul.mubr.f32.gmra.mxu0 %v472
      %v679 = vpop.f32.mrf.mxu0
      %v680 = vadd.f32 %v399, %v679
      %v681 = vpop.f32.mrf.mxu0
      %682 = vmatprep.mubr.f32.mxu0 0.0
      %683 = vmatmul.mubr.f32.gmra.mxu0 %v475
      %v684 = vpop.f32.mrf.mxu0
      %v685 = vadd.f32 %v399, %v684
      %v686 = vpop.f32.mrf.mxu0
      %687 = vmatprep.mubr.f32.mxu0 0.0
      %688 = vmatmul.mubr.f32.gmra.mxu0 %v478
      %v689 = vpop.f32.mrf.mxu0
      %v690 = vadd.f32 %v399, %v689
      %v691 = vpop.f32.mrf.mxu0
      %692 = vmatprep.mubr.f32.mxu0 0.0
      %693 = vmatmul.mubr.f32.gmra.mxu0 %v481
      %v694 = vpop.f32.mrf.mxu0
      %v695 = vadd.f32 %v399, %v694
      %v696 = vpop.f32.mrf.mxu0
      %697 = vmatprep.mubr.f32.mxu0 0.0
      %698 = vmatmul.mubr.f32.gmra.mxu0 %v484
      %v699 = vpop.f32.mrf.mxu0
      %v700 = vadd.f32 %v399, %v699
      %v701 = vpop.f32.mrf.mxu0
      %702 = vmatprep.mubr.f32.mxu0 0.0
      %703 = vmatmul.mubr.f32.gmra.mxu0 %v487
      %v704 = vpop.f32.mrf.mxu0
      %v705 = vadd.f32 %v399, %v704
      %v706 = vpop.f32.mrf.mxu0
      %707 = vmatprep.mubr.f32.mxu0 0.0
      %708 = vmatmul.mubr.f32.gmra.mxu0 %v490
      %v709 = vpop.f32.mrf.mxu0
      %v710 = vadd.f32 %v399, %v709
      %v711 = vpop.f32.mrf.mxu0
      %712 = vmatprep.mubr.f32.mxu0 0.0
      %713 = vmatmul.mubr.f32.gmra.mxu0 %v493
      %v714 = vpop.f32.mrf.mxu0
      %v715 = vadd.f32 %v399, %v714
      %v716 = vpop.f32.mrf.mxu0
      %717 = vmatprep.mubr.f32.mxu0 0.0
      %718 = vmatmul.mubr.f32.gmra.mxu0 %v496
      %v719 = vpop.f32.mrf.mxu0
      %v720 = vadd.f32 %v399, %v719
      %v721 = vpop.f32.mrf.mxu0
      %722 = vdwg.mxu0
      %v723 = vld [vmem:[%s4] sm:$0xff]
      %v724 = vld [vmem:[%s4 + $0x8] sm:$0xff]
      %v725 = vld [vmem:[%s4 + $0x10] sm:$0xff]
      %v726 = vld [vmem:[%s4 + $0x18] sm:$0xff]
      %v727 = vld [vmem:[%s5] sm:$0x1]
      %v729 = vlaneseq
      %v730 = vshrl.u32 %v729, 7
      %v731 = vsub.s32 0, %v730
      %v732 = vrot.slane %v727, %v731
      %v735 = vsel %vm401, %v358, 0
      %v738 = vsel %vm401, %v359, 0
      %v741 = vsel %vm401, %v360, 0
      %v744 = vsel %vm401, %v361, 0
      %v747 = vsel %vm401, %v362, 0
      %v750 = vsel %vm401, %v363, 0
      %v753 = vsel %vm401, %v364, 0
      %v756 = vsel %vm401, %v365, 0
      %v759 = vsel %vm401, %v366, 0
      %v762 = vsel %vm401, %v367, 0
      %v765 = vsel %vm401, %v368, 0
      %v768 = vsel %vm401, %v369, 0
      %v771 = vsel %vm401, %v370, 0
      %v774 = vsel %vm401, %v371, 0
      %v777 = vsel %vm401, %v372, 0
      %v780 = vsel %vm401, %v373, 0
      %v783 = vsel %vm401, %v374, 0
      %v786 = vsel %vm401, %v375, 0
      %v789 = vsel %vm401, %v376, 0
      %v792 = vsel %vm401, %v377, 0
      %v795 = vsel %vm401, %v378, 0
      %v798 = vsel %vm401, %v379, 0
      %v801 = vsel %vm401, %v380, 0
      %v804 = vsel %vm401, %v381, 0
      %v807 = vsel %vm401, %v382, 0
      %v810 = vsel %vm401, %v383, 0
      %v813 = vsel %vm401, %v384, 0
      %v816 = vsel %vm401, %v385, 0
      %v819 = vsel %vm401, %v386, 0
      %v822 = vsel %vm401, %v387, 0
      %v825 = vsel %vm401, %v388, 0
      %v828 = vsel %vm401, %v389, 0
      %830 = vmatprep.subr.mxu0 0.0
      %831 = vmatpush1.msra.mxu0 0.0
      %832 = vmatprep.subr.mxu0 0.0
      %833 = vmatpush1.msra.mxu0 0.0
      %834 = vmatprep.subr.mxu0 0.0
      %835 = vmatpush1.msra.mxu0 0.0
      %836 = vmatprep.subr.mxu0 0.0
      %837 = vmatpush1.msra.mxu0 0.0
      %838 = vmatprep.subr.mxu0 0.0
      %839 = vmatpush1.msra.mxu0 0.0
      %840 = vmatprep.subr.mxu0 0.0
      %841 = vmatpush1.msra.mxu0 0.0
      %842 = vmatprep.subr.mxu0 0.0
      %843 = vmatpush1.msra.mxu0 0.0
      %844 = vmatprep.subr.mxu0 0.0
      %845 = vmatpush1.msra.mxu0 0.0
      %846 = vmatprep.subr.mxu0 0.0
      %847 = vmatpush1.msra.mxu0 0.0
      %848 = vmatprep.subr.mxu0 0.0
      %849 = vmatpush1.msra.mxu0 0.0
      %850 = vmatprep.subr.mxu0 0.0
      %851 = vmatpush1.msra.mxu0 0.0
      %852 = vmatprep.subr.mxu0 0.0
      %853 = vmatpush1.msra.mxu0 0.0
      %854 = vmatprep.subr.mxu0 0.0
      %855 = vmatpush1.msra.mxu0 %v726
      %856 = vmatprep.subr.mxu0 0.0
      %857 = vmatpush1.msra.mxu0 %v725
      %858 = vmatprep.subr.mxu0 0.0
      %859 = vmatpush1.msra.mxu0 %v724
      %860 = vmatprep.subr.mxu0 0.0
      %861 = vmatpush1.msra.mxu0 %v723
      %862 = vmatprep.subr.mxu0 0.0
      %863 = vmatpush2.msra.mxu0 0.0
      %864 = vmatprep.subr.mxu0 0.0
      %865 = vmatpush2.msra.mxu0 0.0
      %866 = vmatprep.subr.mxu0 0.0
      %867 = vmatpush2.msra.mxu0 0.0
      %868 = vmatprep.subr.mxu0 0.0
      %869 = vmatpush2.msra.mxu0 0.0
      %870 = vmatprep.subr.mxu0 0.0
      %871 = vmatpush2.msra.mxu0 0.0
      %872 = vmatprep.subr.mxu0 0.0
      %873 = vmatpush2.msra.mxu0 0.0
      %874 = vmatprep.subr.mxu0 0.0
      %875 = vmatpush2.msra.mxu0 0.0
      %876 = vmatprep.subr.mxu0 0.0
      %877 = vmatpush2.msra.mxu0 0.0
      %878 = vmatprep.subr.mxu0 0.0
      %879 = vmatpush2.msra.mxu0 0.0
      %880 = vmatprep.subr.mxu0 0.0
      %881 = vmatpush2.msra.mxu0 0.0
      %882 = vmatprep.subr.mxu0 0.0
      %883 = vmatpush2.msra.mxu0 0.0
      %884 = vmatprep.subr.mxu0 0.0
      %885 = vmatpush2.msra.mxu0 0.0
      %886 = vmatprep.subr.mxu0 0.0
      %887 = vmatpush2.msra.mxu0 0.0
      %888 = vmatprep.subr.mxu0 0.0
      %889 = vmatpush2.msra.mxu0 0.0
      %890 = vmatprep.subr.mxu0 0.0
      %891 = vmatpush2.msra.mxu0 0.0
      %892 = vmatprep.subr.mxu0 0.0
      %893 = vmatpush2.msra.mxu0 0.0
      %894 = vmatprep.mubr.f32.mxu0 0.0
      %895 = vmatmul.mubr.f32.gmra.mxu0 %v735
      %v896 = vpop.f32.mrf.mxu0
      %v897 = vadd.f32 %v732, %v896
      %v898 = vpop.f32.mrf.mxu0
      %899 = vmatprep.mubr.f32.mxu0 0.0
      %900 = vmatmul.mubr.f32.gmra.mxu0 %v738
      %v901 = vpop.f32.mrf.mxu0
      %v902 = vadd.f32 %v732, %v901
      %v903 = vpop.f32.mrf.mxu0
      %904 = vmatprep.mubr.f32.mxu0 0.0
      %905 = vmatmul.mubr.f32.gmra.mxu0 %v741
      %v906 = vpop.f32.mrf.mxu0
      %v907 = vadd.f32 %v732, %v906
      %v908 = vpop.f32.mrf.mxu0
      %909 = vmatprep.mubr.f32.mxu0 0.0
      %910 = vmatmul.mubr.f32.gmra.mxu0 %v744
      %v911 = vpop.f32.mrf.mxu0
      %v912 = vadd.f32 %v732, %v911
      %v913 = vpop.f32.mrf.mxu0
      %914 = vmatprep.mubr.f32.mxu0 0.0
      %915 = vmatmul.mubr.f32.gmra.mxu0 %v747
      %v916 = vpop.f32.mrf.mxu0
      %v917 = vadd.f32 %v732, %v916
      %v918 = vpop.f32.mrf.mxu0
      %919 = vmatprep.mubr.f32.mxu0 0.0
      %920 = vmatmul.mubr.f32.gmra.mxu0 %v750
      %v921 = vpop.f32.mrf.mxu0
      %v922 = vadd.f32 %v732, %v921
      %v923 = vpop.f32.mrf.mxu0
      %924 = vmatprep.mubr.f32.mxu0 0.0
      %925 = vmatmul.mubr.f32.gmra.mxu0 %v753
      %v926 = vpop.f32.mrf.mxu0
      %v927 = vadd.f32 %v732, %v926
      %v928 = vpop.f32.mrf.mxu0
      %929 = vmatprep.mubr.f32.mxu0 0.0
      %930 = vmatmul.mubr.f32.gmra.mxu0 %v756
      %v931 = vpop.f32.mrf.mxu0
      %v932 = vadd.f32 %v732, %v931
      %v933 = vpop.f32.mrf.mxu0
      %934 = vmatprep.mubr.f32.mxu0 0.0
      %935 = vmatmul.mubr.f32.gmra.mxu0 %v759
      %v936 = vpop.f32.mrf.mxu0
      %v937 = vadd.f32 %v732, %v936
      %v938 = vpop.f32.mrf.mxu0
      %939 = vmatprep.mubr.f32.mxu0 0.0
      %940 = vmatmul.mubr.f32.gmra.mxu0 %v762
      %v941 = vpop.f32.mrf.mxu0
      %v942 = vadd.f32 %v732, %v941
      %v943 = vpop.f32.mrf.mxu0
      %944 = vmatprep.mubr.f32.mxu0 0.0
      %945 = vmatmul.mubr.f32.gmra.mxu0 %v765
      %v946 = vpop.f32.mrf.mxu0
      %v947 = vadd.f32 %v732, %v946
      %v948 = vpop.f32.mrf.mxu0
      %949 = vmatprep.mubr.f32.mxu0 0.0
      %950 = vmatmul.mubr.f32.gmra.mxu0 %v768
      %v951 = vpop.f32.mrf.mxu0
      %v952 = vadd.f32 %v732, %v951
      %v953 = vpop.f32.mrf.mxu0
      %954 = vmatprep.mubr.f32.mxu0 0.0
      %955 = vmatmul.mubr.f32.gmra.mxu0 %v771
      %v956 = vpop.f32.mrf.mxu0
      %v957 = vadd.f32 %v732, %v956
      %v958 = vpop.f32.mrf.mxu0
      %959 = vmatprep.mubr.f32.mxu0 0.0
      %960 = vmatmul.mubr.f32.gmra.mxu0 %v774
      %v961 = vpop.f32.mrf.mxu0
      %v962 = vadd.f32 %v732, %v961
      %v963 = vpop.f32.mrf.mxu0
      %964 = vmatprep.mubr.f32.mxu0 0.0
      %965 = vmatmul.mubr.f32.gmra.mxu0 %v777
      %v966 = vpop.f32.mrf.mxu0
      %v967 = vadd.f32 %v732, %v966
      %v968 = vpop.f32.mrf.mxu0
      %969 = vmatprep.mubr.f32.mxu0 0.0
      %970 = vmatmul.mubr.f32.gmra.mxu0 %v780
      %v971 = vpop.f32.mrf.mxu0
      %v972 = vadd.f32 %v732, %v971
      %v973 = vpop.f32.mrf.mxu0
      %974 = vmatprep.mubr.f32.mxu0 0.0
      %975 = vmatmul.mubr.f32.gmra.mxu0 %v783
      %v976 = vpop.f32.mrf.mxu0
      %v977 = vadd.f32 %v732, %v976
      %v978 = vpop.f32.mrf.mxu0
      %979 = vmatprep.mubr.f32.mxu0 0.0
      %980 = vmatmul.mubr.f32.gmra.mxu0 %v786
      %v981 = vpop.f32.mrf.mxu0
      %v982 = vadd.f32 %v732, %v981
      %v983 = vpop.f32.mrf.mxu0
      %984 = vmatprep.mubr.f32.mxu0 0.0
      %985 = vmatmul.mubr.f32.gmra.mxu0 %v789
      %v986 = vpop.f32.mrf.mxu0
      %v987 = vadd.f32 %v732, %v986
      %v988 = vpop.f32.mrf.mxu0
      %989 = vmatprep.mubr.f32.mxu0 0.0
      %990 = vmatmul.mubr.f32.gmra.mxu0 %v792
      %v991 = vpop.f32.mrf.mxu0
      %v992 = vadd.f32 %v732, %v991
      %v993 = vpop.f32.mrf.mxu0
      %994 = vmatprep.mubr.f32.mxu0 0.0
      %995 = vmatmul.mubr.f32.gmra.mxu0 %v795
      %v996 = vpop.f32.mrf.mxu0
      %v997 = vadd.f32 %v732, %v996
      %v998 = vpop.f32.mrf.mxu0
      %999 = vmatprep.mubr.f32.mxu0 0.0
      %1000 = vmatmul.mubr.f32.gmra.mxu0 %v798
      %v1001 = vpop.f32.mrf.mxu0
      %v1002 = vadd.f32 %v732, %v1001
      %v1003 = vpop.f32.mrf.mxu0
      %1004 = vmatprep.mubr.f32.mxu0 0.0
      %1005 = vmatmul.mubr.f32.gmra.mxu0 %v801
      %v1006 = vpop.f32.mrf.mxu0
      %v1007 = vadd.f32 %v732, %v1006
      %v1008 = vpop.f32.mrf.mxu0
      %1009 = vmatprep.mubr.f32.mxu0 0.0
      %1010 = vmatmul.mubr.f32.gmra.mxu0 %v804
      %v1011 = vpop.f32.mrf.mxu0
      %v1012 = vadd.f32 %v732, %v1011
      %v1013 = vpop.f32.mrf.mxu0
      %1014 = vmatprep.mubr.f32.mxu0 0.0
      %1015 = vmatmul.mubr.f32.gmra.mxu0 %v807
      %v1016 = vpop.f32.mrf.mxu0
      %v1017 = vadd.f32 %v732, %v1016
      %v1018 = vpop.f32.mrf.mxu0
      %1019 = vmatprep.mubr.f32.mxu0 0.0
      %1020 = vmatmul.mubr.f32.gmra.mxu0 %v810
      %v1021 = vpop.f32.mrf.mxu0
      %v1022 = vadd.f32 %v732, %v1021
      %v1023 = vpop.f32.mrf.mxu0
      %1024 = vmatprep.mubr.f32.mxu0 0.0
      %1025 = vmatmul.mubr.f32.gmra.mxu0 %v813
      %v1026 = vpop.f32.mrf.mxu0
      %v1027 = vadd.f32 %v732, %v1026
      %v1028 = vpop.f32.mrf.mxu0
      %1029 = vmatprep.mubr.f32.mxu0 0.0
      %1030 = vmatmul.mubr.f32.gmra.mxu0 %v816
      %v1031 = vpop.f32.mrf.mxu0
      %v1032 = vadd.f32 %v732, %v1031
      %v1033 = vpop.f32.mrf.mxu0
      %1034 = vmatprep.mubr.f32.mxu0 0.0
      %1035 = vmatmul.mubr.f32.gmra.mxu0 %v819
      %v1036 = vpop.f32.mrf.mxu0
      %v1037 = vadd.f32 %v732, %v1036
      %v1038 = vpop.f32.mrf.mxu0
      %1039 = vmatprep.mubr.f32.mxu0 0.0
      %1040 = vmatmul.mubr.f32.gmra.mxu0 %v822
      %v1041 = vpop.f32.mrf.mxu0
      %v1042 = vadd.f32 %v732, %v1041
      %v1043 = vpop.f32.mrf.mxu0
      %1044 = vmatprep.mubr.f32.mxu0 0.0
      %1045 = vmatmul.mubr.f32.gmra.mxu0 %v825
      %v1046 = vpop.f32.mrf.mxu0
      %v1047 = vadd.f32 %v732, %v1046
      %v1048 = vpop.f32.mrf.mxu0
      %1049 = vmatprep.mubr.f32.mxu0 0.0
      %1050 = vmatmul.mubr.f32.gmra.mxu0 %v828
      %v1051 = vpop.f32.mrf.mxu0
      %v1052 = vadd.f32 %v732, %v1051
      %v1053 = vpop.f32.mrf.mxu0
      %1054 = vdwg.mxu0
      %v1055 = vmul.f32 %v897, 0.5
      %v1056 = vmul.f32 %v902, 0.5
      %v1057 = vmul.f32 %v907, 0.5
      %v1058 = vmul.f32 %v912, 0.5
      %v1059 = vmul.f32 %v917, 0.5
      %v1060 = vmul.f32 %v922, 0.5
      %v1061 = vmul.f32 %v927, 0.5
      %v1062 = vmul.f32 %v932, 0.5
      %v1063 = vmul.f32 %v937, 0.5
      %v1064 = vmul.f32 %v942, 0.5
      %v1065 = vmul.f32 %v947, 0.5
      %v1066 = vmul.f32 %v952, 0.5
      %v1067 = vmul.f32 %v957, 0.5
      %v1068 = vmul.f32 %v962, 0.5
      %v1069 = vmul.f32 %v967, 0.5
      %v1070 = vmul.f32 %v972, 0.5
      %v1071 = vmul.f32 %v977, 0.5
      %v1072 = vmul.f32 %v982, 0.5
      %v1073 = vmul.f32 %v987, 0.5
      %v1074 = vmul.f32 %v992, 0.5
      %v1075 = vmul.f32 %v997, 0.5
      %v1076 = vmul.f32 %v1002, 0.5
      %v1077 = vmul.f32 %v1007, 0.5
      %v1078 = vmul.f32 %v1012, 0.5
      %v1079 = vmul.f32 %v1017, 0.5
      %v1080 = vmul.f32 %v1022, 0.5
      %v1081 = vmul.f32 %v1027, 0.5
      %v1082 = vmul.f32 %v1032, 0.5
      %v1083 = vmul.f32 %v1037, 0.5
      %v1084 = vmul.f32 %v1042, 0.5
      %v1085 = vmul.f32 %v1047, 0.5
      %v1086 = vmul.f32 %v1052, 0.5
      %vm1087 = vcmask 31744
      %v1089 = vsel %vm1087, %v1055, 0
      %v1092 = vsel %vm1087, %v1056, 0
      %v1095 = vsel %vm1087, %v1057, 0
      %v1098 = vsel %vm1087, %v1058, 0
      %v1101 = vsel %vm1087, %v1059, 0
      %v1104 = vsel %vm1087, %v1060, 0
      %v1107 = vsel %vm1087, %v1061, 0
      %v1110 = vsel %vm1087, %v1062, 0
      %v1113 = vsel %vm1087, %v1063, 0
      %v1116 = vsel %vm1087, %v1064, 0
      %v1119 = vsel %vm1087, %v1065, 0
      %v1122 = vsel %vm1087, %v1066, 0
      %v1125 = vsel %vm1087, %v1067, 0
      %v1128 = vsel %vm1087, %v1068, 0
      %v1131 = vsel %vm1087, %v1069, 0
      %v1134 = vsel %vm1087, %v1070, 0
      %v1137 = vsel %vm1087, %v1071, 0
      %v1140 = vsel %vm1087, %v1072, 0
      %v1143 = vsel %vm1087, %v1073, 0
      %v1146 = vsel %vm1087, %v1074, 0
      %v1149 = vsel %vm1087, %v1075, 0
      %v1152 = vsel %vm1087, %v1076, 0
      %v1155 = vsel %vm1087, %v1077, 0
      %v1158 = vsel %vm1087, %v1078, 0
      %v1161 = vsel %vm1087, %v1079, 0
      %v1164 = vsel %vm1087, %v1080, 0
      %v1167 = vsel %vm1087, %v1081, 0
      %v1170 = vsel %vm1087, %v1082, 0
      %v1173 = vsel %vm1087, %v1083, 0
      %v1176 = vsel %vm1087, %v1084, 0
      %v1179 = vsel %vm1087, %v1085, 0
      %v1182 = vsel %vm1087, %v1086, 0
      %v1185 = vsel %vm1087, %v565, 0
      %v1188 = vsel %vm1087, %v570, 0
      %v1191 = vsel %vm1087, %v575, 0
      %v1194 = vsel %vm1087, %v580, 0
      %v1197 = vsel %vm1087, %v585, 0
      %v1200 = vsel %vm1087, %v590, 0
      %v1203 = vsel %vm1087, %v595, 0
      %v1206 = vsel %vm1087, %v600, 0
      %v1209 = vsel %vm1087, %v605, 0
      %v1212 = vsel %vm1087, %v610, 0
      %v1215 = vsel %vm1087, %v615, 0
      %v1218 = vsel %vm1087, %v620, 0
      %v1221 = vsel %vm1087, %v625, 0
      %v1224 = vsel %vm1087, %v630, 0
      %v1227 = vsel %vm1087, %v635, 0
      %v1230 = vsel %vm1087, %v640, 0
      %v1233 = vsel %vm1087, %v645, 0
      %v1236 = vsel %vm1087, %v650, 0
      %v1239 = vsel %vm1087, %v655, 0
      %v1242 = vsel %vm1087, %v660, 0
      %v1245 = vsel %vm1087, %v665, 0
      %v1248 = vsel %vm1087, %v670, 0
      %v1251 = vsel %vm1087, %v675, 0
      %v1254 = vsel %vm1087, %v680, 0
      %v1257 = vsel %vm1087, %v685, 0
      %v1260 = vsel %vm1087, %v690, 0
      %v1263 = vsel %vm1087, %v695, 0
      %v1266 = vsel %vm1087, %v700, 0
      %v1269 = vsel %vm1087, %v705, 0
      %v1272 = vsel %vm1087, %v710, 0
      %v1275 = vsel %vm1087, %v715, 0
      %v1278 = vsel %vm1087, %v720, 0
      %1280 = vmatprep.subr.mxu0 0.0
      %1281 = vmatpush1.xpose.msra.mxu0 %v1230
      %1282 = vmatprep.subr.mxu0 0.0
      %1283 = vmatpush1.xpose.msra.mxu0 %v1227
      %1284 = vmatprep.subr.mxu0 0.0
      %1285 = vmatpush1.xpose.msra.mxu0 %v1224
      %1286 = vmatprep.subr.mxu0 0.0
      %1287 = vmatpush1.xpose.msra.mxu0 %v1221
      %1288 = vmatprep.subr.mxu0 0.0
      %1289 = vmatpush1.xpose.msra.mxu0 %v1218
      %1290 = vmatprep.subr.mxu0 0.0
      %1291 = vmatpush1.xpose.msra.mxu0 %v1215
      %1292 = vmatprep.subr.mxu0 0.0
      %1293 = vmatpush1.xpose.msra.mxu0 %v1212
      %1294 = vmatprep.subr.mxu0 0.0
      %1295 = vmatpush1.xpose.msra.mxu0 %v1209
      %1296 = vmatprep.subr.mxu0 0.0
      %1297 = vmatpush1.xpose.msra.mxu0 %v1206
      %1298 = vmatprep.subr.mxu0 0.0
      %1299 = vmatpush1.xpose.msra.mxu0 %v1203
      %1300 = vmatprep.subr.mxu0 0.0
      %1301 = vmatpush1.xpose.msra.mxu0 %v1200
      %1302 = vmatprep.subr.mxu0 0.0
      %1303 = vmatpush1.xpose.msra.mxu0 %v1197
      %1304 = vmatprep.subr.mxu0 0.0
      %1305 = vmatpush1.xpose.msra.mxu0 %v1194
      %1306 = vmatprep.subr.mxu0 0.0
      %1307 = vmatpush1.xpose.msra.mxu0 %v1191
      %1308 = vmatprep.subr.mxu0 0.0
      %1309 = vmatpush1.xpose.msra.mxu0 %v1188
      %1310 = vmatprep.subr.mxu0 0.0
      %1311 = vmatpush1.xpose.msra.mxu0 %v1185
      %1312 = vmatprep.subr.mxu0 0.0
      %1313 = vmatpush2.xpose.msra.mxu0 %v1278
      %1314 = vmatprep.subr.mxu0 0.0
      %1315 = vmatpush2.xpose.msra.mxu0 %v1275
      %1316 = vmatprep.subr.mxu0 0.0
      %1317 = vmatpush2.xpose.msra.mxu0 %v1272
      %1318 = vmatprep.subr.mxu0 0.0
      %1319 = vmatpush2.xpose.msra.mxu0 %v1269
      %1320 = vmatprep.subr.mxu0 0.0
      %1321 = vmatpush2.xpose.msra.mxu0 %v1266
      %1322 = vmatprep.subr.mxu0 0.0
      %1323 = vmatpush2.xpose.msra.mxu0 %v1263
      %1324 = vmatprep.subr.mxu0 0.0
      %1325 = vmatpush2.xpose.msra.mxu0 %v1260
      %1326 = vmatprep.subr.mxu0 0.0
      %1327 = vmatpush2.xpose.msra.mxu0 %v1257
      %1328 = vmatprep.subr.mxu0 0.0
      %1329 = vmatpush2.xpose.msra.mxu0 %v1254
      %1330 = vmatprep.subr.mxu0 0.0
      %1331 = vmatpush2.xpose.msra.mxu0 %v1251
      %1332 = vmatprep.subr.mxu0 0.0
      %1333 = vmatpush2.xpose.msra.mxu0 %v1248
      %1334 = vmatprep.subr.mxu0 0.0
      %1335 = vmatpush2.xpose.msra.mxu0 %v1245
      %1336 = vmatprep.subr.mxu0 0.0
      %1337 = vmatpush2.xpose.msra.mxu0 %v1242
      %1338 = vmatprep.subr.mxu0 0.0
      %1339 = vmatpush2.xpose.msra.mxu0 %v1239
      %1340 = vmatprep.subr.mxu0 0.0
      %1341 = vmatpush2.xpose.msra.mxu0 %v1236
      %1342 = vmatprep.subr.mxu0 0.0
      %1343 = vmatpush2.xpose.msra.mxu0 %v1233
      %1344 = vmatprep.mubr.f32.mxu0 0.0
      %1345 = vmatmul.mubr.f32.gmra.mxu0 %v1089
      %v1346 = vpop.f32.mrf.mxu0
      %v1347 = vadd.f32 0.0, %v1346
      %v1348 = vpop.f32.mrf.mxu0
      %v1349 = vadd.f32 0.0, %v1348
      %1350 = vmatprep.mubr.f32.mxu0 0.0
      %1351 = vmatmul.mubr.f32.gmra.mxu0 %v1092
      %v1352 = vpop.f32.mrf.mxu0
      %v1353 = vadd.f32 0.0, %v1352
      %v1354 = vpop.f32.mrf.mxu0
      %v1355 = vadd.f32 0.0, %v1354
      %1356 = vmatprep.mubr.f32.mxu0 0.0
      %1357 = vmatmul.mubr.f32.gmra.mxu0 %v1095
      %v1358 = vpop.f32.mrf.mxu0
      %v1359 = vadd.f32 0.0, %v1358
      %v1360 = vpop.f32.mrf.mxu0
      %v1361 = vadd.f32 0.0, %v1360
      %1362 = vmatprep.mubr.f32.mxu0 0.0
      %1363 = vmatmul.mubr.f32.gmra.mxu0 %v1098
      %v1364 = vpop.f32.mrf.mxu0
      %v1365 = vadd.f32 0.0, %v1364
      %v1366 = vpop.f32.mrf.mxu0
      %v1367 = vadd.f32 0.0, %v1366
      %1368 = vmatprep.mubr.f32.mxu0 0.0
      %1369 = vmatmul.mubr.f32.gmra.mxu0 %v1101
      %v1370 = vpop.f32.mrf.mxu0
      %v1371 = vadd.f32 0.0, %v1370
      %v1372 = vpop.f32.mrf.mxu0
      %v1373 = vadd.f32 0.0, %v1372
      %1374 = vmatprep.mubr.f32.mxu0 0.0
      %1375 = vmatmul.mubr.f32.gmra.mxu0 %v1104
      %v1376 = vpop.f32.mrf.mxu0
      %v1377 = vadd.f32 0.0, %v1376
      %v1378 = vpop.f32.mrf.mxu0
      %v1379 = vadd.f32 0.0, %v1378
      %1380 = vmatprep.mubr.f32.mxu0 0.0
      %1381 = vmatmul.mubr.f32.gmra.mxu0 %v1107
      %v1382 = vpop.f32.mrf.mxu0
      %v1383 = vadd.f32 0.0, %v1382
      %v1384 = vpop.f32.mrf.mxu0
      %v1385 = vadd.f32 0.0, %v1384
      %1386 = vmatprep.mubr.f32.mxu0 0.0
      %1387 = vmatmul.mubr.f32.gmra.mxu0 %v1110
      %v1388 = vpop.f32.mrf.mxu0
      %v1389 = vadd.f32 0.0, %v1388
      %v1390 = vpop.f32.mrf.mxu0
      %v1391 = vadd.f32 0.0, %v1390
      %1392 = vmatprep.mubr.f32.mxu0 0.0
      %1393 = vmatmul.mubr.f32.gmra.mxu0 %v1113
      %v1394 = vpop.f32.mrf.mxu0
      %v1395 = vadd.f32 0.0, %v1394
      %v1396 = vpop.f32.mrf.mxu0
      %v1397 = vadd.f32 0.0, %v1396
      %1398 = vmatprep.mubr.f32.mxu0 0.0
      %1399 = vmatmul.mubr.f32.gmra.mxu0 %v1116
      %v1400 = vpop.f32.mrf.mxu0
      %v1401 = vadd.f32 0.0, %v1400
      %v1402 = vpop.f32.mrf.mxu0
      %v1403 = vadd.f32 0.0, %v1402
      %1404 = vmatprep.mubr.f32.mxu0 0.0
      %1405 = vmatmul.mubr.f32.gmra.mxu0 %v1119
      %v1406 = vpop.f32.mrf.mxu0
      %v1407 = vadd.f32 0.0, %v1406
      %v1408 = vpop.f32.mrf.mxu0
      %v1409 = vadd.f32 0.0, %v1408
      %1410 = vmatprep.mubr.f32.mxu0 0.0
      %1411 = vmatmul.mubr.f32.gmra.mxu0 %v1122
      %v1412 = vpop.f32.mrf.mxu0
      %v1413 = vadd.f32 0.0, %v1412
      %v1414 = vpop.f32.mrf.mxu0
      %v1415 = vadd.f32 0.0, %v1414
      %1416 = vmatprep.mubr.f32.mxu0 0.0
      %1417 = vmatmul.mubr.f32.gmra.mxu0 %v1125
      %v1418 = vpop.f32.mrf.mxu0
      %v1419 = vadd.f32 0.0, %v1418
      %v1420 = vpop.f32.mrf.mxu0
      %v1421 = vadd.f32 0.0, %v1420
      %1422 = vmatprep.mubr.f32.mxu0 0.0
      %1423 = vmatmul.mubr.f32.gmra.mxu0 %v1128
      %v1424 = vpop.f32.mrf.mxu0
      %v1425 = vadd.f32 0.0, %v1424
      %v1426 = vpop.f32.mrf.mxu0
      %v1427 = vadd.f32 0.0, %v1426
      %1428 = vmatprep.mubr.f32.mxu0 0.0
      %1429 = vmatmul.mubr.f32.gmra.mxu0 %v1131
      %v1430 = vpop.f32.mrf.mxu0
      %v1431 = vadd.f32 0.0, %v1430
      %v1432 = vpop.f32.mrf.mxu0
      %v1433 = vadd.f32 0.0, %v1432
      %1434 = vmatprep.mubr.f32.mxu0 0.0
      %1435 = vmatmul.mubr.f32.gmra.mxu0 %v1134
      %v1436 = vpop.f32.mrf.mxu0
      %v1437 = vadd.f32 0.0, %v1436
      %v1438 = vpop.f32.mrf.mxu0
      %v1439 = vadd.f32 0.0, %v1438
      %1440 = vmatprep.mubr.f32.mxu0 0.0
      %1441 = vmatmul.mubr.f32.gmra.mxu0 %v1137
      %v1442 = vpop.f32.mrf.mxu0
      %v1443 = vadd.f32 0.0, %v1442
      %v1444 = vpop.f32.mrf.mxu0
      %v1445 = vadd.f32 0.0, %v1444
      %1446 = vmatprep.mubr.f32.mxu0 0.0
      %1447 = vmatmul.mubr.f32.gmra.mxu0 %v1140
      %v1448 = vpop.f32.mrf.mxu0
      %v1449 = vadd.f32 0.0, %v1448
      %v1450 = vpop.f32.mrf.mxu0
      %v1451 = vadd.f32 0.0, %v1450
      %1452 = vmatprep.mubr.f32.mxu0 0.0
      %1453 = vmatmul.mubr.f32.gmra.mxu0 %v1143
      %v1454 = vpop.f32.mrf.mxu0
      %v1455 = vadd.f32 0.0, %v1454
      %v1456 = vpop.f32.mrf.mxu0
      %v1457 = vadd.f32 0.0, %v1456
      %1458 = vmatprep.mubr.f32.mxu0 0.0
      %1459 = vmatmul.mubr.f32.gmra.mxu0 %v1146
      %v1460 = vpop.f32.mrf.mxu0
      %v1461 = vadd.f32 0.0, %v1460
      %v1462 = vpop.f32.mrf.mxu0
      %v1463 = vadd.f32 0.0, %v1462
      %1464 = vmatprep.mubr.f32.mxu0 0.0
      %1465 = vmatmul.mubr.f32.gmra.mxu0 %v1149
      %v1466 = vpop.f32.mrf.mxu0
      %v1467 = vadd.f32 0.0, %v1466
      %v1468 = vpop.f32.mrf.mxu0
      %v1469 = vadd.f32 0.0, %v1468
      %1470 = vmatprep.mubr.f32.mxu0 0.0
      %1471 = vmatmul.mubr.f32.gmra.mxu0 %v1152
      %v1472 = vpop.f32.mrf.mxu0
      %v1473 = vadd.f32 0.0, %v1472
      %v1474 = vpop.f32.mrf.mxu0
      %v1475 = vadd.f32 0.0, %v1474
      %1476 = vmatprep.mubr.f32.mxu0 0.0
      %1477 = vmatmul.mubr.f32.gmra.mxu0 %v1155
      %v1478 = vpop.f32.mrf.mxu0
      %v1479 = vadd.f32 0.0, %v1478
      %v1480 = vpop.f32.mrf.mxu0
      %v1481 = vadd.f32 0.0, %v1480
      %1482 = vmatprep.mubr.f32.mxu0 0.0
      %1483 = vmatmul.mubr.f32.gmra.mxu0 %v1158
      %v1484 = vpop.f32.mrf.mxu0
      %v1485 = vadd.f32 0.0, %v1484
      %v1486 = vpop.f32.mrf.mxu0
      %v1487 = vadd.f32 0.0, %v1486
      %1488 = vmatprep.mubr.f32.mxu0 0.0
      %1489 = vmatmul.mubr.f32.gmra.mxu0 %v1161
      %v1490 = vpop.f32.mrf.mxu0
      %v1491 = vadd.f32 0.0, %v1490
      %v1492 = vpop.f32.mrf.mxu0
      %v1493 = vadd.f32 0.0, %v1492
      %1494 = vmatprep.mubr.f32.mxu0 0.0
      %1495 = vmatmul.mubr.f32.gmra.mxu0 %v1164
      %v1496 = vpop.f32.mrf.mxu0
      %v1497 = vadd.f32 0.0, %v1496
      %v1498 = vpop.f32.mrf.mxu0
      %v1499 = vadd.f32 0.0, %v1498
      %1500 = vmatprep.mubr.f32.mxu0 0.0
      %1501 = vmatmul.mubr.f32.gmra.mxu0 %v1167
      %v1502 = vpop.f32.mrf.mxu0
      %v1503 = vadd.f32 0.0, %v1502
      %v1504 = vpop.f32.mrf.mxu0
      %v1505 = vadd.f32 0.0, %v1504
      %1506 = vmatprep.mubr.f32.mxu0 0.0
      %1507 = vmatmul.mubr.f32.gmra.mxu0 %v1170
      %v1508 = vpop.f32.mrf.mxu0
      %v1509 = vadd.f32 0.0, %v1508
      %v1510 = vpop.f32.mrf.mxu0
      %v1511 = vadd.f32 0.0, %v1510
      %1512 = vmatprep.mubr.f32.mxu0 0.0
      %1513 = vmatmul.mubr.f32.gmra.mxu0 %v1173
      %v1514 = vpop.f32.mrf.mxu0
      %v1515 = vadd.f32 0.0, %v1514
      %v1516 = vpop.f32.mrf.mxu0
      %v1517 = vadd.f32 0.0, %v1516
      %1518 = vmatprep.mubr.f32.mxu0 0.0
      %1519 = vmatmul.mubr.f32.gmra.mxu0 %v1176
      %v1520 = vpop.f32.mrf.mxu0
      %v1521 = vadd.f32 0.0, %v1520
      %v1522 = vpop.f32.mrf.mxu0
      %v1523 = vadd.f32 0.0, %v1522
      %1524 = vmatprep.mubr.f32.mxu0 0.0
      %1525 = vmatmul.mubr.f32.gmra.mxu0 %v1179
      %v1526 = vpop.f32.mrf.mxu0
      %v1527 = vadd.f32 0.0, %v1526
      %v1528 = vpop.f32.mrf.mxu0
      %v1529 = vadd.f32 0.0, %v1528
      %1530 = vmatprep.mubr.f32.mxu0 0.0
      %1531 = vmatmul.mubr.f32.gmra.mxu0 %v1182
      %v1532 = vpop.f32.mrf.mxu0
      %v1533 = vadd.f32 0.0, %v1532
      %v1534 = vpop.f32.mrf.mxu0
      %v1535 = vadd.f32 0.0, %v1534
      %1536 = vdwg.mxu0
      %v1537 = vmax.f32 %v1347, %v1349
      %1538 = vmax.xlane.f32.xlu0 %v1537
      %v1539 = vpop.xlane.xlu0 %1538
      %v1540 = vmax.f32 %v1353, %v1355
      %1541 = vmax.xlane.f32.xlu0 %v1540
      %v1542 = vpop.xlane.xlu0 %1541
      %v1543 = vmax.f32 %v1359, %v1361
      %1544 = vmax.xlane.f32.xlu0 %v1543
      %v1545 = vpop.xlane.xlu0 %1544
      %v1546 = vmax.f32 %v1365, %v1367
      %1547 = vmax.xlane.f32.xlu0 %v1546
      %v1548 = vpop.xlane.xlu0 %1547
      %v1549 = vmax.f32 %v1371, %v1373
      %1550 = vmax.xlane.f32.xlu0 %v1549
      %v1551 = vpop.xlane.xlu0 %1550
      %v1552 = vmax.f32 %v1377, %v1379
      %1553 = vmax.xlane.f32.xlu0 %v1552
      %v1554 = vpop.xlane.xlu0 %1553
      %v1555 = vmax.f32 %v1383, %v1385
      %1556 = vmax.xlane.f32.xlu0 %v1555
      %v1557 = vpop.xlane.xlu0 %1556
      %v1558 = vmax.f32 %v1389, %v1391
      %1559 = vmax.xlane.f32.xlu0 %v1558
      %v1560 = vpop.xlane.xlu0 %1559
      %v1561 = vmax.f32 %v1395, %v1397
      %1562 = vmax.xlane.f32.xlu0 %v1561
      %v1563 = vpop.xlane.xlu0 %1562
      %v1564 = vmax.f32 %v1401, %v1403
      %1565 = vmax.xlane.f32.xlu0 %v1564
      %v1566 = vpop.xlane.xlu0 %1565
      %v1567 = vmax.f32 %v1407, %v1409
      %1568 = vmax.xlane.f32.xlu0 %v1567
      %v1569 = vpop.xlane.xlu0 %1568
      %v1570 = vmax.f32 %v1413, %v1415
      %1571 = vmax.xlane.f32.xlu0 %v1570
      %v1572 = vpop.xlane.xlu0 %1571
      %v1573 = vmax.f32 %v1419, %v1421
      %1574 = vmax.xlane.f32.xlu0 %v1573
      %v1575 = vpop.xlane.xlu0 %1574
      %v1576 = vmax.f32 %v1425, %v1427
      %1577 = vmax.xlane.f32.xlu0 %v1576
      %v1578 = vpop.xlane.xlu0 %1577
      %v1579 = vmax.f32 %v1431, %v1433
      %1580 = vmax.xlane.f32.xlu0 %v1579
      %v1581 = vpop.xlane.xlu0 %1580
      %v1582 = vmax.f32 %v1437, %v1439
      %1583 = vmax.xlane.f32.xlu0 %v1582
      %v1584 = vpop.xlane.xlu0 %1583
      %v1585 = vmax.f32 %v1443, %v1445
      %1586 = vmax.xlane.f32.xlu0 %v1585
      %v1587 = vpop.xlane.xlu0 %1586
      %v1588 = vmax.f32 %v1449, %v1451
      %1589 = vmax.xlane.f32.xlu0 %v1588
      %v1590 = vpop.xlane.xlu0 %1589
      %v1591 = vmax.f32 %v1455, %v1457
      %1592 = vmax.xlane.f32.xlu0 %v1591
      %v1593 = vpop.xlane.xlu0 %1592
      %v1594 = vmax.f32 %v1461, %v1463
      %1595 = vmax.xlane.f32.xlu0 %v1594
      %v1596 = vpop.xlane.xlu0 %1595
      %v1597 = vmax.f32 %v1467, %v1469
      %1598 = vmax.xlane.f32.xlu0 %v1597
      %v1599 = vpop.xlane.xlu0 %1598
      %v1600 = vmax.f32 %v1473, %v1475
      %1601 = vmax.xlane.f32.xlu0 %v1600
      %v1602 = vpop.xlane.xlu0 %1601
      %v1603 = vmax.f32 %v1479, %v1481
      %1604 = vmax.xlane.f32.xlu0 %v1603
      %v1605 = vpop.xlane.xlu0 %1604
      %v1606 = vmax.f32 %v1485, %v1487
      %1607 = vmax.xlane.f32.xlu0 %v1606
      %v1608 = vpop.xlane.xlu0 %1607
      %v1609 = vmax.f32 %v1491, %v1493
      %1610 = vmax.xlane.f32.xlu0 %v1609
      %v1611 = vpop.xlane.xlu0 %1610
      %v1612 = vmax.f32 %v1497, %v1499
      %1613 = vmax.xlane.f32.xlu0 %v1612
      %v1614 = vpop.xlane.xlu0 %1613
      %v1615 = vmax.f32 %v1503, %v1505
      %1616 = vmax.xlane.f32.xlu0 %v1615
      %v1617 = vpop.xlane.xlu0 %1616
      %v1618 = vmax.f32 %v1509, %v1511
      %1619 = vmax.xlane.f32.xlu0 %v1618
      %v1620 = vpop.xlane.xlu0 %1619
      %v1621 = vmax.f32 %v1515, %v1517
      %1622 = vmax.xlane.f32.xlu0 %v1621
      %v1623 = vpop.xlane.xlu0 %1622
      %v1624 = vmax.f32 %v1521, %v1523
      %1625 = vmax.xlane.f32.xlu0 %v1624
      %v1626 = vpop.xlane.xlu0 %1625
      %v1627 = vmax.f32 %v1527, %v1529
      %1628 = vmax.xlane.f32.xlu0 %v1627
      %v1629 = vpop.xlane.xlu0 %1628
      %v1630 = vmax.f32 %v1533, %v1535
      %1631 = vmax.xlane.f32.xlu0 %v1630
      %v1632 = vpop.xlane.xlu0 %1631
      %v1633 = vsub.f32 %v1347, %v1539
      %v1634 = vsub.f32 %v1349, %v1539
      %v1635 = vsub.f32 %v1353, %v1542
      %v1636 = vsub.f32 %v1355, %v1542
      %v1637 = vsub.f32 %v1359, %v1545
      %v1638 = vsub.f32 %v1361, %v1545
      %v1639 = vsub.f32 %v1365, %v1548
      %v1640 = vsub.f32 %v1367, %v1548
      %v1641 = vsub.f32 %v1371, %v1551
      %v1642 = vsub.f32 %v1373, %v1551
      %v1643 = vsub.f32 %v1377, %v1554
      %v1644 = vsub.f32 %v1379, %v1554
      %v1645 = vsub.f32 %v1383, %v1557
      %v1646 = vsub.f32 %v1385, %v1557
      %v1647 = vsub.f32 %v1389, %v1560
      %v1648 = vsub.f32 %v1391, %v1560
      %v1649 = vsub.f32 %v1395, %v1563
      %v1650 = vsub.f32 %v1397, %v1563
      %v1651 = vsub.f32 %v1401, %v1566
      %v1652 = vsub.f32 %v1403, %v1566
      %v1653 = vsub.f32 %v1407, %v1569
      %v1654 = vsub.f32 %v1409, %v1569
      %v1655 = vsub.f32 %v1413, %v1572
      %v1656 = vsub.f32 %v1415, %v1572
      %v1657 = vsub.f32 %v1419, %v1575
      %v1658 = vsub.f32 %v1421, %v1575
      %v1659 = vsub.f32 %v1425, %v1578
      %v1660 = vsub.f32 %v1427, %v1578
      %v1661 = vsub.f32 %v1431, %v1581
      %v1662 = vsub.f32 %v1433, %v1581
      %v1663 = vsub.f32 %v1437, %v1584
      %v1664 = vsub.f32 %v1439, %v1584
      %v1665 = vsub.f32 %v1443, %v1587
      %v1666 = vsub.f32 %v1445, %v1587
      %v1667 = vsub.f32 %v1449, %v1590
      %v1668 = vsub.f32 %v1451, %v1590
      %v1669 = vsub.f32 %v1455, %v1593
      %v1670 = vsub.f32 %v1457, %v1593
      %v1671 = vsub.f32 %v1461, %v1596
      %v1672 = vsub.f32 %v1463, %v1596
      %v1673 = vsub.f32 %v1467, %v1599
      %v1674 = vsub.f32 %v1469, %v1599
      %v1675 = vsub.f32 %v1473, %v1602
      %v1676 = vsub.f32 %v1475, %v1602
      %v1677 = vsub.f32 %v1479, %v1605
      %v1678 = vsub.f32 %v1481, %v1605
      %v1679 = vsub.f32 %v1485, %v1608
      %v1680 = vsub.f32 %v1487, %v1608
      %v1681 = vsub.f32 %v1491, %v1611
      %v1682 = vsub.f32 %v1493, %v1611
      %v1683 = vsub.f32 %v1497, %v1614
      %v1684 = vsub.f32 %v1499, %v1614
      %v1685 = vsub.f32 %v1503, %v1617
      %v1686 = vsub.f32 %v1505, %v1617
      %v1687 = vsub.f32 %v1509, %v1620
      %v1688 = vsub.f32 %v1511, %v1620
      %v1689 = vsub.f32 %v1515, %v1623
      %v1690 = vsub.f32 %v1517, %v1623
      %v1691 = vsub.f32 %v1521, %v1626
      %v1692 = vsub.f32 %v1523, %v1626
      %v1693 = vsub.f32 %v1527, %v1629
      %v1694 = vsub.f32 %v1529, %v1629
      %v1695 = vsub.f32 %v1533, %v1632
      %v1696 = vsub.f32 %v1535, %v1632
      %v1697 = vmul.f32 %v1633, 1.442695
      %v1698 = vpow.pop %v1697
      %v1699 = vmul.f32 %v1634, 1.442695
      %v1700 = vpow.pop %v1699
      %v1701 = vmul.f32 %v1635, 1.442695
      %v1702 = vpow.pop %v1701
      %v1703 = vmul.f32 %v1636, 1.442695
      %v1704 = vpow.pop %v1703
      %v1705 = vmul.f32 %v1637, 1.442695
      %v1706 = vpow.pop %v1705
      %v1707 = vmul.f32 %v1638, 1.442695
      %v1708 = vpow.pop %v1707
      %v1709 = vmul.f32 %v1639, 1.442695
      %v1710 = vpow.pop %v1709
      %v1711 = vmul.f32 %v1640, 1.442695
      %v1712 = vpow.pop %v1711
      %v1713 = vmul.f32 %v1641, 1.442695
      %v1714 = vpow.pop %v1713
      %v1715 = vmul.f32 %v1642, 1.442695
      %v1716 = vpow.pop %v1715
      %v1717 = vmul.f32 %v1643, 1.442695
      %v1718 = vpow.pop %v1717
      %v1719 = vmul.f32 %v1644, 1.442695
      %v1720 = vpow.pop %v1719
      %v1721 = vmul.f32 %v1645, 1.442695
      %v1722 = vpow.pop %v1721
      %v1723 = vmul.f32 %v1646, 1.442695
      %v1724 = vpow.pop %v1723
      %v1725 = vmul.f32 %v1647, 1.442695
      %v1726 = vpow.pop %v1725
      %v1727 = vmul.f32 %v1648, 1.442695
      %v1728 = vpow.pop %v1727
      %v1729 = vmul.f32 %v1649, 1.442695
      %v1730 = vpow.pop %v1729
      %v1731 = vmul.f32 %v1650, 1.442695
      %v1732 = vpow.pop %v1731
      %v1733 = vmul.f32 %v1651, 1.442695
      %v1734 = vpow.pop %v1733
      %v1735 = vmul.f32 %v1652, 1.442695
      %v1736 = vpow.pop %v1735
      %v1737 = vmul.f32 %v1653, 1.442695
      %v1738 = vpow.pop %v1737
      %v1739 = vmul.f32 %v1654, 1.442695
      %v1740 = vpow.pop %v1739
      %v1741 = vmul.f32 %v1655, 1.442695
      %v1742 = vpow.pop %v1741
      %v1743 = vmul.f32 %v1656, 1.442695
      %v1744 = vpow.pop %v1743
      %v1745 = vmul.f32 %v1657, 1.442695
      %v1746 = vpow.pop %v1745
      %v1747 = vmul.f32 %v1658, 1.442695
      %v1748 = vpow.pop %v1747
      %v1749 = vmul.f32 %v1659, 1.442695
      %v1750 = vpow.pop %v1749
      %v1751 = vmul.f32 %v1660, 1.442695
      %v1752 = vpow.pop %v1751
      %v1753 = vmul.f32 %v1661, 1.442695
      %v1754 = vpow.pop %v1753
      %v1755 = vmul.f32 %v1662, 1.442695
      %v1756 = vpow.pop %v1755
      %v1757 = vmul.f32 %v1663, 1.442695
      %v1758 = vpow.pop %v1757
      %v1759 = vmul.f32 %v1664, 1.442695
      %v1760 = vpow.pop %v1759
      %v1761 = vmul.f32 %v1665, 1.442695
      %v1762 = vpow.pop %v1761
      %v1763 = vmul.f32 %v1666, 1.442695
      %v1764 = vpow.pop %v1763
      %v1765 = vmul.f32 %v1667, 1.442695
      %v1766 = vpow.pop %v1765
      %v1767 = vmul.f32 %v1668, 1.442695
      %v1768 = vpow.pop %v1767
      %v1769 = vmul.f32 %v1669, 1.442695
      %v1770 = vpow.pop %v1769
      %v1771 = vmul.f32 %v1670, 1.442695
      %v1772 = vpow.pop %v1771
      %v1773 = vmul.f32 %v1671, 1.442695
      %v1774 = vpow.pop %v1773
      %v1775 = vmul.f32 %v1672, 1.442695
      %v1776 = vpow.pop %v1775
      %v1777 = vmul.f32 %v1673, 1.442695
      %v1778 = vpow.pop %v1777
      %v1779 = vmul.f32 %v1674, 1.442695
      %v1780 = vpow.pop %v1779
      %v1781 = vmul.f32 %v1675, 1.442695
      %v1782 = vpow.pop %v1781
      %v1783 = vmul.f32 %v1676, 1.442695
      %v1784 = vpow.pop %v1783
      %v1785 = vmul.f32 %v1677, 1.442695
      %v1786 = vpow.pop %v1785
      %v1787 = vmul.f32 %v1678, 1.442695
      %v1788 = vpow.pop %v1787
      %v1789 = vmul.f32 %v1679, 1.442695
      %v1790 = vpow.pop %v1789
      %v1791 = vmul.f32 %v1680, 1.442695
      %v1792 = vpow.pop %v1791
      %v1793 = vmul.f32 %v1681, 1.442695
      %v1794 = vpow.pop %v1793
      %v1795 = vmul.f32 %v1682, 1.442695
      %v1796 = vpow.pop %v1795
      %v1797 = vmul.f32 %v1683, 1.442695
      %v1798 = vpow.pop %v1797
      %v1799 = vmul.f32 %v1684, 1.442695
      %v1800 = vpow.pop %v1799
      %v1801 = vmul.f32 %v1685, 1.442695
      %v1802 = vpow.pop %v1801
      %v1803 = vmul.f32 %v1686, 1.442695
      %v1804 = vpow.pop %v1803
      %v1805 = vmul.f32 %v1687, 1.442695
      %v1806 = vpow.pop %v1805
      %v1807 = vmul.f32 %v1688, 1.442695
      %v1808 = vpow.pop %v1807
      %v1809 = vmul.f32 %v1689, 1.442695
      %v1810 = vpow.pop %v1809
      %v1811 = vmul.f32 %v1690, 1.442695
      %v1812 = vpow.pop %v1811
      %v1813 = vmul.f32 %v1691, 1.442695
      %v1814 = vpow.pop %v1813
      %v1815 = vmul.f32 %v1692, 1.442695
      %v1816 = vpow.pop %v1815
      %v1817 = vmul.f32 %v1693, 1.442695
      %v1818 = vpow.pop %v1817
      %v1819 = vmul.f32 %v1694, 1.442695
      %v1820 = vpow.pop %v1819
      %v1821 = vmul.f32 %v1695, 1.442695
      %v1822 = vpow.pop %v1821
      %v1823 = vmul.f32 %v1696, 1.442695
      %v1824 = vpow.pop %v1823
      %v1825 = vadd.f32 %v1698, %v1700
      %1826 = vadd.xlane.f32.xlu0 %v1825
      %v1827 = vpop.xlane.xlu0 %1826
      %v1828 = vadd.f32 %v1702, %v1704
      %1829 = vadd.xlane.f32.xlu0 %v1828
      %v1830 = vpop.xlane.xlu0 %1829
      %v1831 = vadd.f32 %v1706, %v1708
      %1832 = vadd.xlane.f32.xlu0 %v1831
      %v1833 = vpop.xlane.xlu0 %1832
      %v1834 = vadd.f32 %v1710, %v1712
      %1835 = vadd.xlane.f32.xlu0 %v1834
      %v1836 = vpop.xlane.xlu0 %1835
      %v1837 = vadd.f32 %v1714, %v1716
      %1838 = vadd.xlane.f32.xlu0 %v1837
      %v1839 = vpop.xlane.xlu0 %1838
      %v1840 = vadd.f32 %v1718, %v1720
      %1841 = vadd.xlane.f32.xlu0 %v1840
      %v1842 = vpop.xlane.xlu0 %1841
      %v1843 = vadd.f32 %v1722, %v1724
      %1844 = vadd.xlane.f32.xlu0 %v1843
      %v1845 = vpop.xlane.xlu0 %1844
      %v1846 = vadd.f32 %v1726, %v1728
      %1847 = vadd.xlane.f32.xlu0 %v1846
      %v1848 = vpop.xlane.xlu0 %1847
      %v1849 = vadd.f32 %v1730, %v1732
      %1850 = vadd.xlane.f32.xlu0 %v1849
      %v1851 = vpop.xlane.xlu0 %1850
      %v1852 = vadd.f32 %v1734, %v1736
      %1853 = vadd.xlane.f32.xlu0 %v1852
      %v1854 = vpop.xlane.xlu0 %1853
      %v1855 = vadd.f32 %v1738, %v1740
      %1856 = vadd.xlane.f32.xlu0 %v1855
      %v1857 = vpop.xlane.xlu0 %1856
      %v1858 = vadd.f32 %v1742, %v1744
      %1859 = vadd.xlane.f32.xlu0 %v1858
      %v1860 = vpop.xlane.xlu0 %1859
      %v1861 = vadd.f32 %v1746, %v1748
      %1862 = vadd.xlane.f32.xlu0 %v1861
      %v1863 = vpop.xlane.xlu0 %1862
      %v1864 = vadd.f32 %v1750, %v1752
      %1865 = vadd.xlane.f32.xlu0 %v1864
      %v1866 = vpop.xlane.xlu0 %1865
      %v1867 = vadd.f32 %v1754, %v1756
      %1868 = vadd.xlane.f32.xlu0 %v1867
      %v1869 = vpop.xlane.xlu0 %1868
      %v1870 = vadd.f32 %v1758, %v1760
      %1871 = vadd.xlane.f32.xlu0 %v1870
      %v1872 = vpop.xlane.xlu0 %1871
      %v1873 = vadd.f32 %v1762, %v1764
      %1874 = vadd.xlane.f32.xlu0 %v1873
      %v1875 = vpop.xlane.xlu0 %1874
      %v1876 = vadd.f32 %v1766, %v1768
      %1877 = vadd.xlane.f32.xlu0 %v1876
      %v1878 = vpop.xlane.xlu0 %1877
      %v1879 = vadd.f32 %v1770, %v1772
      %1880 = vadd.xlane.f32.xlu0 %v1879
      %v1881 = vpop.xlane.xlu0 %1880
      %v1882 = vadd.f32 %v1774, %v1776
      %1883 = vadd.xlane.f32.xlu0 %v1882
      %v1884 = vpop.xlane.xlu0 %1883
      %v1885 = vadd.f32 %v1778, %v1780
      %1886 = vadd.xlane.f32.xlu0 %v1885
      %v1887 = vpop.xlane.xlu0 %1886
      %v1888 = vadd.f32 %v1782, %v1784
      %1889 = vadd.xlane.f32.xlu0 %v1888
      %v1890 = vpop.xlane.xlu0 %1889
      %v1891 = vadd.f32 %v1786, %v1788
      %1892 = vadd.xlane.f32.xlu0 %v1891
      %v1893 = vpop.xlane.xlu0 %1892
      %v1894 = vadd.f32 %v1790, %v1792
      %1895 = vadd.xlane.f32.xlu0 %v1894
      %v1896 = vpop.xlane.xlu0 %1895
      %v1897 = vadd.f32 %v1794, %v1796
      %1898 = vadd.xlane.f32.xlu0 %v1897
      %v1899 = vpop.xlane.xlu0 %1898
      %v1900 = vadd.f32 %v1798, %v1800
      %1901 = vadd.xlane.f32.xlu0 %v1900
      %v1902 = vpop.xlane.xlu0 %1901
      %v1903 = vadd.f32 %v1802, %v1804
      %1904 = vadd.xlane.f32.xlu0 %v1903
      %v1905 = vpop.xlane.xlu0 %1904
      %v1906 = vadd.f32 %v1806, %v1808
      %1907 = vadd.xlane.f32.xlu0 %v1906
      %v1908 = vpop.xlane.xlu0 %1907
      %v1909 = vadd.f32 %v1810, %v1812
      %1910 = vadd.xlane.f32.xlu0 %v1909
      %v1911 = vpop.xlane.xlu0 %1910
      %v1912 = vadd.f32 %v1814, %v1816
      %1913 = vadd.xlane.f32.xlu0 %v1912
      %v1914 = vpop.xlane.xlu0 %1913
      %v1915 = vadd.f32 %v1818, %v1820
      %1916 = vadd.xlane.f32.xlu0 %v1915
      %v1917 = vpop.xlane.xlu0 %1916
      %v1918 = vadd.f32 %v1822, %v1824
      %1919 = vadd.xlane.f32.xlu0 %v1918
      %v1920 = vpop.xlane.xlu0 %1919
      %v1921 = vrcp.pop %v1827
      %v1922 = vrcp.pop %v1830
      %v1923 = vrcp.pop %v1833
      %v1924 = vrcp.pop %v1836
      %v1925 = vrcp.pop %v1839
      %v1926 = vrcp.pop %v1842
      %v1927 = vrcp.pop %v1845
      %v1928 = vrcp.pop %v1848
      %v1929 = vrcp.pop %v1851
      %v1930 = vrcp.pop %v1854
      %v1931 = vrcp.pop %v1857
      %v1932 = vrcp.pop %v1860
      %v1933 = vrcp.pop %v1863
      %v1934 = vrcp.pop %v1866
      %v1935 = vrcp.pop %v1869
      %v1936 = vrcp.pop %v1872
      %v1937 = vrcp.pop %v1875
      %v1938 = vrcp.pop %v1878
      %v1939 = vrcp.pop %v1881
      %v1940 = vrcp.pop %v1884
      %v1941 = vrcp.pop %v1887
      %v1942 = vrcp.pop %v1890
      %v1943 = vrcp.pop %v1893
      %v1944 = vrcp.pop %v1896
      %v1945 = vrcp.pop %v1899
      %v1946 = vrcp.pop %v1902
      %v1947 = vrcp.pop %v1905
      %v1948 = vrcp.pop %v1908
      %v1949 = vrcp.pop %v1911
      %v1950 = vrcp.pop %v1914
      %v1951 = vrcp.pop %v1917
      %v1952 = vrcp.pop %v1920
      %v1953 = vmul.f32 %v1698, %v1921
      %v1954 = vmul.f32 %v1700, %v1921
      %v1955 = vmul.f32 %v1702, %v1922
      %v1956 = vmul.f32 %v1704, %v1922
      %v1957 = vmul.f32 %v1706, %v1923
      %v1958 = vmul.f32 %v1708, %v1923
      %v1959 = vmul.f32 %v1710, %v1924
      %v1960 = vmul.f32 %v1712, %v1924
      %v1961 = vmul.f32 %v1714, %v1925
      %v1962 = vmul.f32 %v1716, %v1925
      %v1963 = vmul.f32 %v1718, %v1926
      %v1964 = vmul.f32 %v1720, %v1926
      %v1965 = vmul.f32 %v1722, %v1927
      %v1966 = vmul.f32 %v1724, %v1927
      %v1967 = vmul.f32 %v1726, %v1928
      %v1968 = vmul.f32 %v1728, %v1928
      %v1969 = vmul.f32 %v1730, %v1929
      %v1970 = vmul.f32 %v1732, %v1929
      %v1971 = vmul.f32 %v1734, %v1930
      %v1972 = vmul.f32 %v1736, %v1930
      %v1973 = vmul.f32 %v1738, %v1931
      %v1974 = vmul.f32 %v1740, %v1931
      %v1975 = vmul.f32 %v1742, %v1932
      %v1976 = vmul.f32 %v1744, %v1932
      %v1977 = vmul.f32 %v1746, %v1933
      %v1978 = vmul.f32 %v1748, %v1933
      %v1979 = vmul.f32 %v1750, %v1934
      %v1980 = vmul.f32 %v1752, %v1934
      %v1981 = vmul.f32 %v1754, %v1935
      %v1982 = vmul.f32 %v1756, %v1935
      %v1983 = vmul.f32 %v1758, %v1936
      %v1984 = vmul.f32 %v1760, %v1936
      %v1985 = vmul.f32 %v1762, %v1937
      %v1986 = vmul.f32 %v1764, %v1937
      %v1987 = vmul.f32 %v1766, %v1938
      %v1988 = vmul.f32 %v1768, %v1938
      %v1989 = vmul.f32 %v1770, %v1939
      %v1990 = vmul.f32 %v1772, %v1939
      %v1991 = vmul.f32 %v1774, %v1940
      %v1992 = vmul.f32 %v1776, %v1940
      %v1993 = vmul.f32 %v1778, %v1941
      %v1994 = vmul.f32 %v1780, %v1941
      %v1995 = vmul.f32 %v1782, %v1942
      %v1996 = vmul.f32 %v1784, %v1942
      %v1997 = vmul.f32 %v1786, %v1943
      %v1998 = vmul.f32 %v1788, %v1943
      %v1999 = vmul.f32 %v1790, %v1944
      %v2000 = vmul.f32 %v1792, %v1944
      %v2001 = vmul.f32 %v1794, %v1945
      %v2002 = vmul.f32 %v1796, %v1945
      %v2003 = vmul.f32 %v1798, %v1946
      %v2004 = vmul.f32 %v1800, %v1946
      %v2005 = vmul.f32 %v1802, %v1947
      %v2006 = vmul.f32 %v1804, %v1947
      %v2007 = vmul.f32 %v1806, %v1948
      %v2008 = vmul.f32 %v1808, %v1948
      %v2009 = vmul.f32 %v1810, %v1949
      %v2010 = vmul.f32 %v1812, %v1949
      %v2011 = vmul.f32 %v1814, %v1950
      %v2012 = vmul.f32 %v1816, %v1950
      %v2013 = vmul.f32 %v1818, %v1951
      %v2014 = vmul.f32 %v1820, %v1951
      %v2015 = vmul.f32 %v1822, %v1952
      %v2016 = vmul.f32 %v1824, %v1952
      %2017 = vrot.lane.b32.xlu0 %v565, 96
      %v2018 = vpop.permute.xlu0 %2017
      %2019 = vrot.lane.b32.xlu0 %v570, 96
      %v2020 = vpop.permute.xlu0 %2019
      %2021 = vrot.lane.b32.xlu0 %v575, 96
      %v2022 = vpop.permute.xlu0 %2021
      %2023 = vrot.lane.b32.xlu0 %v580, 96
      %v2024 = vpop.permute.xlu0 %2023
      %2025 = vrot.lane.b32.xlu0 %v585, 96
      %v2026 = vpop.permute.xlu0 %2025
      %2027 = vrot.lane.b32.xlu0 %v590, 96
      %v2028 = vpop.permute.xlu0 %2027
      %2029 = vrot.lane.b32.xlu0 %v595, 96
      %v2030 = vpop.permute.xlu0 %2029
      %2031 = vrot.lane.b32.xlu0 %v600, 96
      %v2032 = vpop.permute.xlu0 %2031
      %2033 = vrot.lane.b32.xlu0 %v605, 96
      %v2034 = vpop.permute.xlu0 %2033
      %2035 = vrot.lane.b32.xlu0 %v610, 96
      %v2036 = vpop.permute.xlu0 %2035
      %2037 = vrot.lane.b32.xlu0 %v615, 96
      %v2038 = vpop.permute.xlu0 %2037
      %2039 = vrot.lane.b32.xlu0 %v620, 96
      %v2040 = vpop.permute.xlu0 %2039
      %2041 = vrot.lane.b32.xlu0 %v625, 96
      %v2042 = vpop.permute.xlu0 %2041
      %2043 = vrot.lane.b32.xlu0 %v630, 96
      %v2044 = vpop.permute.xlu0 %2043
      %2045 = vrot.lane.b32.xlu0 %v635, 96
      %v2046 = vpop.permute.xlu0 %2045
      %2047 = vrot.lane.b32.xlu0 %v640, 96
      %v2048 = vpop.permute.xlu0 %2047
      %2049 = vrot.lane.b32.xlu0 %v645, 96
      %v2050 = vpop.permute.xlu0 %2049
      %2051 = vrot.lane.b32.xlu0 %v650, 96
      %v2052 = vpop.permute.xlu0 %2051
      %2053 = vrot.lane.b32.xlu0 %v655, 96
      %v2054 = vpop.permute.xlu0 %2053
      %2055 = vrot.lane.b32.xlu0 %v660, 96
      %v2056 = vpop.permute.xlu0 %2055
      %2057 = vrot.lane.b32.xlu0 %v665, 96
      %v2058 = vpop.permute.xlu0 %2057
      %2059 = vrot.lane.b32.xlu0 %v670, 96
      %v2060 = vpop.permute.xlu0 %2059
      %2061 = vrot.lane.b32.xlu0 %v675, 96
      %v2062 = vpop.permute.xlu0 %2061
      %2063 = vrot.lane.b32.xlu0 %v680, 96
      %v2064 = vpop.permute.xlu0 %2063
      %2065 = vrot.lane.b32.xlu0 %v685, 96
      %v2066 = vpop.permute.xlu0 %2065
      %2067 = vrot.lane.b32.xlu0 %v690, 96
      %v2068 = vpop.permute.xlu0 %2067
      %2069 = vrot.lane.b32.xlu0 %v695, 96
      %v2070 = vpop.permute.xlu0 %2069
      %2071 = vrot.lane.b32.xlu0 %v700, 96
      %v2072 = vpop.permute.xlu0 %2071
      %2073 = vrot.lane.b32.xlu0 %v705, 96
      %v2074 = vpop.permute.xlu0 %2073
      %2075 = vrot.lane.b32.xlu0 %v710, 96
      %v2076 = vpop.permute.xlu0 %2075
      %2077 = vrot.lane.b32.xlu0 %v715, 96
      %v2078 = vpop.permute.xlu0 %2077
      %2079 = vrot.lane.b32.xlu0 %v720, 96
      %v2080 = vpop.permute.xlu0 %2079
      %2113 = vmatprep.subr.mxu0 0.0
      %2114 = vmatpush1.msra.mxu0 %v2048
      %2115 = vmatprep.subr.mxu0 0.0
      %2116 = vmatpush1.msra.mxu0 %v2046
      %2117 = vmatprep.subr.mxu0 0.0
      %2118 = vmatpush1.msra.mxu0 %v2044
      %2119 = vmatprep.subr.mxu0 0.0
      %2120 = vmatpush1.msra.mxu0 %v2042
      %2121 = vmatprep.subr.mxu0 0.0
      %2122 = vmatpush1.msra.mxu0 %v2040
      %2123 = vmatprep.subr.mxu0 0.0
      %2124 = vmatpush1.msra.mxu0 %v2038
      %2125 = vmatprep.subr.mxu0 0.0
      %2126 = vmatpush1.msra.mxu0 %v2036
      %2127 = vmatprep.subr.mxu0 0.0
      %2128 = vmatpush1.msra.mxu0 %v2034
      %2129 = vmatprep.subr.mxu0 0.0
      %2130 = vmatpush1.msra.mxu0 %v2032
      %2131 = vmatprep.subr.mxu0 0.0
      %2132 = vmatpush1.msra.mxu0 %v2030
      %2133 = vmatprep.subr.mxu0 0.0
      %2134 = vmatpush1.msra.mxu0 %v2028
      %2135 = vmatprep.subr.mxu0 0.0
      %2136 = vmatpush1.msra.mxu0 %v2026
      %2137 = vmatprep.subr.mxu0 0.0
      %2138 = vmatpush1.msra.mxu0 %v2024
      %2139 = vmatprep.subr.mxu0 0.0
      %2140 = vmatpush1.msra.mxu0 %v2022
      %2141 = vmatprep.subr.mxu0 0.0
      %2142 = vmatpush1.msra.mxu0 %v2020
      %2143 = vmatprep.subr.mxu0 0.0
      %2144 = vmatpush1.msra.mxu0 %v2018
      %2145 = vmatprep.subr.mxu0 0.0
      %2146 = vmatpush2.msra.mxu0 %v2080
      %2147 = vmatprep.subr.mxu0 0.0
      %2148 = vmatpush2.msra.mxu0 %v2078
      %2149 = vmatprep.subr.mxu0 0.0
      %2150 = vmatpush2.msra.mxu0 %v2076
      %2151 = vmatprep.subr.mxu0 0.0
      %2152 = vmatpush2.msra.mxu0 %v2074
      %2153 = vmatprep.subr.mxu0 0.0
      %2154 = vmatpush2.msra.mxu0 %v2072
      %2155 = vmatprep.subr.mxu0 0.0
      %2156 = vmatpush2.msra.mxu0 %v2070
      %2157 = vmatprep.subr.mxu0 0.0
      %2158 = vmatpush2.msra.mxu0 %v2068
      %2159 = vmatprep.subr.mxu0 0.0
      %2160 = vmatpush2.msra.mxu0 %v2066
      %2161 = vmatprep.subr.mxu0 0.0
      %2162 = vmatpush2.msra.mxu0 %v2064
      %2163 = vmatprep.subr.mxu0 0.0
      %2164 = vmatpush2.msra.mxu0 %v2062
      %2165 = vmatprep.subr.mxu0 0.0
      %2166 = vmatpush2.msra.mxu0 %v2060
      %2167 = vmatprep.subr.mxu0 0.0
      %2168 = vmatpush2.msra.mxu0 %v2058
      %2169 = vmatprep.subr.mxu0 0.0
      %2170 = vmatpush2.msra.mxu0 %v2056
      %2171 = vmatprep.subr.mxu0 0.0
      %2172 = vmatpush2.msra.mxu0 %v2054
      %2173 = vmatprep.subr.mxu0 0.0
      %2174 = vmatpush2.msra.mxu0 %v2052
      %2175 = vmatprep.subr.mxu0 0.0
      %2176 = vmatpush2.msra.mxu0 %v2050
      %2177 = vmatprep.mubr.f32.mxu0 %v1954
      %2178 = vmatmul.mubr.f32.gmra.mxu0 %v1953
      %v2179 = vpop.f32.mrf.mxu0
      %v2180 = vadd.f32 0.0, %v2179
      %v2181 = vpop.f32.mrf.mxu0
      %2182 = vmatprep.mubr.f32.mxu0 %v1956
      %2183 = vmatmul.mubr.f32.gmra.mxu0 %v1955
      %v2184 = vpop.f32.mrf.mxu0
      %v2185 = vadd.f32 0.0, %v2184
      %v2186 = vpop.f32.mrf.mxu0
      %2187 = vmatprep.mubr.f32.mxu0 %v1958
      %2188 = vmatmul.mubr.f32.gmra.mxu0 %v1957
      %v2189 = vpop.f32.mrf.mxu0
      %v2190 = vadd.f32 0.0, %v2189
      %v2191 = vpop.f32.mrf.mxu0
      %2192 = vmatprep.mubr.f32.mxu0 %v1960
      %2193 = vmatmul.mubr.f32.gmra.mxu0 %v1959
      %v2194 = vpop.f32.mrf.mxu0
      %v2195 = vadd.f32 0.0, %v2194
      %v2196 = vpop.f32.mrf.mxu0
      %2197 = vmatprep.mubr.f32.mxu0 %v1962
      %2198 = vmatmul.mubr.f32.gmra.mxu0 %v1961
      %v2199 = vpop.f32.mrf.mxu0
      %v2200 = vadd.f32 0.0, %v2199
      %v2201 = vpop.f32.mrf.mxu0
      %2202 = vmatprep.mubr.f32.mxu0 %v1964
      %2203 = vmatmul.mubr.f32.gmra.mxu0 %v1963
      %v2204 = vpop.f32.mrf.mxu0
      %v2205 = vadd.f32 0.0, %v2204
      %v2206 = vpop.f32.mrf.mxu0
      %2207 = vmatprep.mubr.f32.mxu0 %v1966
      %2208 = vmatmul.mubr.f32.gmra.mxu0 %v1965
      %v2209 = vpop.f32.mrf.mxu0
      %v2210 = vadd.f32 0.0, %v2209
      %v2211 = vpop.f32.mrf.mxu0
      %2212 = vmatprep.mubr.f32.mxu0 %v1968
      %2213 = vmatmul.mubr.f32.gmra.mxu0 %v1967
      %v2214 = vpop.f32.mrf.mxu0
      %v2215 = vadd.f32 0.0, %v2214
      %v2216 = vpop.f32.mrf.mxu0
      %2217 = vmatprep.mubr.f32.mxu0 %v1970
      %2218 = vmatmul.mubr.f32.gmra.mxu0 %v1969
      %v2219 = vpop.f32.mrf.mxu0
      %v2220 = vadd.f32 0.0, %v2219
      %v2221 = vpop.f32.mrf.mxu0
      %2222 = vmatprep.mubr.f32.mxu0 %v1972
      %2223 = vmatmul.mubr.f32.gmra.mxu0 %v1971
      %v2224 = vpop.f32.mrf.mxu0
      %v2225 = vadd.f32 0.0, %v2224
      %v2226 = vpop.f32.mrf.mxu0
      %2227 = vmatprep.mubr.f32.mxu0 %v1974
      %2228 = vmatmul.mubr.f32.gmra.mxu0 %v1973
      %v2229 = vpop.f32.mrf.mxu0
      %v2230 = vadd.f32 0.0, %v2229
      %v2231 = vpop.f32.mrf.mxu0
      %2232 = vmatprep.mubr.f32.mxu0 %v1976
      %2233 = vmatmul.mubr.f32.gmra.mxu0 %v1975
      %v2234 = vpop.f32.mrf.mxu0
      %v2235 = vadd.f32 0.0, %v2234
      %v2236 = vpop.f32.mrf.mxu0
      %2237 = vmatprep.mubr.f32.mxu0 %v1978
      %2238 = vmatmul.mubr.f32.gmra.mxu0 %v1977
      %v2239 = vpop.f32.mrf.mxu0
      %v2240 = vadd.f32 0.0, %v2239
      %v2241 = vpop.f32.mrf.mxu0
      %2242 = vmatprep.mubr.f32.mxu0 %v1980
      %2243 = vmatmul.mubr.f32.gmra.mxu0 %v1979
      %v2244 = vpop.f32.mrf.mxu0
      %v2245 = vadd.f32 0.0, %v2244
      %v2246 = vpop.f32.mrf.mxu0
      %2247 = vmatprep.mubr.f32.mxu0 %v1982
      %2248 = vmatmul.mubr.f32.gmra.mxu0 %v1981
      %v2249 = vpop.f32.mrf.mxu0
      %v2250 = vadd.f32 0.0, %v2249
      %v2251 = vpop.f32.mrf.mxu0
      %2252 = vmatprep.mubr.f32.mxu0 %v1984
      %2253 = vmatmul.mubr.f32.gmra.mxu0 %v1983
      %v2254 = vpop.f32.mrf.mxu0
      %v2255 = vadd.f32 0.0, %v2254
      %v2256 = vpop.f32.mrf.mxu0
      %2257 = vmatprep.mubr.f32.mxu0 %v1986
      %2258 = vmatmul.mubr.f32.gmra.mxu0 %v1985
      %v2259 = vpop.f32.mrf.mxu0
      %v2260 = vadd.f32 0.0, %v2259
      %v2261 = vpop.f32.mrf.mxu0
      %2262 = vmatprep.mubr.f32.mxu0 %v1988
      %2263 = vmatmul.mubr.f32.gmra.mxu0 %v1987
      %v2264 = vpop.f32.mrf.mxu0
      %v2265 = vadd.f32 0.0, %v2264
      %v2266 = vpop.f32.mrf.mxu0
      %2267 = vmatprep.mubr.f32.mxu0 %v1990
      %2268 = vmatmul.mubr.f32.gmra.mxu0 %v1989
      %v2269 = vpop.f32.mrf.mxu0
      %v2270 = vadd.f32 0.0, %v2269
      %v2271 = vpop.f32.mrf.mxu0
      %2272 = vmatprep.mubr.f32.mxu0 %v1992
      %2273 = vmatmul.mubr.f32.gmra.mxu0 %v1991
      %v2274 = vpop.f32.mrf.mxu0
      %v2275 = vadd.f32 0.0, %v2274
      %v2276 = vpop.f32.mrf.mxu0
      %2277 = vmatprep.mubr.f32.mxu0 %v1994
      %2278 = vmatmul.mubr.f32.gmra.mxu0 %v1993
      %v2279 = vpop.f32.mrf.mxu0
      %v2280 = vadd.f32 0.0, %v2279
      %v2281 = vpop.f32.mrf.mxu0
      %2282 = vmatprep.mubr.f32.mxu0 %v1996
      %2283 = vmatmul.mubr.f32.gmra.mxu0 %v1995
      %v2284 = vpop.f32.mrf.mxu0
      %v2285 = vadd.f32 0.0, %v2284
      %v2286 = vpop.f32.mrf.mxu0
      %2287 = vmatprep.mubr.f32.mxu0 %v1998
      %2288 = vmatmul.mubr.f32.gmra.mxu0 %v1997
      %v2289 = vpop.f32.mrf.mxu0
      %v2290 = vadd.f32 0.0, %v2289
      %v2291 = vpop.f32.mrf.mxu0
      %2292 = vmatprep.mubr.f32.mxu0 %v2000
      %2293 = vmatmul.mubr.f32.gmra.mxu0 %v1999
      %v2294 = vpop.f32.mrf.mxu0
      %v2295 = vadd.f32 0.0, %v2294
      %v2296 = vpop.f32.mrf.mxu0
      %2297 = vmatprep.mubr.f32.mxu0 %v2002
      %2298 = vmatmul.mubr.f32.gmra.mxu0 %v2001
      %v2299 = vpop.f32.mrf.mxu0
      %v2300 = vadd.f32 0.0, %v2299
      %v2301 = vpop.f32.mrf.mxu0
      %2302 = vmatprep.mubr.f32.mxu0 %v2004
      %2303 = vmatmul.mubr.f32.gmra.mxu0 %v2003
      %v2304 = vpop.f32.mrf.mxu0
      %v2305 = vadd.f32 0.0, %v2304
      %v2306 = vpop.f32.mrf.mxu0
      %2307 = vmatprep.mubr.f32.mxu0 %v2006
      %2308 = vmatmul.mubr.f32.gmra.mxu0 %v2005
      %v2309 = vpop.f32.mrf.mxu0
      %v2310 = vadd.f32 0.0, %v2309
      %v2311 = vpop.f32.mrf.mxu0
      %2312 = vmatprep.mubr.f32.mxu0 %v2008
      %2313 = vmatmul.mubr.f32.gmra.mxu0 %v2007
      %v2314 = vpop.f32.mrf.mxu0
      %v2315 = vadd.f32 0.0, %v2314
      %v2316 = vpop.f32.mrf.mxu0
      %2317 = vmatprep.mubr.f32.mxu0 %v2010
      %2318 = vmatmul.mubr.f32.gmra.mxu0 %v2009
      %v2319 = vpop.f32.mrf.mxu0
      %v2320 = vadd.f32 0.0, %v2319
      %v2321 = vpop.f32.mrf.mxu0
      %2322 = vmatprep.mubr.f32.mxu0 %v2012
      %2323 = vmatmul.mubr.f32.gmra.mxu0 %v2011
      %v2324 = vpop.f32.mrf.mxu0
      %v2325 = vadd.f32 0.0, %v2324
      %v2326 = vpop.f32.mrf.mxu0
      %2327 = vmatprep.mubr.f32.mxu0 %v2014
      %2328 = vmatmul.mubr.f32.gmra.mxu0 %v2013
      %v2329 = vpop.f32.mrf.mxu0
      %v2330 = vadd.f32 0.0, %v2329
      %v2331 = vpop.f32.mrf.mxu0
      %2332 = vmatprep.mubr.f32.mxu0 %v2016
      %2333 = vmatmul.mubr.f32.gmra.mxu0 %v2015
      %v2334 = vpop.f32.mrf.mxu0
      %v2335 = vadd.f32 0.0, %v2334
      %v2336 = vpop.f32.mrf.mxu0
      %2337 = vdwg.mxu0
      %2338 = vrot.lane.b32.xlu0 %v1055, 124
      %v2339 = vpop.permute.xlu0 %2338
      %2340 = vrot.lane.b32.xlu0 %v1056, 124
      %v2341 = vpop.permute.xlu0 %2340
      %2342 = vrot.lane.b32.xlu0 %v1057, 124
      %v2343 = vpop.permute.xlu0 %2342
      %2344 = vrot.lane.b32.xlu0 %v1058, 124
      %v2345 = vpop.permute.xlu0 %2344
      %2346 = vrot.lane.b32.xlu0 %v1059, 124
      %v2347 = vpop.permute.xlu0 %2346
      %2348 = vrot.lane.b32.xlu0 %v1060, 124
      %v2349 = vpop.permute.xlu0 %2348
      %2350 = vrot.lane.b32.xlu0 %v1061, 124
      %v2351 = vpop.permute.xlu0 %2350
      %2352 = vrot.lane.b32.xlu0 %v1062, 124
      %v2353 = vpop.permute.xlu0 %2352
      %2354 = vrot.lane.b32.xlu0 %v1063, 124
      %v2355 = vpop.permute.xlu0 %2354
      %2356 = vrot.lane.b32.xlu0 %v1064, 124
      %v2357 = vpop.permute.xlu0 %2356
      %2358 = vrot.lane.b32.xlu0 %v1065, 124
      %v2359 = vpop.permute.xlu0 %2358
      %2360 = vrot.lane.b32.xlu0 %v1066, 124
      %v2361 = vpop.permute.xlu0 %2360
      %2362 = vrot.lane.b32.xlu0 %v1067, 124
      %v2363 = vpop.permute.xlu0 %2362
      %2364 = vrot.lane.b32.xlu0 %v1068, 124
      %v2365 = vpop.permute.xlu0 %2364
      %2366 = vrot.lane.b32.xlu0 %v1069, 124
      %v2367 = vpop.permute.xlu0 %2366
      %2368 = vrot.lane.b32.xlu0 %v1070, 124
      %v2369 = vpop.permute.xlu0 %2368
      %2370 = vrot.lane.b32.xlu0 %v1071, 124
      %v2371 = vpop.permute.xlu0 %2370
      %2372 = vrot.lane.b32.xlu0 %v1072, 124
      %v2373 = vpop.permute.xlu0 %2372
      %2374 = vrot.lane.b32.xlu0 %v1073, 124
      %v2375 = vpop.permute.xlu0 %2374
      %2376 = vrot.lane.b32.xlu0 %v1074, 124
      %v2377 = vpop.permute.xlu0 %2376
      %2378 = vrot.lane.b32.xlu0 %v1075, 124
      %v2379 = vpop.permute.xlu0 %2378
      %2380 = vrot.lane.b32.xlu0 %v1076, 124
      %v2381 = vpop.permute.xlu0 %2380
      %2382 = vrot.lane.b32.xlu0 %v1077, 124
      %v2383 = vpop.permute.xlu0 %2382
      %2384 = vrot.lane.b32.xlu0 %v1078, 124
      %v2385 = vpop.permute.xlu0 %2384
      %2386 = vrot.lane.b32.xlu0 %v1079, 124
      %v2387 = vpop.permute.xlu0 %2386
      %2388 = vrot.lane.b32.xlu0 %v1080, 124
      %v2389 = vpop.permute.xlu0 %2388
      %2390 = vrot.lane.b32.xlu0 %v1081, 124
      %v2391 = vpop.permute.xlu0 %2390
      %2392 = vrot.lane.b32.xlu0 %v1082, 124
      %v2393 = vpop.permute.xlu0 %2392
      %2394 = vrot.lane.b32.xlu0 %v1083, 124
      %v2395 = vpop.permute.xlu0 %2394
      %2396 = vrot.lane.b32.xlu0 %v1084, 124
      %v2397 = vpop.permute.xlu0 %2396
      %2398 = vrot.lane.b32.xlu0 %v1085, 124
      %v2399 = vpop.permute.xlu0 %2398
      %2400 = vrot.lane.b32.xlu0 %v1086, 124
      %v2401 = vpop.permute.xlu0 %2400
      %2402 = vrot.lane.b32.xlu0 %v565, 124
      %v2403 = vpop.permute.xlu0 %2402
      %2404 = vrot.lane.b32.xlu0 %v570, 124
      %v2405 = vpop.permute.xlu0 %2404
      %2406 = vrot.lane.b32.xlu0 %v575, 124
      %v2407 = vpop.permute.xlu0 %2406
      %2408 = vrot.lane.b32.xlu0 %v580, 124
      %v2409 = vpop.permute.xlu0 %2408
      %2410 = vrot.lane.b32.xlu0 %v585, 124
      %v2411 = vpop.permute.xlu0 %2410
      %2412 = vrot.lane.b32.xlu0 %v590, 124
      %v2413 = vpop.permute.xlu0 %2412
      %2414 = vrot.lane.b32.xlu0 %v595, 124
      %v2415 = vpop.permute.xlu0 %2414
      %2416 = vrot.lane.b32.xlu0 %v600, 124
      %v2417 = vpop.permute.xlu0 %2416
      %2418 = vrot.lane.b32.xlu0 %v605, 124
      %v2419 = vpop.permute.xlu0 %2418
      %2420 = vrot.lane.b32.xlu0 %v610, 124
      %v2421 = vpop.permute.xlu0 %2420
      %2422 = vrot.lane.b32.xlu0 %v615, 124
      %v2423 = vpop.permute.xlu0 %2422
      %2424 = vrot.lane.b32.xlu0 %v620, 124
      %v2425 = vpop.permute.xlu0 %2424
      %2426 = vrot.lane.b32.xlu0 %v625, 124
      %v2427 = vpop.permute.xlu0 %2426
      %2428 = vrot.lane.b32.xlu0 %v630, 124
      %v2429 = vpop.permute.xlu0 %2428
      %2430 = vrot.lane.b32.xlu0 %v635, 124
      %v2431 = vpop.permute.xlu0 %2430
      %2432 = vrot.lane.b32.xlu0 %v640, 124
      %v2433 = vpop.permute.xlu0 %2432
      %2434 = vrot.lane.b32.xlu0 %v645, 124
      %v2435 = vpop.permute.xlu0 %2434
      %2436 = vrot.lane.b32.xlu0 %v650, 124
      %v2437 = vpop.permute.xlu0 %2436
      %2438 = vrot.lane.b32.xlu0 %v655, 124
      %v2439 = vpop.permute.xlu0 %2438
      %2440 = vrot.lane.b32.xlu0 %v660, 124
      %v2441 = vpop.permute.xlu0 %2440
      %2442 = vrot.lane.b32.xlu0 %v665, 124
      %v2443 = vpop.permute.xlu0 %2442
      %2444 = vrot.lane.b32.xlu0 %v670, 124
      %v2445 = vpop.permute.xlu0 %2444
      %2446 = vrot.lane.b32.xlu0 %v675, 124
      %v2447 = vpop.permute.xlu0 %2446
      %2448 = vrot.lane.b32.xlu0 %v680, 124
      %v2449 = vpop.permute.xlu0 %2448
      %2450 = vrot.lane.b32.xlu0 %v685, 124
      %v2451 = vpop.permute.xlu0 %2450
      %2452 = vrot.lane.b32.xlu0 %v690, 124
      %v2453 = vpop.permute.xlu0 %2452
      %2454 = vrot.lane.b32.xlu0 %v695, 124
      %v2455 = vpop.permute.xlu0 %2454
      %2456 = vrot.lane.b32.xlu0 %v700, 124
      %v2457 = vpop.permute.xlu0 %2456
      %2458 = vrot.lane.b32.xlu0 %v705, 124
      %v2459 = vpop.permute.xlu0 %2458
      %2460 = vrot.lane.b32.xlu0 %v710, 124
      %v2461 = vpop.permute.xlu0 %2460
      %2462 = vrot.lane.b32.xlu0 %v715, 124
      %v2463 = vpop.permute.xlu0 %2462
      %2464 = vrot.lane.b32.xlu0 %v720, 124
      %v2465 = vpop.permute.xlu0 %2464
      %v2466 = vsel %vm1087, %v2339, 0
      %v2468 = vsel %vm1087, %v2341, 0
      %v2470 = vsel %vm1087, %v2343, 0
      %v2472 = vsel %vm1087, %v2345, 0
      %v2474 = vsel %vm1087, %v2347, 0
      %v2476 = vsel %vm1087, %v2349, 0
      %v2478 = vsel %vm1087, %v2351, 0
      %v2480 = vsel %vm1087, %v2353, 0
      %v2482 = vsel %vm1087, %v2355, 0
      %v2484 = vsel %vm1087, %v2357, 0
      %v2486 = vsel %vm1087, %v2359, 0
      %v2488 = vsel %vm1087, %v2361, 0
      %v2490 = vsel %vm1087, %v2363, 0
      %v2492 = vsel %vm1087, %v2365, 0
      %v2494 = vsel %vm1087, %v2367, 0
      %v2496 = vsel %vm1087, %v2369, 0
      %v2498 = vsel %vm1087, %v2371, 0
      %v2500 = vsel %vm1087, %v2373, 0
      %v2502 = vsel %vm1087, %v2375, 0
      %v2504 = vsel %vm1087, %v2377, 0
      %v2506 = vsel %vm1087, %v2379, 0
      %v2508 = vsel %vm1087, %v2381, 0
      %v2510 = vsel %vm1087, %v2383, 0
      %v2512 = vsel %vm1087, %v2385, 0
      %v2514 = vsel %vm1087, %v2387, 0
      %v2516 = vsel %vm1087, %v2389, 0
      %v2518 = vsel %vm1087, %v2391, 0
      %v2520 = vsel %vm1087, %v2393, 0
      %v2522 = vsel %vm1087, %v2395, 0
      %v2524 = vsel %vm1087, %v2397, 0
      %v2526 = vsel %vm1087, %v2399, 0
      %v2528 = vsel %vm1087, %v2401, 0
      %v2530 = vsel %vm1087, %v2403, 0
      %v2532 = vsel %vm1087, %v2405, 0
      %v2534 = vsel %vm1087, %v2407, 0
      %v2536 = vsel %vm1087, %v2409, 0
      %v2538 = vsel %vm1087, %v2411, 0
      %v2540 = vsel %vm1087, %v2413, 0
      %v2542 = vsel %vm1087, %v2415, 0
      %v2544 = vsel %vm1087, %v2417, 0
      %v2546 = vsel %vm1087, %v2419, 0
      %v2548 = vsel %vm1087, %v2421, 0
      %v2550 = vsel %vm1087, %v2423, 0
      %v2552 = vsel %vm1087, %v2425, 0
      %v2554 = vsel %vm1087, %v2427, 0
      %v2556 = vsel %vm1087, %v2429, 0
      %v2558 = vsel %vm1087, %v2431, 0
      %v2560 = vsel %vm1087, %v2433, 0
      %v2562 = vsel %vm1087, %v2435, 0
      %v2564 = vsel %vm1087, %v2437, 0
      %v2566 = vsel %vm1087, %v2439, 0
      %v2568 = vsel %vm1087, %v2441, 0
      %v2570 = vsel %vm1087, %v2443, 0
      %v2572 = vsel %vm1087, %v2445, 0
      %v2574 = vsel %vm1087, %v2447, 0
      %v2576 = vsel %vm1087, %v2449, 0
      %v2578 = vsel %vm1087, %v2451, 0
      %v2580 = vsel %vm1087, %v2453, 0
      %v2582 = vsel %vm1087, %v2455, 0
      %v2584 = vsel %vm1087, %v2457, 0
      %v2586 = vsel %vm1087, %v2459, 0
      %v2588 = vsel %vm1087, %v2461, 0
      %v2590 = vsel %vm1087, %v2463, 0
      %v2592 = vsel %vm1087, %v2465, 0
      %2594 = vmatprep.subr.mxu0 0.0
      %2595 = vmatpush1.xpose.msra.mxu0 %v2560
      %2596 = vmatprep.subr.mxu0 0.0
      %2597 = vmatpush1.xpose.msra.mxu0 %v2558
      %2598 = vmatprep.subr.mxu0 0.0
      %2599 = vmatpush1.xpose.msra.mxu0 %v2556
      %2600 = vmatprep.subr.mxu0 0.0
      %2601 = vmatpush1.xpose.msra.mxu0 %v2554
      %2602 = vmatprep.subr.mxu0 0.0
      %2603 = vmatpush1.xpose.msra.mxu0 %v2552
      %2604 = vmatprep.subr.mxu0 0.0
      %2605 = vmatpush1.xpose.msra.mxu0 %v2550
      %2606 = vmatprep.subr.mxu0 0.0
      %2607 = vmatpush1.xpose.msra.mxu0 %v2548
      %2608 = vmatprep.subr.mxu0 0.0
      %2609 = vmatpush1.xpose.msra.mxu0 %v2546
      %2610 = vmatprep.subr.mxu0 0.0
      %2611 = vmatpush1.xpose.msra.mxu0 %v2544
      %2612 = vmatprep.subr.mxu0 0.0
      %2613 = vmatpush1.xpose.msra.mxu0 %v2542
      %2614 = vmatprep.subr.mxu0 0.0
      %2615 = vmatpush1.xpose.msra.mxu0 %v2540
      %2616 = vmatprep.subr.mxu0 0.0
      %2617 = vmatpush1.xpose.msra.mxu0 %v2538
      %2618 = vmatprep.subr.mxu0 0.0
      %2619 = vmatpush1.xpose.msra.mxu0 %v2536
      %2620 = vmatprep.subr.mxu0 0.0
      %2621 = vmatpush1.xpose.msra.mxu0 %v2534
      %2622 = vmatprep.subr.mxu0 0.0
      %2623 = vmatpush1.xpose.msra.mxu0 %v2532
      %2624 = vmatprep.subr.mxu0 0.0
      %2625 = vmatpush1.xpose.msra.mxu0 %v2530
      %2626 = vmatprep.subr.mxu0 0.0
      %2627 = vmatpush2.xpose.msra.mxu0 %v2592
      %2628 = vmatprep.subr.mxu0 0.0
      %2629 = vmatpush2.xpose.msra.mxu0 %v2590
      %2630 = vmatprep.subr.mxu0 0.0
      %2631 = vmatpush2.xpose.msra.mxu0 %v2588
      %2632 = vmatprep.subr.mxu0 0.0
      %2633 = vmatpush2.xpose.msra.mxu0 %v2586
      %2634 = vmatprep.subr.mxu0 0.0
      %2635 = vmatpush2.xpose.msra.mxu0 %v2584
      %2636 = vmatprep.subr.mxu0 0.0
      %2637 = vmatpush2.xpose.msra.mxu0 %v2582
      %2638 = vmatprep.subr.mxu0 0.0
      %2639 = vmatpush2.xpose.msra.mxu0 %v2580
      %2640 = vmatprep.subr.mxu0 0.0
      %2641 = vmatpush2.xpose.msra.mxu0 %v2578
      %2642 = vmatprep.subr.mxu0 0.0
      %2643 = vmatpush2.xpose.msra.mxu0 %v2576
      %2644 = vmatprep.subr.mxu0 0.0
      %2645 = vmatpush2.xpose.msra.mxu0 %v2574
      %2646 = vmatprep.subr.mxu0 0.0
      %2647 = vmatpush2.xpose.msra.mxu0 %v2572
      %2648 = vmatprep.subr.mxu0 0.0
      %2649 = vmatpush2.xpose.msra.mxu0 %v2570
      %2650 = vmatprep.subr.mxu0 0.0
      %2651 = vmatpush2.xpose.msra.mxu0 %v2568
      %2652 = vmatprep.subr.mxu0 0.0
      %2653 = vmatpush2.xpose.msra.mxu0 %v2566
      %2654 = vmatprep.subr.mxu0 0.0
      %2655 = vmatpush2.xpose.msra.mxu0 %v2564
      %2656 = vmatprep.subr.mxu0 0.0
      %2657 = vmatpush2.xpose.msra.mxu0 %v2562
      %2658 = vmatprep.mubr.f32.mxu0 0.0
      %2659 = vmatmul.mubr.f32.gmra.mxu0 %v2466
      %v2660 = vpop.f32.mrf.mxu0
      %v2661 = vadd.f32 0.0, %v2660
      %v2662 = vpop.f32.mrf.mxu0
      %v2663 = vadd.f32 0.0, %v2662
      %2664 = vmatprep.mubr.f32.mxu0 0.0
      %2665 = vmatmul.mubr.f32.gmra.mxu0 %v2468
      %v2666 = vpop.f32.mrf.mxu0
      %v2667 = vadd.f32 0.0, %v2666
      %v2668 = vpop.f32.mrf.mxu0
      %v2669 = vadd.f32 0.0, %v2668
      %2670 = vmatprep.mubr.f32.mxu0 0.0
      %2671 = vmatmul.mubr.f32.gmra.mxu0 %v2470
      %v2672 = vpop.f32.mrf.mxu0
      %v2673 = vadd.f32 0.0, %v2672
      %v2674 = vpop.f32.mrf.mxu0
      %v2675 = vadd.f32 0.0, %v2674
      %2676 = vmatprep.mubr.f32.mxu0 0.0
      %2677 = vmatmul.mubr.f32.gmra.mxu0 %v2472
      %v2678 = vpop.f32.mrf.mxu0
      %v2679 = vadd.f32 0.0, %v2678
      %v2680 = vpop.f32.mrf.mxu0
      %v2681 = vadd.f32 0.0, %v2680
      %2682 = vmatprep.mubr.f32.mxu0 0.0
      %2683 = vmatmul.mubr.f32.gmra.mxu0 %v2474
      %v2684 = vpop.f32.mrf.mxu0
      %v2685 = vadd.f32 0.0, %v2684
      %v2686 = vpop.f32.mrf.mxu0
      %v2687 = vadd.f32 0.0, %v2686
      %2688 = vmatprep.mubr.f32.mxu0 0.0
      %2689 = vmatmul.mubr.f32.gmra.mxu0 %v2476
      %v2690 = vpop.f32.mrf.mxu0
      %v2691 = vadd.f32 0.0, %v2690
      %v2692 = vpop.f32.mrf.mxu0
      %v2693 = vadd.f32 0.0, %v2692
      %2694 = vmatprep.mubr.f32.mxu0 0.0
      %2695 = vmatmul.mubr.f32.gmra.mxu0 %v2478
      %v2696 = vpop.f32.mrf.mxu0
      %v2697 = vadd.f32 0.0, %v2696
      %v2698 = vpop.f32.mrf.mxu0
      %v2699 = vadd.f32 0.0, %v2698
      %2700 = vmatprep.mubr.f32.mxu0 0.0
      %2701 = vmatmul.mubr.f32.gmra.mxu0 %v2480
      %v2702 = vpop.f32.mrf.mxu0
      %v2703 = vadd.f32 0.0, %v2702
      %v2704 = vpop.f32.mrf.mxu0
      %v2705 = vadd.f32 0.0, %v2704
      %2706 = vmatprep.mubr.f32.mxu0 0.0
      %2707 = vmatmul.mubr.f32.gmra.mxu0 %v2482
      %v2708 = vpop.f32.mrf.mxu0
      %v2709 = vadd.f32 0.0, %v2708
      %v2710 = vpop.f32.mrf.mxu0
      %v2711 = vadd.f32 0.0, %v2710
      %2712 = vmatprep.mubr.f32.mxu0 0.0
      %2713 = vmatmul.mubr.f32.gmra.mxu0 %v2484
      %v2714 = vpop.f32.mrf.mxu0
      %v2715 = vadd.f32 0.0, %v2714
      %v2716 = vpop.f32.mrf.mxu0
      %v2717 = vadd.f32 0.0, %v2716
      %2718 = vmatprep.mubr.f32.mxu0 0.0
      %2719 = vmatmul.mubr.f32.gmra.mxu0 %v2486
      %v2720 = vpop.f32.mrf.mxu0
      %v2721 = vadd.f32 0.0, %v2720
      %v2722 = vpop.f32.mrf.mxu0
      %v2723 = vadd.f32 0.0, %v2722
      %2724 = vmatprep.mubr.f32.mxu0 0.0
      %2725 = vmatmul.mubr.f32.gmra.mxu0 %v2488
      %v2726 = vpop.f32.mrf.mxu0
      %v2727 = vadd.f32 0.0, %v2726
      %v2728 = vpop.f32.mrf.mxu0
      %v2729 = vadd.f32 0.0, %v2728
      %2730 = vmatprep.mubr.f32.mxu0 0.0
      %2731 = vmatmul.mubr.f32.gmra.mxu0 %v2490
      %v2732 = vpop.f32.mrf.mxu0
      %v2733 = vadd.f32 0.0, %v2732
      %v2734 = vpop.f32.mrf.mxu0
      %v2735 = vadd.f32 0.0, %v2734
      %2736 = vmatprep.mubr.f32.mxu0 0.0
      %2737 = vmatmul.mubr.f32.gmra.mxu0 %v2492
      %v2738 = vpop.f32.mrf.mxu0
      %v2739 = vadd.f32 0.0, %v2738
      %v2740 = vpop.f32.mrf.mxu0
      %v2741 = vadd.f32 0.0, %v2740
      %2742 = vmatprep.mubr.f32.mxu0 0.0
      %2743 = vmatmul.mubr.f32.gmra.mxu0 %v2494
      %v2744 = vpop.f32.mrf.mxu0
      %v2745 = vadd.f32 0.0, %v2744
      %v2746 = vpop.f32.mrf.mxu0
      %v2747 = vadd.f32 0.0, %v2746
      %2748 = vmatprep.mubr.f32.mxu0 0.0
      %2749 = vmatmul.mubr.f32.gmra.mxu0 %v2496
      %v2750 = vpop.f32.mrf.mxu0
      %v2751 = vadd.f32 0.0, %v2750
      %v2752 = vpop.f32.mrf.mxu0
      %v2753 = vadd.f32 0.0, %v2752
      %2754 = vmatprep.mubr.f32.mxu0 0.0
      %2755 = vmatmul.mubr.f32.gmra.mxu0 %v2498
      %v2756 = vpop.f32.mrf.mxu0
      %v2757 = vadd.f32 0.0, %v2756
      %v2758 = vpop.f32.mrf.mxu0
      %v2759 = vadd.f32 0.0, %v2758
      %2760 = vmatprep.mubr.f32.mxu0 0.0
      %2761 = vmatmul.mubr.f32.gmra.mxu0 %v2500
      %v2762 = vpop.f32.mrf.mxu0
      %v2763 = vadd.f32 0.0, %v2762
      %v2764 = vpop.f32.mrf.mxu0
      %v2765 = vadd.f32 0.0, %v2764
      %2766 = vmatprep.mubr.f32.mxu0 0.0
      %2767 = vmatmul.mubr.f32.gmra.mxu0 %v2502
      %v2768 = vpop.f32.mrf.mxu0
      %v2769 = vadd.f32 0.0, %v2768
      %v2770 = vpop.f32.mrf.mxu0
      %v2771 = vadd.f32 0.0, %v2770
      %2772 = vmatprep.mubr.f32.mxu0 0.0
      %2773 = vmatmul.mubr.f32.gmra.mxu0 %v2504
      %v2774 = vpop.f32.mrf.mxu0
      %v2775 = vadd.f32 0.0, %v2774
      %v2776 = vpop.f32.mrf.mxu0
      %v2777 = vadd.f32 0.0, %v2776
      %2778 = vmatprep.mubr.f32.mxu0 0.0
      %2779 = vmatmul.mubr.f32.gmra.mxu0 %v2506
      %v2780 = vpop.f32.mrf.mxu0
      %v2781 = vadd.f32 0.0, %v2780
      %v2782 = vpop.f32.mrf.mxu0
      %v2783 = vadd.f32 0.0, %v2782
      %2784 = vmatprep.mubr.f32.mxu0 0.0
      %2785 = vmatmul.mubr.f32.gmra.mxu0 %v2508
      %v2786 = vpop.f32.mrf.mxu0
      %v2787 = vadd.f32 0.0, %v2786
      %v2788 = vpop.f32.mrf.mxu0
      %v2789 = vadd.f32 0.0, %v2788
      %2790 = vmatprep.mubr.f32.mxu0 0.0
      %2791 = vmatmul.mubr.f32.gmra.mxu0 %v2510
      %v2792 = vpop.f32.mrf.mxu0
      %v2793 = vadd.f32 0.0, %v2792
      %v2794 = vpop.f32.mrf.mxu0
      %v2795 = vadd.f32 0.0, %v2794
      %2796 = vmatprep.mubr.f32.mxu0 0.0
      %2797 = vmatmul.mubr.f32.gmra.mxu0 %v2512
      %v2798 = vpop.f32.mrf.mxu0
      %v2799 = vadd.f32 0.0, %v2798
      %v2800 = vpop.f32.mrf.mxu0
      %v2801 = vadd.f32 0.0, %v2800
      %2802 = vmatprep.mubr.f32.mxu0 0.0
      %2803 = vmatmul.mubr.f32.gmra.mxu0 %v2514
      %v2804 = vpop.f32.mrf.mxu0
      %v2805 = vadd.f32 0.0, %v2804
      %v2806 = vpop.f32.mrf.mxu0
      %v2807 = vadd.f32 0.0, %v2806
      %2808 = vmatprep.mubr.f32.mxu0 0.0
      %2809 = vmatmul.mubr.f32.gmra.mxu0 %v2516
      %v2810 = vpop.f32.mrf.mxu0
      %v2811 = vadd.f32 0.0, %v2810
      %v2812 = vpop.f32.mrf.mxu0
      %v2813 = vadd.f32 0.0, %v2812
      %2814 = vmatprep.mubr.f32.mxu0 0.0
      %2815 = vmatmul.mubr.f32.gmra.mxu0 %v2518
      %v2816 = vpop.f32.mrf.mxu0
      %v2817 = vadd.f32 0.0, %v2816
      %v2818 = vpop.f32.mrf.mxu0
      %v2819 = vadd.f32 0.0, %v2818
      %2820 = vmatprep.mubr.f32.mxu0 0.0
      %2821 = vmatmul.mubr.f32.gmra.mxu0 %v2520
      %v2822 = vpop.f32.mrf.mxu0
      %v2823 = vadd.f32 0.0, %v2822
      %v2824 = vpop.f32.mrf.mxu0
      %v2825 = vadd.f32 0.0, %v2824
      %2826 = vmatprep.mubr.f32.mxu0 0.0
      %2827 = vmatmul.mubr.f32.gmra.mxu0 %v2522
      %v2828 = vpop.f32.mrf.mxu0
      %v2829 = vadd.f32 0.0, %v2828
      %v2830 = vpop.f32.mrf.mxu0
      %v2831 = vadd.f32 0.0, %v2830
      %2832 = vmatprep.mubr.f32.mxu0 0.0
      %2833 = vmatmul.mubr.f32.gmra.mxu0 %v2524
      %v2834 = vpop.f32.mrf.mxu0
      %v2835 = vadd.f32 0.0, %v2834
      %v2836 = vpop.f32.mrf.mxu0
      %v2837 = vadd.f32 0.0, %v2836
      %2838 = vmatprep.mubr.f32.mxu0 0.0
      %2839 = vmatmul.mubr.f32.gmra.mxu0 %v2526
      %v2840 = vpop.f32.mrf.mxu0
      %v2841 = vadd.f32 0.0, %v2840
      %v2842 = vpop.f32.mrf.mxu0
      %v2843 = vadd.f32 0.0, %v2842
      %2844 = vmatprep.mubr.f32.mxu0 0.0
      %2845 = vmatmul.mubr.f32.gmra.mxu0 %v2528
      %v2846 = vpop.f32.mrf.mxu0
      %v2847 = vadd.f32 0.0, %v2846
      %v2848 = vpop.f32.mrf.mxu0
      %v2849 = vadd.f32 0.0, %v2848
      %2850 = vdwg.mxu0
      %v2851 = vmax.f32 %v2661, %v2663
      %2852 = vmax.xlane.f32.xlu0 %v2851
      %v2853 = vpop.xlane.xlu0 %2852
      %v2854 = vmax.f32 %v2667, %v2669
      %2855 = vmax.xlane.f32.xlu0 %v2854
      %v2856 = vpop.xlane.xlu0 %2855
      %v2857 = vmax.f32 %v2673, %v2675
      %2858 = vmax.xlane.f32.xlu0 %v2857
      %v2859 = vpop.xlane.xlu0 %2858
      %v2860 = vmax.f32 %v2679, %v2681
      %2861 = vmax.xlane.f32.xlu0 %v2860
      %v2862 = vpop.xlane.xlu0 %2861
      %v2863 = vmax.f32 %v2685, %v2687
      %2864 = vmax.xlane.f32.xlu0 %v2863
      %v2865 = vpop.xlane.xlu0 %2864
      %v2866 = vmax.f32 %v2691, %v2693
      %2867 = vmax.xlane.f32.xlu0 %v2866
      %v2868 = vpop.xlane.xlu0 %2867
      %v2869 = vmax.f32 %v2697, %v2699
      %2870 = vmax.xlane.f32.xlu0 %v2869
      %v2871 = vpop.xlane.xlu0 %2870
      %v2872 = vmax.f32 %v2703, %v2705
      %2873 = vmax.xlane.f32.xlu0 %v2872
      %v2874 = vpop.xlane.xlu0 %2873
      %v2875 = vmax.f32 %v2709, %v2711
      %2876 = vmax.xlane.f32.xlu0 %v2875
      %v2877 = vpop.xlane.xlu0 %2876
      %v2878 = vmax.f32 %v2715, %v2717
      %2879 = vmax.xlane.f32.xlu0 %v2878
      %v2880 = vpop.xlane.xlu0 %2879
      %v2881 = vmax.f32 %v2721, %v2723
      %2882 = vmax.xlane.f32.xlu0 %v2881
      %v2883 = vpop.xlane.xlu0 %2882
      %v2884 = vmax.f32 %v2727, %v2729
      %2885 = vmax.xlane.f32.xlu0 %v2884
      %v2886 = vpop.xlane.xlu0 %2885
      %v2887 = vmax.f32 %v2733, %v2735
      %2888 = vmax.xlane.f32.xlu0 %v2887
      %v2889 = vpop.xlane.xlu0 %2888
      %v2890 = vmax.f32 %v2739, %v2741
      %2891 = vmax.xlane.f32.xlu0 %v2890
      %v2892 = vpop.xlane.xlu0 %2891
      %v2893 = vmax.f32 %v2745, %v2747
      %2894 = vmax.xlane.f32.xlu0 %v2893
      %v2895 = vpop.xlane.xlu0 %2894
      %v2896 = vmax.f32 %v2751, %v2753
      %2897 = vmax.xlane.f32.xlu0 %v2896
      %v2898 = vpop.xlane.xlu0 %2897
      %v2899 = vmax.f32 %v2757, %v2759
      %2900 = vmax.xlane.f32.xlu0 %v2899
      %v2901 = vpop.xlane.xlu0 %2900
      %v2902 = vmax.f32 %v2763, %v2765
      %2903 = vmax.xlane.f32.xlu0 %v2902
      %v2904 = vpop.xlane.xlu0 %2903
      %v2905 = vmax.f32 %v2769, %v2771
      %2906 = vmax.xlane.f32.xlu0 %v2905
      %v2907 = vpop.xlane.xlu0 %2906
      %v2908 = vmax.f32 %v2775, %v2777
      %2909 = vmax.xlane.f32.xlu0 %v2908
      %v2910 = vpop.xlane.xlu0 %2909
      %v2911 = vmax.f32 %v2781, %v2783
      %2912 = vmax.xlane.f32.xlu0 %v2911
      %v2913 = vpop.xlane.xlu0 %2912
      %v2914 = vmax.f32 %v2787, %v2789
      %2915 = vmax.xlane.f32.xlu0 %v2914
      %v2916 = vpop.xlane.xlu0 %2915
      %v2917 = vmax.f32 %v2793, %v2795
      %2918 = vmax.xlane.f32.xlu0 %v2917
      %v2919 = vpop.xlane.xlu0 %2918
      %v2920 = vmax.f32 %v2799, %v2801
      %2921 = vmax.xlane.f32.xlu0 %v2920
      %v2922 = vpop.xlane.xlu0 %2921
      %v2923 = vmax.f32 %v2805, %v2807
      %2924 = vmax.xlane.f32.xlu0 %v2923
      %v2925 = vpop.xlane.xlu0 %2924
      %v2926 = vmax.f32 %v2811, %v2813
      %2927 = vmax.xlane.f32.xlu0 %v2926
      %v2928 = vpop.xlane.xlu0 %2927
      %v2929 = vmax.f32 %v2817, %v2819
      %2930 = vmax.xlane.f32.xlu0 %v2929
      %v2931 = vpop.xlane.xlu0 %2930
      %v2932 = vmax.f32 %v2823, %v2825
      %2933 = vmax.xlane.f32.xlu0 %v2932
      %v2934 = vpop.xlane.xlu0 %2933
      %v2935 = vmax.f32 %v2829, %v2831
      %2936 = vmax.xlane.f32.xlu0 %v2935
      %v2937 = vpop.xlane.xlu0 %2936
      %v2938 = vmax.f32 %v2835, %v2837
      %2939 = vmax.xlane.f32.xlu0 %v2938
      %v2940 = vpop.xlane.xlu0 %2939
      %v2941 = vmax.f32 %v2841, %v2843
      %2942 = vmax.xlane.f32.xlu0 %v2941
      %v2943 = vpop.xlane.xlu0 %2942
      %v2944 = vmax.f32 %v2847, %v2849
      %2945 = vmax.xlane.f32.xlu0 %v2944
      %v2946 = vpop.xlane.xlu0 %2945
      %v2947 = vsub.f32 %v2661, %v2853
      %v2948 = vsub.f32 %v2663, %v2853
      %v2949 = vsub.f32 %v2667, %v2856
      %v2950 = vsub.f32 %v2669, %v2856
      %v2951 = vsub.f32 %v2673, %v2859
      %v2952 = vsub.f32 %v2675, %v2859
      %v2953 = vsub.f32 %v2679, %v2862
      %v2954 = vsub.f32 %v2681, %v2862
      %v2955 = vsub.f32 %v2685, %v2865
      %v2956 = vsub.f32 %v2687, %v2865
      %v2957 = vsub.f32 %v2691, %v2868
      %v2958 = vsub.f32 %v2693, %v2868
      %v2959 = vsub.f32 %v2697, %v2871
      %v2960 = vsub.f32 %v2699, %v2871
      %v2961 = vsub.f32 %v2703, %v2874
      %v2962 = vsub.f32 %v2705, %v2874
      %v2963 = vsub.f32 %v2709, %v2877
      %v2964 = vsub.f32 %v2711, %v2877
      %v2965 = vsub.f32 %v2715, %v2880
      %v2966 = vsub.f32 %v2717, %v2880
      %v2967 = vsub.f32 %v2721, %v2883
      %v2968 = vsub.f32 %v2723, %v2883
      %v2969 = vsub.f32 %v2727, %v2886
      %v2970 = vsub.f32 %v2729, %v2886
      %v2971 = vsub.f32 %v2733, %v2889
      %v2972 = vsub.f32 %v2735, %v2889
      %v2973 = vsub.f32 %v2739, %v2892
      %v2974 = vsub.f32 %v2741, %v2892
      %v2975 = vsub.f32 %v2745, %v2895
      %v2976 = vsub.f32 %v2747, %v2895
      %v2977 = vsub.f32 %v2751, %v2898
      %v2978 = vsub.f32 %v2753, %v2898
      %v2979 = vsub.f32 %v2757, %v2901
      %v2980 = vsub.f32 %v2759, %v2901
      %v2981 = vsub.f32 %v2763, %v2904
      %v2982 = vsub.f32 %v2765, %v2904
      %v2983 = vsub.f32 %v2769, %v2907
      %v2984 = vsub.f32 %v2771, %v2907
      %v2985 = vsub.f32 %v2775, %v2910
      %v2986 = vsub.f32 %v2777, %v2910
      %v2987 = vsub.f32 %v2781, %v2913
      %v2988 = vsub.f32 %v2783, %v2913
      %v2989 = vsub.f32 %v2787, %v2916
      %v2990 = vsub.f32 %v2789, %v2916
      %v2991 = vsub.f32 %v2793, %v2919
      %v2992 = vsub.f32 %v2795, %v2919
      %v2993 = vsub.f32 %v2799, %v2922
      %v2994 = vsub.f32 %v2801, %v2922
      %v2995 = vsub.f32 %v2805, %v2925
      %v2996 = vsub.f32 %v2807, %v2925
      %v2997 = vsub.f32 %v2811, %v2928
      %v2998 = vsub.f32 %v2813, %v2928
      %v2999 = vsub.f32 %v2817, %v2931
      %v3000 = vsub.f32 %v2819, %v2931
      %v3001 = vsub.f32 %v2823, %v2934
      %v3002 = vsub.f32 %v2825, %v2934
      %v3003 = vsub.f32 %v2829, %v2937
      %v3004 = vsub.f32 %v2831, %v2937
      %v3005 = vsub.f32 %v2835, %v2940
      %v3006 = vsub.f32 %v2837, %v2940
      %v3007 = vsub.f32 %v2841, %v2943
      %v3008 = vsub.f32 %v2843, %v2943
      %v3009 = vsub.f32 %v2847, %v2946
      %v3010 = vsub.f32 %v2849, %v2946
      %v3011 = vmul.f32 %v2947, 1.442695
      %v3012 = vpow.pop %v3011
      %v3013 = vmul.f32 %v2948, 1.442695
      %v3014 = vpow.pop %v3013
      %v3015 = vmul.f32 %v2949, 1.442695
      %v3016 = vpow.pop %v3015
      %v3017 = vmul.f32 %v2950, 1.442695
      %v3018 = vpow.pop %v3017
      %v3019 = vmul.f32 %v2951, 1.442695
      %v3020 = vpow.pop %v3019
      %v3021 = vmul.f32 %v2952, 1.442695
      %v3022 = vpow.pop %v3021
      %v3023 = vmul.f32 %v2953, 1.442695
      %v3024 = vpow.pop %v3023
      %v3025 = vmul.f32 %v2954, 1.442695
      %v3026 = vpow.pop %v3025
      %v3027 = vmul.f32 %v2955, 1.442695
      %v3028 = vpow.pop %v3027
      %v3029 = vmul.f32 %v2956, 1.442695
      %v3030 = vpow.pop %v3029
      %v3031 = vmul.f32 %v2957, 1.442695
      %v3032 = vpow.pop %v3031
      %v3033 = vmul.f32 %v2958, 1.442695
      %v3034 = vpow.pop %v3033
      %v3035 = vmul.f32 %v2959, 1.442695
      %v3036 = vpow.pop %v3035
      %v3037 = vmul.f32 %v2960, 1.442695
      %v3038 = vpow.pop %v3037
      %v3039 = vmul.f32 %v2961, 1.442695
      %v3040 = vpow.pop %v3039
      %v3041 = vmul.f32 %v2962, 1.442695
      %v3042 = vpow.pop %v3041
      %v3043 = vmul.f32 %v2963, 1.442695
      %v3044 = vpow.pop %v3043
      %v3045 = vmul.f32 %v2964, 1.442695
      %v3046 = vpow.pop %v3045
      %v3047 = vmul.f32 %v2965, 1.442695
      %v3048 = vpow.pop %v3047
      %v3049 = vmul.f32 %v2966, 1.442695
      %v3050 = vpow.pop %v3049
      %v3051 = vmul.f32 %v2967, 1.442695
      %v3052 = vpow.pop %v3051
      %v3053 = vmul.f32 %v2968, 1.442695
      %v3054 = vpow.pop %v3053
      %v3055 = vmul.f32 %v2969, 1.442695
      %v3056 = vpow.pop %v3055
      %v3057 = vmul.f32 %v2970, 1.442695
      %v3058 = vpow.pop %v3057
      %v3059 = vmul.f32 %v2971, 1.442695
      %v3060 = vpow.pop %v3059
      %v3061 = vmul.f32 %v2972, 1.442695
      %v3062 = vpow.pop %v3061
      %v3063 = vmul.f32 %v2973, 1.442695
      %v3064 = vpow.pop %v3063
      %v3065 = vmul.f32 %v2974, 1.442695
      %v3066 = vpow.pop %v3065
      %v3067 = vmul.f32 %v2975, 1.442695
      %v3068 = vpow.pop %v3067
      %v3069 = vmul.f32 %v2976, 1.442695
      %v3070 = vpow.pop %v3069
      %v3071 = vmul.f32 %v2977, 1.442695
      %v3072 = vpow.pop %v3071
      %v3073 = vmul.f32 %v2978, 1.442695
      %v3074 = vpow.pop %v3073
      %v3075 = vmul.f32 %v2979, 1.442695
      %v3076 = vpow.pop %v3075
      %v3077 = vmul.f32 %v2980, 1.442695
      %v3078 = vpow.pop %v3077
      %v3079 = vmul.f32 %v2981, 1.442695
      %v3080 = vpow.pop %v3079
      %v3081 = vmul.f32 %v2982, 1.442695
      %v3082 = vpow.pop %v3081
      %v3083 = vmul.f32 %v2983, 1.442695
      %v3084 = vpow.pop %v3083
      %v3085 = vmul.f32 %v2984, 1.442695
      %v3086 = vpow.pop %v3085
      %v3087 = vmul.f32 %v2985, 1.442695
      %v3088 = vpow.pop %v3087
      %v3089 = vmul.f32 %v2986, 1.442695
      %v3090 = vpow.pop %v3089
      %v3091 = vmul.f32 %v2987, 1.442695
      %v3092 = vpow.pop %v3091
      %v3093 = vmul.f32 %v2988, 1.442695
      %v3094 = vpow.pop %v3093
      %v3095 = vmul.f32 %v2989, 1.442695
      %v3096 = vpow.pop %v3095
      %v3097 = vmul.f32 %v2990, 1.442695
      %v3098 = vpow.pop %v3097
      %v3099 = vmul.f32 %v2991, 1.442695
      %v3100 = vpow.pop %v3099
      %v3101 = vmul.f32 %v2992, 1.442695
      %v3102 = vpow.pop %v3101
      %v3103 = vmul.f32 %v2993, 1.442695
      %v3104 = vpow.pop %v3103
      %v3105 = vmul.f32 %v2994, 1.442695
      %v3106 = vpow.pop %v3105
      %v3107 = vmul.f32 %v2995, 1.442695
      %v3108 = vpow.pop %v3107
      %v3109 = vmul.f32 %v2996, 1.442695
      %v3110 = vpow.pop %v3109
      %v3111 = vmul.f32 %v2997, 1.442695
      %v3112 = vpow.pop %v3111
      %v3113 = vmul.f32 %v2998, 1.442695
      %v3114 = vpow.pop %v3113
      %v3115 = vmul.f32 %v2999, 1.442695
      %v3116 = vpow.pop %v3115
      %v3117 = vmul.f32 %v3000, 1.442695
      %v3118 = vpow.pop %v3117
      %v3119 = vmul.f32 %v3001, 1.442695
      %v3120 = vpow.pop %v3119
      %v3121 = vmul.f32 %v3002, 1.442695
      %v3122 = vpow.pop %v3121
      %v3123 = vmul.f32 %v3003, 1.442695
      %v3124 = vpow.pop %v3123
      %v3125 = vmul.f32 %v3004, 1.442695
      %v3126 = vpow.pop %v3125
      %v3127 = vmul.f32 %v3005, 1.442695
      %v3128 = vpow.pop %v3127
      %v3129 = vmul.f32 %v3006, 1.442695
      %v3130 = vpow.pop %v3129
      %v3131 = vmul.f32 %v3007, 1.442695
      %v3132 = vpow.pop %v3131
      %v3133 = vmul.f32 %v3008, 1.442695
      %v3134 = vpow.pop %v3133
      %v3135 = vmul.f32 %v3009, 1.442695
      %v3136 = vpow.pop %v3135
      %v3137 = vmul.f32 %v3010, 1.442695
      %v3138 = vpow.pop %v3137
      %v3139 = vadd.f32 %v3012, %v3014
      %3140 = vadd.xlane.f32.xlu0 %v3139
      %v3141 = vpop.xlane.xlu0 %3140
      %v3142 = vadd.f32 %v3016, %v3018
      %3143 = vadd.xlane.f32.xlu0 %v3142
      %v3144 = vpop.xlane.xlu0 %3143
      %v3145 = vadd.f32 %v3020, %v3022
      %3146 = vadd.xlane.f32.xlu0 %v3145
      %v3147 = vpop.xlane.xlu0 %3146
      %v3148 = vadd.f32 %v3024, %v3026
      %3149 = vadd.xlane.f32.xlu0 %v3148
      %v3150 = vpop.xlane.xlu0 %3149
      %v3151 = vadd.f32 %v3028, %v3030
      %3152 = vadd.xlane.f32.xlu0 %v3151
      %v3153 = vpop.xlane.xlu0 %3152
      %v3154 = vadd.f32 %v3032, %v3034
      %3155 = vadd.xlane.f32.xlu0 %v3154
      %v3156 = vpop.xlane.xlu0 %3155
      %v3157 = vadd.f32 %v3036, %v3038
      %3158 = vadd.xlane.f32.xlu0 %v3157
      %v3159 = vpop.xlane.xlu0 %3158
      %v3160 = vadd.f32 %v3040, %v3042
      %3161 = vadd.xlane.f32.xlu0 %v3160
      %v3162 = vpop.xlane.xlu0 %3161
      %v3163 = vadd.f32 %v3044, %v3046
      %3164 = vadd.xlane.f32.xlu0 %v3163
      %v3165 = vpop.xlane.xlu0 %3164
      %v3166 = vadd.f32 %v3048, %v3050
      %3167 = vadd.xlane.f32.xlu0 %v3166
      %v3168 = vpop.xlane.xlu0 %3167
      %v3169 = vadd.f32 %v3052, %v3054
      %3170 = vadd.xlane.f32.xlu0 %v3169
      %v3171 = vpop.xlane.xlu0 %3170
      %v3172 = vadd.f32 %v3056, %v3058
      %3173 = vadd.xlane.f32.xlu0 %v3172
      %v3174 = vpop.xlane.xlu0 %3173
      %v3175 = vadd.f32 %v3060, %v3062
      %3176 = vadd.xlane.f32.xlu0 %v3175
      %v3177 = vpop.xlane.xlu0 %3176
      %v3178 = vadd.f32 %v3064, %v3066
      %3179 = vadd.xlane.f32.xlu0 %v3178
      %v3180 = vpop.xlane.xlu0 %3179
      %v3181 = vadd.f32 %v3068, %v3070
      %3182 = vadd.xlane.f32.xlu0 %v3181
      %v3183 = vpop.xlane.xlu0 %3182
      %v3184 = vadd.f32 %v3072, %v3074
      %3185 = vadd.xlane.f32.xlu0 %v3184
      %v3186 = vpop.xlane.xlu0 %3185
      %v3187 = vadd.f32 %v3076, %v3078
      %3188 = vadd.xlane.f32.xlu0 %v3187
      %v3189 = vpop.xlane.xlu0 %3188
      %v3190 = vadd.f32 %v3080, %v3082
      %3191 = vadd.xlane.f32.xlu0 %v3190
      %v3192 = vpop.xlane.xlu0 %3191
      %v3193 = vadd.f32 %v3084, %v3086
      %3194 = vadd.xlane.f32.xlu0 %v3193
      %v3195 = vpop.xlane.xlu0 %3194
      %v3196 = vadd.f32 %v3088, %v3090
      %3197 = vadd.xlane.f32.xlu0 %v3196
      %v3198 = vpop.xlane.xlu0 %3197
      %v3199 = vadd.f32 %v3092, %v3094
      %3200 = vadd.xlane.f32.xlu0 %v3199
      %v3201 = vpop.xlane.xlu0 %3200
      %v3202 = vadd.f32 %v3096, %v3098
      %3203 = vadd.xlane.f32.xlu0 %v3202
      %v3204 = vpop.xlane.xlu0 %3203
      %v3205 = vadd.f32 %v3100, %v3102
      %3206 = vadd.xlane.f32.xlu0 %v3205
      %v3207 = vpop.xlane.xlu0 %3206
      %v3208 = vadd.f32 %v3104, %v3106
      %3209 = vadd.xlane.f32.xlu0 %v3208
      %v3210 = vpop.xlane.xlu0 %3209
      %v3211 = vadd.f32 %v3108, %v3110
      %3212 = vadd.xlane.f32.xlu0 %v3211
      %v3213 = vpop.xlane.xlu0 %3212
      %v3214 = vadd.f32 %v3112, %v3114
      %3215 = vadd.xlane.f32.xlu0 %v3214
      %v3216 = vpop.xlane.xlu0 %3215
      %v3217 = vadd.f32 %v3116, %v3118
      %3218 = vadd.xlane.f32.xlu0 %v3217
      %v3219 = vpop.xlane.xlu0 %3218
      %v3220 = vadd.f32 %v3120, %v3122
      %3221 = vadd.xlane.f32.xlu0 %v3220
      %v3222 = vpop.xlane.xlu0 %3221
      %v3223 = vadd.f32 %v3124, %v3126
      %3224 = vadd.xlane.f32.xlu0 %v3223
      %v3225 = vpop.xlane.xlu0 %3224
      %v3226 = vadd.f32 %v3128, %v3130
      %3227 = vadd.xlane.f32.xlu0 %v3226
      %v3228 = vpop.xlane.xlu0 %3227
      %v3229 = vadd.f32 %v3132, %v3134
      %3230 = vadd.xlane.f32.xlu0 %v3229
      %v3231 = vpop.xlane.xlu0 %3230
      %v3232 = vadd.f32 %v3136, %v3138
      %3233 = vadd.xlane.f32.xlu0 %v3232
      %v3234 = vpop.xlane.xlu0 %3233
      %v3235 = vrcp.pop %v3141
      %v3236 = vrcp.pop %v3144
      %v3237 = vrcp.pop %v3147
      %v3238 = vrcp.pop %v3150
      %v3239 = vrcp.pop %v3153
      %v3240 = vrcp.pop %v3156
      %v3241 = vrcp.pop %v3159
      %v3242 = vrcp.pop %v3162
      %v3243 = vrcp.pop %v3165
      %v3244 = vrcp.pop %v3168
      %v3245 = vrcp.pop %v3171
      %v3246 = vrcp.pop %v3174
      %v3247 = vrcp.pop %v3177
      %v3248 = vrcp.pop %v3180
      %v3249 = vrcp.pop %v3183
      %v3250 = vrcp.pop %v3186
      %v3251 = vrcp.pop %v3189
      %v3252 = vrcp.pop %v3192
      %v3253 = vrcp.pop %v3195
      %v3254 = vrcp.pop %v3198
      %v3255 = vrcp.pop %v3201
      %v3256 = vrcp.pop %v3204
      %v3257 = vrcp.pop %v3207
      %v3258 = vrcp.pop %v3210
      %v3259 = vrcp.pop %v3213
      %v3260 = vrcp.pop %v3216
      %v3261 = vrcp.pop %v3219
      %v3262 = vrcp.pop %v3222
      %v3263 = vrcp.pop %v3225
      %v3264 = vrcp.pop %v3228
      %v3265 = vrcp.pop %v3231
      %v3266 = vrcp.pop %v3234
      %v3267 = vmul.f32 %v3012, %v3235
      %v3268 = vmul.f32 %v3014, %v3235
      %v3269 = vmul.f32 %v3016, %v3236
      %v3270 = vmul.f32 %v3018, %v3236
      %v3271 = vmul.f32 %v3020, %v3237
      %v3272 = vmul.f32 %v3022, %v3237
      %v3273 = vmul.f32 %v3024, %v3238
      %v3274 = vmul.f32 %v3026, %v3238
      %v3275 = vmul.f32 %v3028, %v3239
      %v3276 = vmul.f32 %v3030, %v3239
      %v3277 = vmul.f32 %v3032, %v3240
      %v3278 = vmul.f32 %v3034, %v3240
      %v3279 = vmul.f32 %v3036, %v3241
      %v3280 = vmul.f32 %v3038, %v3241
      %v3281 = vmul.f32 %v3040, %v3242
      %v3282 = vmul.f32 %v3042, %v3242
      %v3283 = vmul.f32 %v3044, %v3243
      %v3284 = vmul.f32 %v3046, %v3243
      %v3285 = vmul.f32 %v3048, %v3244
      %v3286 = vmul.f32 %v3050, %v3244
      %v3287 = vmul.f32 %v3052, %v3245
      %v3288 = vmul.f32 %v3054, %v3245
      %v3289 = vmul.f32 %v3056, %v3246
      %v3290 = vmul.f32 %v3058, %v3246
      %v3291 = vmul.f32 %v3060, %v3247
      %v3292 = vmul.f32 %v3062, %v3247
      %v3293 = vmul.f32 %v3064, %v3248
      %v3294 = vmul.f32 %v3066, %v3248
      %v3295 = vmul.f32 %v3068, %v3249
      %v3296 = vmul.f32 %v3070, %v3249
      %v3297 = vmul.f32 %v3072, %v3250
      %v3298 = vmul.f32 %v3074, %v3250
      %v3299 = vmul.f32 %v3076, %v3251
      %v3300 = vmul.f32 %v3078, %v3251
      %v3301 = vmul.f32 %v3080, %v3252
      %v3302 = vmul.f32 %v3082, %v3252
      %v3303 = vmul.f32 %v3084, %v3253
      %v3304 = vmul.f32 %v3086, %v3253
      %v3305 = vmul.f32 %v3088, %v3254
      %v3306 = vmul.f32 %v3090, %v3254
      %v3307 = vmul.f32 %v3092, %v3255
      %v3308 = vmul.f32 %v3094, %v3255
      %v3309 = vmul.f32 %v3096, %v3256
      %v3310 = vmul.f32 %v3098, %v3256
      %v3311 = vmul.f32 %v3100, %v3257
      %v3312 = vmul.f32 %v3102, %v3257
      %v3313 = vmul.f32 %v3104, %v3258
      %v3314 = vmul.f32 %v3106, %v3258
      %v3315 = vmul.f32 %v3108, %v3259
      %v3316 = vmul.f32 %v3110, %v3259
      %v3317 = vmul.f32 %v3112, %v3260
      %v3318 = vmul.f32 %v3114, %v3260
      %v3319 = vmul.f32 %v3116, %v3261
      %v3320 = vmul.f32 %v3118, %v3261
      %v3321 = vmul.f32 %v3120, %v3262
      %v3322 = vmul.f32 %v3122, %v3262
      %v3323 = vmul.f32 %v3124, %v3263
      %v3324 = vmul.f32 %v3126, %v3263
      %v3325 = vmul.f32 %v3128, %v3264
      %v3326 = vmul.f32 %v3130, %v3264
      %v3327 = vmul.f32 %v3132, %v3265
      %v3328 = vmul.f32 %v3134, %v3265
      %v3329 = vmul.f32 %v3136, %v3266
      %v3330 = vmul.f32 %v3138, %v3266
      %3331 = vrot.lane.b32.xlu0 %v565, 92
      %v3332 = vpop.permute.xlu0 %3331
      %3333 = vrot.lane.b32.xlu0 %v570, 92
      %v3334 = vpop.permute.xlu0 %3333
      %3335 = vrot.lane.b32.xlu0 %v575, 92
      %v3336 = vpop.permute.xlu0 %3335
      %3337 = vrot.lane.b32.xlu0 %v580, 92
      %v3338 = vpop.permute.xlu0 %3337
      %3339 = vrot.lane.b32.xlu0 %v585, 92
      %v3340 = vpop.permute.xlu0 %3339
      %3341 = vrot.lane.b32.xlu0 %v590, 92
      %v3342 = vpop.permute.xlu0 %3341
      %3343 = vrot.lane.b32.xlu0 %v595, 92
      %v3344 = vpop.permute.xlu0 %3343
      %3345 = vrot.lane.b32.xlu0 %v600, 92
      %v3346 = vpop.permute.xlu0 %3345
      %3347 = vrot.lane.b32.xlu0 %v605, 92
      %v3348 = vpop.permute.xlu0 %3347
      %3349 = vrot.lane.b32.xlu0 %v610, 92
      %v3350 = vpop.permute.xlu0 %3349
      %3351 = vrot.lane.b32.xlu0 %v615, 92
      %v3352 = vpop.permute.xlu0 %3351
      %3353 = vrot.lane.b32.xlu0 %v620, 92
      %v3354 = vpop.permute.xlu0 %3353
      %3355 = vrot.lane.b32.xlu0 %v625, 92
      %v3356 = vpop.permute.xlu0 %3355
      %3357 = vrot.lane.b32.xlu0 %v630, 92
      %v3358 = vpop.permute.xlu0 %3357
      %3359 = vrot.lane.b32.xlu0 %v635, 92
      %v3360 = vpop.permute.xlu0 %3359
      %3361 = vrot.lane.b32.xlu0 %v640, 92
      %v3362 = vpop.permute.xlu0 %3361
      %3363 = vrot.lane.b32.xlu0 %v645, 92
      %v3364 = vpop.permute.xlu0 %3363
      %3365 = vrot.lane.b32.xlu0 %v650, 92
      %v3366 = vpop.permute.xlu0 %3365
      %3367 = vrot.lane.b32.xlu0 %v655, 92
      %v3368 = vpop.permute.xlu0 %3367
      %3369 = vrot.lane.b32.xlu0 %v660, 92
      %v3370 = vpop.permute.xlu0 %3369
      %3371 = vrot.lane.b32.xlu0 %v665, 92
      %v3372 = vpop.permute.xlu0 %3371
      %3373 = vrot.lane.b32.xlu0 %v670, 92
      %v3374 = vpop.permute.xlu0 %3373
      %3375 = vrot.lane.b32.xlu0 %v675, 92
      %v3376 = vpop.permute.xlu0 %3375
      %3377 = vrot.lane.b32.xlu0 %v680, 92
      %v3378 = vpop.permute.xlu0 %3377
      %3379 = vrot.lane.b32.xlu0 %v685, 92
      %v3380 = vpop.permute.xlu0 %3379
      %3381 = vrot.lane.b32.xlu0 %v690, 92
      %v3382 = vpop.permute.xlu0 %3381
      %3383 = vrot.lane.b32.xlu0 %v695, 92
      %v3384 = vpop.permute.xlu0 %3383
      %3385 = vrot.lane.b32.xlu0 %v700, 92
      %v3386 = vpop.permute.xlu0 %3385
      %3387 = vrot.lane.b32.xlu0 %v705, 92
      %v3388 = vpop.permute.xlu0 %3387
      %3389 = vrot.lane.b32.xlu0 %v710, 92
      %v3390 = vpop.permute.xlu0 %3389
      %3391 = vrot.lane.b32.xlu0 %v715, 92
      %v3392 = vpop.permute.xlu0 %3391
      %3393 = vrot.lane.b32.xlu0 %v720, 92
      %v3394 = vpop.permute.xlu0 %3393
      %3427 = vmatprep.subr.mxu0 0.0
      %3428 = vmatpush1.msra.mxu0 %v3362
      %3429 = vmatprep.subr.mxu0 0.0
      %3430 = vmatpush1.msra.mxu0 %v3360
      %3431 = vmatprep.subr.mxu0 0.0
      %3432 = vmatpush1.msra.mxu0 %v3358
      %3433 = vmatprep.subr.mxu0 0.0
      %3434 = vmatpush1.msra.mxu0 %v3356
      %3435 = vmatprep.subr.mxu0 0.0
      %3436 = vmatpush1.msra.mxu0 %v3354
      %3437 = vmatprep.subr.mxu0 0.0
      %3438 = vmatpush1.msra.mxu0 %v3352
      %3439 = vmatprep.subr.mxu0 0.0
      %3440 = vmatpush1.msra.mxu0 %v3350
      %3441 = vmatprep.subr.mxu0 0.0
      %3442 = vmatpush1.msra.mxu0 %v3348
      %3443 = vmatprep.subr.mxu0 0.0
      %3444 = vmatpush1.msra.mxu0 %v3346
      %3445 = vmatprep.subr.mxu0 0.0
      %3446 = vmatpush1.msra.mxu0 %v3344
      %3447 = vmatprep.subr.mxu0 0.0
      %3448 = vmatpush1.msra.mxu0 %v3342
      %3449 = vmatprep.subr.mxu0 0.0
      %3450 = vmatpush1.msra.mxu0 %v3340
      %3451 = vmatprep.subr.mxu0 0.0
      %3452 = vmatpush1.msra.mxu0 %v3338
      %3453 = vmatprep.subr.mxu0 0.0
      %3454 = vmatpush1.msra.mxu0 %v3336
      %3455 = vmatprep.subr.mxu0 0.0
      %3456 = vmatpush1.msra.mxu0 %v3334
      %3457 = vmatprep.subr.mxu0 0.0
      %3458 = vmatpush1.msra.mxu0 %v3332
      %3459 = vmatprep.subr.mxu0 0.0
      %3460 = vmatpush2.msra.mxu0 %v3394
      %3461 = vmatprep.subr.mxu0 0.0
      %3462 = vmatpush2.msra.mxu0 %v3392
      %3463 = vmatprep.subr.mxu0 0.0
      %3464 = vmatpush2.msra.mxu0 %v3390
      %3465 = vmatprep.subr.mxu0 0.0
      %3466 = vmatpush2.msra.mxu0 %v3388
      %3467 = vmatprep.subr.mxu0 0.0
      %3468 = vmatpush2.msra.mxu0 %v3386
      %3469 = vmatprep.subr.mxu0 0.0
      %3470 = vmatpush2.msra.mxu0 %v3384
      %3471 = vmatprep.subr.mxu0 0.0
      %3472 = vmatpush2.msra.mxu0 %v3382
      %3473 = vmatprep.subr.mxu0 0.0
      %3474 = vmatpush2.msra.mxu0 %v3380
      %3475 = vmatprep.subr.mxu0 0.0
      %3476 = vmatpush2.msra.mxu0 %v3378
      %3477 = vmatprep.subr.mxu0 0.0
      %3478 = vmatpush2.msra.mxu0 %v3376
      %3479 = vmatprep.subr.mxu0 0.0
      %3480 = vmatpush2.msra.mxu0 %v3374
      %3481 = vmatprep.subr.mxu0 0.0
      %3482 = vmatpush2.msra.mxu0 %v3372
      %3483 = vmatprep.subr.mxu0 0.0
      %3484 = vmatpush2.msra.mxu0 %v3370
      %3485 = vmatprep.subr.mxu0 0.0
      %3486 = vmatpush2.msra.mxu0 %v3368
      %3487 = vmatprep.subr.mxu0 0.0
      %3488 = vmatpush2.msra.mxu0 %v3366
      %3489 = vmatprep.subr.mxu0 0.0
      %3490 = vmatpush2.msra.mxu0 %v3364
      %3491 = vmatprep.mubr.f32.mxu0 %v3268
      %3492 = vmatmul.mubr.f32.gmra.mxu0 %v3267
      %v3493 = vpop.f32.mrf.mxu0
      %v3494 = vadd.f32 0.0, %v3493
      %v3495 = vpop.f32.mrf.mxu0
      %3496 = vmatprep.mubr.f32.mxu0 %v3270
      %3497 = vmatmul.mubr.f32.gmra.mxu0 %v3269
      %v3498 = vpop.f32.mrf.mxu0
      %v3499 = vadd.f32 0.0, %v3498
      %v3500 = vpop.f32.mrf.mxu0
      %3501 = vmatprep.mubr.f32.mxu0 %v3272
      %3502 = vmatmul.mubr.f32.gmra.mxu0 %v3271
      %v3503 = vpop.f32.mrf.mxu0
      %v3504 = vadd.f32 0.0, %v3503
      %v3505 = vpop.f32.mrf.mxu0
      %3506 = vmatprep.mubr.f32.mxu0 %v3274
      %3507 = vmatmul.mubr.f32.gmra.mxu0 %v3273
      %v3508 = vpop.f32.mrf.mxu0
      %v3509 = vadd.f32 0.0, %v3508
      %v3510 = vpop.f32.mrf.mxu0
      %3511 = vmatprep.mubr.f32.mxu0 %v3276
      %3512 = vmatmul.mubr.f32.gmra.mxu0 %v3275
      %v3513 = vpop.f32.mrf.mxu0
      %v3514 = vadd.f32 0.0, %v3513
      %v3515 = vpop.f32.mrf.mxu0
      %3516 = vmatprep.mubr.f32.mxu0 %v3278
      %3517 = vmatmul.mubr.f32.gmra.mxu0 %v3277
      %v3518 = vpop.f32.mrf.mxu0
      %v3519 = vadd.f32 0.0, %v3518
      %v3520 = vpop.f32.mrf.mxu0
      %3521 = vmatprep.mubr.f32.mxu0 %v3280
      %3522 = vmatmul.mubr.f32.gmra.mxu0 %v3279
      %v3523 = vpop.f32.mrf.mxu0
      %v3524 = vadd.f32 0.0, %v3523
      %v3525 = vpop.f32.mrf.mxu0
      %3526 = vmatprep.mubr.f32.mxu0 %v3282
      %3527 = vmatmul.mubr.f32.gmra.mxu0 %v3281
      %v3528 = vpop.f32.mrf.mxu0
      %v3529 = vadd.f32 0.0, %v3528
      %v3530 = vpop.f32.mrf.mxu0
      %3531 = vmatprep.mubr.f32.mxu0 %v3284
      %3532 = vmatmul.mubr.f32.gmra.mxu0 %v3283
      %v3533 = vpop.f32.mrf.mxu0
      %v3534 = vadd.f32 0.0, %v3533
      %v3535 = vpop.f32.mrf.mxu0
      %3536 = vmatprep.mubr.f32.mxu0 %v3286
      %3537 = vmatmul.mubr.f32.gmra.mxu0 %v3285
      %v3538 = vpop.f32.mrf.mxu0
      %v3539 = vadd.f32 0.0, %v3538
      %v3540 = vpop.f32.mrf.mxu0
      %3541 = vmatprep.mubr.f32.mxu0 %v3288
      %3542 = vmatmul.mubr.f32.gmra.mxu0 %v3287
      %v3543 = vpop.f32.mrf.mxu0
      %v3544 = vadd.f32 0.0, %v3543
      %v3545 = vpop.f32.mrf.mxu0
      %3546 = vmatprep.mubr.f32.mxu0 %v3290
      %3547 = vmatmul.mubr.f32.gmra.mxu0 %v3289
      %v3548 = vpop.f32.mrf.mxu0
      %v3549 = vadd.f32 0.0, %v3548
      %v3550 = vpop.f32.mrf.mxu0
      %3551 = vmatprep.mubr.f32.mxu0 %v3292
      %3552 = vmatmul.mubr.f32.gmra.mxu0 %v3291
      %v3553 = vpop.f32.mrf.mxu0
      %v3554 = vadd.f32 0.0, %v3553
      %v3555 = vpop.f32.mrf.mxu0
      %3556 = vmatprep.mubr.f32.mxu0 %v3294
      %3557 = vmatmul.mubr.f32.gmra.mxu0 %v3293
      %v3558 = vpop.f32.mrf.mxu0
      %v3559 = vadd.f32 0.0, %v3558
      %v3560 = vpop.f32.mrf.mxu0
      %3561 = vmatprep.mubr.f32.mxu0 %v3296
      %3562 = vmatmul.mubr.f32.gmra.mxu0 %v3295
      %v3563 = vpop.f32.mrf.mxu0
      %v3564 = vadd.f32 0.0, %v3563
      %v3565 = vpop.f32.mrf.mxu0
      %3566 = vmatprep.mubr.f32.mxu0 %v3298
      %3567 = vmatmul.mubr.f32.gmra.mxu0 %v3297
      %v3568 = vpop.f32.mrf.mxu0
      %v3569 = vadd.f32 0.0, %v3568
      %v3570 = vpop.f32.mrf.mxu0
      %3571 = vmatprep.mubr.f32.mxu0 %v3300
      %3572 = vmatmul.mubr.f32.gmra.mxu0 %v3299
      %v3573 = vpop.f32.mrf.mxu0
      %v3574 = vadd.f32 0.0, %v3573
      %v3575 = vpop.f32.mrf.mxu0
      %3576 = vmatprep.mubr.f32.mxu0 %v3302
      %3577 = vmatmul.mubr.f32.gmra.mxu0 %v3301
      %v3578 = vpop.f32.mrf.mxu0
      %v3579 = vadd.f32 0.0, %v3578
      %v3580 = vpop.f32.mrf.mxu0
      %3581 = vmatprep.mubr.f32.mxu0 %v3304
      %3582 = vmatmul.mubr.f32.gmra.mxu0 %v3303
      %v3583 = vpop.f32.mrf.mxu0
      %v3584 = vadd.f32 0.0, %v3583
      %v3585 = vpop.f32.mrf.mxu0
      %3586 = vmatprep.mubr.f32.mxu0 %v3306
      %3587 = vmatmul.mubr.f32.gmra.mxu0 %v3305
      %v3588 = vpop.f32.mrf.mxu0
      %v3589 = vadd.f32 0.0, %v3588
      %v3590 = vpop.f32.mrf.mxu0
      %3591 = vmatprep.mubr.f32.mxu0 %v3308
      %3592 = vmatmul.mubr.f32.gmra.mxu0 %v3307
      %v3593 = vpop.f32.mrf.mxu0
      %v3594 = vadd.f32 0.0, %v3593
      %v3595 = vpop.f32.mrf.mxu0
      %3596 = vmatprep.mubr.f32.mxu0 %v3310
      %3597 = vmatmul.mubr.f32.gmra.mxu0 %v3309
      %v3598 = vpop.f32.mrf.mxu0
      %v3599 = vadd.f32 0.0, %v3598
      %v3600 = vpop.f32.mrf.mxu0
      %3601 = vmatprep.mubr.f32.mxu0 %v3312
      %3602 = vmatmul.mubr.f32.gmra.mxu0 %v3311
      %v3603 = vpop.f32.mrf.mxu0
      %v3604 = vadd.f32 0.0, %v3603
      %v3605 = vpop.f32.mrf.mxu0
      %3606 = vmatprep.mubr.f32.mxu0 %v3314
      %3607 = vmatmul.mubr.f32.gmra.mxu0 %v3313
      %v3608 = vpop.f32.mrf.mxu0
      %v3609 = vadd.f32 0.0, %v3608
      %v3610 = vpop.f32.mrf.mxu0
      %3611 = vmatprep.mubr.f32.mxu0 %v3316
      %3612 = vmatmul.mubr.f32.gmra.mxu0 %v3315
      %v3613 = vpop.f32.mrf.mxu0
      %v3614 = vadd.f32 0.0, %v3613
      %v3615 = vpop.f32.mrf.mxu0
      %3616 = vmatprep.mubr.f32.mxu0 %v3318
      %3617 = vmatmul.mubr.f32.gmra.mxu0 %v3317
      %v3618 = vpop.f32.mrf.mxu0
      %v3619 = vadd.f32 0.0, %v3618
      %v3620 = vpop.f32.mrf.mxu0
      %3621 = vmatprep.mubr.f32.mxu0 %v3320
      %3622 = vmatmul.mubr.f32.gmra.mxu0 %v3319
      %v3623 = vpop.f32.mrf.mxu0
      %v3624 = vadd.f32 0.0, %v3623
      %v3625 = vpop.f32.mrf.mxu0
      %3626 = vmatprep.mubr.f32.mxu0 %v3322
      %3627 = vmatmul.mubr.f32.gmra.mxu0 %v3321
      %v3628 = vpop.f32.mrf.mxu0
      %v3629 = vadd.f32 0.0, %v3628
      %v3630 = vpop.f32.mrf.mxu0
      %3631 = vmatprep.mubr.f32.mxu0 %v3324
      %3632 = vmatmul.mubr.f32.gmra.mxu0 %v3323
      %v3633 = vpop.f32.mrf.mxu0
      %v3634 = vadd.f32 0.0, %v3633
      %v3635 = vpop.f32.mrf.mxu0
      %3636 = vmatprep.mubr.f32.mxu0 %v3326
      %3637 = vmatmul.mubr.f32.gmra.mxu0 %v3325
      %v3638 = vpop.f32.mrf.mxu0
      %v3639 = vadd.f32 0.0, %v3638
      %v3640 = vpop.f32.mrf.mxu0
      %3641 = vmatprep.mubr.f32.mxu0 %v3328
      %3642 = vmatmul.mubr.f32.gmra.mxu0 %v3327
      %v3643 = vpop.f32.mrf.mxu0
      %v3644 = vadd.f32 0.0, %v3643
      %v3645 = vpop.f32.mrf.mxu0
      %3646 = vmatprep.mubr.f32.mxu0 %v3330
      %3647 = vmatmul.mubr.f32.gmra.mxu0 %v3329
      %v3648 = vpop.f32.mrf.mxu0
      %v3649 = vadd.f32 0.0, %v3648
      %v3650 = vpop.f32.mrf.mxu0
      %3651 = vdwg.mxu0
      %3652 = vrot.lane.b32.xlu0 %v1055, 120
      %v3653 = vpop.permute.xlu0 %3652
      %3654 = vrot.lane.b32.xlu0 %v1056, 120
      %v3655 = vpop.permute.xlu0 %3654
      %3656 = vrot.lane.b32.xlu0 %v1057, 120
      %v3657 = vpop.permute.xlu0 %3656
      %3658 = vrot.lane.b32.xlu0 %v1058, 120
      %v3659 = vpop.permute.xlu0 %3658
      %3660 = vrot.lane.b32.xlu0 %v1059, 120
      %v3661 = vpop.permute.xlu0 %3660
      %3662 = vrot.lane.b32.xlu0 %v1060, 120
      %v3663 = vpop.permute.xlu0 %3662
      %3664 = vrot.lane.b32.xlu0 %v1061, 120
      %v3665 = vpop.permute.xlu0 %3664
      %3666 = vrot.lane.b32.xlu0 %v1062, 120
      %v3667 = vpop.permute.xlu0 %3666
      %3668 = vrot.lane.b32.xlu0 %v1063, 120
      %v3669 = vpop.permute.xlu0 %3668
      %3670 = vrot.lane.b32.xlu0 %v1064, 120
      %v3671 = vpop.permute.xlu0 %3670
      %3672 = vrot.lane.b32.xlu0 %v1065, 120
      %v3673 = vpop.permute.xlu0 %3672
      %3674 = vrot.lane.b32.xlu0 %v1066, 120
      %v3675 = vpop.permute.xlu0 %3674
      %3676 = vrot.lane.b32.xlu0 %v1067, 120
      %v3677 = vpop.permute.xlu0 %3676
      %3678 = vrot.lane.b32.xlu0 %v1068, 120
      %v3679 = vpop.permute.xlu0 %3678
      %3680 = vrot.lane.b32.xlu0 %v1069, 120
      %v3681 = vpop.permute.xlu0 %3680
      %3682 = vrot.lane.b32.xlu0 %v1070, 120
      %v3683 = vpop.permute.xlu0 %3682
      %3684 = vrot.lane.b32.xlu0 %v1071, 120
      %v3685 = vpop.permute.xlu0 %3684
      %3686 = vrot.lane.b32.xlu0 %v1072, 120
      %v3687 = vpop.permute.xlu0 %3686
      %3688 = vrot.lane.b32.xlu0 %v1073, 120
      %v3689 = vpop.permute.xlu0 %3688
      %3690 = vrot.lane.b32.xlu0 %v1074, 120
      %v3691 = vpop.permute.xlu0 %3690
      %3692 = vrot.lane.b32.xlu0 %v1075, 120
      %v3693 = vpop.permute.xlu0 %3692
      %3694 = vrot.lane.b32.xlu0 %v1076, 120
      %v3695 = vpop.permute.xlu0 %3694
      %3696 = vrot.lane.b32.xlu0 %v1077, 120
      %v3697 = vpop.permute.xlu0 %3696
      %3698 = vrot.lane.b32.xlu0 %v1078, 120
      %v3699 = vpop.permute.xlu0 %3698
      %3700 = vrot.lane.b32.xlu0 %v1079, 120
      %v3701 = vpop.permute.xlu0 %3700
      %3702 = vrot.lane.b32.xlu0 %v1080, 120
      %v3703 = vpop.permute.xlu0 %3702
      %3704 = vrot.lane.b32.xlu0 %v1081, 120
      %v3705 = vpop.permute.xlu0 %3704
      %3706 = vrot.lane.b32.xlu0 %v1082, 120
      %v3707 = vpop.permute.xlu0 %3706
      %3708 = vrot.lane.b32.xlu0 %v1083, 120
      %v3709 = vpop.permute.xlu0 %3708
      %3710 = vrot.lane.b32.xlu0 %v1084, 120
      %v3711 = vpop.permute.xlu0 %3710
      %3712 = vrot.lane.b32.xlu0 %v1085, 120
      %v3713 = vpop.permute.xlu0 %3712
      %3714 = vrot.lane.b32.xlu0 %v1086, 120
      %v3715 = vpop.permute.xlu0 %3714
      %3716 = vrot.lane.b32.xlu0 %v565, 120
      %v3717 = vpop.permute.xlu0 %3716
      %3718 = vrot.lane.b32.xlu0 %v570, 120
      %v3719 = vpop.permute.xlu0 %3718
      %3720 = vrot.lane.b32.xlu0 %v575, 120
      %v3721 = vpop.permute.xlu0 %3720
      %3722 = vrot.lane.b32.xlu0 %v580, 120
      %v3723 = vpop.permute.xlu0 %3722
      %3724 = vrot.lane.b32.xlu0 %v585, 120
      %v3725 = vpop.permute.xlu0 %3724
      %3726 = vrot.lane.b32.xlu0 %v590, 120
      %v3727 = vpop.permute.xlu0 %3726
      %3728 = vrot.lane.b32.xlu0 %v595, 120
      %v3729 = vpop.permute.xlu0 %3728
      %3730 = vrot.lane.b32.xlu0 %v600, 120
      %v3731 = vpop.permute.xlu0 %3730
      %3732 = vrot.lane.b32.xlu0 %v605, 120
      %v3733 = vpop.permute.xlu0 %3732
      %3734 = vrot.lane.b32.xlu0 %v610, 120
      %v3735 = vpop.permute.xlu0 %3734
      %3736 = vrot.lane.b32.xlu0 %v615, 120
      %v3737 = vpop.permute.xlu0 %3736
      %3738 = vrot.lane.b32.xlu0 %v620, 120
      %v3739 = vpop.permute.xlu0 %3738
      %3740 = vrot.lane.b32.xlu0 %v625, 120
      %v3741 = vpop.permute.xlu0 %3740
      %3742 = vrot.lane.b32.xlu0 %v630, 120
      %v3743 = vpop.permute.xlu0 %3742
      %3744 = vrot.lane.b32.xlu0 %v635, 120
      %v3745 = vpop.permute.xlu0 %3744
      %3746 = vrot.lane.b32.xlu0 %v640, 120
      %v3747 = vpop.permute.xlu0 %3746
      %3748 = vrot.lane.b32.xlu0 %v645, 120
      %v3749 = vpop.permute.xlu0 %3748
      %3750 = vrot.lane.b32.xlu0 %v650, 120
      %v3751 = vpop.permute.xlu0 %3750
      %3752 = vrot.lane.b32.xlu0 %v655, 120
      %v3753 = vpop.permute.xlu0 %3752
      %3754 = vrot.lane.b32.xlu0 %v660, 120
      %v3755 = vpop.permute.xlu0 %3754
      %3756 = vrot.lane.b32.xlu0 %v665, 120
      %v3757 = vpop.permute.xlu0 %3756
      %3758 = vrot.lane.b32.xlu0 %v670, 120
      %v3759 = vpop.permute.xlu0 %3758
      %3760 = vrot.lane.b32.xlu0 %v675, 120
      %v3761 = vpop.permute.xlu0 %3760
      %3762 = vrot.lane.b32.xlu0 %v680, 120
      %v3763 = vpop.permute.xlu0 %3762
      %3764 = vrot.lane.b32.xlu0 %v685, 120
      %v3765 = vpop.permute.xlu0 %3764
      %3766 = vrot.lane.b32.xlu0 %v690, 120
      %v3767 = vpop.permute.xlu0 %3766
      %3768 = vrot.lane.b32.xlu0 %v695, 120
      %v3769 = vpop.permute.xlu0 %3768
      %3770 = vrot.lane.b32.xlu0 %v700, 120
      %v3771 = vpop.permute.xlu0 %3770
      %3772 = vrot.lane.b32.xlu0 %v705, 120
      %v3773 = vpop.permute.xlu0 %3772
      %3774 = vrot.lane.b32.xlu0 %v710, 120
      %v3775 = vpop.permute.xlu0 %3774
      %3776 = vrot.lane.b32.xlu0 %v715, 120
      %v3777 = vpop.permute.xlu0 %3776
      %3778 = vrot.lane.b32.xlu0 %v720, 120
      %v3779 = vpop.permute.xlu0 %3778
      %v3780 = vsel %vm1087, %v3653, 0
      %v3782 = vsel %vm1087, %v3655, 0
      %v3784 = vsel %vm1087, %v3657, 0
      %v3786 = vsel %vm1087, %v3659, 0
      %v3788 = vsel %vm1087, %v3661, 0
      %v3790 = vsel %vm1087, %v3663, 0
      %v3792 = vsel %vm1087, %v3665, 0
      %v3794 = vsel %vm1087, %v3667, 0
      %v3796 = vsel %vm1087, %v3669, 0
      %v3798 = vsel %vm1087, %v3671, 0
      %v3800 = vsel %vm1087, %v3673, 0
      %v3802 = vsel %vm1087, %v3675, 0
      %v3804 = vsel %vm1087, %v3677, 0
      %v3806 = vsel %vm1087, %v3679, 0
      %v3808 = vsel %vm1087, %v3681, 0
      %v3810 = vsel %vm1087, %v3683, 0
      %v3812 = vsel %vm1087, %v3685, 0
      %v3814 = vsel %vm1087, %v3687, 0
      %v3816 = vsel %vm1087, %v3689, 0
      %v3818 = vsel %vm1087, %v3691, 0
      %v3820 = vsel %vm1087, %v3693, 0
      %v3822 = vsel %vm1087, %v3695, 0
      %v3824 = vsel %vm1087, %v3697, 0
      %v3826 = vsel %vm1087, %v3699, 0
      %v3828 = vsel %vm1087, %v3701, 0
      %v3830 = vsel %vm1087, %v3703, 0
      %v3832 = vsel %vm1087, %v3705, 0
      %v3834 = vsel %vm1087, %v3707, 0
      %v3836 = vsel %vm1087, %v3709, 0
      %v3838 = vsel %vm1087, %v3711, 0
      %v3840 = vsel %vm1087, %v3713, 0
      %v3842 = vsel %vm1087, %v3715, 0
      %v3844 = vsel %vm1087, %v3717, 0
      %v3846 = vsel %vm1087, %v3719, 0
      %v3848 = vsel %vm1087, %v3721, 0
      %v3850 = vsel %vm1087, %v3723, 0
      %v3852 = vsel %vm1087, %v3725, 0
      %v3854 = vsel %vm1087, %v3727, 0
      %v3856 = vsel %vm1087, %v3729, 0
      %v3858 = vsel %vm1087, %v3731, 0
      %v3860 = vsel %vm1087, %v3733, 0
      %v3862 = vsel %vm1087, %v3735, 0
      %v3864 = vsel %vm1087, %v3737, 0
      %v3866 = vsel %vm1087, %v3739, 0
      %v3868 = vsel %vm1087, %v3741, 0
      %v3870 = vsel %vm1087, %v3743, 0
      %v3872 = vsel %vm1087, %v3745, 0
      %v3874 = vsel %vm1087, %v3747, 0
      %v3876 = vsel %vm1087, %v3749, 0
      %v3878 = vsel %vm1087, %v3751, 0
      %v3880 = vsel %vm1087, %v3753, 0
      %v3882 = vsel %vm1087, %v3755, 0
      %v3884 = vsel %vm1087, %v3757, 0
      %v3886 = vsel %vm1087, %v3759, 0
      %v3888 = vsel %vm1087, %v3761, 0
      %v3890 = vsel %vm1087, %v3763, 0
      %v3892 = vsel %vm1087, %v3765, 0
      %v3894 = vsel %vm1087, %v3767, 0
      %v3896 = vsel %vm1087, %v3769, 0
      %v3898 = vsel %vm1087, %v3771, 0
      %v3900 = vsel %vm1087, %v3773, 0
      %v3902 = vsel %vm1087, %v3775, 0
      %v3904 = vsel %vm1087, %v3777, 0
      %v3906 = vsel %vm1087, %v3779, 0
      %3908 = vmatprep.subr.mxu0 0.0
      %3909 = vmatpush1.xpose.msra.mxu0 %v3874
      %3910 = vmatprep.subr.mxu0 0.0
      %3911 = vmatpush1.xpose.msra.mxu0 %v3872
      %3912 = vmatprep.subr.mxu0 0.0
      %3913 = vmatpush1.xpose.msra.mxu0 %v3870
      %3914 = vmatprep.subr.mxu0 0.0
      %3915 = vmatpush1.xpose.msra.mxu0 %v3868
      %3916 = vmatprep.subr.mxu0 0.0
      %3917 = vmatpush1.xpose.msra.mxu0 %v3866
      %3918 = vmatprep.subr.mxu0 0.0
      %3919 = vmatpush1.xpose.msra.mxu0 %v3864
      %3920 = vmatprep.subr.mxu0 0.0
      %3921 = vmatpush1.xpose.msra.mxu0 %v3862
      %3922 = vmatprep.subr.mxu0 0.0
      %3923 = vmatpush1.xpose.msra.mxu0 %v3860
      %3924 = vmatprep.subr.mxu0 0.0
      %3925 = vmatpush1.xpose.msra.mxu0 %v3858
      %3926 = vmatprep.subr.mxu0 0.0
      %3927 = vmatpush1.xpose.msra.mxu0 %v3856
      %3928 = vmatprep.subr.mxu0 0.0
      %3929 = vmatpush1.xpose.msra.mxu0 %v3854
      %3930 = vmatprep.subr.mxu0 0.0
      %3931 = vmatpush1.xpose.msra.mxu0 %v3852
      %3932 = vmatprep.subr.mxu0 0.0
      %3933 = vmatpush1.xpose.msra.mxu0 %v3850
      %3934 = vmatprep.subr.mxu0 0.0
      %3935 = vmatpush1.xpose.msra.mxu0 %v3848
      %3936 = vmatprep.subr.mxu0 0.0
      %3937 = vmatpush1.xpose.msra.mxu0 %v3846
      %3938 = vmatprep.subr.mxu0 0.0
      %3939 = vmatpush1.xpose.msra.mxu0 %v3844
      %3940 = vmatprep.subr.mxu0 0.0
      %3941 = vmatpush2.xpose.msra.mxu0 %v3906
      %3942 = vmatprep.subr.mxu0 0.0
      %3943 = vmatpush2.xpose.msra.mxu0 %v3904
      %3944 = vmatprep.subr.mxu0 0.0
      %3945 = vmatpush2.xpose.msra.mxu0 %v3902
      %3946 = vmatprep.subr.mxu0 0.0
      %3947 = vmatpush2.xpose.msra.mxu0 %v3900
      %3948 = vmatprep.subr.mxu0 0.0
      %3949 = vmatpush2.xpose.msra.mxu0 %v3898
      %3950 = vmatprep.subr.mxu0 0.0
      %3951 = vmatpush2.xpose.msra.mxu0 %v3896
      %3952 = vmatprep.subr.mxu0 0.0
      %3953 = vmatpush2.xpose.msra.mxu0 %v3894
      %3954 = vmatprep.subr.mxu0 0.0
      %3955 = vmatpush2.xpose.msra.mxu0 %v3892
      %3956 = vmatprep.subr.mxu0 0.0
      %3957 = vmatpush2.xpose.msra.mxu0 %v3890
      %3958 = vmatprep.subr.mxu0 0.0
      %3959 = vmatpush2.xpose.msra.mxu0 %v3888
      %3960 = vmatprep.subr.mxu0 0.0
      %3961 = vmatpush2.xpose.msra.mxu0 %v3886
      %3962 = vmatprep.subr.mxu0 0.0
      %3963 = vmatpush2.xpose.msra.mxu0 %v3884
      %3964 = vmatprep.subr.mxu0 0.0
      %3965 = vmatpush2.xpose.msra.mxu0 %v3882
      %3966 = vmatprep.subr.mxu0 0.0
      %3967 = vmatpush2.xpose.msra.mxu0 %v3880
      %3968 = vmatprep.subr.mxu0 0.0
      %3969 = vmatpush2.xpose.msra.mxu0 %v3878
      %3970 = vmatprep.subr.mxu0 0.0
      %3971 = vmatpush2.xpose.msra.mxu0 %v3876
      %3972 = vmatprep.mubr.f32.mxu0 0.0
      %3973 = vmatmul.mubr.f32.gmra.mxu0 %v3780
      %v3974 = vpop.f32.mrf.mxu0
      %v3975 = vadd.f32 0.0, %v3974
      %v3976 = vpop.f32.mrf.mxu0
      %v3977 = vadd.f32 0.0, %v3976
      %3978 = vmatprep.mubr.f32.mxu0 0.0
      %3979 = vmatmul.mubr.f32.gmra.mxu0 %v3782
      %v3980 = vpop.f32.mrf.mxu0
      %v3981 = vadd.f32 0.0, %v3980
      %v3982 = vpop.f32.mrf.mxu0
      %v3983 = vadd.f32 0.0, %v3982
      %3984 = vmatprep.mubr.f32.mxu0 0.0
      %3985 = vmatmul.mubr.f32.gmra.mxu0 %v3784
      %v3986 = vpop.f32.mrf.mxu0
      %v3987 = vadd.f32 0.0, %v3986
      %v3988 = vpop.f32.mrf.mxu0
      %v3989 = vadd.f32 0.0, %v3988
      %3990 = vmatprep.mubr.f32.mxu0 0.0
      %3991 = vmatmul.mubr.f32.gmra.mxu0 %v3786
      %v3992 = vpop.f32.mrf.mxu0
      %v3993 = vadd.f32 0.0, %v3992
      %v3994 = vpop.f32.mrf.mxu0
      %v3995 = vadd.f32 0.0, %v3994
      %3996 = vmatprep.mubr.f32.mxu0 0.0
      %3997 = vmatmul.mubr.f32.gmra.mxu0 %v3788
      %v3998 = vpop.f32.mrf.mxu0
      %v3999 = vadd.f32 0.0, %v3998
      %v4000 = vpop.f32.mrf.mxu0
      %v4001 = vadd.f32 0.0, %v4000
      %4002 = vmatprep.mubr.f32.mxu0 0.0
      %4003 = vmatmul.mubr.f32.gmra.mxu0 %v3790
      %v4004 = vpop.f32.mrf.mxu0
      %v4005 = vadd.f32 0.0, %v4004
      %v4006 = vpop.f32.mrf.mxu0
      %v4007 = vadd.f32 0.0, %v4006
      %4008 = vmatprep.mubr.f32.mxu0 0.0
      %4009 = vmatmul.mubr.f32.gmra.mxu0 %v3792
      %v4010 = vpop.f32.mrf.mxu0
      %v4011 = vadd.f32 0.0, %v4010
      %v4012 = vpop.f32.mrf.mxu0
      %v4013 = vadd.f32 0.0, %v4012
      %4014 = vmatprep.mubr.f32.mxu0 0.0
      %4015 = vmatmul.mubr.f32.gmra.mxu0 %v3794
      %v4016 = vpop.f32.mrf.mxu0
      %v4017 = vadd.f32 0.0, %v4016
      %v4018 = vpop.f32.mrf.mxu0
      %v4019 = vadd.f32 0.0, %v4018
      %4020 = vmatprep.mubr.f32.mxu0 0.0
      %4021 = vmatmul.mubr.f32.gmra.mxu0 %v3796
      %v4022 = vpop.f32.mrf.mxu0
      %v4023 = vadd.f32 0.0, %v4022
      %v4024 = vpop.f32.mrf.mxu0
      %v4025 = vadd.f32 0.0, %v4024
      %4026 = vmatprep.mubr.f32.mxu0 0.0
      %4027 = vmatmul.mubr.f32.gmra.mxu0 %v3798
      %v4028 = vpop.f32.mrf.mxu0
      %v4029 = vadd.f32 0.0, %v4028
      %v4030 = vpop.f32.mrf.mxu0
      %v4031 = vadd.f32 0.0, %v4030
      %4032 = vmatprep.mubr.f32.mxu0 0.0
      %4033 = vmatmul.mubr.f32.gmra.mxu0 %v3800
      %v4034 = vpop.f32.mrf.mxu0
      %v4035 = vadd.f32 0.0, %v4034
      %v4036 = vpop.f32.mrf.mxu0
      %v4037 = vadd.f32 0.0, %v4036
      %4038 = vmatprep.mubr.f32.mxu0 0.0
      %4039 = vmatmul.mubr.f32.gmra.mxu0 %v3802
      %v4040 = vpop.f32.mrf.mxu0
      %v4041 = vadd.f32 0.0, %v4040
      %v4042 = vpop.f32.mrf.mxu0
      %v4043 = vadd.f32 0.0, %v4042
      %4044 = vmatprep.mubr.f32.mxu0 0.0
      %4045 = vmatmul.mubr.f32.gmra.mxu0 %v3804
      %v4046 = vpop.f32.mrf.mxu0
      %v4047 = vadd.f32 0.0, %v4046
      %v4048 = vpop.f32.mrf.mxu0
      %v4049 = vadd.f32 0.0, %v4048
      %4050 = vmatprep.mubr.f32.mxu0 0.0
      %4051 = vmatmul.mubr.f32.gmra.mxu0 %v3806
      %v4052 = vpop.f32.mrf.mxu0
      %v4053 = vadd.f32 0.0, %v4052
      %v4054 = vpop.f32.mrf.mxu0
      %v4055 = vadd.f32 0.0, %v4054
      %4056 = vmatprep.mubr.f32.mxu0 0.0
      %4057 = vmatmul.mubr.f32.gmra.mxu0 %v3808
      %v4058 = vpop.f32.mrf.mxu0
      %v4059 = vadd.f32 0.0, %v4058
      %v4060 = vpop.f32.mrf.mxu0
      %v4061 = vadd.f32 0.0, %v4060
      %4062 = vmatprep.mubr.f32.mxu0 0.0
      %4063 = vmatmul.mubr.f32.gmra.mxu0 %v3810
      %v4064 = vpop.f32.mrf.mxu0
      %v4065 = vadd.f32 0.0, %v4064
      %v4066 = vpop.f32.mrf.mxu0
      %v4067 = vadd.f32 0.0, %v4066
      %4068 = vmatprep.mubr.f32.mxu0 0.0
      %4069 = vmatmul.mubr.f32.gmra.mxu0 %v3812
      %v4070 = vpop.f32.mrf.mxu0
      %v4071 = vadd.f32 0.0, %v4070
      %v4072 = vpop.f32.mrf.mxu0
      %v4073 = vadd.f32 0.0, %v4072
      %4074 = vmatprep.mubr.f32.mxu0 0.0
      %4075 = vmatmul.mubr.f32.gmra.mxu0 %v3814
      %v4076 = vpop.f32.mrf.mxu0
      %v4077 = vadd.f32 0.0, %v4076
      %v4078 = vpop.f32.mrf.mxu0
      %v4079 = vadd.f32 0.0, %v4078
      %4080 = vmatprep.mubr.f32.mxu0 0.0
      %4081 = vmatmul.mubr.f32.gmra.mxu0 %v3816
      %v4082 = vpop.f32.mrf.mxu0
      %v4083 = vadd.f32 0.0, %v4082
      %v4084 = vpop.f32.mrf.mxu0
      %v4085 = vadd.f32 0.0, %v4084
      %4086 = vmatprep.mubr.f32.mxu0 0.0
      %4087 = vmatmul.mubr.f32.gmra.mxu0 %v3818
      %v4088 = vpop.f32.mrf.mxu0
      %v4089 = vadd.f32 0.0, %v4088
      %v4090 = vpop.f32.mrf.mxu0
      %v4091 = vadd.f32 0.0, %v4090
      %4092 = vmatprep.mubr.f32.mxu0 0.0
      %4093 = vmatmul.mubr.f32.gmra.mxu0 %v3820
      %v4094 = vpop.f32.mrf.mxu0
      %v4095 = vadd.f32 0.0, %v4094
      %v4096 = vpop.f32.mrf.mxu0
      %v4097 = vadd.f32 0.0, %v4096
      %4098 = vmatprep.mubr.f32.mxu0 0.0
      %4099 = vmatmul.mubr.f32.gmra.mxu0 %v3822
      %v4100 = vpop.f32.mrf.mxu0
      %v4101 = vadd.f32 0.0, %v4100
      %v4102 = vpop.f32.mrf.mxu0
      %v4103 = vadd.f32 0.0, %v4102
      %4104 = vmatprep.mubr.f32.mxu0 0.0
      %4105 = vmatmul.mubr.f32.gmra.mxu0 %v3824
      %v4106 = vpop.f32.mrf.mxu0
      %v4107 = vadd.f32 0.0, %v4106
      %v4108 = vpop.f32.mrf.mxu0
      %v4109 = vadd.f32 0.0, %v4108
      %4110 = vmatprep.mubr.f32.mxu0 0.0
      %4111 = vmatmul.mubr.f32.gmra.mxu0 %v3826
      %v4112 = vpop.f32.mrf.mxu0
      %v4113 = vadd.f32 0.0, %v4112
      %v4114 = vpop.f32.mrf.mxu0
      %v4115 = vadd.f32 0.0, %v4114
      %4116 = vmatprep.mubr.f32.mxu0 0.0
      %4117 = vmatmul.mubr.f32.gmra.mxu0 %v3828
      %v4118 = vpop.f32.mrf.mxu0
      %v4119 = vadd.f32 0.0, %v4118
      %v4120 = vpop.f32.mrf.mxu0
      %v4121 = vadd.f32 0.0, %v4120
      %4122 = vmatprep.mubr.f32.mxu0 0.0
      %4123 = vmatmul.mubr.f32.gmra.mxu0 %v3830
      %v4124 = vpop.f32.mrf.mxu0
      %v4125 = vadd.f32 0.0, %v4124
      %v4126 = vpop.f32.mrf.mxu0
      %v4127 = vadd.f32 0.0, %v4126
      %4128 = vmatprep.mubr.f32.mxu0 0.0
      %4129 = vmatmul.mubr.f32.gmra.mxu0 %v3832
      %v4130 = vpop.f32.mrf.mxu0
      %v4131 = vadd.f32 0.0, %v4130
      %v4132 = vpop.f32.mrf.mxu0
      %v4133 = vadd.f32 0.0, %v4132
      %4134 = vmatprep.mubr.f32.mxu0 0.0
      %4135 = vmatmul.mubr.f32.gmra.mxu0 %v3834
      %v4136 = vpop.f32.mrf.mxu0
      %v4137 = vadd.f32 0.0, %v4136
      %v4138 = vpop.f32.mrf.mxu0
      %v4139 = vadd.f32 0.0, %v4138
      %4140 = vmatprep.mubr.f32.mxu0 0.0
      %4141 = vmatmul.mubr.f32.gmra.mxu0 %v3836
      %v4142 = vpop.f32.mrf.mxu0
      %v4143 = vadd.f32 0.0, %v4142
      %v4144 = vpop.f32.mrf.mxu0
      %v4145 = vadd.f32 0.0, %v4144
      %4146 = vmatprep.mubr.f32.mxu0 0.0
      %4147 = vmatmul.mubr.f32.gmra.mxu0 %v3838
      %v4148 = vpop.f32.mrf.mxu0
      %v4149 = vadd.f32 0.0, %v4148
      %v4150 = vpop.f32.mrf.mxu0
      %v4151 = vadd.f32 0.0, %v4150
      %4152 = vmatprep.mubr.f32.mxu0 0.0
      %4153 = vmatmul.mubr.f32.gmra.mxu0 %v3840
      %v4154 = vpop.f32.mrf.mxu0
      %v4155 = vadd.f32 0.0, %v4154
      %v4156 = vpop.f32.mrf.mxu0
      %v4157 = vadd.f32 0.0, %v4156
      %4158 = vmatprep.mubr.f32.mxu0 0.0
      %4159 = vmatmul.mubr.f32.gmra.mxu0 %v3842
      %v4160 = vpop.f32.mrf.mxu0
      %v4161 = vadd.f32 0.0, %v4160
      %v4162 = vpop.f32.mrf.mxu0
      %v4163 = vadd.f32 0.0, %v4162
      %4164 = vdwg.mxu0
      %v4165 = vmax.f32 %v3975, %v3977
      %4166 = vmax.xlane.f32.xlu0 %v4165
      %v4167 = vpop.xlane.xlu0 %4166
      %v4168 = vmax.f32 %v3981, %v3983
      %4169 = vmax.xlane.f32.xlu0 %v4168
      %v4170 = vpop.xlane.xlu0 %4169
      %v4171 = vmax.f32 %v3987, %v3989
      %4172 = vmax.xlane.f32.xlu0 %v4171
      %v4173 = vpop.xlane.xlu0 %4172
      %v4174 = vmax.f32 %v3993, %v3995
      %4175 = vmax.xlane.f32.xlu0 %v4174
      %v4176 = vpop.xlane.xlu0 %4175
      %v4177 = vmax.f32 %v3999, %v4001
      %4178 = vmax.xlane.f32.xlu0 %v4177
      %v4179 = vpop.xlane.xlu0 %4178
      %v4180 = vmax.f32 %v4005, %v4007
      %4181 = vmax.xlane.f32.xlu0 %v4180
      %v4182 = vpop.xlane.xlu0 %4181
      %v4183 = vmax.f32 %v4011, %v4013
      %4184 = vmax.xlane.f32.xlu0 %v4183
      %v4185 = vpop.xlane.xlu0 %4184
      %v4186 = vmax.f32 %v4017, %v4019
      %4187 = vmax.xlane.f32.xlu0 %v4186
      %v4188 = vpop.xlane.xlu0 %4187
      %v4189 = vmax.f32 %v4023, %v4025
      %4190 = vmax.xlane.f32.xlu0 %v4189
      %v4191 = vpop.xlane.xlu0 %4190
      %v4192 = vmax.f32 %v4029, %v4031
      %4193 = vmax.xlane.f32.xlu0 %v4192
      %v4194 = vpop.xlane.xlu0 %4193
      %v4195 = vmax.f32 %v4035, %v4037
      %4196 = vmax.xlane.f32.xlu0 %v4195
      %v4197 = vpop.xlane.xlu0 %4196
      %v4198 = vmax.f32 %v4041, %v4043
      %4199 = vmax.xlane.f32.xlu0 %v4198
      %v4200 = vpop.xlane.xlu0 %4199
      %v4201 = vmax.f32 %v4047, %v4049
      %4202 = vmax.xlane.f32.xlu0 %v4201
      %v4203 = vpop.xlane.xlu0 %4202
      %v4204 = vmax.f32 %v4053, %v4055
      %4205 = vmax.xlane.f32.xlu0 %v4204
      %v4206 = vpop.xlane.xlu0 %4205
      %v4207 = vmax.f32 %v4059, %v4061
      %4208 = vmax.xlane.f32.xlu0 %v4207
      %v4209 = vpop.xlane.xlu0 %4208
      %v4210 = vmax.f32 %v4065, %v4067
      %4211 = vmax.xlane.f32.xlu0 %v4210
      %v4212 = vpop.xlane.xlu0 %4211
      %v4213 = vmax.f32 %v4071, %v4073
      %4214 = vmax.xlane.f32.xlu0 %v4213
      %v4215 = vpop.xlane.xlu0 %4214
      %v4216 = vmax.f32 %v4077, %v4079
      %4217 = vmax.xlane.f32.xlu0 %v4216
      %v4218 = vpop.xlane.xlu0 %4217
      %v4219 = vmax.f32 %v4083, %v4085
      %4220 = vmax.xlane.f32.xlu0 %v4219
      %v4221 = vpop.xlane.xlu0 %4220
      %v4222 = vmax.f32 %v4089, %v4091
      %4223 = vmax.xlane.f32.xlu0 %v4222
      %v4224 = vpop.xlane.xlu0 %4223
      %v4225 = vmax.f32 %v4095, %v4097
      %4226 = vmax.xlane.f32.xlu0 %v4225
      %v4227 = vpop.xlane.xlu0 %4226
      %v4228 = vmax.f32 %v4101, %v4103
      %4229 = vmax.xlane.f32.xlu0 %v4228
      %v4230 = vpop.xlane.xlu0 %4229
      %v4231 = vmax.f32 %v4107, %v4109
      %4232 = vmax.xlane.f32.xlu0 %v4231
      %v4233 = vpop.xlane.xlu0 %4232
      %v4234 = vmax.f32 %v4113, %v4115
      %4235 = vmax.xlane.f32.xlu0 %v4234
      %v4236 = vpop.xlane.xlu0 %4235
      %v4237 = vmax.f32 %v4119, %v4121
      %4238 = vmax.xlane.f32.xlu0 %v4237
      %v4239 = vpop.xlane.xlu0 %4238
      %v4240 = vmax.f32 %v4125, %v4127
      %4241 = vmax.xlane.f32.xlu0 %v4240
      %v4242 = vpop.xlane.xlu0 %4241
      %v4243 = vmax.f32 %v4131, %v4133
      %4244 = vmax.xlane.f32.xlu0 %v4243
      %v4245 = vpop.xlane.xlu0 %4244
      %v4246 = vmax.f32 %v4137, %v4139
      %4247 = vmax.xlane.f32.xlu0 %v4246
      %v4248 = vpop.xlane.xlu0 %4247
      %v4249 = vmax.f32 %v4143, %v4145
      %4250 = vmax.xlane.f32.xlu0 %v4249
      %v4251 = vpop.xlane.xlu0 %4250
      %v4252 = vmax.f32 %v4149, %v4151
      %4253 = vmax.xlane.f32.xlu0 %v4252
      %v4254 = vpop.xlane.xlu0 %4253
      %v4255 = vmax.f32 %v4155, %v4157
      %4256 = vmax.xlane.f32.xlu0 %v4255
      %v4257 = vpop.xlane.xlu0 %4256
      %v4258 = vmax.f32 %v4161, %v4163
      %4259 = vmax.xlane.f32.xlu0 %v4258
      %v4260 = vpop.xlane.xlu0 %4259
      %v4261 = vsub.f32 %v3975, %v4167
      %v4262 = vsub.f32 %v3977, %v4167
      %v4263 = vsub.f32 %v3981, %v4170
      %v4264 = vsub.f32 %v3983, %v4170
      %v4265 = vsub.f32 %v3987, %v4173
      %v4266 = vsub.f32 %v3989, %v4173
      %v4267 = vsub.f32 %v3993, %v4176
      %v4268 = vsub.f32 %v3995, %v4176
      %v4269 = vsub.f32 %v3999, %v4179
      %v4270 = vsub.f32 %v4001, %v4179
      %v4271 = vsub.f32 %v4005, %v4182
      %v4272 = vsub.f32 %v4007, %v4182
      %v4273 = vsub.f32 %v4011, %v4185
      %v4274 = vsub.f32 %v4013, %v4185
      %v4275 = vsub.f32 %v4017, %v4188
      %v4276 = vsub.f32 %v4019, %v4188
      %v4277 = vsub.f32 %v4023, %v4191
      %v4278 = vsub.f32 %v4025, %v4191
      %v4279 = vsub.f32 %v4029, %v4194
      %v4280 = vsub.f32 %v4031, %v4194
      %v4281 = vsub.f32 %v4035, %v4197
      %v4282 = vsub.f32 %v4037, %v4197
      %v4283 = vsub.f32 %v4041, %v4200
      %v4284 = vsub.f32 %v4043, %v4200
      %v4285 = vsub.f32 %v4047, %v4203
      %v4286 = vsub.f32 %v4049, %v4203
      %v4287 = vsub.f32 %v4053, %v4206
      %v4288 = vsub.f32 %v4055, %v4206
      %v4289 = vsub.f32 %v4059, %v4209
      %v4290 = vsub.f32 %v4061, %v4209
      %v4291 = vsub.f32 %v4065, %v4212
      %v4292 = vsub.f32 %v4067, %v4212
      %v4293 = vsub.f32 %v4071, %v4215
      %v4294 = vsub.f32 %v4073, %v4215
      %v4295 = vsub.f32 %v4077, %v4218
      %v4296 = vsub.f32 %v4079, %v4218
      %v4297 = vsub.f32 %v4083, %v4221
      %v4298 = vsub.f32 %v4085, %v4221
      %v4299 = vsub.f32 %v4089, %v4224
      %v4300 = vsub.f32 %v4091, %v4224
      %v4301 = vsub.f32 %v4095, %v4227
      %v4302 = vsub.f32 %v4097, %v4227
      %v4303 = vsub.f32 %v4101, %v4230
      %v4304 = vsub.f32 %v4103, %v4230
      %v4305 = vsub.f32 %v4107, %v4233
      %v4306 = vsub.f32 %v4109, %v4233
      %v4307 = vsub.f32 %v4113, %v4236
      %v4308 = vsub.f32 %v4115, %v4236
      %v4309 = vsub.f32 %v4119, %v4239
      %v4310 = vsub.f32 %v4121, %v4239
      %v4311 = vsub.f32 %v4125, %v4242
      %v4312 = vsub.f32 %v4127, %v4242
      %v4313 = vsub.f32 %v4131, %v4245
      %v4314 = vsub.f32 %v4133, %v4245
      %v4315 = vsub.f32 %v4137, %v4248
      %v4316 = vsub.f32 %v4139, %v4248
      %v4317 = vsub.f32 %v4143, %v4251
      %v4318 = vsub.f32 %v4145, %v4251
      %v4319 = vsub.f32 %v4149, %v4254
      %v4320 = vsub.f32 %v4151, %v4254
      %v4321 = vsub.f32 %v4155, %v4257
      %v4322 = vsub.f32 %v4157, %v4257
      %v4323 = vsub.f32 %v4161, %v4260
      %v4324 = vsub.f32 %v4163, %v4260
      %v4325 = vmul.f32 %v4261, 1.442695
      %v4326 = vpow.pop %v4325
      %v4327 = vmul.f32 %v4262, 1.442695
      %v4328 = vpow.pop %v4327
      %v4329 = vmul.f32 %v4263, 1.442695
      %v4330 = vpow.pop %v4329
      %v4331 = vmul.f32 %v4264, 1.442695
      %v4332 = vpow.pop %v4331
      %v4333 = vmul.f32 %v4265, 1.442695
      %v4334 = vpow.pop %v4333
      %v4335 = vmul.f32 %v4266, 1.442695
      %v4336 = vpow.pop %v4335
      %v4337 = vmul.f32 %v4267, 1.442695
      %v4338 = vpow.pop %v4337
      %v4339 = vmul.f32 %v4268, 1.442695
      %v4340 = vpow.pop %v4339
      %v4341 = vmul.f32 %v4269, 1.442695
      %v4342 = vpow.pop %v4341
      %v4343 = vmul.f32 %v4270, 1.442695
      %v4344 = vpow.pop %v4343
      %v4345 = vmul.f32 %v4271, 1.442695
      %v4346 = vpow.pop %v4345
      %v4347 = vmul.f32 %v4272, 1.442695
      %v4348 = vpow.pop %v4347
      %v4349 = vmul.f32 %v4273, 1.442695
      %v4350 = vpow.pop %v4349
      %v4351 = vmul.f32 %v4274, 1.442695
      %v4352 = vpow.pop %v4351
      %v4353 = vmul.f32 %v4275, 1.442695
      %v4354 = vpow.pop %v4353
      %v4355 = vmul.f32 %v4276, 1.442695
      %v4356 = vpow.pop %v4355
      %v4357 = vmul.f32 %v4277, 1.442695
      %v4358 = vpow.pop %v4357
      %v4359 = vmul.f32 %v4278, 1.442695
      %v4360 = vpow.pop %v4359
      %v4361 = vmul.f32 %v4279, 1.442695
      %v4362 = vpow.pop %v4361
      %v4363 = vmul.f32 %v4280, 1.442695
      %v4364 = vpow.pop %v4363
      %v4365 = vmul.f32 %v4281, 1.442695
      %v4366 = vpow.pop %v4365
      %v4367 = vmul.f32 %v4282, 1.442695
      %v4368 = vpow.pop %v4367
      %v4369 = vmul.f32 %v4283, 1.442695
      %v4370 = vpow.pop %v4369
      %v4371 = vmul.f32 %v4284, 1.442695
      %v4372 = vpow.pop %v4371
      %v4373 = vmul.f32 %v4285, 1.442695
      %v4374 = vpow.pop %v4373
      %v4375 = vmul.f32 %v4286, 1.442695
      %v4376 = vpow.pop %v4375
      %v4377 = vmul.f32 %v4287, 1.442695
      %v4378 = vpow.pop %v4377
      %v4379 = vmul.f32 %v4288, 1.442695
      %v4380 = vpow.pop %v4379
      %v4381 = vmul.f32 %v4289, 1.442695
      %v4382 = vpow.pop %v4381
      %v4383 = vmul.f32 %v4290, 1.442695
      %v4384 = vpow.pop %v4383
      %v4385 = vmul.f32 %v4291, 1.442695
      %v4386 = vpow.pop %v4385
      %v4387 = vmul.f32 %v4292, 1.442695
      %v4388 = vpow.pop %v4387
      %v4389 = vmul.f32 %v4293, 1.442695
      %v4390 = vpow.pop %v4389
      %v4391 = vmul.f32 %v4294, 1.442695
      %v4392 = vpow.pop %v4391
      %v4393 = vmul.f32 %v4295, 1.442695
      %v4394 = vpow.pop %v4393
      %v4395 = vmul.f32 %v4296, 1.442695
      %v4396 = vpow.pop %v4395
      %v4397 = vmul.f32 %v4297, 1.442695
      %v4398 = vpow.pop %v4397
      %v4399 = vmul.f32 %v4298, 1.442695
      %v4400 = vpow.pop %v4399
      %v4401 = vmul.f32 %v4299, 1.442695
      %v4402 = vpow.pop %v4401
      %v4403 = vmul.f32 %v4300, 1.442695
      %v4404 = vpow.pop %v4403
      %v4405 = vmul.f32 %v4301, 1.442695
      %v4406 = vpow.pop %v4405
      %v4407 = vmul.f32 %v4302, 1.442695
      %v4408 = vpow.pop %v4407
      %v4409 = vmul.f32 %v4303, 1.442695
      %v4410 = vpow.pop %v4409
      %v4411 = vmul.f32 %v4304, 1.442695
      %v4412 = vpow.pop %v4411
      %v4413 = vmul.f32 %v4305, 1.442695
      %v4414 = vpow.pop %v4413
      %v4415 = vmul.f32 %v4306, 1.442695
      %v4416 = vpow.pop %v4415
      %v4417 = vmul.f32 %v4307, 1.442695
      %v4418 = vpow.pop %v4417
      %v4419 = vmul.f32 %v4308, 1.442695
      %v4420 = vpow.pop %v4419
      %v4421 = vmul.f32 %v4309, 1.442695
      %v4422 = vpow.pop %v4421
      %v4423 = vmul.f32 %v4310, 1.442695
      %v4424 = vpow.pop %v4423
      %v4425 = vmul.f32 %v4311, 1.442695
      %v4426 = vpow.pop %v4425
      %v4427 = vmul.f32 %v4312, 1.442695
      %v4428 = vpow.pop %v4427
      %v4429 = vmul.f32 %v4313, 1.442695
      %v4430 = vpow.pop %v4429
      %v4431 = vmul.f32 %v4314, 1.442695
      %v4432 = vpow.pop %v4431
      %v4433 = vmul.f32 %v4315, 1.442695
      %v4434 = vpow.pop %v4433
      %v4435 = vmul.f32 %v4316, 1.442695
      %v4436 = vpow.pop %v4435
      %v4437 = vmul.f32 %v4317, 1.442695
      %v4438 = vpow.pop %v4437
      %v4439 = vmul.f32 %v4318, 1.442695
      %v4440 = vpow.pop %v4439
      %v4441 = vmul.f32 %v4319, 1.442695
      %v4442 = vpow.pop %v4441
      %v4443 = vmul.f32 %v4320, 1.442695
      %v4444 = vpow.pop %v4443
      %v4445 = vmul.f32 %v4321, 1.442695
      %v4446 = vpow.pop %v4445
      %v4447 = vmul.f32 %v4322, 1.442695
      %v4448 = vpow.pop %v4447
      %v4449 = vmul.f32 %v4323, 1.442695
      %v4450 = vpow.pop %v4449
      %v4451 = vmul.f32 %v4324, 1.442695
      %v4452 = vpow.pop %v4451
      %v4453 = vadd.f32 %v4326, %v4328
      %4454 = vadd.xlane.f32.xlu0 %v4453
      %v4455 = vpop.xlane.xlu0 %4454
      %v4456 = vadd.f32 %v4330, %v4332
      %4457 = vadd.xlane.f32.xlu0 %v4456
      %v4458 = vpop.xlane.xlu0 %4457
      %v4459 = vadd.f32 %v4334, %v4336
      %4460 = vadd.xlane.f32.xlu0 %v4459
      %v4461 = vpop.xlane.xlu0 %4460
      %v4462 = vadd.f32 %v4338, %v4340
      %4463 = vadd.xlane.f32.xlu0 %v4462
      %v4464 = vpop.xlane.xlu0 %4463
      %v4465 = vadd.f32 %v4342, %v4344
      %4466 = vadd.xlane.f32.xlu0 %v4465
      %v4467 = vpop.xlane.xlu0 %4466
      %v4468 = vadd.f32 %v4346, %v4348
      %4469 = vadd.xlane.f32.xlu0 %v4468
      %v4470 = vpop.xlane.xlu0 %4469
      %v4471 = vadd.f32 %v4350, %v4352
      %4472 = vadd.xlane.f32.xlu0 %v4471
      %v4473 = vpop.xlane.xlu0 %4472
      %v4474 = vadd.f32 %v4354, %v4356
      %4475 = vadd.xlane.f32.xlu0 %v4474
      %v4476 = vpop.xlane.xlu0 %4475
      %v4477 = vadd.f32 %v4358, %v4360
      %4478 = vadd.xlane.f32.xlu0 %v4477
      %v4479 = vpop.xlane.xlu0 %4478
      %v4480 = vadd.f32 %v4362, %v4364
      %4481 = vadd.xlane.f32.xlu0 %v4480
      %v4482 = vpop.xlane.xlu0 %4481
      %v4483 = vadd.f32 %v4366, %v4368
      %4484 = vadd.xlane.f32.xlu0 %v4483
      %v4485 = vpop.xlane.xlu0 %4484
      %v4486 = vadd.f32 %v4370, %v4372
      %4487 = vadd.xlane.f32.xlu0 %v4486
      %v4488 = vpop.xlane.xlu0 %4487
      %v4489 = vadd.f32 %v4374, %v4376
      %4490 = vadd.xlane.f32.xlu0 %v4489
      %v4491 = vpop.xlane.xlu0 %4490
      %v4492 = vadd.f32 %v4378, %v4380
      %4493 = vadd.xlane.f32.xlu0 %v4492
      %v4494 = vpop.xlane.xlu0 %4493
      %v4495 = vadd.f32 %v4382, %v4384
      %4496 = vadd.xlane.f32.xlu0 %v4495
      %v4497 = vpop.xlane.xlu0 %4496
      %v4498 = vadd.f32 %v4386, %v4388
      %4499 = vadd.xlane.f32.xlu0 %v4498
      %v4500 = vpop.xlane.xlu0 %4499
      %v4501 = vadd.f32 %v4390, %v4392
      %4502 = vadd.xlane.f32.xlu0 %v4501
      %v4503 = vpop.xlane.xlu0 %4502
      %v4504 = vadd.f32 %v4394, %v4396
      %4505 = vadd.xlane.f32.xlu0 %v4504
      %v4506 = vpop.xlane.xlu0 %4505
      %v4507 = vadd.f32 %v4398, %v4400
      %4508 = vadd.xlane.f32.xlu0 %v4507
      %v4509 = vpop.xlane.xlu0 %4508
      %v4510 = vadd.f32 %v4402, %v4404
      %4511 = vadd.xlane.f32.xlu0 %v4510
      %v4512 = vpop.xlane.xlu0 %4511
      %v4513 = vadd.f32 %v4406, %v4408
      %4514 = vadd.xlane.f32.xlu0 %v4513
      %v4515 = vpop.xlane.xlu0 %4514
      %v4516 = vadd.f32 %v4410, %v4412
      %4517 = vadd.xlane.f32.xlu0 %v4516
      %v4518 = vpop.xlane.xlu0 %4517
      %v4519 = vadd.f32 %v4414, %v4416
      %4520 = vadd.xlane.f32.xlu0 %v4519
      %v4521 = vpop.xlane.xlu0 %4520
      %v4522 = vadd.f32 %v4418, %v4420
      %4523 = vadd.xlane.f32.xlu0 %v4522
      %v4524 = vpop.xlane.xlu0 %4523
      %v4525 = vadd.f32 %v4422, %v4424
      %4526 = vadd.xlane.f32.xlu0 %v4525
      %v4527 = vpop.xlane.xlu0 %4526
      %v4528 = vadd.f32 %v4426, %v4428
      %4529 = vadd.xlane.f32.xlu0 %v4528
      %v4530 = vpop.xlane.xlu0 %4529
      %v4531 = vadd.f32 %v4430, %v4432
      %4532 = vadd.xlane.f32.xlu0 %v4531
      %v4533 = vpop.xlane.xlu0 %4532
      %v4534 = vadd.f32 %v4434, %v4436
      %4535 = vadd.xlane.f32.xlu0 %v4534
      %v4536 = vpop.xlane.xlu0 %4535
      %v4537 = vadd.f32 %v4438, %v4440
      %4538 = vadd.xlane.f32.xlu0 %v4537
      %v4539 = vpop.xlane.xlu0 %4538
      %v4540 = vadd.f32 %v4442, %v4444
      %4541 = vadd.xlane.f32.xlu0 %v4540
      %v4542 = vpop.xlane.xlu0 %4541
      %v4543 = vadd.f32 %v4446, %v4448
      %4544 = vadd.xlane.f32.xlu0 %v4543
      %v4545 = vpop.xlane.xlu0 %4544
      %v4546 = vadd.f32 %v4450, %v4452
      %4547 = vadd.xlane.f32.xlu0 %v4546
      %v4548 = vpop.xlane.xlu0 %4547
      %v4549 = vrcp.pop %v4455
      %v4550 = vrcp.pop %v4458
      %v4551 = vrcp.pop %v4461
      %v4552 = vrcp.pop %v4464
      %v4553 = vrcp.pop %v4467
      %v4554 = vrcp.pop %v4470
      %v4555 = vrcp.pop %v4473
      %v4556 = vrcp.pop %v4476
      %v4557 = vrcp.pop %v4479
      %v4558 = vrcp.pop %v4482
      %v4559 = vrcp.pop %v4485
      %v4560 = vrcp.pop %v4488
      %v4561 = vrcp.pop %v4491
      %v4562 = vrcp.pop %v4494
      %v4563 = vrcp.pop %v4497
      %v4564 = vrcp.pop %v4500
      %v4565 = vrcp.pop %v4503
      %v4566 = vrcp.pop %v4506
      %v4567 = vrcp.pop %v4509
      %v4568 = vrcp.pop %v4512
      %v4569 = vrcp.pop %v4515
      %v4570 = vrcp.pop %v4518
      %v4571 = vrcp.pop %v4521
      %v4572 = vrcp.pop %v4524
      %v4573 = vrcp.pop %v4527
      %v4574 = vrcp.pop %v4530
      %v4575 = vrcp.pop %v4533
      %v4576 = vrcp.pop %v4536
      %v4577 = vrcp.pop %v4539
      %v4578 = vrcp.pop %v4542
      %v4579 = vrcp.pop %v4545
      %v4580 = vrcp.pop %v4548
      %v4581 = vmul.f32 %v4326, %v4549
      %v4582 = vmul.f32 %v4328, %v4549
      %v4583 = vmul.f32 %v4330, %v4550
      %v4584 = vmul.f32 %v4332, %v4550
      %v4585 = vmul.f32 %v4334, %v4551
      %v4586 = vmul.f32 %v4336, %v4551
      %v4587 = vmul.f32 %v4338, %v4552
      %v4588 = vmul.f32 %v4340, %v4552
      %v4589 = vmul.f32 %v4342, %v4553
      %v4590 = vmul.f32 %v4344, %v4553
      %v4591 = vmul.f32 %v4346, %v4554
      %v4592 = vmul.f32 %v4348, %v4554
      %v4593 = vmul.f32 %v4350, %v4555
      %v4594 = vmul.f32 %v4352, %v4555
      %v4595 = vmul.f32 %v4354, %v4556
      %v4596 = vmul.f32 %v4356, %v4556
      %v4597 = vmul.f32 %v4358, %v4557
      %v4598 = vmul.f32 %v4360, %v4557
      %v4599 = vmul.f32 %v4362, %v4558
      %v4600 = vmul.f32 %v4364, %v4558
      %v4601 = vmul.f32 %v4366, %v4559
      %v4602 = vmul.f32 %v4368, %v4559
      %v4603 = vmul.f32 %v4370, %v4560
      %v4604 = vmul.f32 %v4372, %v4560
      %v4605 = vmul.f32 %v4374, %v4561
      %v4606 = vmul.f32 %v4376, %v4561
      %v4607 = vmul.f32 %v4378, %v4562
      %v4608 = vmul.f32 %v4380, %v4562
      %v4609 = vmul.f32 %v4382, %v4563
      %v4610 = vmul.f32 %v4384, %v4563
      %v4611 = vmul.f32 %v4386, %v4564
      %v4612 = vmul.f32 %v4388, %v4564
      %v4613 = vmul.f32 %v4390, %v4565
      %v4614 = vmul.f32 %v4392, %v4565
      %v4615 = vmul.f32 %v4394, %v4566
      %v4616 = vmul.f32 %v4396, %v4566
      %v4617 = vmul.f32 %v4398, %v4567
      %v4618 = vmul.f32 %v4400, %v4567
      %v4619 = vmul.f32 %v4402, %v4568
      %v4620 = vmul.f32 %v4404, %v4568
      %v4621 = vmul.f32 %v4406, %v4569
      %v4622 = vmul.f32 %v4408, %v4569
      %v4623 = vmul.f32 %v4410, %v4570
      %v4624 = vmul.f32 %v4412, %v4570
      %v4625 = vmul.f32 %v4414, %v4571
      %v4626 = vmul.f32 %v4416, %v4571
      %v4627 = vmul.f32 %v4418, %v4572
      %v4628 = vmul.f32 %v4420, %v4572
      %v4629 = vmul.f32 %v4422, %v4573
      %v4630 = vmul.f32 %v4424, %v4573
      %v4631 = vmul.f32 %v4426, %v4574
      %v4632 = vmul.f32 %v4428, %v4574
      %v4633 = vmul.f32 %v4430, %v4575
      %v4634 = vmul.f32 %v4432, %v4575
      %v4635 = vmul.f32 %v4434, %v4576
      %v4636 = vmul.f32 %v4436, %v4576
      %v4637 = vmul.f32 %v4438, %v4577
      %v4638 = vmul.f32 %v4440, %v4577
      %v4639 = vmul.f32 %v4442, %v4578
      %v4640 = vmul.f32 %v4444, %v4578
      %v4641 = vmul.f32 %v4446, %v4579
      %v4642 = vmul.f32 %v4448, %v4579
      %v4643 = vmul.f32 %v4450, %v4580
      %v4644 = vmul.f32 %v4452, %v4580
      %4645 = vrot.lane.b32.xlu0 %v565, 88
      %v4646 = vpop.permute.xlu0 %4645
      %4647 = vrot.lane.b32.xlu0 %v570, 88
      %v4648 = vpop.permute.xlu0 %4647
      %4649 = vrot.lane.b32.xlu0 %v575, 88
      %v4650 = vpop.permute.xlu0 %4649
      %4651 = vrot.lane.b32.xlu0 %v580, 88
      %v4652 = vpop.permute.xlu0 %4651
      %4653 = vrot.lane.b32.xlu0 %v585, 88
      %v4654 = vpop.permute.xlu0 %4653
      %4655 = vrot.lane.b32.xlu0 %v590, 88
      %v4656 = vpop.permute.xlu0 %4655
      %4657 = vrot.lane.b32.xlu0 %v595, 88
      %v4658 = vpop.permute.xlu0 %4657
      %4659 = vrot.lane.b32.xlu0 %v600, 88
      %v4660 = vpop.permute.xlu0 %4659
      %4661 = vrot.lane.b32.xlu0 %v605, 88
      %v4662 = vpop.permute.xlu0 %4661
      %4663 = vrot.lane.b32.xlu0 %v610, 88
      %v4664 = vpop.permute.xlu0 %4663
      %4665 = vrot.lane.b32.xlu0 %v615, 88
      %v4666 = vpop.permute.xlu0 %4665
      %4667 = vrot.lane.b32.xlu0 %v620, 88
      %v4668 = vpop.permute.xlu0 %4667
      %4669 = vrot.lane.b32.xlu0 %v625, 88
      %v4670 = vpop.permute.xlu0 %4669
      %4671 = vrot.lane.b32.xlu0 %v630, 88
      %v4672 = vpop.permute.xlu0 %4671
      %4673 = vrot.lane.b32.xlu0 %v635, 88
      %v4674 = vpop.permute.xlu0 %4673
      %4675 = vrot.lane.b32.xlu0 %v640, 88
      %v4676 = vpop.permute.xlu0 %4675
      %4677 = vrot.lane.b32.xlu0 %v645, 88
      %v4678 = vpop.permute.xlu0 %4677
      %4679 = vrot.lane.b32.xlu0 %v650, 88
      %v4680 = vpop.permute.xlu0 %4679
      %4681 = vrot.lane.b32.xlu0 %v655, 88
      %v4682 = vpop.permute.xlu0 %4681
      %4683 = vrot.lane.b32.xlu0 %v660, 88
      %v4684 = vpop.permute.xlu0 %4683
      %4685 = vrot.lane.b32.xlu0 %v665, 88
      %v4686 = vpop.permute.xlu0 %4685
      %4687 = vrot.lane.b32.xlu0 %v670, 88
      %v4688 = vpop.permute.xlu0 %4687
      %4689 = vrot.lane.b32.xlu0 %v675, 88
      %v4690 = vpop.permute.xlu0 %4689
      %4691 = vrot.lane.b32.xlu0 %v680, 88
      %v4692 = vpop.permute.xlu0 %4691
      %4693 = vrot.lane.b32.xlu0 %v685, 88
      %v4694 = vpop.permute.xlu0 %4693
      %4695 = vrot.lane.b32.xlu0 %v690, 88
      %v4696 = vpop.permute.xlu0 %4695
      %4697 = vrot.lane.b32.xlu0 %v695, 88
      %v4698 = vpop.permute.xlu0 %4697
      %4699 = vrot.lane.b32.xlu0 %v700, 88
      %v4700 = vpop.permute.xlu0 %4699
      %4701 = vrot.lane.b32.xlu0 %v705, 88
      %v4702 = vpop.permute.xlu0 %4701
      %4703 = vrot.lane.b32.xlu0 %v710, 88
      %v4704 = vpop.permute.xlu0 %4703
      %4705 = vrot.lane.b32.xlu0 %v715, 88
      %v4706 = vpop.permute.xlu0 %4705
      %4707 = vrot.lane.b32.xlu0 %v720, 88
      %v4708 = vpop.permute.xlu0 %4707
      %4741 = vmatprep.subr.mxu0 0.0
      %4742 = vmatpush1.msra.mxu0 %v4676
      %4743 = vmatprep.subr.mxu0 0.0
      %4744 = vmatpush1.msra.mxu0 %v4674
      %4745 = vmatprep.subr.mxu0 0.0
      %4746 = vmatpush1.msra.mxu0 %v4672
      %4747 = vmatprep.subr.mxu0 0.0
      %4748 = vmatpush1.msra.mxu0 %v4670
      %4749 = vmatprep.subr.mxu0 0.0
      %4750 = vmatpush1.msra.mxu0 %v4668
      %4751 = vmatprep.subr.mxu0 0.0
      %4752 = vmatpush1.msra.mxu0 %v4666
      %4753 = vmatprep.subr.mxu0 0.0
      %4754 = vmatpush1.msra.mxu0 %v4664
      %4755 = vmatprep.subr.mxu0 0.0
      %4756 = vmatpush1.msra.mxu0 %v4662
      %4757 = vmatprep.subr.mxu0 0.0
      %4758 = vmatpush1.msra.mxu0 %v4660
      %4759 = vmatprep.subr.mxu0 0.0
      %4760 = vmatpush1.msra.mxu0 %v4658
      %4761 = vmatprep.subr.mxu0 0.0
      %4762 = vmatpush1.msra.mxu0 %v4656
      %4763 = vmatprep.subr.mxu0 0.0
      %4764 = vmatpush1.msra.mxu0 %v4654
      %4765 = vmatprep.subr.mxu0 0.0
      %4766 = vmatpush1.msra.mxu0 %v4652
      %4767 = vmatprep.subr.mxu0 0.0
      %4768 = vmatpush1.msra.mxu0 %v4650
      %4769 = vmatprep.subr.mxu0 0.0
      %4770 = vmatpush1.msra.mxu0 %v4648
      %4771 = vmatprep.subr.mxu0 0.0
      %4772 = vmatpush1.msra.mxu0 %v4646
      %4773 = vmatprep.subr.mxu0 0.0
      %4774 = vmatpush2.msra.mxu0 %v4708
      %4775 = vmatprep.subr.mxu0 0.0
      %4776 = vmatpush2.msra.mxu0 %v4706
      %4777 = vmatprep.subr.mxu0 0.0
      %4778 = vmatpush2.msra.mxu0 %v4704
      %4779 = vmatprep.subr.mxu0 0.0
      %4780 = vmatpush2.msra.mxu0 %v4702
      %4781 = vmatprep.subr.mxu0 0.0
      %4782 = vmatpush2.msra.mxu0 %v4700
      %4783 = vmatprep.subr.mxu0 0.0
      %4784 = vmatpush2.msra.mxu0 %v4698
      %4785 = vmatprep.subr.mxu0 0.0
      %4786 = vmatpush2.msra.mxu0 %v4696
      %4787 = vmatprep.subr.mxu0 0.0
      %4788 = vmatpush2.msra.mxu0 %v4694
      %4789 = vmatprep.subr.mxu0 0.0
      %4790 = vmatpush2.msra.mxu0 %v4692
      %4791 = vmatprep.subr.mxu0 0.0
      %4792 = vmatpush2.msra.mxu0 %v4690
      %4793 = vmatprep.subr.mxu0 0.0
      %4794 = vmatpush2.msra.mxu0 %v4688
      %4795 = vmatprep.subr.mxu0 0.0
      %4796 = vmatpush2.msra.mxu0 %v4686
      %4797 = vmatprep.subr.mxu0 0.0
      %4798 = vmatpush2.msra.mxu0 %v4684
      %4799 = vmatprep.subr.mxu0 0.0
      %4800 = vmatpush2.msra.mxu0 %v4682
      %4801 = vmatprep.subr.mxu0 0.0
      %4802 = vmatpush2.msra.mxu0 %v4680
      %4803 = vmatprep.subr.mxu0 0.0
      %4804 = vmatpush2.msra.mxu0 %v4678
      %4805 = vmatprep.mubr.f32.mxu0 %v4582
      %4806 = vmatmul.mubr.f32.gmra.mxu0 %v4581
      %v4807 = vpop.f32.mrf.mxu0
      %v4808 = vadd.f32 0.0, %v4807
      %v4809 = vpop.f32.mrf.mxu0
      %4810 = vmatprep.mubr.f32.mxu0 %v4584
      %4811 = vmatmul.mubr.f32.gmra.mxu0 %v4583
      %v4812 = vpop.f32.mrf.mxu0
      %v4813 = vadd.f32 0.0, %v4812
      %v4814 = vpop.f32.mrf.mxu0
      %4815 = vmatprep.mubr.f32.mxu0 %v4586
      %4816 = vmatmul.mubr.f32.gmra.mxu0 %v4585
      %v4817 = vpop.f32.mrf.mxu0
      %v4818 = vadd.f32 0.0, %v4817
      %v4819 = vpop.f32.mrf.mxu0
      %4820 = vmatprep.mubr.f32.mxu0 %v4588
      %4821 = vmatmul.mubr.f32.gmra.mxu0 %v4587
      %v4822 = vpop.f32.mrf.mxu0
      %v4823 = vadd.f32 0.0, %v4822
      %v4824 = vpop.f32.mrf.mxu0
      %4825 = vmatprep.mubr.f32.mxu0 %v4590
      %4826 = vmatmul.mubr.f32.gmra.mxu0 %v4589
      %v4827 = vpop.f32.mrf.mxu0
      %v4828 = vadd.f32 0.0, %v4827
      %v4829 = vpop.f32.mrf.mxu0
      %4830 = vmatprep.mubr.f32.mxu0 %v4592
      %4831 = vmatmul.mubr.f32.gmra.mxu0 %v4591
      %v4832 = vpop.f32.mrf.mxu0
      %v4833 = vadd.f32 0.0, %v4832
      %v4834 = vpop.f32.mrf.mxu0
      %4835 = vmatprep.mubr.f32.mxu0 %v4594
      %4836 = vmatmul.mubr.f32.gmra.mxu0 %v4593
      %v4837 = vpop.f32.mrf.mxu0
      %v4838 = vadd.f32 0.0, %v4837
      %v4839 = vpop.f32.mrf.mxu0
      %4840 = vmatprep.mubr.f32.mxu0 %v4596
      %4841 = vmatmul.mubr.f32.gmra.mxu0 %v4595
      %v4842 = vpop.f32.mrf.mxu0
      %v4843 = vadd.f32 0.0, %v4842
      %v4844 = vpop.f32.mrf.mxu0
      %4845 = vmatprep.mubr.f32.mxu0 %v4598
      %4846 = vmatmul.mubr.f32.gmra.mxu0 %v4597
      %v4847 = vpop.f32.mrf.mxu0
      %v4848 = vadd.f32 0.0, %v4847
      %v4849 = vpop.f32.mrf.mxu0
      %4850 = vmatprep.mubr.f32.mxu0 %v4600
      %4851 = vmatmul.mubr.f32.gmra.mxu0 %v4599
      %v4852 = vpop.f32.mrf.mxu0
      %v4853 = vadd.f32 0.0, %v4852
      %v4854 = vpop.f32.mrf.mxu0
      %4855 = vmatprep.mubr.f32.mxu0 %v4602
      %4856 = vmatmul.mubr.f32.gmra.mxu0 %v4601
      %v4857 = vpop.f32.mrf.mxu0
      %v4858 = vadd.f32 0.0, %v4857
      %v4859 = vpop.f32.mrf.mxu0
      %4860 = vmatprep.mubr.f32.mxu0 %v4604
      %4861 = vmatmul.mubr.f32.gmra.mxu0 %v4603
      %v4862 = vpop.f32.mrf.mxu0
      %v4863 = vadd.f32 0.0, %v4862
      %v4864 = vpop.f32.mrf.mxu0
      %4865 = vmatprep.mubr.f32.mxu0 %v4606
      %4866 = vmatmul.mubr.f32.gmra.mxu0 %v4605
      %v4867 = vpop.f32.mrf.mxu0
      %v4868 = vadd.f32 0.0, %v4867
      %v4869 = vpop.f32.mrf.mxu0
      %4870 = vmatprep.mubr.f32.mxu0 %v4608
      %4871 = vmatmul.mubr.f32.gmra.mxu0 %v4607
      %v4872 = vpop.f32.mrf.mxu0
      %v4873 = vadd.f32 0.0, %v4872
      %v4874 = vpop.f32.mrf.mxu0
      %4875 = vmatprep.mubr.f32.mxu0 %v4610
      %4876 = vmatmul.mubr.f32.gmra.mxu0 %v4609
      %v4877 = vpop.f32.mrf.mxu0
      %v4878 = vadd.f32 0.0, %v4877
      %v4879 = vpop.f32.mrf.mxu0
      %4880 = vmatprep.mubr.f32.mxu0 %v4612
      %4881 = vmatmul.mubr.f32.gmra.mxu0 %v4611
      %v4882 = vpop.f32.mrf.mxu0
      %v4883 = vadd.f32 0.0, %v4882
      %v4884 = vpop.f32.mrf.mxu0
      %4885 = vmatprep.mubr.f32.mxu0 %v4614
      %4886 = vmatmul.mubr.f32.gmra.mxu0 %v4613
      %v4887 = vpop.f32.mrf.mxu0
      %v4888 = vadd.f32 0.0, %v4887
      %v4889 = vpop.f32.mrf.mxu0
      %4890 = vmatprep.mubr.f32.mxu0 %v4616
      %4891 = vmatmul.mubr.f32.gmra.mxu0 %v4615
      %v4892 = vpop.f32.mrf.mxu0
      %v4893 = vadd.f32 0.0, %v4892
      %v4894 = vpop.f32.mrf.mxu0
      %4895 = vmatprep.mubr.f32.mxu0 %v4618
      %4896 = vmatmul.mubr.f32.gmra.mxu0 %v4617
      %v4897 = vpop.f32.mrf.mxu0
      %v4898 = vadd.f32 0.0, %v4897
      %v4899 = vpop.f32.mrf.mxu0
      %4900 = vmatprep.mubr.f32.mxu0 %v4620
      %4901 = vmatmul.mubr.f32.gmra.mxu0 %v4619
      %v4902 = vpop.f32.mrf.mxu0
      %v4903 = vadd.f32 0.0, %v4902
      %v4904 = vpop.f32.mrf.mxu0
      %4905 = vmatprep.mubr.f32.mxu0 %v4622
      %4906 = vmatmul.mubr.f32.gmra.mxu0 %v4621
      %v4907 = vpop.f32.mrf.mxu0
      %v4908 = vadd.f32 0.0, %v4907
      %v4909 = vpop.f32.mrf.mxu0
      %4910 = vmatprep.mubr.f32.mxu0 %v4624
      %4911 = vmatmul.mubr.f32.gmra.mxu0 %v4623
      %v4912 = vpop.f32.mrf.mxu0
      %v4913 = vadd.f32 0.0, %v4912
      %v4914 = vpop.f32.mrf.mxu0
      %4915 = vmatprep.mubr.f32.mxu0 %v4626
      %4916 = vmatmul.mubr.f32.gmra.mxu0 %v4625
      %v4917 = vpop.f32.mrf.mxu0
      %v4918 = vadd.f32 0.0, %v4917
      %v4919 = vpop.f32.mrf.mxu0
      %4920 = vmatprep.mubr.f32.mxu0 %v4628
      %4921 = vmatmul.mubr.f32.gmra.mxu0 %v4627
      %v4922 = vpop.f32.mrf.mxu0
      %v4923 = vadd.f32 0.0, %v4922
      %v4924 = vpop.f32.mrf.mxu0
      %4925 = vmatprep.mubr.f32.mxu0 %v4630
      %4926 = vmatmul.mubr.f32.gmra.mxu0 %v4629
      %v4927 = vpop.f32.mrf.mxu0
      %v4928 = vadd.f32 0.0, %v4927
      %v4929 = vpop.f32.mrf.mxu0
      %4930 = vmatprep.mubr.f32.mxu0 %v4632
      %4931 = vmatmul.mubr.f32.gmra.mxu0 %v4631
      %v4932 = vpop.f32.mrf.mxu0
      %v4933 = vadd.f32 0.0, %v4932
      %v4934 = vpop.f32.mrf.mxu0
      %4935 = vmatprep.mubr.f32.mxu0 %v4634
      %4936 = vmatmul.mubr.f32.gmra.mxu0 %v4633
      %v4937 = vpop.f32.mrf.mxu0
      %v4938 = vadd.f32 0.0, %v4937
      %v4939 = vpop.f32.mrf.mxu0
      %4940 = vmatprep.mubr.f32.mxu0 %v4636
      %4941 = vmatmul.mubr.f32.gmra.mxu0 %v4635
      %v4942 = vpop.f32.mrf.mxu0
      %v4943 = vadd.f32 0.0, %v4942
      %v4944 = vpop.f32.mrf.mxu0
      %4945 = vmatprep.mubr.f32.mxu0 %v4638
      %4946 = vmatmul.mubr.f32.gmra.mxu0 %v4637
      %v4947 = vpop.f32.mrf.mxu0
      %v4948 = vadd.f32 0.0, %v4947
      %v4949 = vpop.f32.mrf.mxu0
      %4950 = vmatprep.mubr.f32.mxu0 %v4640
      %4951 = vmatmul.mubr.f32.gmra.mxu0 %v4639
      %v4952 = vpop.f32.mrf.mxu0
      %v4953 = vadd.f32 0.0, %v4952
      %v4954 = vpop.f32.mrf.mxu0
      %4955 = vmatprep.mubr.f32.mxu0 %v4642
      %4956 = vmatmul.mubr.f32.gmra.mxu0 %v4641
      %v4957 = vpop.f32.mrf.mxu0
      %v4958 = vadd.f32 0.0, %v4957
      %v4959 = vpop.f32.mrf.mxu0
      %4960 = vmatprep.mubr.f32.mxu0 %v4644
      %4961 = vmatmul.mubr.f32.gmra.mxu0 %v4643
      %v4962 = vpop.f32.mrf.mxu0
      %v4963 = vadd.f32 0.0, %v4962
      %v4964 = vpop.f32.mrf.mxu0
      %4965 = vdwg.mxu0
      %4966 = vrot.lane.b32.xlu0 %v1055, 116
      %v4967 = vpop.permute.xlu0 %4966
      %4968 = vrot.lane.b32.xlu0 %v1056, 116
      %v4969 = vpop.permute.xlu0 %4968
      %4970 = vrot.lane.b32.xlu0 %v1057, 116
      %v4971 = vpop.permute.xlu0 %4970
      %4972 = vrot.lane.b32.xlu0 %v1058, 116
      %v4973 = vpop.permute.xlu0 %4972
      %4974 = vrot.lane.b32.xlu0 %v1059, 116
      %v4975 = vpop.permute.xlu0 %4974
      %4976 = vrot.lane.b32.xlu0 %v1060, 116
      %v4977 = vpop.permute.xlu0 %4976
      %4978 = vrot.lane.b32.xlu0 %v1061, 116
      %v4979 = vpop.permute.xlu0 %4978
      %4980 = vrot.lane.b32.xlu0 %v1062, 116
      %v4981 = vpop.permute.xlu0 %4980
      %4982 = vrot.lane.b32.xlu0 %v1063, 116
      %v4983 = vpop.permute.xlu0 %4982
      %4984 = vrot.lane.b32.xlu0 %v1064, 116
      %v4985 = vpop.permute.xlu0 %4984
      %4986 = vrot.lane.b32.xlu0 %v1065, 116
      %v4987 = vpop.permute.xlu0 %4986
      %4988 = vrot.lane.b32.xlu0 %v1066, 116
      %v4989 = vpop.permute.xlu0 %4988
      %4990 = vrot.lane.b32.xlu0 %v1067, 116
      %v4991 = vpop.permute.xlu0 %4990
      %4992 = vrot.lane.b32.xlu0 %v1068, 116
      %v4993 = vpop.permute.xlu0 %4992
      %4994 = vrot.lane.b32.xlu0 %v1069, 116
      %v4995 = vpop.permute.xlu0 %4994
      %4996 = vrot.lane.b32.xlu0 %v1070, 116
      %v4997 = vpop.permute.xlu0 %4996
      %4998 = vrot.lane.b32.xlu0 %v1071, 116
      %v4999 = vpop.permute.xlu0 %4998
      %5000 = vrot.lane.b32.xlu0 %v1072, 116
      %v5001 = vpop.permute.xlu0 %5000
      %5002 = vrot.lane.b32.xlu0 %v1073, 116
      %v5003 = vpop.permute.xlu0 %5002
      %5004 = vrot.lane.b32.xlu0 %v1074, 116
      %v5005 = vpop.permute.xlu0 %5004
      %5006 = vrot.lane.b32.xlu0 %v1075, 116
      %v5007 = vpop.permute.xlu0 %5006
      %5008 = vrot.lane.b32.xlu0 %v1076, 116
      %v5009 = vpop.permute.xlu0 %5008
      %5010 = vrot.lane.b32.xlu0 %v1077, 116
      %v5011 = vpop.permute.xlu0 %5010
      %5012 = vrot.lane.b32.xlu0 %v1078, 116
      %v5013 = vpop.permute.xlu0 %5012
      %5014 = vrot.lane.b32.xlu0 %v1079, 116
      %v5015 = vpop.permute.xlu0 %5014
      %5016 = vrot.lane.b32.xlu0 %v1080, 116
      %v5017 = vpop.permute.xlu0 %5016
      %5018 = vrot.lane.b32.xlu0 %v1081, 116
      %v5019 = vpop.permute.xlu0 %5018
      %5020 = vrot.lane.b32.xlu0 %v1082, 116
      %v5021 = vpop.permute.xlu0 %5020
      %5022 = vrot.lane.b32.xlu0 %v1083, 116
      %v5023 = vpop.permute.xlu0 %5022
      %5024 = vrot.lane.b32.xlu0 %v1084, 116
      %v5025 = vpop.permute.xlu0 %5024
      %5026 = vrot.lane.b32.xlu0 %v1085, 116
      %v5027 = vpop.permute.xlu0 %5026
      %5028 = vrot.lane.b32.xlu0 %v1086, 116
      %v5029 = vpop.permute.xlu0 %5028
      %5030 = vrot.lane.b32.xlu0 %v565, 116
      %v5031 = vpop.permute.xlu0 %5030
      %5032 = vrot.lane.b32.xlu0 %v570, 116
      %v5033 = vpop.permute.xlu0 %5032
      %5034 = vrot.lane.b32.xlu0 %v575, 116
      %v5035 = vpop.permute.xlu0 %5034
      %5036 = vrot.lane.b32.xlu0 %v580, 116
      %v5037 = vpop.permute.xlu0 %5036
      %5038 = vrot.lane.b32.xlu0 %v585, 116
      %v5039 = vpop.permute.xlu0 %5038
      %5040 = vrot.lane.b32.xlu0 %v590, 116
      %v5041 = vpop.permute.xlu0 %5040
      %5042 = vrot.lane.b32.xlu0 %v595, 116
      %v5043 = vpop.permute.xlu0 %5042
      %5044 = vrot.lane.b32.xlu0 %v600, 116
      %v5045 = vpop.permute.xlu0 %5044
      %5046 = vrot.lane.b32.xlu0 %v605, 116
      %v5047 = vpop.permute.xlu0 %5046
      %5048 = vrot.lane.b32.xlu0 %v610, 116
      %v5049 = vpop.permute.xlu0 %5048
      %5050 = vrot.lane.b32.xlu0 %v615, 116
      %v5051 = vpop.permute.xlu0 %5050
      %5052 = vrot.lane.b32.xlu0 %v620, 116
      %v5053 = vpop.permute.xlu0 %5052
      %5054 = vrot.lane.b32.xlu0 %v625, 116
      %v5055 = vpop.permute.xlu0 %5054
      %5056 = vrot.lane.b32.xlu0 %v630, 116
      %v5057 = vpop.permute.xlu0 %5056
      %5058 = vrot.lane.b32.xlu0 %v635, 116
      %v5059 = vpop.permute.xlu0 %5058
      %5060 = vrot.lane.b32.xlu0 %v640, 116
      %v5061 = vpop.permute.xlu0 %5060
      %5062 = vrot.lane.b32.xlu0 %v645, 116
      %v5063 = vpop.permute.xlu0 %5062
      %5064 = vrot.lane.b32.xlu0 %v650, 116
      %v5065 = vpop.permute.xlu0 %5064
      %5066 = vrot.lane.b32.xlu0 %v655, 116
      %v5067 = vpop.permute.xlu0 %5066
      %5068 = vrot.lane.b32.xlu0 %v660, 116
      %v5069 = vpop.permute.xlu0 %5068
      %5070 = vrot.lane.b32.xlu0 %v665, 116
      %v5071 = vpop.permute.xlu0 %5070
      %5072 = vrot.lane.b32.xlu0 %v670, 116
      %v5073 = vpop.permute.xlu0 %5072
      %5074 = vrot.lane.b32.xlu0 %v675, 116
      %v5075 = vpop.permute.xlu0 %5074
      %5076 = vrot.lane.b32.xlu0 %v680, 116
      %v5077 = vpop.permute.xlu0 %5076
      %5078 = vrot.lane.b32.xlu0 %v685, 116
      %v5079 = vpop.permute.xlu0 %5078
      %5080 = vrot.lane.b32.xlu0 %v690, 116
      %v5081 = vpop.permute.xlu0 %5080
      %5082 = vrot.lane.b32.xlu0 %v695, 116
      %v5083 = vpop.permute.xlu0 %5082
      %5084 = vrot.lane.b32.xlu0 %v700, 116
      %v5085 = vpop.permute.xlu0 %5084
      %5086 = vrot.lane.b32.xlu0 %v705, 116
      %v5087 = vpop.permute.xlu0 %5086
      %5088 = vrot.lane.b32.xlu0 %v710, 116
      %v5089 = vpop.permute.xlu0 %5088
      %5090 = vrot.lane.b32.xlu0 %v715, 116
      %v5091 = vpop.permute.xlu0 %5090
      %5092 = vrot.lane.b32.xlu0 %v720, 116
      %v5093 = vpop.permute.xlu0 %5092
      %v5094 = vsel %vm1087, %v4967, 0
      %v5096 = vsel %vm1087, %v4969, 0
      %v5098 = vsel %vm1087, %v4971, 0
      %v5100 = vsel %vm1087, %v4973, 0
      %v5102 = vsel %vm1087, %v4975, 0
      %v5104 = vsel %vm1087, %v4977, 0
      %v5106 = vsel %vm1087, %v4979, 0
      %v5108 = vsel %vm1087, %v4981, 0
      %v5110 = vsel %vm1087, %v4983, 0
      %v5112 = vsel %vm1087, %v4985, 0
      %v5114 = vsel %vm1087, %v4987, 0
      %v5116 = vsel %vm1087, %v4989, 0
      %v5118 = vsel %vm1087, %v4991, 0
      %v5120 = vsel %vm1087, %v4993, 0
      %v5122 = vsel %vm1087, %v4995, 0
      %v5124 = vsel %vm1087, %v4997, 0
      %v5126 = vsel %vm1087, %v4999, 0
      %v5128 = vsel %vm1087, %v5001, 0
      %v5130 = vsel %vm1087, %v5003, 0
      %v5132 = vsel %vm1087, %v5005, 0
      %v5134 = vsel %vm1087, %v5007, 0
      %v5136 = vsel %vm1087, %v5009, 0
      %v5138 = vsel %vm1087, %v5011, 0
      %v5140 = vsel %vm1087, %v5013, 0
      %v5142 = vsel %vm1087, %v5015, 0
      %v5144 = vsel %vm1087, %v5017, 0
      %v5146 = vsel %vm1087, %v5019, 0
      %v5148 = vsel %vm1087, %v5021, 0
      %v5150 = vsel %vm1087, %v5023, 0
      %v5152 = vsel %vm1087, %v5025, 0
      %v5154 = vsel %vm1087, %v5027, 0
      %v5156 = vsel %vm1087, %v5029, 0
      %v5158 = vsel %vm1087, %v5031, 0
      %v5160 = vsel %vm1087, %v5033, 0
      %v5162 = vsel %vm1087, %v5035, 0
      %v5164 = vsel %vm1087, %v5037, 0
      %v5166 = vsel %vm1087, %v5039, 0
      %v5168 = vsel %vm1087, %v5041, 0
      %v5170 = vsel %vm1087, %v5043, 0
      %v5172 = vsel %vm1087, %v5045, 0
      %v5174 = vsel %vm1087, %v5047, 0
      %v5176 = vsel %vm1087, %v5049, 0
      %v5178 = vsel %vm1087, %v5051, 0
      %v5180 = vsel %vm1087, %v5053, 0
      %v5182 = vsel %vm1087, %v5055, 0
      %v5184 = vsel %vm1087, %v5057, 0
      %v5186 = vsel %vm1087, %v5059, 0
      %v5188 = vsel %vm1087, %v5061, 0
      %v5190 = vsel %vm1087, %v5063, 0
      %v5192 = vsel %vm1087, %v5065, 0
      %v5194 = vsel %vm1087, %v5067, 0
      %v5196 = vsel %vm1087, %v5069, 0
      %v5198 = vsel %vm1087, %v5071, 0
      %v5200 = vsel %vm1087, %v5073, 0
      %v5202 = vsel %vm1087, %v5075, 0
      %v5204 = vsel %vm1087, %v5077, 0
      %v5206 = vsel %vm1087, %v5079, 0
      %v5208 = vsel %vm1087, %v5081, 0
      %v5210 = vsel %vm1087, %v5083, 0
      %v5212 = vsel %vm1087, %v5085, 0
      %v5214 = vsel %vm1087, %v5087, 0
      %v5216 = vsel %vm1087, %v5089, 0
      %v5218 = vsel %vm1087, %v5091, 0
      %v5220 = vsel %vm1087, %v5093, 0
      %5222 = vmatprep.subr.mxu0 0.0
      %5223 = vmatpush1.xpose.msra.mxu0 %v5188
      %5224 = vmatprep.subr.mxu0 0.0
      %5225 = vmatpush1.xpose.msra.mxu0 %v5186
      %5226 = vmatprep.subr.mxu0 0.0
      %5227 = vmatpush1.xpose.msra.mxu0 %v5184
      %5228 = vmatprep.subr.mxu0 0.0
      %5229 = vmatpush1.xpose.msra.mxu0 %v5182
      %5230 = vmatprep.subr.mxu0 0.0
      %5231 = vmatpush1.xpose.msra.mxu0 %v5180
      %5232 = vmatprep.subr.mxu0 0.0
      %5233 = vmatpush1.xpose.msra.mxu0 %v5178
      %5234 = vmatprep.subr.mxu0 0.0
      %5235 = vmatpush1.xpose.msra.mxu0 %v5176
      %5236 = vmatprep.subr.mxu0 0.0
      %5237 = vmatpush1.xpose.msra.mxu0 %v5174
      %5238 = vmatprep.subr.mxu0 0.0
      %5239 = vmatpush1.xpose.msra.mxu0 %v5172
      %5240 = vmatprep.subr.mxu0 0.0
      %5241 = vmatpush1.xpose.msra.mxu0 %v5170
      %5242 = vmatprep.subr.mxu0 0.0
      %5243 = vmatpush1.xpose.msra.mxu0 %v5168
      %5244 = vmatprep.subr.mxu0 0.0
      %5245 = vmatpush1.xpose.msra.mxu0 %v5166
      %5246 = vmatprep.subr.mxu0 0.0
      %5247 = vmatpush1.xpose.msra.mxu0 %v5164
      %5248 = vmatprep.subr.mxu0 0.0
      %5249 = vmatpush1.xpose.msra.mxu0 %v5162
      %5250 = vmatprep.subr.mxu0 0.0
      %5251 = vmatpush1.xpose.msra.mxu0 %v5160
      %5252 = vmatprep.subr.mxu0 0.0
      %5253 = vmatpush1.xpose.msra.mxu0 %v5158
      %5254 = vmatprep.subr.mxu0 0.0
      %5255 = vmatpush2.xpose.msra.mxu0 %v5220
      %5256 = vmatprep.subr.mxu0 0.0
      %5257 = vmatpush2.xpose.msra.mxu0 %v5218
      %5258 = vmatprep.subr.mxu0 0.0
      %5259 = vmatpush2.xpose.msra.mxu0 %v5216
      %5260 = vmatprep.subr.mxu0 0.0
      %5261 = vmatpush2.xpose.msra.mxu0 %v5214
      %5262 = vmatprep.subr.mxu0 0.0
      %5263 = vmatpush2.xpose.msra.mxu0 %v5212
      %5264 = vmatprep.subr.mxu0 0.0
      %5265 = vmatpush2.xpose.msra.mxu0 %v5210
      %5266 = vmatprep.subr.mxu0 0.0
      %5267 = vmatpush2.xpose.msra.mxu0 %v5208
      %5268 = vmatprep.subr.mxu0 0.0
      %5269 = vmatpush2.xpose.msra.mxu0 %v5206
      %5270 = vmatprep.subr.mxu0 0.0
      %5271 = vmatpush2.xpose.msra.mxu0 %v5204
      %5272 = vmatprep.subr.mxu0 0.0
      %5273 = vmatpush2.xpose.msra.mxu0 %v5202
      %5274 = vmatprep.subr.mxu0 0.0
      %5275 = vmatpush2.xpose.msra.mxu0 %v5200
      %5276 = vmatprep.subr.mxu0 0.0
      %5277 = vmatpush2.xpose.msra.mxu0 %v5198
      %5278 = vmatprep.subr.mxu0 0.0
      %5279 = vmatpush2.xpose.msra.mxu0 %v5196
      %5280 = vmatprep.subr.mxu0 0.0
      %5281 = vmatpush2.xpose.msra.mxu0 %v5194
      %5282 = vmatprep.subr.mxu0 0.0
      %5283 = vmatpush2.xpose.msra.mxu0 %v5192
      %5284 = vmatprep.subr.mxu0 0.0
      %5285 = vmatpush2.xpose.msra.mxu0 %v5190
      %5286 = vmatprep.mubr.f32.mxu0 0.0
      %5287 = vmatmul.mubr.f32.gmra.mxu0 %v5094
      %v5288 = vpop.f32.mrf.mxu0
      %v5289 = vadd.f32 0.0, %v5288
      %v5290 = vpop.f32.mrf.mxu0
      %v5291 = vadd.f32 0.0, %v5290
      %5292 = vmatprep.mubr.f32.mxu0 0.0
      %5293 = vmatmul.mubr.f32.gmra.mxu0 %v5096
      %v5294 = vpop.f32.mrf.mxu0
      %v5295 = vadd.f32 0.0, %v5294
      %v5296 = vpop.f32.mrf.mxu0
      %v5297 = vadd.f32 0.0, %v5296
      %5298 = vmatprep.mubr.f32.mxu0 0.0
      %5299 = vmatmul.mubr.f32.gmra.mxu0 %v5098
      %v5300 = vpop.f32.mrf.mxu0
      %v5301 = vadd.f32 0.0, %v5300
      %v5302 = vpop.f32.mrf.mxu0
      %v5303 = vadd.f32 0.0, %v5302
      %5304 = vmatprep.mubr.f32.mxu0 0.0
      %5305 = vmatmul.mubr.f32.gmra.mxu0 %v5100
      %v5306 = vpop.f32.mrf.mxu0
      %v5307 = vadd.f32 0.0, %v5306
      %v5308 = vpop.f32.mrf.mxu0
      %v5309 = vadd.f32 0.0, %v5308
      %5310 = vmatprep.mubr.f32.mxu0 0.0
      %5311 = vmatmul.mubr.f32.gmra.mxu0 %v5102
      %v5312 = vpop.f32.mrf.mxu0
      %v5313 = vadd.f32 0.0, %v5312
      %v5314 = vpop.f32.mrf.mxu0
      %v5315 = vadd.f32 0.0, %v5314
      %5316 = vmatprep.mubr.f32.mxu0 0.0
      %5317 = vmatmul.mubr.f32.gmra.mxu0 %v5104
      %v5318 = vpop.f32.mrf.mxu0
      %v5319 = vadd.f32 0.0, %v5318
      %v5320 = vpop.f32.mrf.mxu0
      %v5321 = vadd.f32 0.0, %v5320
      %5322 = vmatprep.mubr.f32.mxu0 0.0
      %5323 = vmatmul.mubr.f32.gmra.mxu0 %v5106
      %v5324 = vpop.f32.mrf.mxu0
      %v5325 = vadd.f32 0.0, %v5324
      %v5326 = vpop.f32.mrf.mxu0
      %v5327 = vadd.f32 0.0, %v5326
      %5328 = vmatprep.mubr.f32.mxu0 0.0
      %5329 = vmatmul.mubr.f32.gmra.mxu0 %v5108
      %v5330 = vpop.f32.mrf.mxu0
      %v5331 = vadd.f32 0.0, %v5330
      %v5332 = vpop.f32.mrf.mxu0
      %v5333 = vadd.f32 0.0, %v5332
      %5334 = vmatprep.mubr.f32.mxu0 0.0
      %5335 = vmatmul.mubr.f32.gmra.mxu0 %v5110
      %v5336 = vpop.f32.mrf.mxu0
      %v5337 = vadd.f32 0.0, %v5336
      %v5338 = vpop.f32.mrf.mxu0
      %v5339 = vadd.f32 0.0, %v5338
      %5340 = vmatprep.mubr.f32.mxu0 0.0
      %5341 = vmatmul.mubr.f32.gmra.mxu0 %v5112
      %v5342 = vpop.f32.mrf.mxu0
      %v5343 = vadd.f32 0.0, %v5342
      %v5344 = vpop.f32.mrf.mxu0
      %v5345 = vadd.f32 0.0, %v5344
      %5346 = vmatprep.mubr.f32.mxu0 0.0
      %5347 = vmatmul.mubr.f32.gmra.mxu0 %v5114
      %v5348 = vpop.f32.mrf.mxu0
      %v5349 = vadd.f32 0.0, %v5348
      %v5350 = vpop.f32.mrf.mxu0
      %v5351 = vadd.f32 0.0, %v5350
      %5352 = vmatprep.mubr.f32.mxu0 0.0
      %5353 = vmatmul.mubr.f32.gmra.mxu0 %v5116
      %v5354 = vpop.f32.mrf.mxu0
      %v5355 = vadd.f32 0.0, %v5354
      %v5356 = vpop.f32.mrf.mxu0
      %v5357 = vadd.f32 0.0, %v5356
      %5358 = vmatprep.mubr.f32.mxu0 0.0
      %5359 = vmatmul.mubr.f32.gmra.mxu0 %v5118
      %v5360 = vpop.f32.mrf.mxu0
      %v5361 = vadd.f32 0.0, %v5360
      %v5362 = vpop.f32.mrf.mxu0
      %v5363 = vadd.f32 0.0, %v5362
      %5364 = vmatprep.mubr.f32.mxu0 0.0
      %5365 = vmatmul.mubr.f32.gmra.mxu0 %v5120
      %v5366 = vpop.f32.mrf.mxu0
      %v5367 = vadd.f32 0.0, %v5366
      %v5368 = vpop.f32.mrf.mxu0
      %v5369 = vadd.f32 0.0, %v5368
      %5370 = vmatprep.mubr.f32.mxu0 0.0
      %5371 = vmatmul.mubr.f32.gmra.mxu0 %v5122
      %v5372 = vpop.f32.mrf.mxu0
      %v5373 = vadd.f32 0.0, %v5372
      %v5374 = vpop.f32.mrf.mxu0
      %v5375 = vadd.f32 0.0, %v5374
      %5376 = vmatprep.mubr.f32.mxu0 0.0
      %5377 = vmatmul.mubr.f32.gmra.mxu0 %v5124
      %v5378 = vpop.f32.mrf.mxu0
      %v5379 = vadd.f32 0.0, %v5378
      %v5380 = vpop.f32.mrf.mxu0
      %v5381 = vadd.f32 0.0, %v5380
      %5382 = vmatprep.mubr.f32.mxu0 0.0
      %5383 = vmatmul.mubr.f32.gmra.mxu0 %v5126
      %v5384 = vpop.f32.mrf.mxu0
      %v5385 = vadd.f32 0.0, %v5384
      %v5386 = vpop.f32.mrf.mxu0
      %v5387 = vadd.f32 0.0, %v5386
      %5388 = vmatprep.mubr.f32.mxu0 0.0
      %5389 = vmatmul.mubr.f32.gmra.mxu0 %v5128
      %v5390 = vpop.f32.mrf.mxu0
      %v5391 = vadd.f32 0.0, %v5390
      %v5392 = vpop.f32.mrf.mxu0
      %v5393 = vadd.f32 0.0, %v5392
      %5394 = vmatprep.mubr.f32.mxu0 0.0
      %5395 = vmatmul.mubr.f32.gmra.mxu0 %v5130
      %v5396 = vpop.f32.mrf.mxu0
      %v5397 = vadd.f32 0.0, %v5396
      %v5398 = vpop.f32.mrf.mxu0
      %v5399 = vadd.f32 0.0, %v5398
      %5400 = vmatprep.mubr.f32.mxu0 0.0
      %5401 = vmatmul.mubr.f32.gmra.mxu0 %v5132
      %v5402 = vpop.f32.mrf.mxu0
      %v5403 = vadd.f32 0.0, %v5402
      %v5404 = vpop.f32.mrf.mxu0
      %v5405 = vadd.f32 0.0, %v5404
      %5406 = vmatprep.mubr.f32.mxu0 0.0
      %5407 = vmatmul.mubr.f32.gmra.mxu0 %v5134
      %v5408 = vpop.f32.mrf.mxu0
      %v5409 = vadd.f32 0.0, %v5408
      %v5410 = vpop.f32.mrf.mxu0
      %v5411 = vadd.f32 0.0, %v5410
      %5412 = vmatprep.mubr.f32.mxu0 0.0
      %5413 = vmatmul.mubr.f32.gmra.mxu0 %v5136
      %v5414 = vpop.f32.mrf.mxu0
      %v5415 = vadd.f32 0.0, %v5414
      %v5416 = vpop.f32.mrf.mxu0
      %v5417 = vadd.f32 0.0, %v5416
      %5418 = vmatprep.mubr.f32.mxu0 0.0
      %5419 = vmatmul.mubr.f32.gmra.mxu0 %v5138
      %v5420 = vpop.f32.mrf.mxu0
      %v5421 = vadd.f32 0.0, %v5420
      %v5422 = vpop.f32.mrf.mxu0
      %v5423 = vadd.f32 0.0, %v5422
      %5424 = vmatprep.mubr.f32.mxu0 0.0
      %5425 = vmatmul.mubr.f32.gmra.mxu0 %v5140
      %v5426 = vpop.f32.mrf.mxu0
      %v5427 = vadd.f32 0.0, %v5426
      %v5428 = vpop.f32.mrf.mxu0
      %v5429 = vadd.f32 0.0, %v5428
      %5430 = vmatprep.mubr.f32.mxu0 0.0
      %5431 = vmatmul.mubr.f32.gmra.mxu0 %v5142
      %v5432 = vpop.f32.mrf.mxu0
      %v5433 = vadd.f32 0.0, %v5432
      %v5434 = vpop.f32.mrf.mxu0
      %v5435 = vadd.f32 0.0, %v5434
      %5436 = vmatprep.mubr.f32.mxu0 0.0
      %5437 = vmatmul.mubr.f32.gmra.mxu0 %v5144
      %v5438 = vpop.f32.mrf.mxu0
      %v5439 = vadd.f32 0.0, %v5438
      %v5440 = vpop.f32.mrf.mxu0
      %v5441 = vadd.f32 0.0, %v5440
      %5442 = vmatprep.mubr.f32.mxu0 0.0
      %5443 = vmatmul.mubr.f32.gmra.mxu0 %v5146
      %v5444 = vpop.f32.mrf.mxu0
      %v5445 = vadd.f32 0.0, %v5444
      %v5446 = vpop.f32.mrf.mxu0
      %v5447 = vadd.f32 0.0, %v5446
      %5448 = vmatprep.mubr.f32.mxu0 0.0
      %5449 = vmatmul.mubr.f32.gmra.mxu0 %v5148
      %v5450 = vpop.f32.mrf.mxu0
      %v5451 = vadd.f32 0.0, %v5450
      %v5452 = vpop.f32.mrf.mxu0
      %v5453 = vadd.f32 0.0, %v5452
      %5454 = vmatprep.mubr.f32.mxu0 0.0
      %5455 = vmatmul.mubr.f32.gmra.mxu0 %v5150
      %v5456 = vpop.f32.mrf.mxu0
      %v5457 = vadd.f32 0.0, %v5456
      %v5458 = vpop.f32.mrf.mxu0
      %v5459 = vadd.f32 0.0, %v5458
      %5460 = vmatprep.mubr.f32.mxu0 0.0
      %5461 = vmatmul.mubr.f32.gmra.mxu0 %v5152
      %v5462 = vpop.f32.mrf.mxu0
      %v5463 = vadd.f32 0.0, %v5462
      %v5464 = vpop.f32.mrf.mxu0
      %v5465 = vadd.f32 0.0, %v5464
      %5466 = vmatprep.mubr.f32.mxu0 0.0
      %5467 = vmatmul.mubr.f32.gmra.mxu0 %v5154
      %v5468 = vpop.f32.mrf.mxu0
      %v5469 = vadd.f32 0.0, %v5468
      %v5470 = vpop.f32.mrf.mxu0
      %v5471 = vadd.f32 0.0, %v5470
      %5472 = vmatprep.mubr.f32.mxu0 0.0
      %5473 = vmatmul.mubr.f32.gmra.mxu0 %v5156
      %v5474 = vpop.f32.mrf.mxu0
      %v5475 = vadd.f32 0.0, %v5474
      %v5476 = vpop.f32.mrf.mxu0
      %v5477 = vadd.f32 0.0, %v5476
      %5478 = vdwg.mxu0
      %v5479 = vmax.f32 %v5289, %v5291
      %5480 = vmax.xlane.f32.xlu0 %v5479
      %v5481 = vpop.xlane.xlu0 %5480
      %v5482 = vmax.f32 %v5295, %v5297
      %5483 = vmax.xlane.f32.xlu0 %v5482
      %v5484 = vpop.xlane.xlu0 %5483
      %v5485 = vmax.f32 %v5301, %v5303
      %5486 = vmax.xlane.f32.xlu0 %v5485
      %v5487 = vpop.xlane.xlu0 %5486
      %v5488 = vmax.f32 %v5307, %v5309
      %5489 = vmax.xlane.f32.xlu0 %v5488
      %v5490 = vpop.xlane.xlu0 %5489
      %v5491 = vmax.f32 %v5313, %v5315
      %5492 = vmax.xlane.f32.xlu0 %v5491
      %v5493 = vpop.xlane.xlu0 %5492
      %v5494 = vmax.f32 %v5319, %v5321
      %5495 = vmax.xlane.f32.xlu0 %v5494
      %v5496 = vpop.xlane.xlu0 %5495
      %v5497 = vmax.f32 %v5325, %v5327
      %5498 = vmax.xlane.f32.xlu0 %v5497
      %v5499 = vpop.xlane.xlu0 %5498
      %v5500 = vmax.f32 %v5331, %v5333
      %5501 = vmax.xlane.f32.xlu0 %v5500
      %v5502 = vpop.xlane.xlu0 %5501
      %v5503 = vmax.f32 %v5337, %v5339
      %5504 = vmax.xlane.f32.xlu0 %v5503
      %v5505 = vpop.xlane.xlu0 %5504
      %v5506 = vmax.f32 %v5343, %v5345
      %5507 = vmax.xlane.f32.xlu0 %v5506
      %v5508 = vpop.xlane.xlu0 %5507
      %v5509 = vmax.f32 %v5349, %v5351
      %5510 = vmax.xlane.f32.xlu0 %v5509
      %v5511 = vpop.xlane.xlu0 %5510
      %v5512 = vmax.f32 %v5355, %v5357
      %5513 = vmax.xlane.f32.xlu0 %v5512
      %v5514 = vpop.xlane.xlu0 %5513
      %v5515 = vmax.f32 %v5361, %v5363
      %5516 = vmax.xlane.f32.xlu0 %v5515
      %v5517 = vpop.xlane.xlu0 %5516
      %v5518 = vmax.f32 %v5367, %v5369
      %5519 = vmax.xlane.f32.xlu0 %v5518
      %v5520 = vpop.xlane.xlu0 %5519
      %v5521 = vmax.f32 %v5373, %v5375
      %5522 = vmax.xlane.f32.xlu0 %v5521
      %v5523 = vpop.xlane.xlu0 %5522
      %v5524 = vmax.f32 %v5379, %v5381
      %5525 = vmax.xlane.f32.xlu0 %v5524
      %v5526 = vpop.xlane.xlu0 %5525
      %v5527 = vmax.f32 %v5385, %v5387
      %5528 = vmax.xlane.f32.xlu0 %v5527
      %v5529 = vpop.xlane.xlu0 %5528
      %v5530 = vmax.f32 %v5391, %v5393
      %5531 = vmax.xlane.f32.xlu0 %v5530
      %v5532 = vpop.xlane.xlu0 %5531
      %v5533 = vmax.f32 %v5397, %v5399
      %5534 = vmax.xlane.f32.xlu0 %v5533
      %v5535 = vpop.xlane.xlu0 %5534
      %v5536 = vmax.f32 %v5403, %v5405
      %5537 = vmax.xlane.f32.xlu0 %v5536
      %v5538 = vpop.xlane.xlu0 %5537
      %v5539 = vmax.f32 %v5409, %v5411
      %5540 = vmax.xlane.f32.xlu0 %v5539
      %v5541 = vpop.xlane.xlu0 %5540
      %v5542 = vmax.f32 %v5415, %v5417
      %5543 = vmax.xlane.f32.xlu0 %v5542
      %v5544 = vpop.xlane.xlu0 %5543
      %v5545 = vmax.f32 %v5421, %v5423
      %5546 = vmax.xlane.f32.xlu0 %v5545
      %v5547 = vpop.xlane.xlu0 %5546
      %v5548 = vmax.f32 %v5427, %v5429
      %5549 = vmax.xlane.f32.xlu0 %v5548
      %v5550 = vpop.xlane.xlu0 %5549
      %v5551 = vmax.f32 %v5433, %v5435
      %5552 = vmax.xlane.f32.xlu0 %v5551
      %v5553 = vpop.xlane.xlu0 %5552
      %v5554 = vmax.f32 %v5439, %v5441
      %5555 = vmax.xlane.f32.xlu0 %v5554
      %v5556 = vpop.xlane.xlu0 %5555
      %v5557 = vmax.f32 %v5445, %v5447
      %5558 = vmax.xlane.f32.xlu0 %v5557
      %v5559 = vpop.xlane.xlu0 %5558
      %v5560 = vmax.f32 %v5451, %v5453
      %5561 = vmax.xlane.f32.xlu0 %v5560
      %v5562 = vpop.xlane.xlu0 %5561
      %v5563 = vmax.f32 %v5457, %v5459
      %5564 = vmax.xlane.f32.xlu0 %v5563
      %v5565 = vpop.xlane.xlu0 %5564
      %v5566 = vmax.f32 %v5463, %v5465
      %5567 = vmax.xlane.f32.xlu0 %v5566
      %v5568 = vpop.xlane.xlu0 %5567
      %v5569 = vmax.f32 %v5469, %v5471
      %5570 = vmax.xlane.f32.xlu0 %v5569
      %v5571 = vpop.xlane.xlu0 %5570
      %v5572 = vmax.f32 %v5475, %v5477
      %5573 = vmax.xlane.f32.xlu0 %v5572
      %v5574 = vpop.xlane.xlu0 %5573
      %v5575 = vsub.f32 %v5289, %v5481
      %v5576 = vsub.f32 %v5291, %v5481
      %v5577 = vsub.f32 %v5295, %v5484
      %v5578 = vsub.f32 %v5297, %v5484
      %v5579 = vsub.f32 %v5301, %v5487
      %v5580 = vsub.f32 %v5303, %v5487
      %v5581 = vsub.f32 %v5307, %v5490
      %v5582 = vsub.f32 %v5309, %v5490
      %v5583 = vsub.f32 %v5313, %v5493
      %v5584 = vsub.f32 %v5315, %v5493
      %v5585 = vsub.f32 %v5319, %v5496
      %v5586 = vsub.f32 %v5321, %v5496
      %v5587 = vsub.f32 %v5325, %v5499
      %v5588 = vsub.f32 %v5327, %v5499
      %v5589 = vsub.f32 %v5331, %v5502
      %v5590 = vsub.f32 %v5333, %v5502
      %v5591 = vsub.f32 %v5337, %v5505
      %v5592 = vsub.f32 %v5339, %v5505
      %v5593 = vsub.f32 %v5343, %v5508
      %v5594 = vsub.f32 %v5345, %v5508
      %v5595 = vsub.f32 %v5349, %v5511
      %v5596 = vsub.f32 %v5351, %v5511
      %v5597 = vsub.f32 %v5355, %v5514
      %v5598 = vsub.f32 %v5357, %v5514
      %v5599 = vsub.f32 %v5361, %v5517
      %v5600 = vsub.f32 %v5363, %v5517
      %v5601 = vsub.f32 %v5367, %v5520
      %v5602 = vsub.f32 %v5369, %v5520
      %v5603 = vsub.f32 %v5373, %v5523
      %v5604 = vsub.f32 %v5375, %v5523
      %v5605 = vsub.f32 %v5379, %v5526
      %v5606 = vsub.f32 %v5381, %v5526
      %v5607 = vsub.f32 %v5385, %v5529
      %v5608 = vsub.f32 %v5387, %v5529
      %v5609 = vsub.f32 %v5391, %v5532
      %v5610 = vsub.f32 %v5393, %v5532
      %v5611 = vsub.f32 %v5397, %v5535
      %v5612 = vsub.f32 %v5399, %v5535
      %v5613 = vsub.f32 %v5403, %v5538
      %v5614 = vsub.f32 %v5405, %v5538
      %v5615 = vsub.f32 %v5409, %v5541
      %v5616 = vsub.f32 %v5411, %v5541
      %v5617 = vsub.f32 %v5415, %v5544
      %v5618 = vsub.f32 %v5417, %v5544
      %v5619 = vsub.f32 %v5421, %v5547
      %v5620 = vsub.f32 %v5423, %v5547
      %v5621 = vsub.f32 %v5427, %v5550
      %v5622 = vsub.f32 %v5429, %v5550
      %v5623 = vsub.f32 %v5433, %v5553
      %v5624 = vsub.f32 %v5435, %v5553
      %v5625 = vsub.f32 %v5439, %v5556
      %v5626 = vsub.f32 %v5441, %v5556
      %v5627 = vsub.f32 %v5445, %v5559
      %v5628 = vsub.f32 %v5447, %v5559
      %v5629 = vsub.f32 %v5451, %v5562
      %v5630 = vsub.f32 %v5453, %v5562
      %v5631 = vsub.f32 %v5457, %v5565
      %v5632 = vsub.f32 %v5459, %v5565
      %v5633 = vsub.f32 %v5463, %v5568
      %v5634 = vsub.f32 %v5465, %v5568
      %v5635 = vsub.f32 %v5469, %v5571
      %v5636 = vsub.f32 %v5471, %v5571
      %v5637 = vsub.f32 %v5475, %v5574
      %v5638 = vsub.f32 %v5477, %v5574
      %v5639 = vmul.f32 %v5575, 1.442695
      %v5640 = vpow.pop %v5639
      %v5641 = vmul.f32 %v5576, 1.442695
      %v5642 = vpow.pop %v5641
      %v5643 = vmul.f32 %v5577, 1.442695
      %v5644 = vpow.pop %v5643
      %v5645 = vmul.f32 %v5578, 1.442695
      %v5646 = vpow.pop %v5645
      %v5647 = vmul.f32 %v5579, 1.442695
      %v5648 = vpow.pop %v5647
      %v5649 = vmul.f32 %v5580, 1.442695
      %v5650 = vpow.pop %v5649
      %v5651 = vmul.f32 %v5581, 1.442695
      %v5652 = vpow.pop %v5651
      %v5653 = vmul.f32 %v5582, 1.442695
      %v5654 = vpow.pop %v5653
      %v5655 = vmul.f32 %v5583, 1.442695
      %v5656 = vpow.pop %v5655
      %v5657 = vmul.f32 %v5584, 1.442695
      %v5658 = vpow.pop %v5657
      %v5659 = vmul.f32 %v5585, 1.442695
      %v5660 = vpow.pop %v5659
      %v5661 = vmul.f32 %v5586, 1.442695
      %v5662 = vpow.pop %v5661
      %v5663 = vmul.f32 %v5587, 1.442695
      %v5664 = vpow.pop %v5663
      %v5665 = vmul.f32 %v5588, 1.442695
      %v5666 = vpow.pop %v5665
      %v5667 = vmul.f32 %v5589, 1.442695
      %v5668 = vpow.pop %v5667
      %v5669 = vmul.f32 %v5590, 1.442695
      %v5670 = vpow.pop %v5669
      %v5671 = vmul.f32 %v5591, 1.442695
      %v5672 = vpow.pop %v5671
      %v5673 = vmul.f32 %v5592, 1.442695
      %v5674 = vpow.pop %v5673
      %v5675 = vmul.f32 %v5593, 1.442695
      %v5676 = vpow.pop %v5675
      %v5677 = vmul.f32 %v5594, 1.442695
      %v5678 = vpow.pop %v5677
      %v5679 = vmul.f32 %v5595, 1.442695
      %v5680 = vpow.pop %v5679
      %v5681 = vmul.f32 %v5596, 1.442695
      %v5682 = vpow.pop %v5681
      %v5683 = vmul.f32 %v5597, 1.442695
      %v5684 = vpow.pop %v5683
      %v5685 = vmul.f32 %v5598, 1.442695
      %v5686 = vpow.pop %v5685
      %v5687 = vmul.f32 %v5599, 1.442695
      %v5688 = vpow.pop %v5687
      %v5689 = vmul.f32 %v5600, 1.442695
      %v5690 = vpow.pop %v5689
      %v5691 = vmul.f32 %v5601, 1.442695
      %v5692 = vpow.pop %v5691
      %v5693 = vmul.f32 %v5602, 1.442695
      %v5694 = vpow.pop %v5693
      %v5695 = vmul.f32 %v5603, 1.442695
      %v5696 = vpow.pop %v5695
      %v5697 = vmul.f32 %v5604, 1.442695
      %v5698 = vpow.pop %v5697
      %v5699 = vmul.f32 %v5605, 1.442695
      %v5700 = vpow.pop %v5699
      %v5701 = vmul.f32 %v5606, 1.442695
      %v5702 = vpow.pop %v5701
      %v5703 = vmul.f32 %v5607, 1.442695
      %v5704 = vpow.pop %v5703
      %v5705 = vmul.f32 %v5608, 1.442695
      %v5706 = vpow.pop %v5705
      %v5707 = vmul.f32 %v5609, 1.442695
      %v5708 = vpow.pop %v5707
      %v5709 = vmul.f32 %v5610, 1.442695
      %v5710 = vpow.pop %v5709
      %v5711 = vmul.f32 %v5611, 1.442695
      %v5712 = vpow.pop %v5711
      %v5713 = vmul.f32 %v5612, 1.442695
      %v5714 = vpow.pop %v5713
      %v5715 = vmul.f32 %v5613, 1.442695
      %v5716 = vpow.pop %v5715
      %v5717 = vmul.f32 %v5614, 1.442695
      %v5718 = vpow.pop %v5717
      %v5719 = vmul.f32 %v5615, 1.442695
      %v5720 = vpow.pop %v5719
      %v5721 = vmul.f32 %v5616, 1.442695
      %v5722 = vpow.pop %v5721
      %v5723 = vmul.f32 %v5617, 1.442695
      %v5724 = vpow.pop %v5723
      %v5725 = vmul.f32 %v5618, 1.442695
      %v5726 = vpow.pop %v5725
      %v5727 = vmul.f32 %v5619, 1.442695
      %v5728 = vpow.pop %v5727
      %v5729 = vmul.f32 %v5620, 1.442695
      %v5730 = vpow.pop %v5729
      %v5731 = vmul.f32 %v5621, 1.442695
      %v5732 = vpow.pop %v5731
      %v5733 = vmul.f32 %v5622, 1.442695
      %v5734 = vpow.pop %v5733
      %v5735 = vmul.f32 %v5623, 1.442695
      %v5736 = vpow.pop %v5735
      %v5737 = vmul.f32 %v5624, 1.442695
      %v5738 = vpow.pop %v5737
      %v5739 = vmul.f32 %v5625, 1.442695
      %v5740 = vpow.pop %v5739
      %v5741 = vmul.f32 %v5626, 1.442695
      %v5742 = vpow.pop %v5741
      %v5743 = vmul.f32 %v5627, 1.442695
      %v5744 = vpow.pop %v5743
      %v5745 = vmul.f32 %v5628, 1.442695
      %v5746 = vpow.pop %v5745
      %v5747 = vmul.f32 %v5629, 1.442695
      %v5748 = vpow.pop %v5747
      %v5749 = vmul.f32 %v5630, 1.442695
      %v5750 = vpow.pop %v5749
      %v5751 = vmul.f32 %v5631, 1.442695
      %v5752 = vpow.pop %v5751
      %v5753 = vmul.f32 %v5632, 1.442695
      %v5754 = vpow.pop %v5753
      %v5755 = vmul.f32 %v5633, 1.442695
      %v5756 = vpow.pop %v5755
      %v5757 = vmul.f32 %v5634, 1.442695
      %v5758 = vpow.pop %v5757
      %v5759 = vmul.f32 %v5635, 1.442695
      %v5760 = vpow.pop %v5759
      %v5761 = vmul.f32 %v5636, 1.442695
      %v5762 = vpow.pop %v5761
      %v5763 = vmul.f32 %v5637, 1.442695
      %v5764 = vpow.pop %v5763
      %v5765 = vmul.f32 %v5638, 1.442695
      %v5766 = vpow.pop %v5765
      %v5767 = vadd.f32 %v5640, %v5642
      %5768 = vadd.xlane.f32.xlu0 %v5767
      %v5769 = vpop.xlane.xlu0 %5768
      %v5770 = vadd.f32 %v5644, %v5646
      %5771 = vadd.xlane.f32.xlu0 %v5770
      %v5772 = vpop.xlane.xlu0 %5771
      %v5773 = vadd.f32 %v5648, %v5650
      %5774 = vadd.xlane.f32.xlu0 %v5773
      %v5775 = vpop.xlane.xlu0 %5774
      %v5776 = vadd.f32 %v5652, %v5654
      %5777 = vadd.xlane.f32.xlu0 %v5776
      %v5778 = vpop.xlane.xlu0 %5777
      %v5779 = vadd.f32 %v5656, %v5658
      %5780 = vadd.xlane.f32.xlu0 %v5779
      %v5781 = vpop.xlane.xlu0 %5780
      %v5782 = vadd.f32 %v5660, %v5662
      %5783 = vadd.xlane.f32.xlu0 %v5782
      %v5784 = vpop.xlane.xlu0 %5783
      %v5785 = vadd.f32 %v5664, %v5666
      %5786 = vadd.xlane.f32.xlu0 %v5785
      %v5787 = vpop.xlane.xlu0 %5786
      %v5788 = vadd.f32 %v5668, %v5670
      %5789 = vadd.xlane.f32.xlu0 %v5788
      %v5790 = vpop.xlane.xlu0 %5789
      %v5791 = vadd.f32 %v5672, %v5674
      %5792 = vadd.xlane.f32.xlu0 %v5791
      %v5793 = vpop.xlane.xlu0 %5792
      %v5794 = vadd.f32 %v5676, %v5678
      %5795 = vadd.xlane.f32.xlu0 %v5794
      %v5796 = vpop.xlane.xlu0 %5795
      %v5797 = vadd.f32 %v5680, %v5682
      %5798 = vadd.xlane.f32.xlu0 %v5797
      %v5799 = vpop.xlane.xlu0 %5798
      %v5800 = vadd.f32 %v5684, %v5686
      %5801 = vadd.xlane.f32.xlu0 %v5800
      %v5802 = vpop.xlane.xlu0 %5801
      %v5803 = vadd.f32 %v5688, %v5690
      %5804 = vadd.xlane.f32.xlu0 %v5803
      %v5805 = vpop.xlane.xlu0 %5804
      %v5806 = vadd.f32 %v5692, %v5694
      %5807 = vadd.xlane.f32.xlu0 %v5806
      %v5808 = vpop.xlane.xlu0 %5807
      %v5809 = vadd.f32 %v5696, %v5698
      %5810 = vadd.xlane.f32.xlu0 %v5809
      %v5811 = vpop.xlane.xlu0 %5810
      %v5812 = vadd.f32 %v5700, %v5702
      %5813 = vadd.xlane.f32.xlu0 %v5812
      %v5814 = vpop.xlane.xlu0 %5813
      %v5815 = vadd.f32 %v5704, %v5706
      %5816 = vadd.xlane.f32.xlu0 %v5815
      %v5817 = vpop.xlane.xlu0 %5816
      %v5818 = vadd.f32 %v5708, %v5710
      %5819 = vadd.xlane.f32.xlu0 %v5818
      %v5820 = vpop.xlane.xlu0 %5819
      %v5821 = vadd.f32 %v5712, %v5714
      %5822 = vadd.xlane.f32.xlu0 %v5821
      %v5823 = vpop.xlane.xlu0 %5822
      %v5824 = vadd.f32 %v5716, %v5718
      %5825 = vadd.xlane.f32.xlu0 %v5824
      %v5826 = vpop.xlane.xlu0 %5825
      %v5827 = vadd.f32 %v5720, %v5722
      %5828 = vadd.xlane.f32.xlu0 %v5827
      %v5829 = vpop.xlane.xlu0 %5828
      %v5830 = vadd.f32 %v5724, %v5726
      %5831 = vadd.xlane.f32.xlu0 %v5830
      %v5832 = vpop.xlane.xlu0 %5831
      %v5833 = vadd.f32 %v5728, %v5730
      %5834 = vadd.xlane.f32.xlu0 %v5833
      %v5835 = vpop.xlane.xlu0 %5834
      %v5836 = vadd.f32 %v5732, %v5734
      %5837 = vadd.xlane.f32.xlu0 %v5836
      %v5838 = vpop.xlane.xlu0 %5837
      %v5839 = vadd.f32 %v5736, %v5738
      %5840 = vadd.xlane.f32.xlu0 %v5839
      %v5841 = vpop.xlane.xlu0 %5840
      %v5842 = vadd.f32 %v5740, %v5742
      %5843 = vadd.xlane.f32.xlu0 %v5842
      %v5844 = vpop.xlane.xlu0 %5843
      %v5845 = vadd.f32 %v5744, %v5746
      %5846 = vadd.xlane.f32.xlu0 %v5845
      %v5847 = vpop.xlane.xlu0 %5846
      %v5848 = vadd.f32 %v5748, %v5750
      %5849 = vadd.xlane.f32.xlu0 %v5848
      %v5850 = vpop.xlane.xlu0 %5849
      %v5851 = vadd.f32 %v5752, %v5754
      %5852 = vadd.xlane.f32.xlu0 %v5851
      %v5853 = vpop.xlane.xlu0 %5852
      %v5854 = vadd.f32 %v5756, %v5758
      %5855 = vadd.xlane.f32.xlu0 %v5854
      %v5856 = vpop.xlane.xlu0 %5855
      %v5857 = vadd.f32 %v5760, %v5762
      %5858 = vadd.xlane.f32.xlu0 %v5857
      %v5859 = vpop.xlane.xlu0 %5858
      %v5860 = vadd.f32 %v5764, %v5766
      %5861 = vadd.xlane.f32.xlu0 %v5860
      %v5862 = vpop.xlane.xlu0 %5861
      %v5863 = vrcp.pop %v5769
      %v5864 = vrcp.pop %v5772
      %v5865 = vrcp.pop %v5775
      %v5866 = vrcp.pop %v5778
      %v5867 = vrcp.pop %v5781
      %v5868 = vrcp.pop %v5784
      %v5869 = vrcp.pop %v5787
      %v5870 = vrcp.pop %v5790
      %v5871 = vrcp.pop %v5793
      %v5872 = vrcp.pop %v5796
      %v5873 = vrcp.pop %v5799
      %v5874 = vrcp.pop %v5802
      %v5875 = vrcp.pop %v5805
      %v5876 = vrcp.pop %v5808
      %v5877 = vrcp.pop %v5811
      %v5878 = vrcp.pop %v5814
      %v5879 = vrcp.pop %v5817
      %v5880 = vrcp.pop %v5820
      %v5881 = vrcp.pop %v5823
      %v5882 = vrcp.pop %v5826
      %v5883 = vrcp.pop %v5829
      %v5884 = vrcp.pop %v5832
      %v5885 = vrcp.pop %v5835
      %v5886 = vrcp.pop %v5838
      %v5887 = vrcp.pop %v5841
      %v5888 = vrcp.pop %v5844
      %v5889 = vrcp.pop %v5847
      %v5890 = vrcp.pop %v5850
      %v5891 = vrcp.pop %v5853
      %v5892 = vrcp.pop %v5856
      %v5893 = vrcp.pop %v5859
      %v5894 = vrcp.pop %v5862
      %v5895 = vmul.f32 %v5640, %v5863
      %v5896 = vmul.f32 %v5642, %v5863
      %v5897 = vmul.f32 %v5644, %v5864
      %v5898 = vmul.f32 %v5646, %v5864
      %v5899 = vmul.f32 %v5648, %v5865
      %v5900 = vmul.f32 %v5650, %v5865
      %v5901 = vmul.f32 %v5652, %v5866
      %v5902 = vmul.f32 %v5654, %v5866
      %v5903 = vmul.f32 %v5656, %v5867
      %v5904 = vmul.f32 %v5658, %v5867
      %v5905 = vmul.f32 %v5660, %v5868
      %v5906 = vmul.f32 %v5662, %v5868
      %v5907 = vmul.f32 %v5664, %v5869
      %v5908 = vmul.f32 %v5666, %v5869
      %v5909 = vmul.f32 %v5668, %v5870
      %v5910 = vmul.f32 %v5670, %v5870
      %v5911 = vmul.f32 %v5672, %v5871
      %v5912 = vmul.f32 %v5674, %v5871
      %v5913 = vmul.f32 %v5676, %v5872
      %v5914 = vmul.f32 %v5678, %v5872
      %v5915 = vmul.f32 %v5680, %v5873
      %v5916 = vmul.f32 %v5682, %v5873
      %v5917 = vmul.f32 %v5684, %v5874
      %v5918 = vmul.f32 %v5686, %v5874
      %v5919 = vmul.f32 %v5688, %v5875
      %v5920 = vmul.f32 %v5690, %v5875
      %v5921 = vmul.f32 %v5692, %v5876
      %v5922 = vmul.f32 %v5694, %v5876
      %v5923 = vmul.f32 %v5696, %v5877
      %v5924 = vmul.f32 %v5698, %v5877
      %v5925 = vmul.f32 %v5700, %v5878
      %v5926 = vmul.f32 %v5702, %v5878
      %v5927 = vmul.f32 %v5704, %v5879
      %v5928 = vmul.f32 %v5706, %v5879
      %v5929 = vmul.f32 %v5708, %v5880
      %v5930 = vmul.f32 %v5710, %v5880
      %v5931 = vmul.f32 %v5712, %v5881
      %v5932 = vmul.f32 %v5714, %v5881
      %v5933 = vmul.f32 %v5716, %v5882
      %v5934 = vmul.f32 %v5718, %v5882
      %v5935 = vmul.f32 %v5720, %v5883
      %v5936 = vmul.f32 %v5722, %v5883
      %v5937 = vmul.f32 %v5724, %v5884
      %v5938 = vmul.f32 %v5726, %v5884
      %v5939 = vmul.f32 %v5728, %v5885
      %v5940 = vmul.f32 %v5730, %v5885
      %v5941 = vmul.f32 %v5732, %v5886
      %v5942 = vmul.f32 %v5734, %v5886
      %v5943 = vmul.f32 %v5736, %v5887
      %v5944 = vmul.f32 %v5738, %v5887
      %v5945 = vmul.f32 %v5740, %v5888
      %v5946 = vmul.f32 %v5742, %v5888
      %v5947 = vmul.f32 %v5744, %v5889
      %v5948 = vmul.f32 %v5746, %v5889
      %v5949 = vmul.f32 %v5748, %v5890
      %v5950 = vmul.f32 %v5750, %v5890
      %v5951 = vmul.f32 %v5752, %v5891
      %v5952 = vmul.f32 %v5754, %v5891
      %v5953 = vmul.f32 %v5756, %v5892
      %v5954 = vmul.f32 %v5758, %v5892
      %v5955 = vmul.f32 %v5760, %v5893
      %v5956 = vmul.f32 %v5762, %v5893
      %v5957 = vmul.f32 %v5764, %v5894
      %v5958 = vmul.f32 %v5766, %v5894
      %5959 = vrot.lane.b32.xlu0 %v565, 84
      %v5960 = vpop.permute.xlu0 %5959
      %5961 = vrot.lane.b32.xlu0 %v570, 84
      %v5962 = vpop.permute.xlu0 %5961
      %5963 = vrot.lane.b32.xlu0 %v575, 84
      %v5964 = vpop.permute.xlu0 %5963
      %5965 = vrot.lane.b32.xlu0 %v580, 84
      %v5966 = vpop.permute.xlu0 %5965
      %5967 = vrot.lane.b32.xlu0 %v585, 84
      %v5968 = vpop.permute.xlu0 %5967
      %5969 = vrot.lane.b32.xlu0 %v590, 84
      %v5970 = vpop.permute.xlu0 %5969
      %5971 = vrot.lane.b32.xlu0 %v595, 84
      %v5972 = vpop.permute.xlu0 %5971
      %5973 = vrot.lane.b32.xlu0 %v600, 84
      %v5974 = vpop.permute.xlu0 %5973
      %5975 = vrot.lane.b32.xlu0 %v605, 84
      %v5976 = vpop.permute.xlu0 %5975
      %5977 = vrot.lane.b32.xlu0 %v610, 84
      %v5978 = vpop.permute.xlu0 %5977
      %5979 = vrot.lane.b32.xlu0 %v615, 84
      %v5980 = vpop.permute.xlu0 %5979
      %5981 = vrot.lane.b32.xlu0 %v620, 84
      %v5982 = vpop.permute.xlu0 %5981
      %5983 = vrot.lane.b32.xlu0 %v625, 84
      %v5984 = vpop.permute.xlu0 %5983
      %5985 = vrot.lane.b32.xlu0 %v630, 84
      %v5986 = vpop.permute.xlu0 %5985
      %5987 = vrot.lane.b32.xlu0 %v635, 84
      %v5988 = vpop.permute.xlu0 %5987
      %5989 = vrot.lane.b32.xlu0 %v640, 84
      %v5990 = vpop.permute.xlu0 %5989
      %5991 = vrot.lane.b32.xlu0 %v645, 84
      %v5992 = vpop.permute.xlu0 %5991
      %5993 = vrot.lane.b32.xlu0 %v650, 84
      %v5994 = vpop.permute.xlu0 %5993
      %5995 = vrot.lane.b32.xlu0 %v655, 84
      %v5996 = vpop.permute.xlu0 %5995
      %5997 = vrot.lane.b32.xlu0 %v660, 84
      %v5998 = vpop.permute.xlu0 %5997
      %5999 = vrot.lane.b32.xlu0 %v665, 84
      %v6000 = vpop.permute.xlu0 %5999
      %6001 = vrot.lane.b32.xlu0 %v670, 84
      %v6002 = vpop.permute.xlu0 %6001
      %6003 = vrot.lane.b32.xlu0 %v675, 84
      %v6004 = vpop.permute.xlu0 %6003
      %6005 = vrot.lane.b32.xlu0 %v680, 84
      %v6006 = vpop.permute.xlu0 %6005
      %6007 = vrot.lane.b32.xlu0 %v685, 84
      %v6008 = vpop.permute.xlu0 %6007
      %6009 = vrot.lane.b32.xlu0 %v690, 84
      %v6010 = vpop.permute.xlu0 %6009
      %6011 = vrot.lane.b32.xlu0 %v695, 84
      %v6012 = vpop.permute.xlu0 %6011
      %6013 = vrot.lane.b32.xlu0 %v700, 84
      %v6014 = vpop.permute.xlu0 %6013
      %6015 = vrot.lane.b32.xlu0 %v705, 84
      %v6016 = vpop.permute.xlu0 %6015
      %6017 = vrot.lane.b32.xlu0 %v710, 84
      %v6018 = vpop.permute.xlu0 %6017
      %6019 = vrot.lane.b32.xlu0 %v715, 84
      %v6020 = vpop.permute.xlu0 %6019
      %6021 = vrot.lane.b32.xlu0 %v720, 84
      %v6022 = vpop.permute.xlu0 %6021
      %6055 = vmatprep.subr.mxu0 0.0
      %6056 = vmatpush1.msra.mxu0 %v5990
      %6057 = vmatprep.subr.mxu0 0.0
      %6058 = vmatpush1.msra.mxu0 %v5988
      %6059 = vmatprep.subr.mxu0 0.0
      %6060 = vmatpush1.msra.mxu0 %v5986
      %6061 = vmatprep.subr.mxu0 0.0
      %6062 = vmatpush1.msra.mxu0 %v5984
      %6063 = vmatprep.subr.mxu0 0.0
      %6064 = vmatpush1.msra.mxu0 %v5982
      %6065 = vmatprep.subr.mxu0 0.0
      %6066 = vmatpush1.msra.mxu0 %v5980
      %6067 = vmatprep.subr.mxu0 0.0
      %6068 = vmatpush1.msra.mxu0 %v5978
      %6069 = vmatprep.subr.mxu0 0.0
      %6070 = vmatpush1.msra.mxu0 %v5976
      %6071 = vmatprep.subr.mxu0 0.0
      %6072 = vmatpush1.msra.mxu0 %v5974
      %6073 = vmatprep.subr.mxu0 0.0
      %6074 = vmatpush1.msra.mxu0 %v5972
      %6075 = vmatprep.subr.mxu0 0.0
      %6076 = vmatpush1.msra.mxu0 %v5970
      %6077 = vmatprep.subr.mxu0 0.0
      %6078 = vmatpush1.msra.mxu0 %v5968
      %6079 = vmatprep.subr.mxu0 0.0
      %6080 = vmatpush1.msra.mxu0 %v5966
      %6081 = vmatprep.subr.mxu0 0.0
      %6082 = vmatpush1.msra.mxu0 %v5964
      %6083 = vmatprep.subr.mxu0 0.0
      %6084 = vmatpush1.msra.mxu0 %v5962
      %6085 = vmatprep.subr.mxu0 0.0
      %6086 = vmatpush1.msra.mxu0 %v5960
      %6087 = vmatprep.subr.mxu0 0.0
      %6088 = vmatpush2.msra.mxu0 %v6022
      %6089 = vmatprep.subr.mxu0 0.0
      %6090 = vmatpush2.msra.mxu0 %v6020
      %6091 = vmatprep.subr.mxu0 0.0
      %6092 = vmatpush2.msra.mxu0 %v6018
      %6093 = vmatprep.subr.mxu0 0.0
      %6094 = vmatpush2.msra.mxu0 %v6016
      %6095 = vmatprep.subr.mxu0 0.0
      %6096 = vmatpush2.msra.mxu0 %v6014
      %6097 = vmatprep.subr.mxu0 0.0
      %6098 = vmatpush2.msra.mxu0 %v6012
      %6099 = vmatprep.subr.mxu0 0.0
      %6100 = vmatpush2.msra.mxu0 %v6010
      %6101 = vmatprep.subr.mxu0 0.0
      %6102 = vmatpush2.msra.mxu0 %v6008
      %6103 = vmatprep.subr.mxu0 0.0
      %6104 = vmatpush2.msra.mxu0 %v6006
      %6105 = vmatprep.subr.mxu0 0.0
      %6106 = vmatpush2.msra.mxu0 %v6004
      %6107 = vmatprep.subr.mxu0 0.0
      %6108 = vmatpush2.msra.mxu0 %v6002
      %6109 = vmatprep.subr.mxu0 0.0
      %6110 = vmatpush2.msra.mxu0 %v6000
      %6111 = vmatprep.subr.mxu0 0.0
      %6112 = vmatpush2.msra.mxu0 %v5998
      %6113 = vmatprep.subr.mxu0 0.0
      %6114 = vmatpush2.msra.mxu0 %v5996
      %6115 = vmatprep.subr.mxu0 0.0
      %6116 = vmatpush2.msra.mxu0 %v5994
      %6117 = vmatprep.subr.mxu0 0.0
      %6118 = vmatpush2.msra.mxu0 %v5992
      %6119 = vmatprep.mubr.f32.mxu0 %v5896
      %6120 = vmatmul.mubr.f32.gmra.mxu0 %v5895
      %v6121 = vpop.f32.mrf.mxu0
      %v6122 = vadd.f32 0.0, %v6121
      %v6123 = vpop.f32.mrf.mxu0
      %6124 = vmatprep.mubr.f32.mxu0 %v5898
      %6125 = vmatmul.mubr.f32.gmra.mxu0 %v5897
      %v6126 = vpop.f32.mrf.mxu0
      %v6127 = vadd.f32 0.0, %v6126
      %v6128 = vpop.f32.mrf.mxu0
      %6129 = vmatprep.mubr.f32.mxu0 %v5900
      %6130 = vmatmul.mubr.f32.gmra.mxu0 %v5899
      %v6131 = vpop.f32.mrf.mxu0
      %v6132 = vadd.f32 0.0, %v6131
      %v6133 = vpop.f32.mrf.mxu0
      %6134 = vmatprep.mubr.f32.mxu0 %v5902
      %6135 = vmatmul.mubr.f32.gmra.mxu0 %v5901
      %v6136 = vpop.f32.mrf.mxu0
      %v6137 = vadd.f32 0.0, %v6136
      %v6138 = vpop.f32.mrf.mxu0
      %6139 = vmatprep.mubr.f32.mxu0 %v5904
      %6140 = vmatmul.mubr.f32.gmra.mxu0 %v5903
      %v6141 = vpop.f32.mrf.mxu0
      %v6142 = vadd.f32 0.0, %v6141
      %v6143 = vpop.f32.mrf.mxu0
      %6144 = vmatprep.mubr.f32.mxu0 %v5906
      %6145 = vmatmul.mubr.f32.gmra.mxu0 %v5905
      %v6146 = vpop.f32.mrf.mxu0
      %v6147 = vadd.f32 0.0, %v6146
      %v6148 = vpop.f32.mrf.mxu0
      %6149 = vmatprep.mubr.f32.mxu0 %v5908
      %6150 = vmatmul.mubr.f32.gmra.mxu0 %v5907
      %v6151 = vpop.f32.mrf.mxu0
      %v6152 = vadd.f32 0.0, %v6151
      %v6153 = vpop.f32.mrf.mxu0
      %6154 = vmatprep.mubr.f32.mxu0 %v5910
      %6155 = vmatmul.mubr.f32.gmra.mxu0 %v5909
      %v6156 = vpop.f32.mrf.mxu0
      %v6157 = vadd.f32 0.0, %v6156
      %v6158 = vpop.f32.mrf.mxu0
      %6159 = vmatprep.mubr.f32.mxu0 %v5912
      %6160 = vmatmul.mubr.f32.gmra.mxu0 %v5911
      %v6161 = vpop.f32.mrf.mxu0
      %v6162 = vadd.f32 0.0, %v6161
      %v6163 = vpop.f32.mrf.mxu0
      %6164 = vmatprep.mubr.f32.mxu0 %v5914
      %6165 = vmatmul.mubr.f32.gmra.mxu0 %v5913
      %v6166 = vpop.f32.mrf.mxu0
      %v6167 = vadd.f32 0.0, %v6166
      %v6168 = vpop.f32.mrf.mxu0
      %6169 = vmatprep.mubr.f32.mxu0 %v5916
      %6170 = vmatmul.mubr.f32.gmra.mxu0 %v5915
      %v6171 = vpop.f32.mrf.mxu0
      %v6172 = vadd.f32 0.0, %v6171
      %v6173 = vpop.f32.mrf.mxu0
      %6174 = vmatprep.mubr.f32.mxu0 %v5918
      %6175 = vmatmul.mubr.f32.gmra.mxu0 %v5917
      %v6176 = vpop.f32.mrf.mxu0
      %v6177 = vadd.f32 0.0, %v6176
      %v6178 = vpop.f32.mrf.mxu0
      %6179 = vmatprep.mubr.f32.mxu0 %v5920
      %6180 = vmatmul.mubr.f32.gmra.mxu0 %v5919
      %v6181 = vpop.f32.mrf.mxu0
      %v6182 = vadd.f32 0.0, %v6181
      %v6183 = vpop.f32.mrf.mxu0
      %6184 = vmatprep.mubr.f32.mxu0 %v5922
      %6185 = vmatmul.mubr.f32.gmra.mxu0 %v5921
      %v6186 = vpop.f32.mrf.mxu0
      %v6187 = vadd.f32 0.0, %v6186
      %v6188 = vpop.f32.mrf.mxu0
      %6189 = vmatprep.mubr.f32.mxu0 %v5924
      %6190 = vmatmul.mubr.f32.gmra.mxu0 %v5923
      %v6191 = vpop.f32.mrf.mxu0
      %v6192 = vadd.f32 0.0, %v6191
      %v6193 = vpop.f32.mrf.mxu0
      %6194 = vmatprep.mubr.f32.mxu0 %v5926
      %6195 = vmatmul.mubr.f32.gmra.mxu0 %v5925
      %v6196 = vpop.f32.mrf.mxu0
      %v6197 = vadd.f32 0.0, %v6196
      %v6198 = vpop.f32.mrf.mxu0
      %6199 = vmatprep.mubr.f32.mxu0 %v5928
      %6200 = vmatmul.mubr.f32.gmra.mxu0 %v5927
      %v6201 = vpop.f32.mrf.mxu0
      %v6202 = vadd.f32 0.0, %v6201
      %v6203 = vpop.f32.mrf.mxu0
      %6204 = vmatprep.mubr.f32.mxu0 %v5930
      %6205 = vmatmul.mubr.f32.gmra.mxu0 %v5929
      %v6206 = vpop.f32.mrf.mxu0
      %v6207 = vadd.f32 0.0, %v6206
      %v6208 = vpop.f32.mrf.mxu0
      %6209 = vmatprep.mubr.f32.mxu0 %v5932
      %6210 = vmatmul.mubr.f32.gmra.mxu0 %v5931
      %v6211 = vpop.f32.mrf.mxu0
      %v6212 = vadd.f32 0.0, %v6211
      %v6213 = vpop.f32.mrf.mxu0
      %6214 = vmatprep.mubr.f32.mxu0 %v5934
      %6215 = vmatmul.mubr.f32.gmra.mxu0 %v5933
      %v6216 = vpop.f32.mrf.mxu0
      %v6217 = vadd.f32 0.0, %v6216
      %v6218 = vpop.f32.mrf.mxu0
      %6219 = vmatprep.mubr.f32.mxu0 %v5936
      %6220 = vmatmul.mubr.f32.gmra.mxu0 %v5935
      %v6221 = vpop.f32.mrf.mxu0
      %v6222 = vadd.f32 0.0, %v6221
      %v6223 = vpop.f32.mrf.mxu0
      %6224 = vmatprep.mubr.f32.mxu0 %v5938
      %6225 = vmatmul.mubr.f32.gmra.mxu0 %v5937
      %v6226 = vpop.f32.mrf.mxu0
      %v6227 = vadd.f32 0.0, %v6226
      %v6228 = vpop.f32.mrf.mxu0
      %6229 = vmatprep.mubr.f32.mxu0 %v5940
      %6230 = vmatmul.mubr.f32.gmra.mxu0 %v5939
      %v6231 = vpop.f32.mrf.mxu0
      %v6232 = vadd.f32 0.0, %v6231
      %v6233 = vpop.f32.mrf.mxu0
      %6234 = vmatprep.mubr.f32.mxu0 %v5942
      %6235 = vmatmul.mubr.f32.gmra.mxu0 %v5941
      %v6236 = vpop.f32.mrf.mxu0
      %v6237 = vadd.f32 0.0, %v6236
      %v6238 = vpop.f32.mrf.mxu0
      %6239 = vmatprep.mubr.f32.mxu0 %v5944
      %6240 = vmatmul.mubr.f32.gmra.mxu0 %v5943
      %v6241 = vpop.f32.mrf.mxu0
      %v6242 = vadd.f32 0.0, %v6241
      %v6243 = vpop.f32.mrf.mxu0
      %6244 = vmatprep.mubr.f32.mxu0 %v5946
      %6245 = vmatmul.mubr.f32.gmra.mxu0 %v5945
      %v6246 = vpop.f32.mrf.mxu0
      %v6247 = vadd.f32 0.0, %v6246
      %v6248 = vpop.f32.mrf.mxu0
      %6249 = vmatprep.mubr.f32.mxu0 %v5948
      %6250 = vmatmul.mubr.f32.gmra.mxu0 %v5947
      %v6251 = vpop.f32.mrf.mxu0
      %v6252 = vadd.f32 0.0, %v6251
      %v6253 = vpop.f32.mrf.mxu0
      %6254 = vmatprep.mubr.f32.mxu0 %v5950
      %6255 = vmatmul.mubr.f32.gmra.mxu0 %v5949
      %v6256 = vpop.f32.mrf.mxu0
      %v6257 = vadd.f32 0.0, %v6256
      %v6258 = vpop.f32.mrf.mxu0
      %6259 = vmatprep.mubr.f32.mxu0 %v5952
      %6260 = vmatmul.mubr.f32.gmra.mxu0 %v5951
      %v6261 = vpop.f32.mrf.mxu0
      %v6262 = vadd.f32 0.0, %v6261
      %v6263 = vpop.f32.mrf.mxu0
      %6264 = vmatprep.mubr.f32.mxu0 %v5954
      %6265 = vmatmul.mubr.f32.gmra.mxu0 %v5953
      %v6266 = vpop.f32.mrf.mxu0
      %v6267 = vadd.f32 0.0, %v6266
      %v6268 = vpop.f32.mrf.mxu0
      %6269 = vmatprep.mubr.f32.mxu0 %v5956
      %6270 = vmatmul.mubr.f32.gmra.mxu0 %v5955
      %v6271 = vpop.f32.mrf.mxu0
      %v6272 = vadd.f32 0.0, %v6271
      %v6273 = vpop.f32.mrf.mxu0
      %6274 = vmatprep.mubr.f32.mxu0 %v5958
      %6275 = vmatmul.mubr.f32.gmra.mxu0 %v5957
      %v6276 = vpop.f32.mrf.mxu0
      %v6277 = vadd.f32 0.0, %v6276
      %v6278 = vpop.f32.mrf.mxu0
      %6279 = vdwg.mxu0
      %6280 = vrot.lane.b32.xlu0 %v1055, 112
      %v6281 = vpop.permute.xlu0 %6280
      %6282 = vrot.lane.b32.xlu0 %v1056, 112
      %v6283 = vpop.permute.xlu0 %6282
      %6284 = vrot.lane.b32.xlu0 %v1057, 112
      %v6285 = vpop.permute.xlu0 %6284
      %6286 = vrot.lane.b32.xlu0 %v1058, 112
      %v6287 = vpop.permute.xlu0 %6286
      %6288 = vrot.lane.b32.xlu0 %v1059, 112
      %v6289 = vpop.permute.xlu0 %6288
      %6290 = vrot.lane.b32.xlu0 %v1060, 112
      %v6291 = vpop.permute.xlu0 %6290
      %6292 = vrot.lane.b32.xlu0 %v1061, 112
      %v6293 = vpop.permute.xlu0 %6292
      %6294 = vrot.lane.b32.xlu0 %v1062, 112
      %v6295 = vpop.permute.xlu0 %6294
      %6296 = vrot.lane.b32.xlu0 %v1063, 112
      %v6297 = vpop.permute.xlu0 %6296
      %6298 = vrot.lane.b32.xlu0 %v1064, 112
      %v6299 = vpop.permute.xlu0 %6298
      %6300 = vrot.lane.b32.xlu0 %v1065, 112
      %v6301 = vpop.permute.xlu0 %6300
      %6302 = vrot.lane.b32.xlu0 %v1066, 112
      %v6303 = vpop.permute.xlu0 %6302
      %6304 = vrot.lane.b32.xlu0 %v1067, 112
      %v6305 = vpop.permute.xlu0 %6304
      %6306 = vrot.lane.b32.xlu0 %v1068, 112
      %v6307 = vpop.permute.xlu0 %6306
      %6308 = vrot.lane.b32.xlu0 %v1069, 112
      %v6309 = vpop.permute.xlu0 %6308
      %6310 = vrot.lane.b32.xlu0 %v1070, 112
      %v6311 = vpop.permute.xlu0 %6310
      %6312 = vrot.lane.b32.xlu0 %v1071, 112
      %v6313 = vpop.permute.xlu0 %6312
      %6314 = vrot.lane.b32.xlu0 %v1072, 112
      %v6315 = vpop.permute.xlu0 %6314
      %6316 = vrot.lane.b32.xlu0 %v1073, 112
      %v6317 = vpop.permute.xlu0 %6316
      %6318 = vrot.lane.b32.xlu0 %v1074, 112
      %v6319 = vpop.permute.xlu0 %6318
      %6320 = vrot.lane.b32.xlu0 %v1075, 112
      %v6321 = vpop.permute.xlu0 %6320
      %6322 = vrot.lane.b32.xlu0 %v1076, 112
      %v6323 = vpop.permute.xlu0 %6322
      %6324 = vrot.lane.b32.xlu0 %v1077, 112
      %v6325 = vpop.permute.xlu0 %6324
      %6326 = vrot.lane.b32.xlu0 %v1078, 112
      %v6327 = vpop.permute.xlu0 %6326
      %6328 = vrot.lane.b32.xlu0 %v1079, 112
      %v6329 = vpop.permute.xlu0 %6328
      %6330 = vrot.lane.b32.xlu0 %v1080, 112
      %v6331 = vpop.permute.xlu0 %6330
      %6332 = vrot.lane.b32.xlu0 %v1081, 112
      %v6333 = vpop.permute.xlu0 %6332
      %6334 = vrot.lane.b32.xlu0 %v1082, 112
      %v6335 = vpop.permute.xlu0 %6334
      %6336 = vrot.lane.b32.xlu0 %v1083, 112
      %v6337 = vpop.permute.xlu0 %6336
      %6338 = vrot.lane.b32.xlu0 %v1084, 112
      %v6339 = vpop.permute.xlu0 %6338
      %6340 = vrot.lane.b32.xlu0 %v1085, 112
      %v6341 = vpop.permute.xlu0 %6340
      %6342 = vrot.lane.b32.xlu0 %v1086, 112
      %v6343 = vpop.permute.xlu0 %6342
      %6344 = vrot.lane.b32.xlu0 %v565, 112
      %v6345 = vpop.permute.xlu0 %6344
      %6346 = vrot.lane.b32.xlu0 %v570, 112
      %v6347 = vpop.permute.xlu0 %6346
      %6348 = vrot.lane.b32.xlu0 %v575, 112
      %v6349 = vpop.permute.xlu0 %6348
      %6350 = vrot.lane.b32.xlu0 %v580, 112
      %v6351 = vpop.permute.xlu0 %6350
      %6352 = vrot.lane.b32.xlu0 %v585, 112
      %v6353 = vpop.permute.xlu0 %6352
      %6354 = vrot.lane.b32.xlu0 %v590, 112
      %v6355 = vpop.permute.xlu0 %6354
      %6356 = vrot.lane.b32.xlu0 %v595, 112
      %v6357 = vpop.permute.xlu0 %6356
      %6358 = vrot.lane.b32.xlu0 %v600, 112
      %v6359 = vpop.permute.xlu0 %6358
      %6360 = vrot.lane.b32.xlu0 %v605, 112
      %v6361 = vpop.permute.xlu0 %6360
      %6362 = vrot.lane.b32.xlu0 %v610, 112
      %v6363 = vpop.permute.xlu0 %6362
      %6364 = vrot.lane.b32.xlu0 %v615, 112
      %v6365 = vpop.permute.xlu0 %6364
      %6366 = vrot.lane.b32.xlu0 %v620, 112
      %v6367 = vpop.permute.xlu0 %6366
      %6368 = vrot.lane.b32.xlu0 %v625, 112
      %v6369 = vpop.permute.xlu0 %6368
      %6370 = vrot.lane.b32.xlu0 %v630, 112
      %v6371 = vpop.permute.xlu0 %6370
      %6372 = vrot.lane.b32.xlu0 %v635, 112
      %v6373 = vpop.permute.xlu0 %6372
      %6374 = vrot.lane.b32.xlu0 %v640, 112
      %v6375 = vpop.permute.xlu0 %6374
      %6376 = vrot.lane.b32.xlu0 %v645, 112
      %v6377 = vpop.permute.xlu0 %6376
      %6378 = vrot.lane.b32.xlu0 %v650, 112
      %v6379 = vpop.permute.xlu0 %6378
      %6380 = vrot.lane.b32.xlu0 %v655, 112
      %v6381 = vpop.permute.xlu0 %6380
      %6382 = vrot.lane.b32.xlu0 %v660, 112
      %v6383 = vpop.permute.xlu0 %6382
      %6384 = vrot.lane.b32.xlu0 %v665, 112
      %v6385 = vpop.permute.xlu0 %6384
      %6386 = vrot.lane.b32.xlu0 %v670, 112
      %v6387 = vpop.permute.xlu0 %6386
      %6388 = vrot.lane.b32.xlu0 %v675, 112
      %v6389 = vpop.permute.xlu0 %6388
      %6390 = vrot.lane.b32.xlu0 %v680, 112
      %v6391 = vpop.permute.xlu0 %6390
      %6392 = vrot.lane.b32.xlu0 %v685, 112
      %v6393 = vpop.permute.xlu0 %6392
      %6394 = vrot.lane.b32.xlu0 %v690, 112
      %v6395 = vpop.permute.xlu0 %6394
      %6396 = vrot.lane.b32.xlu0 %v695, 112
      %v6397 = vpop.permute.xlu0 %6396
      %6398 = vrot.lane.b32.xlu0 %v700, 112
      %v6399 = vpop.permute.xlu0 %6398
      %6400 = vrot.lane.b32.xlu0 %v705, 112
      %v6401 = vpop.permute.xlu0 %6400
      %6402 = vrot.lane.b32.xlu0 %v710, 112
      %v6403 = vpop.permute.xlu0 %6402
      %6404 = vrot.lane.b32.xlu0 %v715, 112
      %v6405 = vpop.permute.xlu0 %6404
      %6406 = vrot.lane.b32.xlu0 %v720, 112
      %v6407 = vpop.permute.xlu0 %6406
      %v6408 = vsel %vm1087, %v6281, 0
      %v6410 = vsel %vm1087, %v6283, 0
      %v6412 = vsel %vm1087, %v6285, 0
      %v6414 = vsel %vm1087, %v6287, 0
      %v6416 = vsel %vm1087, %v6289, 0
      %v6418 = vsel %vm1087, %v6291, 0
      %v6420 = vsel %vm1087, %v6293, 0
      %v6422 = vsel %vm1087, %v6295, 0
      %v6424 = vsel %vm1087, %v6297, 0
      %v6426 = vsel %vm1087, %v6299, 0
      %v6428 = vsel %vm1087, %v6301, 0
      %v6430 = vsel %vm1087, %v6303, 0
      %v6432 = vsel %vm1087, %v6305, 0
      %v6434 = vsel %vm1087, %v6307, 0
      %v6436 = vsel %vm1087, %v6309, 0
      %v6438 = vsel %vm1087, %v6311, 0
      %v6440 = vsel %vm1087, %v6313, 0
      %v6442 = vsel %vm1087, %v6315, 0
      %v6444 = vsel %vm1087, %v6317, 0
      %v6446 = vsel %vm1087, %v6319, 0
      %v6448 = vsel %vm1087, %v6321, 0
      %v6450 = vsel %vm1087, %v6323, 0
      %v6452 = vsel %vm1087, %v6325, 0
      %v6454 = vsel %vm1087, %v6327, 0
      %v6456 = vsel %vm1087, %v6329, 0
      %v6458 = vsel %vm1087, %v6331, 0
      %v6460 = vsel %vm1087, %v6333, 0
      %v6462 = vsel %vm1087, %v6335, 0
      %v6464 = vsel %vm1087, %v6337, 0
      %v6466 = vsel %vm1087, %v6339, 0
      %v6468 = vsel %vm1087, %v6341, 0
      %v6470 = vsel %vm1087, %v6343, 0
      %v6472 = vsel %vm1087, %v6345, 0
      %v6474 = vsel %vm1087, %v6347, 0
      %v6476 = vsel %vm1087, %v6349, 0
      %v6478 = vsel %vm1087, %v6351, 0
      %v6480 = vsel %vm1087, %v6353, 0
      %v6482 = vsel %vm1087, %v6355, 0
      %v6484 = vsel %vm1087, %v6357, 0
      %v6486 = vsel %vm1087, %v6359, 0
      %v6488 = vsel %vm1087, %v6361, 0
      %v6490 = vsel %vm1087, %v6363, 0
      %v6492 = vsel %vm1087, %v6365, 0
      %v6494 = vsel %vm1087, %v6367, 0
      %v6496 = vsel %vm1087, %v6369, 0
      %v6498 = vsel %vm1087, %v6371, 0
      %v6500 = vsel %vm1087, %v6373, 0
      %v6502 = vsel %vm1087, %v6375, 0
      %v6504 = vsel %vm1087, %v6377, 0
      %v6506 = vsel %vm1087, %v6379, 0
      %v6508 = vsel %vm1087, %v6381, 0
      %v6510 = vsel %vm1087, %v6383, 0
      %v6512 = vsel %vm1087, %v6385, 0
      %v6514 = vsel %vm1087, %v6387, 0
      %v6516 = vsel %vm1087, %v6389, 0
      %v6518 = vsel %vm1087, %v6391, 0
      %v6520 = vsel %vm1087, %v6393, 0
      %v6522 = vsel %vm1087, %v6395, 0
      %v6524 = vsel %vm1087, %v6397, 0
      %v6526 = vsel %vm1087, %v6399, 0
      %v6528 = vsel %vm1087, %v6401, 0
      %v6530 = vsel %vm1087, %v6403, 0
      %v6532 = vsel %vm1087, %v6405, 0
      %v6534 = vsel %vm1087, %v6407, 0
      %6536 = vmatprep.subr.mxu0 0.0
      %6537 = vmatpush1.xpose.msra.mxu0 %v6502
      %6538 = vmatprep.subr.mxu0 0.0
      %6539 = vmatpush1.xpose.msra.mxu0 %v6500
      %6540 = vmatprep.subr.mxu0 0.0
      %6541 = vmatpush1.xpose.msra.mxu0 %v6498
      %6542 = vmatprep.subr.mxu0 0.0
      %6543 = vmatpush1.xpose.msra.mxu0 %v6496
      %6544 = vmatprep.subr.mxu0 0.0
      %6545 = vmatpush1.xpose.msra.mxu0 %v6494
      %6546 = vmatprep.subr.mxu0 0.0
      %6547 = vmatpush1.xpose.msra.mxu0 %v6492
      %6548 = vmatprep.subr.mxu0 0.0
      %6549 = vmatpush1.xpose.msra.mxu0 %v6490
      %6550 = vmatprep.subr.mxu0 0.0
      %6551 = vmatpush1.xpose.msra.mxu0 %v6488
      %6552 = vmatprep.subr.mxu0 0.0
      %6553 = vmatpush1.xpose.msra.mxu0 %v6486
      %6554 = vmatprep.subr.mxu0 0.0
      %6555 = vmatpush1.xpose.msra.mxu0 %v6484
      %6556 = vmatprep.subr.mxu0 0.0
      %6557 = vmatpush1.xpose.msra.mxu0 %v6482
      %6558 = vmatprep.subr.mxu0 0.0
      %6559 = vmatpush1.xpose.msra.mxu0 %v6480
      %6560 = vmatprep.subr.mxu0 0.0
      %6561 = vmatpush1.xpose.msra.mxu0 %v6478
      %6562 = vmatprep.subr.mxu0 0.0
      %6563 = vmatpush1.xpose.msra.mxu0 %v6476
      %6564 = vmatprep.subr.mxu0 0.0
      %6565 = vmatpush1.xpose.msra.mxu0 %v6474
      %6566 = vmatprep.subr.mxu0 0.0
      %6567 = vmatpush1.xpose.msra.mxu0 %v6472
      %6568 = vmatprep.subr.mxu0 0.0
      %6569 = vmatpush2.xpose.msra.mxu0 %v6534
      %6570 = vmatprep.subr.mxu0 0.0
      %6571 = vmatpush2.xpose.msra.mxu0 %v6532
      %6572 = vmatprep.subr.mxu0 0.0
      %6573 = vmatpush2.xpose.msra.mxu0 %v6530
      %6574 = vmatprep.subr.mxu0 0.0
      %6575 = vmatpush2.xpose.msra.mxu0 %v6528
      %6576 = vmatprep.subr.mxu0 0.0
      %6577 = vmatpush2.xpose.msra.mxu0 %v6526
      %6578 = vmatprep.subr.mxu0 0.0
      %6579 = vmatpush2.xpose.msra.mxu0 %v6524
      %6580 = vmatprep.subr.mxu0 0.0
      %6581 = vmatpush2.xpose.msra.mxu0 %v6522
      %6582 = vmatprep.subr.mxu0 0.0
      %6583 = vmatpush2.xpose.msra.mxu0 %v6520
      %6584 = vmatprep.subr.mxu0 0.0
      %6585 = vmatpush2.xpose.msra.mxu0 %v6518
      %6586 = vmatprep.subr.mxu0 0.0
      %6587 = vmatpush2.xpose.msra.mxu0 %v6516
      %6588 = vmatprep.subr.mxu0 0.0
      %6589 = vmatpush2.xpose.msra.mxu0 %v6514
      %6590 = vmatprep.subr.mxu0 0.0
      %6591 = vmatpush2.xpose.msra.mxu0 %v6512
      %6592 = vmatprep.subr.mxu0 0.0
      %6593 = vmatpush2.xpose.msra.mxu0 %v6510
      %6594 = vmatprep.subr.mxu0 0.0
      %6595 = vmatpush2.xpose.msra.mxu0 %v6508
      %6596 = vmatprep.subr.mxu0 0.0
      %6597 = vmatpush2.xpose.msra.mxu0 %v6506
      %6598 = vmatprep.subr.mxu0 0.0
      %6599 = vmatpush2.xpose.msra.mxu0 %v6504
      %6600 = vmatprep.mubr.f32.mxu0 0.0
      %6601 = vmatmul.mubr.f32.gmra.mxu0 %v6408
      %v6602 = vpop.f32.mrf.mxu0
      %v6603 = vadd.f32 0.0, %v6602
      %v6604 = vpop.f32.mrf.mxu0
      %v6605 = vadd.f32 0.0, %v6604
      %6606 = vmatprep.mubr.f32.mxu0 0.0
      %6607 = vmatmul.mubr.f32.gmra.mxu0 %v6410
      %v6608 = vpop.f32.mrf.mxu0
      %v6609 = vadd.f32 0.0, %v6608
      %v6610 = vpop.f32.mrf.mxu0
      %v6611 = vadd.f32 0.0, %v6610
      %6612 = vmatprep.mubr.f32.mxu0 0.0
      %6613 = vmatmul.mubr.f32.gmra.mxu0 %v6412
      %v6614 = vpop.f32.mrf.mxu0
      %v6615 = vadd.f32 0.0, %v6614
      %v6616 = vpop.f32.mrf.mxu0
      %v6617 = vadd.f32 0.0, %v6616
      %6618 = vmatprep.mubr.f32.mxu0 0.0
      %6619 = vmatmul.mubr.f32.gmra.mxu0 %v6414
      %v6620 = vpop.f32.mrf.mxu0
      %v6621 = vadd.f32 0.0, %v6620
      %v6622 = vpop.f32.mrf.mxu0
      %v6623 = vadd.f32 0.0, %v6622
      %6624 = vmatprep.mubr.f32.mxu0 0.0
      %6625 = vmatmul.mubr.f32.gmra.mxu0 %v6416
      %v6626 = vpop.f32.mrf.mxu0
      %v6627 = vadd.f32 0.0, %v6626
      %v6628 = vpop.f32.mrf.mxu0
      %v6629 = vadd.f32 0.0, %v6628
      %6630 = vmatprep.mubr.f32.mxu0 0.0
      %6631 = vmatmul.mubr.f32.gmra.mxu0 %v6418
      %v6632 = vpop.f32.mrf.mxu0
      %v6633 = vadd.f32 0.0, %v6632
      %v6634 = vpop.f32.mrf.mxu0
      %v6635 = vadd.f32 0.0, %v6634
      %6636 = vmatprep.mubr.f32.mxu0 0.0
      %6637 = vmatmul.mubr.f32.gmra.mxu0 %v6420
      %v6638 = vpop.f32.mrf.mxu0
      %v6639 = vadd.f32 0.0, %v6638
      %v6640 = vpop.f32.mrf.mxu0
      %v6641 = vadd.f32 0.0, %v6640
      %6642 = vmatprep.mubr.f32.mxu0 0.0
      %6643 = vmatmul.mubr.f32.gmra.mxu0 %v6422
      %v6644 = vpop.f32.mrf.mxu0
      %v6645 = vadd.f32 0.0, %v6644
      %v6646 = vpop.f32.mrf.mxu0
      %v6647 = vadd.f32 0.0, %v6646
      %6648 = vmatprep.mubr.f32.mxu0 0.0
      %6649 = vmatmul.mubr.f32.gmra.mxu0 %v6424
      %v6650 = vpop.f32.mrf.mxu0
      %v6651 = vadd.f32 0.0, %v6650
      %v6652 = vpop.f32.mrf.mxu0
      %v6653 = vadd.f32 0.0, %v6652
      %6654 = vmatprep.mubr.f32.mxu0 0.0
      %6655 = vmatmul.mubr.f32.gmra.mxu0 %v6426
      %v6656 = vpop.f32.mrf.mxu0
      %v6657 = vadd.f32 0.0, %v6656
      %v6658 = vpop.f32.mrf.mxu0
      %v6659 = vadd.f32 0.0, %v6658
      %6660 = vmatprep.mubr.f32.mxu0 0.0
      %6661 = vmatmul.mubr.f32.gmra.mxu0 %v6428
      %v6662 = vpop.f32.mrf.mxu0
      %v6663 = vadd.f32 0.0, %v6662
      %v6664 = vpop.f32.mrf.mxu0
      %v6665 = vadd.f32 0.0, %v6664
      %6666 = vmatprep.mubr.f32.mxu0 0.0
      %6667 = vmatmul.mubr.f32.gmra.mxu0 %v6430
      %v6668 = vpop.f32.mrf.mxu0
      %v6669 = vadd.f32 0.0, %v6668
      %v6670 = vpop.f32.mrf.mxu0
      %v6671 = vadd.f32 0.0, %v6670
      %6672 = vmatprep.mubr.f32.mxu0 0.0
      %6673 = vmatmul.mubr.f32.gmra.mxu0 %v6432
      %v6674 = vpop.f32.mrf.mxu0
      %v6675 = vadd.f32 0.0, %v6674
      %v6676 = vpop.f32.mrf.mxu0
      %v6677 = vadd.f32 0.0, %v6676
      %6678 = vmatprep.mubr.f32.mxu0 0.0
      %6679 = vmatmul.mubr.f32.gmra.mxu0 %v6434
      %v6680 = vpop.f32.mrf.mxu0
      %v6681 = vadd.f32 0.0, %v6680
      %v6682 = vpop.f32.mrf.mxu0
      %v6683 = vadd.f32 0.0, %v6682
      %6684 = vmatprep.mubr.f32.mxu0 0.0
      %6685 = vmatmul.mubr.f32.gmra.mxu0 %v6436
      %v6686 = vpop.f32.mrf.mxu0
      %v6687 = vadd.f32 0.0, %v6686
      %v6688 = vpop.f32.mrf.mxu0
      %v6689 = vadd.f32 0.0, %v6688
      %6690 = vmatprep.mubr.f32.mxu0 0.0
      %6691 = vmatmul.mubr.f32.gmra.mxu0 %v6438
      %v6692 = vpop.f32.mrf.mxu0
      %v6693 = vadd.f32 0.0, %v6692
      %v6694 = vpop.f32.mrf.mxu0
      %v6695 = vadd.f32 0.0, %v6694
      %6696 = vmatprep.mubr.f32.mxu0 0.0
      %6697 = vmatmul.mubr.f32.gmra.mxu0 %v6440
      %v6698 = vpop.f32.mrf.mxu0
      %v6699 = vadd.f32 0.0, %v6698
      %v6700 = vpop.f32.mrf.mxu0
      %v6701 = vadd.f32 0.0, %v6700
      %6702 = vmatprep.mubr.f32.mxu0 0.0
      %6703 = vmatmul.mubr.f32.gmra.mxu0 %v6442
      %v6704 = vpop.f32.mrf.mxu0
      %v6705 = vadd.f32 0.0, %v6704
      %v6706 = vpop.f32.mrf.mxu0
      %v6707 = vadd.f32 0.0, %v6706
      %6708 = vmatprep.mubr.f32.mxu0 0.0
      %6709 = vmatmul.mubr.f32.gmra.mxu0 %v6444
      %v6710 = vpop.f32.mrf.mxu0
      %v6711 = vadd.f32 0.0, %v6710
      %v6712 = vpop.f32.mrf.mxu0
      %v6713 = vadd.f32 0.0, %v6712
      %6714 = vmatprep.mubr.f32.mxu0 0.0
      %6715 = vmatmul.mubr.f32.gmra.mxu0 %v6446
      %v6716 = vpop.f32.mrf.mxu0
      %v6717 = vadd.f32 0.0, %v6716
      %v6718 = vpop.f32.mrf.mxu0
      %v6719 = vadd.f32 0.0, %v6718
      %6720 = vmatprep.mubr.f32.mxu0 0.0
      %6721 = vmatmul.mubr.f32.gmra.mxu0 %v6448
      %v6722 = vpop.f32.mrf.mxu0
      %v6723 = vadd.f32 0.0, %v6722
      %v6724 = vpop.f32.mrf.mxu0
      %v6725 = vadd.f32 0.0, %v6724
      %6726 = vmatprep.mubr.f32.mxu0 0.0
      %6727 = vmatmul.mubr.f32.gmra.mxu0 %v6450
      %v6728 = vpop.f32.mrf.mxu0
      %v6729 = vadd.f32 0.0, %v6728
      %v6730 = vpop.f32.mrf.mxu0
      %v6731 = vadd.f32 0.0, %v6730
      %6732 = vmatprep.mubr.f32.mxu0 0.0
      %6733 = vmatmul.mubr.f32.gmra.mxu0 %v6452
      %v6734 = vpop.f32.mrf.mxu0
      %v6735 = vadd.f32 0.0, %v6734
      %v6736 = vpop.f32.mrf.mxu0
      %v6737 = vadd.f32 0.0, %v6736
      %6738 = vmatprep.mubr.f32.mxu0 0.0
      %6739 = vmatmul.mubr.f32.gmra.mxu0 %v6454
      %v6740 = vpop.f32.mrf.mxu0
      %v6741 = vadd.f32 0.0, %v6740
      %v6742 = vpop.f32.mrf.mxu0
      %v6743 = vadd.f32 0.0, %v6742
      %6744 = vmatprep.mubr.f32.mxu0 0.0
      %6745 = vmatmul.mubr.f32.gmra.mxu0 %v6456
      %v6746 = vpop.f32.mrf.mxu0
      %v6747 = vadd.f32 0.0, %v6746
      %v6748 = vpop.f32.mrf.mxu0
      %v6749 = vadd.f32 0.0, %v6748
      %6750 = vmatprep.mubr.f32.mxu0 0.0
      %6751 = vmatmul.mubr.f32.gmra.mxu0 %v6458
      %v6752 = vpop.f32.mrf.mxu0
      %v6753 = vadd.f32 0.0, %v6752
      %v6754 = vpop.f32.mrf.mxu0
      %v6755 = vadd.f32 0.0, %v6754
      %6756 = vmatprep.mubr.f32.mxu0 0.0
      %6757 = vmatmul.mubr.f32.gmra.mxu0 %v6460
      %v6758 = vpop.f32.mrf.mxu0
      %v6759 = vadd.f32 0.0, %v6758
      %v6760 = vpop.f32.mrf.mxu0
      %v6761 = vadd.f32 0.0, %v6760
      %6762 = vmatprep.mubr.f32.mxu0 0.0
      %6763 = vmatmul.mubr.f32.gmra.mxu0 %v6462
      %v6764 = vpop.f32.mrf.mxu0
      %v6765 = vadd.f32 0.0, %v6764
      %v6766 = vpop.f32.mrf.mxu0
      %v6767 = vadd.f32 0.0, %v6766
      %6768 = vmatprep.mubr.f32.mxu0 0.0
      %6769 = vmatmul.mubr.f32.gmra.mxu0 %v6464
      %v6770 = vpop.f32.mrf.mxu0
      %v6771 = vadd.f32 0.0, %v6770
      %v6772 = vpop.f32.mrf.mxu0
      %v6773 = vadd.f32 0.0, %v6772
      %6774 = vmatprep.mubr.f32.mxu0 0.0
      %6775 = vmatmul.mubr.f32.gmra.mxu0 %v6466
      %v6776 = vpop.f32.mrf.mxu0
      %v6777 = vadd.f32 0.0, %v6776
      %v6778 = vpop.f32.mrf.mxu0
      %v6779 = vadd.f32 0.0, %v6778
      %6780 = vmatprep.mubr.f32.mxu0 0.0
      %6781 = vmatmul.mubr.f32.gmra.mxu0 %v6468
      %v6782 = vpop.f32.mrf.mxu0
      %v6783 = vadd.f32 0.0, %v6782
      %v6784 = vpop.f32.mrf.mxu0
      %v6785 = vadd.f32 0.0, %v6784
      %6786 = vmatprep.mubr.f32.mxu0 0.0
      %6787 = vmatmul.mubr.f32.gmra.mxu0 %v6470
      %v6788 = vpop.f32.mrf.mxu0
      %v6789 = vadd.f32 0.0, %v6788
      %v6790 = vpop.f32.mrf.mxu0
      %v6791 = vadd.f32 0.0, %v6790
      %6792 = vdwg.mxu0
      %v6793 = vmax.f32 %v6603, %v6605
      %6794 = vmax.xlane.f32.xlu0 %v6793
      %v6795 = vpop.xlane.xlu0 %6794
      %v6796 = vmax.f32 %v6609, %v6611
      %6797 = vmax.xlane.f32.xlu0 %v6796
      %v6798 = vpop.xlane.xlu0 %6797
      %v6799 = vmax.f32 %v6615, %v6617
      %6800 = vmax.xlane.f32.xlu0 %v6799
      %v6801 = vpop.xlane.xlu0 %6800
      %v6802 = vmax.f32 %v6621, %v6623
      %6803 = vmax.xlane.f32.xlu0 %v6802
      %v6804 = vpop.xlane.xlu0 %6803
      %v6805 = vmax.f32 %v6627, %v6629
      %6806 = vmax.xlane.f32.xlu0 %v6805
      %v6807 = vpop.xlane.xlu0 %6806
      %v6808 = vmax.f32 %v6633, %v6635
      %6809 = vmax.xlane.f32.xlu0 %v6808
      %v6810 = vpop.xlane.xlu0 %6809
      %v6811 = vmax.f32 %v6639, %v6641
      %6812 = vmax.xlane.f32.xlu0 %v6811
      %v6813 = vpop.xlane.xlu0 %6812
      %v6814 = vmax.f32 %v6645, %v6647
      %6815 = vmax.xlane.f32.xlu0 %v6814
      %v6816 = vpop.xlane.xlu0 %6815
      %v6817 = vmax.f32 %v6651, %v6653
      %6818 = vmax.xlane.f32.xlu0 %v6817
      %v6819 = vpop.xlane.xlu0 %6818
      %v6820 = vmax.f32 %v6657, %v6659
      %6821 = vmax.xlane.f32.xlu0 %v6820
      %v6822 = vpop.xlane.xlu0 %6821
      %v6823 = vmax.f32 %v6663, %v6665
      %6824 = vmax.xlane.f32.xlu0 %v6823
      %v6825 = vpop.xlane.xlu0 %6824
      %v6826 = vmax.f32 %v6669, %v6671
      %6827 = vmax.xlane.f32.xlu0 %v6826
      %v6828 = vpop.xlane.xlu0 %6827
      %v6829 = vmax.f32 %v6675, %v6677
      %6830 = vmax.xlane.f32.xlu0 %v6829
      %v6831 = vpop.xlane.xlu0 %6830
      %v6832 = vmax.f32 %v6681, %v6683
      %6833 = vmax.xlane.f32.xlu0 %v6832
      %v6834 = vpop.xlane.xlu0 %6833
      %v6835 = vmax.f32 %v6687, %v6689
      %6836 = vmax.xlane.f32.xlu0 %v6835
      %v6837 = vpop.xlane.xlu0 %6836
      %v6838 = vmax.f32 %v6693, %v6695
      %6839 = vmax.xlane.f32.xlu0 %v6838
      %v6840 = vpop.xlane.xlu0 %6839
      %v6841 = vmax.f32 %v6699, %v6701
      %6842 = vmax.xlane.f32.xlu0 %v6841
      %v6843 = vpop.xlane.xlu0 %6842
      %v6844 = vmax.f32 %v6705, %v6707
      %6845 = vmax.xlane.f32.xlu0 %v6844
      %v6846 = vpop.xlane.xlu0 %6845
      %v6847 = vmax.f32 %v6711, %v6713
      %6848 = vmax.xlane.f32.xlu0 %v6847
      %v6849 = vpop.xlane.xlu0 %6848
      %v6850 = vmax.f32 %v6717, %v6719
      %6851 = vmax.xlane.f32.xlu0 %v6850
      %v6852 = vpop.xlane.xlu0 %6851
      %v6853 = vmax.f32 %v6723, %v6725
      %6854 = vmax.xlane.f32.xlu0 %v6853
      %v6855 = vpop.xlane.xlu0 %6854
      %v6856 = vmax.f32 %v6729, %v6731
      %6857 = vmax.xlane.f32.xlu0 %v6856
      %v6858 = vpop.xlane.xlu0 %6857
      %v6859 = vmax.f32 %v6735, %v6737
      %6860 = vmax.xlane.f32.xlu0 %v6859
      %v6861 = vpop.xlane.xlu0 %6860
      %v6862 = vmax.f32 %v6741, %v6743
      %6863 = vmax.xlane.f32.xlu0 %v6862
      %v6864 = vpop.xlane.xlu0 %6863
      %v6865 = vmax.f32 %v6747, %v6749
      %6866 = vmax.xlane.f32.xlu0 %v6865
      %v6867 = vpop.xlane.xlu0 %6866
      %v6868 = vmax.f32 %v6753, %v6755
      %6869 = vmax.xlane.f32.xlu0 %v6868
      %v6870 = vpop.xlane.xlu0 %6869
      %v6871 = vmax.f32 %v6759, %v6761
      %6872 = vmax.xlane.f32.xlu0 %v6871
      %v6873 = vpop.xlane.xlu0 %6872
      %v6874 = vmax.f32 %v6765, %v6767
      %6875 = vmax.xlane.f32.xlu0 %v6874
      %v6876 = vpop.xlane.xlu0 %6875
      %v6877 = vmax.f32 %v6771, %v6773
      %6878 = vmax.xlane.f32.xlu0 %v6877
      %v6879 = vpop.xlane.xlu0 %6878
      %v6880 = vmax.f32 %v6777, %v6779
      %6881 = vmax.xlane.f32.xlu0 %v6880
      %v6882 = vpop.xlane.xlu0 %6881
      %v6883 = vmax.f32 %v6783, %v6785
      %6884 = vmax.xlane.f32.xlu0 %v6883
      %v6885 = vpop.xlane.xlu0 %6884
      %v6886 = vmax.f32 %v6789, %v6791
      %6887 = vmax.xlane.f32.xlu0 %v6886
      %v6888 = vpop.xlane.xlu0 %6887
      %v6889 = vsub.f32 %v6603, %v6795
      %v6890 = vsub.f32 %v6605, %v6795
      %v6891 = vsub.f32 %v6609, %v6798
      %v6892 = vsub.f32 %v6611, %v6798
      %v6893 = vsub.f32 %v6615, %v6801
      %v6894 = vsub.f32 %v6617, %v6801
      %v6895 = vsub.f32 %v6621, %v6804
      %v6896 = vsub.f32 %v6623, %v6804
      %v6897 = vsub.f32 %v6627, %v6807
      %v6898 = vsub.f32 %v6629, %v6807
      %v6899 = vsub.f32 %v6633, %v6810
      %v6900 = vsub.f32 %v6635, %v6810
      %v6901 = vsub.f32 %v6639, %v6813
      %v6902 = vsub.f32 %v6641, %v6813
      %v6903 = vsub.f32 %v6645, %v6816
      %v6904 = vsub.f32 %v6647, %v6816
      %v6905 = vsub.f32 %v6651, %v6819
      %v6906 = vsub.f32 %v6653, %v6819
      %v6907 = vsub.f32 %v6657, %v6822
      %v6908 = vsub.f32 %v6659, %v6822
      %v6909 = vsub.f32 %v6663, %v6825
      %v6910 = vsub.f32 %v6665, %v6825
      %v6911 = vsub.f32 %v6669, %v6828
      %v6912 = vsub.f32 %v6671, %v6828
      %v6913 = vsub.f32 %v6675, %v6831
      %v6914 = vsub.f32 %v6677, %v6831
      %v6915 = vsub.f32 %v6681, %v6834
      %v6916 = vsub.f32 %v6683, %v6834
      %v6917 = vsub.f32 %v6687, %v6837
      %v6918 = vsub.f32 %v6689, %v6837
      %v6919 = vsub.f32 %v6693, %v6840
      %v6920 = vsub.f32 %v6695, %v6840
      %v6921 = vsub.f32 %v6699, %v6843
      %v6922 = vsub.f32 %v6701, %v6843
      %v6923 = vsub.f32 %v6705, %v6846
      %v6924 = vsub.f32 %v6707, %v6846
      %v6925 = vsub.f32 %v6711, %v6849
      %v6926 = vsub.f32 %v6713, %v6849
      %v6927 = vsub.f32 %v6717, %v6852
      %v6928 = vsub.f32 %v6719, %v6852
      %v6929 = vsub.f32 %v6723, %v6855
      %v6930 = vsub.f32 %v6725, %v6855
      %v6931 = vsub.f32 %v6729, %v6858
      %v6932 = vsub.f32 %v6731, %v6858
      %v6933 = vsub.f32 %v6735, %v6861
      %v6934 = vsub.f32 %v6737, %v6861
      %v6935 = vsub.f32 %v6741, %v6864
      %v6936 = vsub.f32 %v6743, %v6864
      %v6937 = vsub.f32 %v6747, %v6867
      %v6938 = vsub.f32 %v6749, %v6867
      %v6939 = vsub.f32 %v6753, %v6870
      %v6940 = vsub.f32 %v6755, %v6870
      %v6941 = vsub.f32 %v6759, %v6873
      %v6942 = vsub.f32 %v6761, %v6873
      %v6943 = vsub.f32 %v6765, %v6876
      %v6944 = vsub.f32 %v6767, %v6876
      %v6945 = vsub.f32 %v6771, %v6879
      %v6946 = vsub.f32 %v6773, %v6879
      %v6947 = vsub.f32 %v6777, %v6882
      %v6948 = vsub.f32 %v6779, %v6882
      %v6949 = vsub.f32 %v6783, %v6885
      %v6950 = vsub.f32 %v6785, %v6885
      %v6951 = vsub.f32 %v6789, %v6888
      %v6952 = vsub.f32 %v6791, %v6888
      %v6953 = vmul.f32 %v6889, 1.442695
      %v6954 = vpow.pop %v6953
      %v6955 = vmul.f32 %v6890, 1.442695
      %v6956 = vpow.pop %v6955
      %v6957 = vmul.f32 %v6891, 1.442695
      %v6958 = vpow.pop %v6957
      %v6959 = vmul.f32 %v6892, 1.442695
      %v6960 = vpow.pop %v6959
      %v6961 = vmul.f32 %v6893, 1.442695
      %v6962 = vpow.pop %v6961
      %v6963 = vmul.f32 %v6894, 1.442695
      %v6964 = vpow.pop %v6963
      %v6965 = vmul.f32 %v6895, 1.442695
      %v6966 = vpow.pop %v6965
      %v6967 = vmul.f32 %v6896, 1.442695
      %v6968 = vpow.pop %v6967
      %v6969 = vmul.f32 %v6897, 1.442695
      %v6970 = vpow.pop %v6969
      %v6971 = vmul.f32 %v6898, 1.442695
      %v6972 = vpow.pop %v6971
      %v6973 = vmul.f32 %v6899, 1.442695
      %v6974 = vpow.pop %v6973
      %v6975 = vmul.f32 %v6900, 1.442695
      %v6976 = vpow.pop %v6975
      %v6977 = vmul.f32 %v6901, 1.442695
      %v6978 = vpow.pop %v6977
      %v6979 = vmul.f32 %v6902, 1.442695
      %v6980 = vpow.pop %v6979
      %v6981 = vmul.f32 %v6903, 1.442695
      %v6982 = vpow.pop %v6981
      %v6983 = vmul.f32 %v6904, 1.442695
      %v6984 = vpow.pop %v6983
      %v6985 = vmul.f32 %v6905, 1.442695
      %v6986 = vpow.pop %v6985
      %v6987 = vmul.f32 %v6906, 1.442695
      %v6988 = vpow.pop %v6987
      %v6989 = vmul.f32 %v6907, 1.442695
      %v6990 = vpow.pop %v6989
      %v6991 = vmul.f32 %v6908, 1.442695
      %v6992 = vpow.pop %v6991
      %v6993 = vmul.f32 %v6909, 1.442695
      %v6994 = vpow.pop %v6993
      %v6995 = vmul.f32 %v6910, 1.442695
      %v6996 = vpow.pop %v6995
      %v6997 = vmul.f32 %v6911, 1.442695
      %v6998 = vpow.pop %v6997
      %v6999 = vmul.f32 %v6912, 1.442695
      %v7000 = vpow.pop %v6999
      %v7001 = vmul.f32 %v6913, 1.442695
      %v7002 = vpow.pop %v7001
      %v7003 = vmul.f32 %v6914, 1.442695
      %v7004 = vpow.pop %v7003
      %v7005 = vmul.f32 %v6915, 1.442695
      %v7006 = vpow.pop %v7005
      %v7007 = vmul.f32 %v6916, 1.442695
      %v7008 = vpow.pop %v7007
      %v7009 = vmul.f32 %v6917, 1.442695
      %v7010 = vpow.pop %v7009
      %v7011 = vmul.f32 %v6918, 1.442695
      %v7012 = vpow.pop %v7011
      %v7013 = vmul.f32 %v6919, 1.442695
      %v7014 = vpow.pop %v7013
      %v7015 = vmul.f32 %v6920, 1.442695
      %v7016 = vpow.pop %v7015
      %v7017 = vmul.f32 %v6921, 1.442695
      %v7018 = vpow.pop %v7017
      %v7019 = vmul.f32 %v6922, 1.442695
      %v7020 = vpow.pop %v7019
      %v7021 = vmul.f32 %v6923, 1.442695
      %v7022 = vpow.pop %v7021
      %v7023 = vmul.f32 %v6924, 1.442695
      %v7024 = vpow.pop %v7023
      %v7025 = vmul.f32 %v6925, 1.442695
      %v7026 = vpow.pop %v7025
      %v7027 = vmul.f32 %v6926, 1.442695
      %v7028 = vpow.pop %v7027
      %v7029 = vmul.f32 %v6927, 1.442695
      %v7030 = vpow.pop %v7029
      %v7031 = vmul.f32 %v6928, 1.442695
      %v7032 = vpow.pop %v7031
      %v7033 = vmul.f32 %v6929, 1.442695
      %v7034 = vpow.pop %v7033
      %v7035 = vmul.f32 %v6930, 1.442695
      %v7036 = vpow.pop %v7035
      %v7037 = vmul.f32 %v6931, 1.442695
      %v7038 = vpow.pop %v7037
      %v7039 = vmul.f32 %v6932, 1.442695
      %v7040 = vpow.pop %v7039
      %v7041 = vmul.f32 %v6933, 1.442695
      %v7042 = vpow.pop %v7041
      %v7043 = vmul.f32 %v6934, 1.442695
      %v7044 = vpow.pop %v7043
      %v7045 = vmul.f32 %v6935, 1.442695
      %v7046 = vpow.pop %v7045
      %v7047 = vmul.f32 %v6936, 1.442695
      %v7048 = vpow.pop %v7047
      %v7049 = vmul.f32 %v6937, 1.442695
      %v7050 = vpow.pop %v7049
      %v7051 = vmul.f32 %v6938, 1.442695
      %v7052 = vpow.pop %v7051
      %v7053 = vmul.f32 %v6939, 1.442695
      %v7054 = vpow.pop %v7053
      %v7055 = vmul.f32 %v6940, 1.442695
      %v7056 = vpow.pop %v7055
      %v7057 = vmul.f32 %v6941, 1.442695
      %v7058 = vpow.pop %v7057
      %v7059 = vmul.f32 %v6942, 1.442695
      %v7060 = vpow.pop %v7059
      %v7061 = vmul.f32 %v6943, 1.442695
      %v7062 = vpow.pop %v7061
      %v7063 = vmul.f32 %v6944, 1.442695
      %v7064 = vpow.pop %v7063
      %v7065 = vmul.f32 %v6945, 1.442695
      %v7066 = vpow.pop %v7065
      %v7067 = vmul.f32 %v6946, 1.442695
      %v7068 = vpow.pop %v7067
      %v7069 = vmul.f32 %v6947, 1.442695
      %v7070 = vpow.pop %v7069
      %v7071 = vmul.f32 %v6948, 1.442695
      %v7072 = vpow.pop %v7071
      %v7073 = vmul.f32 %v6949, 1.442695
      %v7074 = vpow.pop %v7073
      %v7075 = vmul.f32 %v6950, 1.442695
      %v7076 = vpow.pop %v7075
      %v7077 = vmul.f32 %v6951, 1.442695
      %v7078 = vpow.pop %v7077
      %v7079 = vmul.f32 %v6952, 1.442695
      %v7080 = vpow.pop %v7079
      %v7081 = vadd.f32 %v6954, %v6956
      %7082 = vadd.xlane.f32.xlu0 %v7081
      %v7083 = vpop.xlane.xlu0 %7082
      %v7084 = vadd.f32 %v6958, %v6960
      %7085 = vadd.xlane.f32.xlu0 %v7084
      %v7086 = vpop.xlane.xlu0 %7085
      %v7087 = vadd.f32 %v6962, %v6964
      %7088 = vadd.xlane.f32.xlu0 %v7087
      %v7089 = vpop.xlane.xlu0 %7088
      %v7090 = vadd.f32 %v6966, %v6968
      %7091 = vadd.xlane.f32.xlu0 %v7090
      %v7092 = vpop.xlane.xlu0 %7091
      %v7093 = vadd.f32 %v6970, %v6972
      %7094 = vadd.xlane.f32.xlu0 %v7093
      %v7095 = vpop.xlane.xlu0 %7094
      %v7096 = vadd.f32 %v6974, %v6976
      %7097 = vadd.xlane.f32.xlu0 %v7096
      %v7098 = vpop.xlane.xlu0 %7097
      %v7099 = vadd.f32 %v6978, %v6980
      %7100 = vadd.xlane.f32.xlu0 %v7099
      %v7101 = vpop.xlane.xlu0 %7100
      %v7102 = vadd.f32 %v6982, %v6984
      %7103 = vadd.xlane.f32.xlu0 %v7102
      %v7104 = vpop.xlane.xlu0 %7103
      %v7105 = vadd.f32 %v6986, %v6988
      %7106 = vadd.xlane.f32.xlu0 %v7105
      %v7107 = vpop.xlane.xlu0 %7106
      %v7108 = vadd.f32 %v6990, %v6992
      %7109 = vadd.xlane.f32.xlu0 %v7108
      %v7110 = vpop.xlane.xlu0 %7109
      %v7111 = vadd.f32 %v6994, %v6996
      %7112 = vadd.xlane.f32.xlu0 %v7111
      %v7113 = vpop.xlane.xlu0 %7112
      %v7114 = vadd.f32 %v6998, %v7000
      %7115 = vadd.xlane.f32.xlu0 %v7114
      %v7116 = vpop.xlane.xlu0 %7115
      %v7117 = vadd.f32 %v7002, %v7004
      %7118 = vadd.xlane.f32.xlu0 %v7117
      %v7119 = vpop.xlane.xlu0 %7118
      %v7120 = vadd.f32 %v7006, %v7008
      %7121 = vadd.xlane.f32.xlu0 %v7120
      %v7122 = vpop.xlane.xlu0 %7121
      %v7123 = vadd.f32 %v7010, %v7012
      %7124 = vadd.xlane.f32.xlu0 %v7123
      %v7125 = vpop.xlane.xlu0 %7124
      %v7126 = vadd.f32 %v7014, %v7016
      %7127 = vadd.xlane.f32.xlu0 %v7126
      %v7128 = vpop.xlane.xlu0 %7127
      %v7129 = vadd.f32 %v7018, %v7020
      %7130 = vadd.xlane.f32.xlu0 %v7129
      %v7131 = vpop.xlane.xlu0 %7130
      %v7132 = vadd.f32 %v7022, %v7024
      %7133 = vadd.xlane.f32.xlu0 %v7132
      %v7134 = vpop.xlane.xlu0 %7133
      %v7135 = vadd.f32 %v7026, %v7028
      %7136 = vadd.xlane.f32.xlu0 %v7135
      %v7137 = vpop.xlane.xlu0 %7136
      %v7138 = vadd.f32 %v7030, %v7032
      %7139 = vadd.xlane.f32.xlu0 %v7138
      %v7140 = vpop.xlane.xlu0 %7139
      %v7141 = vadd.f32 %v7034, %v7036
      %7142 = vadd.xlane.f32.xlu0 %v7141
      %v7143 = vpop.xlane.xlu0 %7142
      %v7144 = vadd.f32 %v7038, %v7040
      %7145 = vadd.xlane.f32.xlu0 %v7144
      %v7146 = vpop.xlane.xlu0 %7145
      %v7147 = vadd.f32 %v7042, %v7044
      %7148 = vadd.xlane.f32.xlu0 %v7147
      %v7149 = vpop.xlane.xlu0 %7148
      %v7150 = vadd.f32 %v7046, %v7048
      %7151 = vadd.xlane.f32.xlu0 %v7150
      %v7152 = vpop.xlane.xlu0 %7151
      %v7153 = vadd.f32 %v7050, %v7052
      %7154 = vadd.xlane.f32.xlu0 %v7153
      %v7155 = vpop.xlane.xlu0 %7154
      %v7156 = vadd.f32 %v7054, %v7056
      %7157 = vadd.xlane.f32.xlu0 %v7156
      %v7158 = vpop.xlane.xlu0 %7157
      %v7159 = vadd.f32 %v7058, %v7060
      %7160 = vadd.xlane.f32.xlu0 %v7159
      %v7161 = vpop.xlane.xlu0 %7160
      %v7162 = vadd.f32 %v7062, %v7064
      %7163 = vadd.xlane.f32.xlu0 %v7162
      %v7164 = vpop.xlane.xlu0 %7163
      %v7165 = vadd.f32 %v7066, %v7068
      %7166 = vadd.xlane.f32.xlu0 %v7165
      %v7167 = vpop.xlane.xlu0 %7166
      %v7168 = vadd.f32 %v7070, %v7072
      %7169 = vadd.xlane.f32.xlu0 %v7168
      %v7170 = vpop.xlane.xlu0 %7169
      %v7171 = vadd.f32 %v7074, %v7076
      %7172 = vadd.xlane.f32.xlu0 %v7171
      %v7173 = vpop.xlane.xlu0 %7172
      %v7174 = vadd.f32 %v7078, %v7080
      %7175 = vadd.xlane.f32.xlu0 %v7174
      %v7176 = vpop.xlane.xlu0 %7175
      %v7177 = vrcp.pop %v7083
      %v7178 = vrcp.pop %v7086
      %v7179 = vrcp.pop %v7089
      %v7180 = vrcp.pop %v7092
      %v7181 = vrcp.pop %v7095
      %v7182 = vrcp.pop %v7098
      %v7183 = vrcp.pop %v7101
      %v7184 = vrcp.pop %v7104
      %v7185 = vrcp.pop %v7107
      %v7186 = vrcp.pop %v7110
      %v7187 = vrcp.pop %v7113
      %v7188 = vrcp.pop %v7116
      %v7189 = vrcp.pop %v7119
      %v7190 = vrcp.pop %v7122
      %v7191 = vrcp.pop %v7125
      %v7192 = vrcp.pop %v7128
      %v7193 = vrcp.pop %v7131
      %v7194 = vrcp.pop %v7134
      %v7195 = vrcp.pop %v7137
      %v7196 = vrcp.pop %v7140
      %v7197 = vrcp.pop %v7143
      %v7198 = vrcp.pop %v7146
      %v7199 = vrcp.pop %v7149
      %v7200 = vrcp.pop %v7152
      %v7201 = vrcp.pop %v7155
      %v7202 = vrcp.pop %v7158
      %v7203 = vrcp.pop %v7161
      %v7204 = vrcp.pop %v7164
      %v7205 = vrcp.pop %v7167
      %v7206 = vrcp.pop %v7170
      %v7207 = vrcp.pop %v7173
      %v7208 = vrcp.pop %v7176
      %v7209 = vmul.f32 %v6954, %v7177
      %v7210 = vmul.f32 %v6956, %v7177
      %v7211 = vmul.f32 %v6958, %v7178
      %v7212 = vmul.f32 %v6960, %v7178
      %v7213 = vmul.f32 %v6962, %v7179
      %v7214 = vmul.f32 %v6964, %v7179
      %v7215 = vmul.f32 %v6966, %v7180
      %v7216 = vmul.f32 %v6968, %v7180
      %v7217 = vmul.f32 %v6970, %v7181
      %v7218 = vmul.f32 %v6972, %v7181
      %v7219 = vmul.f32 %v6974, %v7182
      %v7220 = vmul.f32 %v6976, %v7182
      %v7221 = vmul.f32 %v6978, %v7183
      %v7222 = vmul.f32 %v6980, %v7183
      %v7223 = vmul.f32 %v6982, %v7184
      %v7224 = vmul.f32 %v6984, %v7184
      %v7225 = vmul.f32 %v6986, %v7185
      %v7226 = vmul.f32 %v6988, %v7185
      %v7227 = vmul.f32 %v6990, %v7186
      %v7228 = vmul.f32 %v6992, %v7186
      %v7229 = vmul.f32 %v6994, %v7187
      %v7230 = vmul.f32 %v6996, %v7187
      %v7231 = vmul.f32 %v6998, %v7188
      %v7232 = vmul.f32 %v7000, %v7188
      %v7233 = vmul.f32 %v7002, %v7189
      %v7234 = vmul.f32 %v7004, %v7189
      %v7235 = vmul.f32 %v7006, %v7190
      %v7236 = vmul.f32 %v7008, %v7190
      %v7237 = vmul.f32 %v7010, %v7191
      %v7238 = vmul.f32 %v7012, %v7191
      %v7239 = vmul.f32 %v7014, %v7192
      %v7240 = vmul.f32 %v7016, %v7192
      %v7241 = vmul.f32 %v7018, %v7193
      %v7242 = vmul.f32 %v7020, %v7193
      %v7243 = vmul.f32 %v7022, %v7194
      %v7244 = vmul.f32 %v7024, %v7194
      %v7245 = vmul.f32 %v7026, %v7195
      %v7246 = vmul.f32 %v7028, %v7195
      %v7247 = vmul.f32 %v7030, %v7196
      %v7248 = vmul.f32 %v7032, %v7196
      %v7249 = vmul.f32 %v7034, %v7197
      %v7250 = vmul.f32 %v7036, %v7197
      %v7251 = vmul.f32 %v7038, %v7198
      %v7252 = vmul.f32 %v7040, %v7198
      %v7253 = vmul.f32 %v7042, %v7199
      %v7254 = vmul.f32 %v7044, %v7199
      %v7255 = vmul.f32 %v7046, %v7200
      %v7256 = vmul.f32 %v7048, %v7200
      %v7257 = vmul.f32 %v7050, %v7201
      %v7258 = vmul.f32 %v7052, %v7201
      %v7259 = vmul.f32 %v7054, %v7202
      %v7260 = vmul.f32 %v7056, %v7202
      %v7261 = vmul.f32 %v7058, %v7203
      %v7262 = vmul.f32 %v7060, %v7203
      %v7263 = vmul.f32 %v7062, %v7204
      %v7264 = vmul.f32 %v7064, %v7204
      %v7265 = vmul.f32 %v7066, %v7205
      %v7266 = vmul.f32 %v7068, %v7205
      %v7267 = vmul.f32 %v7070, %v7206
      %v7268 = vmul.f32 %v7072, %v7206
      %v7269 = vmul.f32 %v7074, %v7207
      %v7270 = vmul.f32 %v7076, %v7207
      %v7271 = vmul.f32 %v7078, %v7208
      %v7272 = vmul.f32 %v7080, %v7208
      %7273 = vrot.lane.b32.xlu0 %v565, 80
      %v7274 = vpop.permute.xlu0 %7273
      %7275 = vrot.lane.b32.xlu0 %v570, 80
      %v7276 = vpop.permute.xlu0 %7275
      %7277 = vrot.lane.b32.xlu0 %v575, 80
      %v7278 = vpop.permute.xlu0 %7277
      %7279 = vrot.lane.b32.xlu0 %v580, 80
      %v7280 = vpop.permute.xlu0 %7279
      %7281 = vrot.lane.b32.xlu0 %v585, 80
      %v7282 = vpop.permute.xlu0 %7281
      %7283 = vrot.lane.b32.xlu0 %v590, 80
      %v7284 = vpop.permute.xlu0 %7283
      %7285 = vrot.lane.b32.xlu0 %v595, 80
      %v7286 = vpop.permute.xlu0 %7285
      %7287 = vrot.lane.b32.xlu0 %v600, 80
      %v7288 = vpop.permute.xlu0 %7287
      %7289 = vrot.lane.b32.xlu0 %v605, 80
      %v7290 = vpop.permute.xlu0 %7289
      %7291 = vrot.lane.b32.xlu0 %v610, 80
      %v7292 = vpop.permute.xlu0 %7291
      %7293 = vrot.lane.b32.xlu0 %v615, 80
      %v7294 = vpop.permute.xlu0 %7293
      %7295 = vrot.lane.b32.xlu0 %v620, 80
      %v7296 = vpop.permute.xlu0 %7295
      %7297 = vrot.lane.b32.xlu0 %v625, 80
      %v7298 = vpop.permute.xlu0 %7297
      %7299 = vrot.lane.b32.xlu0 %v630, 80
      %v7300 = vpop.permute.xlu0 %7299
      %7301 = vrot.lane.b32.xlu0 %v635, 80
      %v7302 = vpop.permute.xlu0 %7301
      %7303 = vrot.lane.b32.xlu0 %v640, 80
      %v7304 = vpop.permute.xlu0 %7303
      %7305 = vrot.lane.b32.xlu0 %v645, 80
      %v7306 = vpop.permute.xlu0 %7305
      %7307 = vrot.lane.b32.xlu0 %v650, 80
      %v7308 = vpop.permute.xlu0 %7307
      %7309 = vrot.lane.b32.xlu0 %v655, 80
      %v7310 = vpop.permute.xlu0 %7309
      %7311 = vrot.lane.b32.xlu0 %v660, 80
      %v7312 = vpop.permute.xlu0 %7311
      %7313 = vrot.lane.b32.xlu0 %v665, 80
      %v7314 = vpop.permute.xlu0 %7313
      %7315 = vrot.lane.b32.xlu0 %v670, 80
      %v7316 = vpop.permute.xlu0 %7315
      %7317 = vrot.lane.b32.xlu0 %v675, 80
      %v7318 = vpop.permute.xlu0 %7317
      %7319 = vrot.lane.b32.xlu0 %v680, 80
      %v7320 = vpop.permute.xlu0 %7319
      %7321 = vrot.lane.b32.xlu0 %v685, 80
      %v7322 = vpop.permute.xlu0 %7321
      %7323 = vrot.lane.b32.xlu0 %v690, 80
      %v7324 = vpop.permute.xlu0 %7323
      %7325 = vrot.lane.b32.xlu0 %v695, 80
      %v7326 = vpop.permute.xlu0 %7325
      %7327 = vrot.lane.b32.xlu0 %v700, 80
      %v7328 = vpop.permute.xlu0 %7327
      %7329 = vrot.lane.b32.xlu0 %v705, 80
      %v7330 = vpop.permute.xlu0 %7329
      %7331 = vrot.lane.b32.xlu0 %v710, 80
      %v7332 = vpop.permute.xlu0 %7331
      %7333 = vrot.lane.b32.xlu0 %v715, 80
      %v7334 = vpop.permute.xlu0 %7333
      %7335 = vrot.lane.b32.xlu0 %v720, 80
      %v7336 = vpop.permute.xlu0 %7335
      %7369 = vmatprep.subr.mxu0 0.0
      %7370 = vmatpush1.msra.mxu0 %v7304
      %7371 = vmatprep.subr.mxu0 0.0
      %7372 = vmatpush1.msra.mxu0 %v7302
      %7373 = vmatprep.subr.mxu0 0.0
      %7374 = vmatpush1.msra.mxu0 %v7300
      %7375 = vmatprep.subr.mxu0 0.0
      %7376 = vmatpush1.msra.mxu0 %v7298
      %7377 = vmatprep.subr.mxu0 0.0
      %7378 = vmatpush1.msra.mxu0 %v7296
      %7379 = vmatprep.subr.mxu0 0.0
      %7380 = vmatpush1.msra.mxu0 %v7294
      %7381 = vmatprep.subr.mxu0 0.0
      %7382 = vmatpush1.msra.mxu0 %v7292
      %7383 = vmatprep.subr.mxu0 0.0
      %7384 = vmatpush1.msra.mxu0 %v7290
      %7385 = vmatprep.subr.mxu0 0.0
      %7386 = vmatpush1.msra.mxu0 %v7288
      %7387 = vmatprep.subr.mxu0 0.0
      %7388 = vmatpush1.msra.mxu0 %v7286
      %7389 = vmatprep.subr.mxu0 0.0
      %7390 = vmatpush1.msra.mxu0 %v7284
      %7391 = vmatprep.subr.mxu0 0.0
      %7392 = vmatpush1.msra.mxu0 %v7282
      %7393 = vmatprep.subr.mxu0 0.0
      %7394 = vmatpush1.msra.mxu0 %v7280
      %7395 = vmatprep.subr.mxu0 0.0
      %7396 = vmatpush1.msra.mxu0 %v7278
      %7397 = vmatprep.subr.mxu0 0.0
      %7398 = vmatpush1.msra.mxu0 %v7276
      %7399 = vmatprep.subr.mxu0 0.0
      %7400 = vmatpush1.msra.mxu0 %v7274
      %7401 = vmatprep.subr.mxu0 0.0
      %7402 = vmatpush2.msra.mxu0 %v7336
      %7403 = vmatprep.subr.mxu0 0.0
      %7404 = vmatpush2.msra.mxu0 %v7334
      %7405 = vmatprep.subr.mxu0 0.0
      %7406 = vmatpush2.msra.mxu0 %v7332
      %7407 = vmatprep.subr.mxu0 0.0
      %7408 = vmatpush2.msra.mxu0 %v7330
      %7409 = vmatprep.subr.mxu0 0.0
      %7410 = vmatpush2.msra.mxu0 %v7328
      %7411 = vmatprep.subr.mxu0 0.0
      %7412 = vmatpush2.msra.mxu0 %v7326
      %7413 = vmatprep.subr.mxu0 0.0
      %7414 = vmatpush2.msra.mxu0 %v7324
      %7415 = vmatprep.subr.mxu0 0.0
      %7416 = vmatpush2.msra.mxu0 %v7322
      %7417 = vmatprep.subr.mxu0 0.0
      %7418 = vmatpush2.msra.mxu0 %v7320
      %7419 = vmatprep.subr.mxu0 0.0
      %7420 = vmatpush2.msra.mxu0 %v7318
      %7421 = vmatprep.subr.mxu0 0.0
      %7422 = vmatpush2.msra.mxu0 %v7316
      %7423 = vmatprep.subr.mxu0 0.0
      %7424 = vmatpush2.msra.mxu0 %v7314
      %7425 = vmatprep.subr.mxu0 0.0
      %7426 = vmatpush2.msra.mxu0 %v7312
      %7427 = vmatprep.subr.mxu0 0.0
      %7428 = vmatpush2.msra.mxu0 %v7310
      %7429 = vmatprep.subr.mxu0 0.0
      %7430 = vmatpush2.msra.mxu0 %v7308
      %7431 = vmatprep.subr.mxu0 0.0
      %7432 = vmatpush2.msra.mxu0 %v7306
      %7433 = vmatprep.mubr.f32.mxu0 %v7210
      %7434 = vmatmul.mubr.f32.gmra.mxu0 %v7209
      %v7435 = vpop.f32.mrf.mxu0
      %v7436 = vadd.f32 0.0, %v7435
      %v7437 = vpop.f32.mrf.mxu0
      %7438 = vmatprep.mubr.f32.mxu0 %v7212
      %7439 = vmatmul.mubr.f32.gmra.mxu0 %v7211
      %v7440 = vpop.f32.mrf.mxu0
      %v7441 = vadd.f32 0.0, %v7440
      %v7442 = vpop.f32.mrf.mxu0
      %7443 = vmatprep.mubr.f32.mxu0 %v7214
      %7444 = vmatmul.mubr.f32.gmra.mxu0 %v7213
      %v7445 = vpop.f32.mrf.mxu0
      %v7446 = vadd.f32 0.0, %v7445
      %v7447 = vpop.f32.mrf.mxu0
      %7448 = vmatprep.mubr.f32.mxu0 %v7216
      %7449 = vmatmul.mubr.f32.gmra.mxu0 %v7215
      %v7450 = vpop.f32.mrf.mxu0
      %v7451 = vadd.f32 0.0, %v7450
      %v7452 = vpop.f32.mrf.mxu0
      %7453 = vmatprep.mubr.f32.mxu0 %v7218
      %7454 = vmatmul.mubr.f32.gmra.mxu0 %v7217
      %v7455 = vpop.f32.mrf.mxu0
      %v7456 = vadd.f32 0.0, %v7455
      %v7457 = vpop.f32.mrf.mxu0
      %7458 = vmatprep.mubr.f32.mxu0 %v7220
      %7459 = vmatmul.mubr.f32.gmra.mxu0 %v7219
      %v7460 = vpop.f32.mrf.mxu0
      %v7461 = vadd.f32 0.0, %v7460
      %v7462 = vpop.f32.mrf.mxu0
      %7463 = vmatprep.mubr.f32.mxu0 %v7222
      %7464 = vmatmul.mubr.f32.gmra.mxu0 %v7221
      %v7465 = vpop.f32.mrf.mxu0
      %v7466 = vadd.f32 0.0, %v7465
      %v7467 = vpop.f32.mrf.mxu0
      %7468 = vmatprep.mubr.f32.mxu0 %v7224
      %7469 = vmatmul.mubr.f32.gmra.mxu0 %v7223
      %v7470 = vpop.f32.mrf.mxu0
      %v7471 = vadd.f32 0.0, %v7470
      %v7472 = vpop.f32.mrf.mxu0
      %7473 = vmatprep.mubr.f32.mxu0 %v7226
      %7474 = vmatmul.mubr.f32.gmra.mxu0 %v7225
      %v7475 = vpop.f32.mrf.mxu0
      %v7476 = vadd.f32 0.0, %v7475
      %v7477 = vpop.f32.mrf.mxu0
      %7478 = vmatprep.mubr.f32.mxu0 %v7228
      %7479 = vmatmul.mubr.f32.gmra.mxu0 %v7227
      %v7480 = vpop.f32.mrf.mxu0
      %v7481 = vadd.f32 0.0, %v7480
      %v7482 = vpop.f32.mrf.mxu0
      %7483 = vmatprep.mubr.f32.mxu0 %v7230
      %7484 = vmatmul.mubr.f32.gmra.mxu0 %v7229
      %v7485 = vpop.f32.mrf.mxu0
      %v7486 = vadd.f32 0.0, %v7485
      %v7487 = vpop.f32.mrf.mxu0
      %7488 = vmatprep.mubr.f32.mxu0 %v7232
      %7489 = vmatmul.mubr.f32.gmra.mxu0 %v7231
      %v7490 = vpop.f32.mrf.mxu0
      %v7491 = vadd.f32 0.0, %v7490
      %v7492 = vpop.f32.mrf.mxu0
      %7493 = vmatprep.mubr.f32.mxu0 %v7234
      %7494 = vmatmul.mubr.f32.gmra.mxu0 %v7233
      %v7495 = vpop.f32.mrf.mxu0
      %v7496 = vadd.f32 0.0, %v7495
      %v7497 = vpop.f32.mrf.mxu0
      %7498 = vmatprep.mubr.f32.mxu0 %v7236
      %7499 = vmatmul.mubr.f32.gmra.mxu0 %v7235
      %v7500 = vpop.f32.mrf.mxu0
      %v7501 = vadd.f32 0.0, %v7500
      %v7502 = vpop.f32.mrf.mxu0
      %7503 = vmatprep.mubr.f32.mxu0 %v7238
      %7504 = vmatmul.mubr.f32.gmra.mxu0 %v7237
      %v7505 = vpop.f32.mrf.mxu0
      %v7506 = vadd.f32 0.0, %v7505
      %v7507 = vpop.f32.mrf.mxu0
      %7508 = vmatprep.mubr.f32.mxu0 %v7240
      %7509 = vmatmul.mubr.f32.gmra.mxu0 %v7239
      %v7510 = vpop.f32.mrf.mxu0
      %v7511 = vadd.f32 0.0, %v7510
      %v7512 = vpop.f32.mrf.mxu0
      %7513 = vmatprep.mubr.f32.mxu0 %v7242
      %7514 = vmatmul.mubr.f32.gmra.mxu0 %v7241
      %v7515 = vpop.f32.mrf.mxu0
      %v7516 = vadd.f32 0.0, %v7515
      %v7517 = vpop.f32.mrf.mxu0
      %7518 = vmatprep.mubr.f32.mxu0 %v7244
      %7519 = vmatmul.mubr.f32.gmra.mxu0 %v7243
      %v7520 = vpop.f32.mrf.mxu0
      %v7521 = vadd.f32 0.0, %v7520
      %v7522 = vpop.f32.mrf.mxu0
      %7523 = vmatprep.mubr.f32.mxu0 %v7246
      %7524 = vmatmul.mubr.f32.gmra.mxu0 %v7245
      %v7525 = vpop.f32.mrf.mxu0
      %v7526 = vadd.f32 0.0, %v7525
      %v7527 = vpop.f32.mrf.mxu0
      %7528 = vmatprep.mubr.f32.mxu0 %v7248
      %7529 = vmatmul.mubr.f32.gmra.mxu0 %v7247
      %v7530 = vpop.f32.mrf.mxu0
      %v7531 = vadd.f32 0.0, %v7530
      %v7532 = vpop.f32.mrf.mxu0
      %7533 = vmatprep.mubr.f32.mxu0 %v7250
      %7534 = vmatmul.mubr.f32.gmra.mxu0 %v7249
      %v7535 = vpop.f32.mrf.mxu0
      %v7536 = vadd.f32 0.0, %v7535
      %v7537 = vpop.f32.mrf.mxu0
      %7538 = vmatprep.mubr.f32.mxu0 %v7252
      %7539 = vmatmul.mubr.f32.gmra.mxu0 %v7251
      %v7540 = vpop.f32.mrf.mxu0
      %v7541 = vadd.f32 0.0, %v7540
      %v7542 = vpop.f32.mrf.mxu0
      %7543 = vmatprep.mubr.f32.mxu0 %v7254
      %7544 = vmatmul.mubr.f32.gmra.mxu0 %v7253
      %v7545 = vpop.f32.mrf.mxu0
      %v7546 = vadd.f32 0.0, %v7545
      %v7547 = vpop.f32.mrf.mxu0
      %7548 = vmatprep.mubr.f32.mxu0 %v7256
      %7549 = vmatmul.mubr.f32.gmra.mxu0 %v7255
      %v7550 = vpop.f32.mrf.mxu0
      %v7551 = vadd.f32 0.0, %v7550
      %v7552 = vpop.f32.mrf.mxu0
      %7553 = vmatprep.mubr.f32.mxu0 %v7258
      %7554 = vmatmul.mubr.f32.gmra.mxu0 %v7257
      %v7555 = vpop.f32.mrf.mxu0
      %v7556 = vadd.f32 0.0, %v7555
      %v7557 = vpop.f32.mrf.mxu0
      %7558 = vmatprep.mubr.f32.mxu0 %v7260
      %7559 = vmatmul.mubr.f32.gmra.mxu0 %v7259
      %v7560 = vpop.f32.mrf.mxu0
      %v7561 = vadd.f32 0.0, %v7560
      %v7562 = vpop.f32.mrf.mxu0
      %7563 = vmatprep.mubr.f32.mxu0 %v7262
      %7564 = vmatmul.mubr.f32.gmra.mxu0 %v7261
      %v7565 = vpop.f32.mrf.mxu0
      %v7566 = vadd.f32 0.0, %v7565
      %v7567 = vpop.f32.mrf.mxu0
      %7568 = vmatprep.mubr.f32.mxu0 %v7264
      %7569 = vmatmul.mubr.f32.gmra.mxu0 %v7263
      %v7570 = vpop.f32.mrf.mxu0
      %v7571 = vadd.f32 0.0, %v7570
      %v7572 = vpop.f32.mrf.mxu0
      %7573 = vmatprep.mubr.f32.mxu0 %v7266
      %7574 = vmatmul.mubr.f32.gmra.mxu0 %v7265
      %v7575 = vpop.f32.mrf.mxu0
      %v7576 = vadd.f32 0.0, %v7575
      %v7577 = vpop.f32.mrf.mxu0
      %7578 = vmatprep.mubr.f32.mxu0 %v7268
      %7579 = vmatmul.mubr.f32.gmra.mxu0 %v7267
      %v7580 = vpop.f32.mrf.mxu0
      %v7581 = vadd.f32 0.0, %v7580
      %v7582 = vpop.f32.mrf.mxu0
      %7583 = vmatprep.mubr.f32.mxu0 %v7270
      %7584 = vmatmul.mubr.f32.gmra.mxu0 %v7269
      %v7585 = vpop.f32.mrf.mxu0
      %v7586 = vadd.f32 0.0, %v7585
      %v7587 = vpop.f32.mrf.mxu0
      %7588 = vmatprep.mubr.f32.mxu0 %v7272
      %7589 = vmatmul.mubr.f32.gmra.mxu0 %v7271
      %v7590 = vpop.f32.mrf.mxu0
      %v7591 = vadd.f32 0.0, %v7590
      %v7592 = vpop.f32.mrf.mxu0
      %7593 = vdwg.mxu0
      %7594 = vrot.lane.b32.xlu0 %v1055, 108
      %v7595 = vpop.permute.xlu0 %7594
      %7596 = vrot.lane.b32.xlu0 %v1056, 108
      %v7597 = vpop.permute.xlu0 %7596
      %7598 = vrot.lane.b32.xlu0 %v1057, 108
      %v7599 = vpop.permute.xlu0 %7598
      %7600 = vrot.lane.b32.xlu0 %v1058, 108
      %v7601 = vpop.permute.xlu0 %7600
      %7602 = vrot.lane.b32.xlu0 %v1059, 108
      %v7603 = vpop.permute.xlu0 %7602
      %7604 = vrot.lane.b32.xlu0 %v1060, 108
      %v7605 = vpop.permute.xlu0 %7604
      %7606 = vrot.lane.b32.xlu0 %v1061, 108
      %v7607 = vpop.permute.xlu0 %7606
      %7608 = vrot.lane.b32.xlu0 %v1062, 108
      %v7609 = vpop.permute.xlu0 %7608
      %7610 = vrot.lane.b32.xlu0 %v1063, 108
      %v7611 = vpop.permute.xlu0 %7610
      %7612 = vrot.lane.b32.xlu0 %v1064, 108
      %v7613 = vpop.permute.xlu0 %7612
      %7614 = vrot.lane.b32.xlu0 %v1065, 108
      %v7615 = vpop.permute.xlu0 %7614
      %7616 = vrot.lane.b32.xlu0 %v1066, 108
      %v7617 = vpop.permute.xlu0 %7616
      %7618 = vrot.lane.b32.xlu0 %v1067, 108
      %v7619 = vpop.permute.xlu0 %7618
      %7620 = vrot.lane.b32.xlu0 %v1068, 108
      %v7621 = vpop.permute.xlu0 %7620
      %7622 = vrot.lane.b32.xlu0 %v1069, 108
      %v7623 = vpop.permute.xlu0 %7622
      %7624 = vrot.lane.b32.xlu0 %v1070, 108
      %v7625 = vpop.permute.xlu0 %7624
      %7626 = vrot.lane.b32.xlu0 %v1071, 108
      %v7627 = vpop.permute.xlu0 %7626
      %7628 = vrot.lane.b32.xlu0 %v1072, 108
      %v7629 = vpop.permute.xlu0 %7628
      %7630 = vrot.lane.b32.xlu0 %v1073, 108
      %v7631 = vpop.permute.xlu0 %7630
      %7632 = vrot.lane.b32.xlu0 %v1074, 108
      %v7633 = vpop.permute.xlu0 %7632
      %7634 = vrot.lane.b32.xlu0 %v1075, 108
      %v7635 = vpop.permute.xlu0 %7634
      %7636 = vrot.lane.b32.xlu0 %v1076, 108
      %v7637 = vpop.permute.xlu0 %7636
      %7638 = vrot.lane.b32.xlu0 %v1077, 108
      %v7639 = vpop.permute.xlu0 %7638
      %7640 = vrot.lane.b32.xlu0 %v1078, 108
      %v7641 = vpop.permute.xlu0 %7640
      %7642 = vrot.lane.b32.xlu0 %v1079, 108
      %v7643 = vpop.permute.xlu0 %7642
      %7644 = vrot.lane.b32.xlu0 %v1080, 108
      %v7645 = vpop.permute.xlu0 %7644
      %7646 = vrot.lane.b32.xlu0 %v1081, 108
      %v7647 = vpop.permute.xlu0 %7646
      %7648 = vrot.lane.b32.xlu0 %v1082, 108
      %v7649 = vpop.permute.xlu0 %7648
      %7650 = vrot.lane.b32.xlu0 %v1083, 108
      %v7651 = vpop.permute.xlu0 %7650
      %7652 = vrot.lane.b32.xlu0 %v1084, 108
      %v7653 = vpop.permute.xlu0 %7652
      %7654 = vrot.lane.b32.xlu0 %v1085, 108
      %v7655 = vpop.permute.xlu0 %7654
      %7656 = vrot.lane.b32.xlu0 %v1086, 108
      %v7657 = vpop.permute.xlu0 %7656
      %7658 = vrot.lane.b32.xlu0 %v565, 108
      %v7659 = vpop.permute.xlu0 %7658
      %7660 = vrot.lane.b32.xlu0 %v570, 108
      %v7661 = vpop.permute.xlu0 %7660
      %7662 = vrot.lane.b32.xlu0 %v575, 108
      %v7663 = vpop.permute.xlu0 %7662
      %7664 = vrot.lane.b32.xlu0 %v580, 108
      %v7665 = vpop.permute.xlu0 %7664
      %7666 = vrot.lane.b32.xlu0 %v585, 108
      %v7667 = vpop.permute.xlu0 %7666
      %7668 = vrot.lane.b32.xlu0 %v590, 108
      %v7669 = vpop.permute.xlu0 %7668
      %7670 = vrot.lane.b32.xlu0 %v595, 108
      %v7671 = vpop.permute.xlu0 %7670
      %7672 = vrot.lane.b32.xlu0 %v600, 108
      %v7673 = vpop.permute.xlu0 %7672
      %7674 = vrot.lane.b32.xlu0 %v605, 108
      %v7675 = vpop.permute.xlu0 %7674
      %7676 = vrot.lane.b32.xlu0 %v610, 108
      %v7677 = vpop.permute.xlu0 %7676
      %7678 = vrot.lane.b32.xlu0 %v615, 108
      %v7679 = vpop.permute.xlu0 %7678
      %7680 = vrot.lane.b32.xlu0 %v620, 108
      %v7681 = vpop.permute.xlu0 %7680
      %7682 = vrot.lane.b32.xlu0 %v625, 108
      %v7683 = vpop.permute.xlu0 %7682
      %7684 = vrot.lane.b32.xlu0 %v630, 108
      %v7685 = vpop.permute.xlu0 %7684
      %7686 = vrot.lane.b32.xlu0 %v635, 108
      %v7687 = vpop.permute.xlu0 %7686
      %7688 = vrot.lane.b32.xlu0 %v640, 108
      %v7689 = vpop.permute.xlu0 %7688
      %7690 = vrot.lane.b32.xlu0 %v645, 108
      %v7691 = vpop.permute.xlu0 %7690
      %7692 = vrot.lane.b32.xlu0 %v650, 108
      %v7693 = vpop.permute.xlu0 %7692
      %7694 = vrot.lane.b32.xlu0 %v655, 108
      %v7695 = vpop.permute.xlu0 %7694
      %7696 = vrot.lane.b32.xlu0 %v660, 108
      %v7697 = vpop.permute.xlu0 %7696
      %7698 = vrot.lane.b32.xlu0 %v665, 108
      %v7699 = vpop.permute.xlu0 %7698
      %7700 = vrot.lane.b32.xlu0 %v670, 108
      %v7701 = vpop.permute.xlu0 %7700
      %7702 = vrot.lane.b32.xlu0 %v675, 108
      %v7703 = vpop.permute.xlu0 %7702
      %7704 = vrot.lane.b32.xlu0 %v680, 108
      %v7705 = vpop.permute.xlu0 %7704
      %7706 = vrot.lane.b32.xlu0 %v685, 108
      %v7707 = vpop.permute.xlu0 %7706
      %7708 = vrot.lane.b32.xlu0 %v690, 108
      %v7709 = vpop.permute.xlu0 %7708
      %7710 = vrot.lane.b32.xlu0 %v695, 108
      %v7711 = vpop.permute.xlu0 %7710
      %7712 = vrot.lane.b32.xlu0 %v700, 108
      %v7713 = vpop.permute.xlu0 %7712
      %7714 = vrot.lane.b32.xlu0 %v705, 108
      %v7715 = vpop.permute.xlu0 %7714
      %7716 = vrot.lane.b32.xlu0 %v710, 108
      %v7717 = vpop.permute.xlu0 %7716
      %7718 = vrot.lane.b32.xlu0 %v715, 108
      %v7719 = vpop.permute.xlu0 %7718
      %7720 = vrot.lane.b32.xlu0 %v720, 108
      %v7721 = vpop.permute.xlu0 %7720
      %v7722 = vsel %vm1087, %v7595, 0
      %v7724 = vsel %vm1087, %v7597, 0
      %v7726 = vsel %vm1087, %v7599, 0
      %v7728 = vsel %vm1087, %v7601, 0
      %v7730 = vsel %vm1087, %v7603, 0
      %v7732 = vsel %vm1087, %v7605, 0
      %v7734 = vsel %vm1087, %v7607, 0
      %v7736 = vsel %vm1087, %v7609, 0
      %v7738 = vsel %vm1087, %v7611, 0
      %v7740 = vsel %vm1087, %v7613, 0
      %v7742 = vsel %vm1087, %v7615, 0
      %v7744 = vsel %vm1087, %v7617, 0
      %v7746 = vsel %vm1087, %v7619, 0
      %v7748 = vsel %vm1087, %v7621, 0
      %v7750 = vsel %vm1087, %v7623, 0
      %v7752 = vsel %vm1087, %v7625, 0
      %v7754 = vsel %vm1087, %v7627, 0
      %v7756 = vsel %vm1087, %v7629, 0
      %v7758 = vsel %vm1087, %v7631, 0
      %v7760 = vsel %vm1087, %v7633, 0
      %v7762 = vsel %vm1087, %v7635, 0
      %v7764 = vsel %vm1087, %v7637, 0
      %v7766 = vsel %vm1087, %v7639, 0
      %v7768 = vsel %vm1087, %v7641, 0
      %v7770 = vsel %vm1087, %v7643, 0
      %v7772 = vsel %vm1087, %v7645, 0
      %v7774 = vsel %vm1087, %v7647, 0
      %v7776 = vsel %vm1087, %v7649, 0
      %v7778 = vsel %vm1087, %v7651, 0
      %v7780 = vsel %vm1087, %v7653, 0
      %v7782 = vsel %vm1087, %v7655, 0
      %v7784 = vsel %vm1087, %v7657, 0
      %v7786 = vsel %vm1087, %v7659, 0
      %v7788 = vsel %vm1087, %v7661, 0
      %v7790 = vsel %vm1087, %v7663, 0
      %v7792 = vsel %vm1087, %v7665, 0
      %v7794 = vsel %vm1087, %v7667, 0
      %v7796 = vsel %vm1087, %v7669, 0
      %v7798 = vsel %vm1087, %v7671, 0
      %v7800 = vsel %vm1087, %v7673, 0
      %v7802 = vsel %vm1087, %v7675, 0
      %v7804 = vsel %vm1087, %v7677, 0
      %v7806 = vsel %vm1087, %v7679, 0
      %v7808 = vsel %vm1087, %v7681, 0
      %v7810 = vsel %vm1087, %v7683, 0
      %v7812 = vsel %vm1087, %v7685, 0
      %v7814 = vsel %vm1087, %v7687, 0
      %v7816 = vsel %vm1087, %v7689, 0
      %v7818 = vsel %vm1087, %v7691, 0
      %v7820 = vsel %vm1087, %v7693, 0
      %v7822 = vsel %vm1087, %v7695, 0
      %v7824 = vsel %vm1087, %v7697, 0
      %v7826 = vsel %vm1087, %v7699, 0
      %v7828 = vsel %vm1087, %v7701, 0
      %v7830 = vsel %vm1087, %v7703, 0
      %v7832 = vsel %vm1087, %v7705, 0
      %v7834 = vsel %vm1087, %v7707, 0
      %v7836 = vsel %vm1087, %v7709, 0
      %v7838 = vsel %vm1087, %v7711, 0
      %v7840 = vsel %vm1087, %v7713, 0
      %v7842 = vsel %vm1087, %v7715, 0
      %v7844 = vsel %vm1087, %v7717, 0
      %v7846 = vsel %vm1087, %v7719, 0
      %v7848 = vsel %vm1087, %v7721, 0
      %7850 = vmatprep.subr.mxu0 0.0
      %7851 = vmatpush1.xpose.msra.mxu0 %v7816
      %7852 = vmatprep.subr.mxu0 0.0
      %7853 = vmatpush1.xpose.msra.mxu0 %v7814
      %7854 = vmatprep.subr.mxu0 0.0
      %7855 = vmatpush1.xpose.msra.mxu0 %v7812
      %7856 = vmatprep.subr.mxu0 0.0
      %7857 = vmatpush1.xpose.msra.mxu0 %v7810
      %7858 = vmatprep.subr.mxu0 0.0
      %7859 = vmatpush1.xpose.msra.mxu0 %v7808
      %7860 = vmatprep.subr.mxu0 0.0
      %7861 = vmatpush1.xpose.msra.mxu0 %v7806
      %7862 = vmatprep.subr.mxu0 0.0
      %7863 = vmatpush1.xpose.msra.mxu0 %v7804
      %7864 = vmatprep.subr.mxu0 0.0
      %7865 = vmatpush1.xpose.msra.mxu0 %v7802
      %7866 = vmatprep.subr.mxu0 0.0
      %7867 = vmatpush1.xpose.msra.mxu0 %v7800
      %7868 = vmatprep.subr.mxu0 0.0
      %7869 = vmatpush1.xpose.msra.mxu0 %v7798
      %7870 = vmatprep.subr.mxu0 0.0
      %7871 = vmatpush1.xpose.msra.mxu0 %v7796
      %7872 = vmatprep.subr.mxu0 0.0
      %7873 = vmatpush1.xpose.msra.mxu0 %v7794
      %7874 = vmatprep.subr.mxu0 0.0
      %7875 = vmatpush1.xpose.msra.mxu0 %v7792
      %7876 = vmatprep.subr.mxu0 0.0
      %7877 = vmatpush1.xpose.msra.mxu0 %v7790
      %7878 = vmatprep.subr.mxu0 0.0
      %7879 = vmatpush1.xpose.msra.mxu0 %v7788
      %7880 = vmatprep.subr.mxu0 0.0
      %7881 = vmatpush1.xpose.msra.mxu0 %v7786
      %7882 = vmatprep.subr.mxu0 0.0
      %7883 = vmatpush2.xpose.msra.mxu0 %v7848
      %7884 = vmatprep.subr.mxu0 0.0
      %7885 = vmatpush2.xpose.msra.mxu0 %v7846
      %7886 = vmatprep.subr.mxu0 0.0
      %7887 = vmatpush2.xpose.msra.mxu0 %v7844
      %7888 = vmatprep.subr.mxu0 0.0
      %7889 = vmatpush2.xpose.msra.mxu0 %v7842
      %7890 = vmatprep.subr.mxu0 0.0
      %7891 = vmatpush2.xpose.msra.mxu0 %v7840
      %7892 = vmatprep.subr.mxu0 0.0
      %7893 = vmatpush2.xpose.msra.mxu0 %v7838
      %7894 = vmatprep.subr.mxu0 0.0
      %7895 = vmatpush2.xpose.msra.mxu0 %v7836
      %7896 = vmatprep.subr.mxu0 0.0
      %7897 = vmatpush2.xpose.msra.mxu0 %v7834
      %7898 = vmatprep.subr.mxu0 0.0
      %7899 = vmatpush2.xpose.msra.mxu0 %v7832
      %7900 = vmatprep.subr.mxu0 0.0
      %7901 = vmatpush2.xpose.msra.mxu0 %v7830
      %7902 = vmatprep.subr.mxu0 0.0
      %7903 = vmatpush2.xpose.msra.mxu0 %v7828
      %7904 = vmatprep.subr.mxu0 0.0
      %7905 = vmatpush2.xpose.msra.mxu0 %v7826
      %7906 = vmatprep.subr.mxu0 0.0
      %7907 = vmatpush2.xpose.msra.mxu0 %v7824
      %7908 = vmatprep.subr.mxu0 0.0
      %7909 = vmatpush2.xpose.msra.mxu0 %v7822
      %7910 = vmatprep.subr.mxu0 0.0
      %7911 = vmatpush2.xpose.msra.mxu0 %v7820
      %7912 = vmatprep.subr.mxu0 0.0
      %7913 = vmatpush2.xpose.msra.mxu0 %v7818
      %7914 = vmatprep.mubr.f32.mxu0 0.0
      %7915 = vmatmul.mubr.f32.gmra.mxu0 %v7722
      %v7916 = vpop.f32.mrf.mxu0
      %v7917 = vadd.f32 0.0, %v7916
      %v7918 = vpop.f32.mrf.mxu0
      %v7919 = vadd.f32 0.0, %v7918
      %7920 = vmatprep.mubr.f32.mxu0 0.0
      %7921 = vmatmul.mubr.f32.gmra.mxu0 %v7724
      %v7922 = vpop.f32.mrf.mxu0
      %v7923 = vadd.f32 0.0, %v7922
      %v7924 = vpop.f32.mrf.mxu0
      %v7925 = vadd.f32 0.0, %v7924
      %7926 = vmatprep.mubr.f32.mxu0 0.0
      %7927 = vmatmul.mubr.f32.gmra.mxu0 %v7726
      %v7928 = vpop.f32.mrf.mxu0
      %v7929 = vadd.f32 0.0, %v7928
      %v7930 = vpop.f32.mrf.mxu0
      %v7931 = vadd.f32 0.0, %v7930
      %7932 = vmatprep.mubr.f32.mxu0 0.0
      %7933 = vmatmul.mubr.f32.gmra.mxu0 %v7728
      %v7934 = vpop.f32.mrf.mxu0
      %v7935 = vadd.f32 0.0, %v7934
      %v7936 = vpop.f32.mrf.mxu0
      %v7937 = vadd.f32 0.0, %v7936
      %7938 = vmatprep.mubr.f32.mxu0 0.0
      %7939 = vmatmul.mubr.f32.gmra.mxu0 %v7730
      %v7940 = vpop.f32.mrf.mxu0
      %v7941 = vadd.f32 0.0, %v7940
      %v7942 = vpop.f32.mrf.mxu0
      %v7943 = vadd.f32 0.0, %v7942
      %7944 = vmatprep.mubr.f32.mxu0 0.0
      %7945 = vmatmul.mubr.f32.gmra.mxu0 %v7732
      %v7946 = vpop.f32.mrf.mxu0
      %v7947 = vadd.f32 0.0, %v7946
      %v7948 = vpop.f32.mrf.mxu0
      %v7949 = vadd.f32 0.0, %v7948
      %7950 = vmatprep.mubr.f32.mxu0 0.0
      %7951 = vmatmul.mubr.f32.gmra.mxu0 %v7734
      %v7952 = vpop.f32.mrf.mxu0
      %v7953 = vadd.f32 0.0, %v7952
      %v7954 = vpop.f32.mrf.mxu0
      %v7955 = vadd.f32 0.0, %v7954
      %7956 = vmatprep.mubr.f32.mxu0 0.0
      %7957 = vmatmul.mubr.f32.gmra.mxu0 %v7736
      %v7958 = vpop.f32.mrf.mxu0
      %v7959 = vadd.f32 0.0, %v7958
      %v7960 = vpop.f32.mrf.mxu0
      %v7961 = vadd.f32 0.0, %v7960
      %7962 = vmatprep.mubr.f32.mxu0 0.0
      %7963 = vmatmul.mubr.f32.gmra.mxu0 %v7738
      %v7964 = vpop.f32.mrf.mxu0
      %v7965 = vadd.f32 0.0, %v7964
      %v7966 = vpop.f32.mrf.mxu0
      %v7967 = vadd.f32 0.0, %v7966
      %7968 = vmatprep.mubr.f32.mxu0 0.0
      %7969 = vmatmul.mubr.f32.gmra.mxu0 %v7740
      %v7970 = vpop.f32.mrf.mxu0
      %v7971 = vadd.f32 0.0, %v7970
      %v7972 = vpop.f32.mrf.mxu0
      %v7973 = vadd.f32 0.0, %v7972
      %7974 = vmatprep.mubr.f32.mxu0 0.0
      %7975 = vmatmul.mubr.f32.gmra.mxu0 %v7742
      %v7976 = vpop.f32.mrf.mxu0
      %v7977 = vadd.f32 0.0, %v7976
      %v7978 = vpop.f32.mrf.mxu0
      %v7979 = vadd.f32 0.0, %v7978
      %7980 = vmatprep.mubr.f32.mxu0 0.0
      %7981 = vmatmul.mubr.f32.gmra.mxu0 %v7744
      %v7982 = vpop.f32.mrf.mxu0
      %v7983 = vadd.f32 0.0, %v7982
      %v7984 = vpop.f32.mrf.mxu0
      %v7985 = vadd.f32 0.0, %v7984
      %7986 = vmatprep.mubr.f32.mxu0 0.0
      %7987 = vmatmul.mubr.f32.gmra.mxu0 %v7746
      %v7988 = vpop.f32.mrf.mxu0
      %v7989 = vadd.f32 0.0, %v7988
      %v7990 = vpop.f32.mrf.mxu0
      %v7991 = vadd.f32 0.0, %v7990
      %7992 = vmatprep.mubr.f32.mxu0 0.0
      %7993 = vmatmul.mubr.f32.gmra.mxu0 %v7748
      %v7994 = vpop.f32.mrf.mxu0
      %v7995 = vadd.f32 0.0, %v7994
      %v7996 = vpop.f32.mrf.mxu0
      %v7997 = vadd.f32 0.0, %v7996
      %7998 = vmatprep.mubr.f32.mxu0 0.0
      %7999 = vmatmul.mubr.f32.gmra.mxu0 %v7750
      %v8000 = vpop.f32.mrf.mxu0
      %v8001 = vadd.f32 0.0, %v8000
      %v8002 = vpop.f32.mrf.mxu0
      %v8003 = vadd.f32 0.0, %v8002
      %8004 = vmatprep.mubr.f32.mxu0 0.0
      %8005 = vmatmul.mubr.f32.gmra.mxu0 %v7752
      %v8006 = vpop.f32.mrf.mxu0
      %v8007 = vadd.f32 0.0, %v8006
      %v8008 = vpop.f32.mrf.mxu0
      %v8009 = vadd.f32 0.0, %v8008
      %8010 = vmatprep.mubr.f32.mxu0 0.0
      %8011 = vmatmul.mubr.f32.gmra.mxu0 %v7754
      %v8012 = vpop.f32.mrf.mxu0
      %v8013 = vadd.f32 0.0, %v8012
      %v8014 = vpop.f32.mrf.mxu0
      %v8015 = vadd.f32 0.0, %v8014
      %8016 = vmatprep.mubr.f32.mxu0 0.0
      %8017 = vmatmul.mubr.f32.gmra.mxu0 %v7756
      %v8018 = vpop.f32.mrf.mxu0
      %v8019 = vadd.f32 0.0, %v8018
      %v8020 = vpop.f32.mrf.mxu0
      %v8021 = vadd.f32 0.0, %v8020
      %8022 = vmatprep.mubr.f32.mxu0 0.0
      %8023 = vmatmul.mubr.f32.gmra.mxu0 %v7758
      %v8024 = vpop.f32.mrf.mxu0
      %v8025 = vadd.f32 0.0, %v8024
      %v8026 = vpop.f32.mrf.mxu0
      %v8027 = vadd.f32 0.0, %v8026
      %8028 = vmatprep.mubr.f32.mxu0 0.0
      %8029 = vmatmul.mubr.f32.gmra.mxu0 %v7760
      %v8030 = vpop.f32.mrf.mxu0
      %v8031 = vadd.f32 0.0, %v8030
      %v8032 = vpop.f32.mrf.mxu0
      %v8033 = vadd.f32 0.0, %v8032
      %8034 = vmatprep.mubr.f32.mxu0 0.0
      %8035 = vmatmul.mubr.f32.gmra.mxu0 %v7762
      %v8036 = vpop.f32.mrf.mxu0
      %v8037 = vadd.f32 0.0, %v8036
      %v8038 = vpop.f32.mrf.mxu0
      %v8039 = vadd.f32 0.0, %v8038
      %8040 = vmatprep.mubr.f32.mxu0 0.0
      %8041 = vmatmul.mubr.f32.gmra.mxu0 %v7764
      %v8042 = vpop.f32.mrf.mxu0
      %v8043 = vadd.f32 0.0, %v8042
      %v8044 = vpop.f32.mrf.mxu0
      %v8045 = vadd.f32 0.0, %v8044
      %8046 = vmatprep.mubr.f32.mxu0 0.0
      %8047 = vmatmul.mubr.f32.gmra.mxu0 %v7766
      %v8048 = vpop.f32.mrf.mxu0
      %v8049 = vadd.f32 0.0, %v8048
      %v8050 = vpop.f32.mrf.mxu0
      %v8051 = vadd.f32 0.0, %v8050
      %8052 = vmatprep.mubr.f32.mxu0 0.0
      %8053 = vmatmul.mubr.f32.gmra.mxu0 %v7768
      %v8054 = vpop.f32.mrf.mxu0
      %v8055 = vadd.f32 0.0, %v8054
      %v8056 = vpop.f32.mrf.mxu0
      %v8057 = vadd.f32 0.0, %v8056
      %8058 = vmatprep.mubr.f32.mxu0 0.0
      %8059 = vmatmul.mubr.f32.gmra.mxu0 %v7770
      %v8060 = vpop.f32.mrf.mxu0
      %v8061 = vadd.f32 0.0, %v8060
      %v8062 = vpop.f32.mrf.mxu0
      %v8063 = vadd.f32 0.0, %v8062
      %8064 = vmatprep.mubr.f32.mxu0 0.0
      %8065 = vmatmul.mubr.f32.gmra.mxu0 %v7772
      %v8066 = vpop.f32.mrf.mxu0
      %v8067 = vadd.f32 0.0, %v8066
      %v8068 = vpop.f32.mrf.mxu0
      %v8069 = vadd.f32 0.0, %v8068
      %8070 = vmatprep.mubr.f32.mxu0 0.0
      %8071 = vmatmul.mubr.f32.gmra.mxu0 %v7774
      %v8072 = vpop.f32.mrf.mxu0
      %v8073 = vadd.f32 0.0, %v8072
      %v8074 = vpop.f32.mrf.mxu0
      %v8075 = vadd.f32 0.0, %v8074
      %8076 = vmatprep.mubr.f32.mxu0 0.0
      %8077 = vmatmul.mubr.f32.gmra.mxu0 %v7776
      %v8078 = vpop.f32.mrf.mxu0
      %v8079 = vadd.f32 0.0, %v8078
      %v8080 = vpop.f32.mrf.mxu0
      %v8081 = vadd.f32 0.0, %v8080
      %8082 = vmatprep.mubr.f32.mxu0 0.0
      %8083 = vmatmul.mubr.f32.gmra.mxu0 %v7778
      %v8084 = vpop.f32.mrf.mxu0
      %v8085 = vadd.f32 0.0, %v8084
      %v8086 = vpop.f32.mrf.mxu0
      %v8087 = vadd.f32 0.0, %v8086
      %8088 = vmatprep.mubr.f32.mxu0 0.0
      %8089 = vmatmul.mubr.f32.gmra.mxu0 %v7780
      %v8090 = vpop.f32.mrf.mxu0
      %v8091 = vadd.f32 0.0, %v8090
      %v8092 = vpop.f32.mrf.mxu0
      %v8093 = vadd.f32 0.0, %v8092
      %8094 = vmatprep.mubr.f32.mxu0 0.0
      %8095 = vmatmul.mubr.f32.gmra.mxu0 %v7782
      %v8096 = vpop.f32.mrf.mxu0
      %v8097 = vadd.f32 0.0, %v8096
      %v8098 = vpop.f32.mrf.mxu0
      %v8099 = vadd.f32 0.0, %v8098
      %8100 = vmatprep.mubr.f32.mxu0 0.0
      %8101 = vmatmul.mubr.f32.gmra.mxu0 %v7784
      %v8102 = vpop.f32.mrf.mxu0
      %v8103 = vadd.f32 0.0, %v8102
      %v8104 = vpop.f32.mrf.mxu0
      %v8105 = vadd.f32 0.0, %v8104
      %8106 = vdwg.mxu0
      %v8107 = vmax.f32 %v7917, %v7919
      %8108 = vmax.xlane.f32.xlu0 %v8107
      %v8109 = vpop.xlane.xlu0 %8108
      %v8110 = vmax.f32 %v7923, %v7925
      %8111 = vmax.xlane.f32.xlu0 %v8110
      %v8112 = vpop.xlane.xlu0 %8111
      %v8113 = vmax.f32 %v7929, %v7931
      %8114 = vmax.xlane.f32.xlu0 %v8113
      %v8115 = vpop.xlane.xlu0 %8114
      %v8116 = vmax.f32 %v7935, %v7937
      %8117 = vmax.xlane.f32.xlu0 %v8116
      %v8118 = vpop.xlane.xlu0 %8117
      %v8119 = vmax.f32 %v7941, %v7943
      %8120 = vmax.xlane.f32.xlu0 %v8119
      %v8121 = vpop.xlane.xlu0 %8120
      %v8122 = vmax.f32 %v7947, %v7949
      %8123 = vmax.xlane.f32.xlu0 %v8122
      %v8124 = vpop.xlane.xlu0 %8123
      %v8125 = vmax.f32 %v7953, %v7955
      %8126 = vmax.xlane.f32.xlu0 %v8125
      %v8127 = vpop.xlane.xlu0 %8126
      %v8128 = vmax.f32 %v7959, %v7961
      %8129 = vmax.xlane.f32.xlu0 %v8128
      %v8130 = vpop.xlane.xlu0 %8129
      %v8131 = vmax.f32 %v7965, %v7967
      %8132 = vmax.xlane.f32.xlu0 %v8131
      %v8133 = vpop.xlane.xlu0 %8132
      %v8134 = vmax.f32 %v7971, %v7973
      %8135 = vmax.xlane.f32.xlu0 %v8134
      %v8136 = vpop.xlane.xlu0 %8135
      %v8137 = vmax.f32 %v7977, %v7979
      %8138 = vmax.xlane.f32.xlu0 %v8137
      %v8139 = vpop.xlane.xlu0 %8138
      %v8140 = vmax.f32 %v7983, %v7985
      %8141 = vmax.xlane.f32.xlu0 %v8140
      %v8142 = vpop.xlane.xlu0 %8141
      %v8143 = vmax.f32 %v7989, %v7991
      %8144 = vmax.xlane.f32.xlu0 %v8143
      %v8145 = vpop.xlane.xlu0 %8144
      %v8146 = vmax.f32 %v7995, %v7997
      %8147 = vmax.xlane.f32.xlu0 %v8146
      %v8148 = vpop.xlane.xlu0 %8147
      %v8149 = vmax.f32 %v8001, %v8003
      %8150 = vmax.xlane.f32.xlu0 %v8149
      %v8151 = vpop.xlane.xlu0 %8150
      %v8152 = vmax.f32 %v8007, %v8009
      %8153 = vmax.xlane.f32.xlu0 %v8152
      %v8154 = vpop.xlane.xlu0 %8153
      %v8155 = vmax.f32 %v8013, %v8015
      %8156 = vmax.xlane.f32.xlu0 %v8155
      %v8157 = vpop.xlane.xlu0 %8156
      %v8158 = vmax.f32 %v8019, %v8021
      %8159 = vmax.xlane.f32.xlu0 %v8158
      %v8160 = vpop.xlane.xlu0 %8159
      %v8161 = vmax.f32 %v8025, %v8027
      %8162 = vmax.xlane.f32.xlu0 %v8161
      %v8163 = vpop.xlane.xlu0 %8162
      %v8164 = vmax.f32 %v8031, %v8033
      %8165 = vmax.xlane.f32.xlu0 %v8164
      %v8166 = vpop.xlane.xlu0 %8165
      %v8167 = vmax.f32 %v8037, %v8039
      %8168 = vmax.xlane.f32.xlu0 %v8167
      %v8169 = vpop.xlane.xlu0 %8168
      %v8170 = vmax.f32 %v8043, %v8045
      %8171 = vmax.xlane.f32.xlu0 %v8170
      %v8172 = vpop.xlane.xlu0 %8171
      %v8173 = vmax.f32 %v8049, %v8051
      %8174 = vmax.xlane.f32.xlu0 %v8173
      %v8175 = vpop.xlane.xlu0 %8174
      %v8176 = vmax.f32 %v8055, %v8057
      %8177 = vmax.xlane.f32.xlu0 %v8176
      %v8178 = vpop.xlane.xlu0 %8177
      %v8179 = vmax.f32 %v8061, %v8063
      %8180 = vmax.xlane.f32.xlu0 %v8179
      %v8181 = vpop.xlane.xlu0 %8180
      %v8182 = vmax.f32 %v8067, %v8069
      %8183 = vmax.xlane.f32.xlu0 %v8182
      %v8184 = vpop.xlane.xlu0 %8183
      %v8185 = vmax.f32 %v8073, %v8075
      %8186 = vmax.xlane.f32.xlu0 %v8185
      %v8187 = vpop.xlane.xlu0 %8186
      %v8188 = vmax.f32 %v8079, %v8081
      %8189 = vmax.xlane.f32.xlu0 %v8188
      %v8190 = vpop.xlane.xlu0 %8189
      %v8191 = vmax.f32 %v8085, %v8087
      %8192 = vmax.xlane.f32.xlu0 %v8191
      %v8193 = vpop.xlane.xlu0 %8192
      %v8194 = vmax.f32 %v8091, %v8093
      %8195 = vmax.xlane.f32.xlu0 %v8194
      %v8196 = vpop.xlane.xlu0 %8195
      %v8197 = vmax.f32 %v8097, %v8099
      %8198 = vmax.xlane.f32.xlu0 %v8197
      %v8199 = vpop.xlane.xlu0 %8198
      %v8200 = vmax.f32 %v8103, %v8105
      %8201 = vmax.xlane.f32.xlu0 %v8200
      %v8202 = vpop.xlane.xlu0 %8201
      %v8203 = vsub.f32 %v7917, %v8109
      %v8204 = vsub.f32 %v7919, %v8109
      %v8205 = vsub.f32 %v7923, %v8112
      %v8206 = vsub.f32 %v7925, %v8112
      %v8207 = vsub.f32 %v7929, %v8115
      %v8208 = vsub.f32 %v7931, %v8115
      %v8209 = vsub.f32 %v7935, %v8118
      %v8210 = vsub.f32 %v7937, %v8118
      %v8211 = vsub.f32 %v7941, %v8121
      %v8212 = vsub.f32 %v7943, %v8121
      %v8213 = vsub.f32 %v7947, %v8124
      %v8214 = vsub.f32 %v7949, %v8124
      %v8215 = vsub.f32 %v7953, %v8127
      %v8216 = vsub.f32 %v7955, %v8127
      %v8217 = vsub.f32 %v7959, %v8130
      %v8218 = vsub.f32 %v7961, %v8130
      %v8219 = vsub.f32 %v7965, %v8133
      %v8220 = vsub.f32 %v7967, %v8133
      %v8221 = vsub.f32 %v7971, %v8136
      %v8222 = vsub.f32 %v7973, %v8136
      %v8223 = vsub.f32 %v7977, %v8139
      %v8224 = vsub.f32 %v7979, %v8139
      %v8225 = vsub.f32 %v7983, %v8142
      %v8226 = vsub.f32 %v7985, %v8142
      %v8227 = vsub.f32 %v7989, %v8145
      %v8228 = vsub.f32 %v7991, %v8145
      %v8229 = vsub.f32 %v7995, %v8148
      %v8230 = vsub.f32 %v7997, %v8148
      %v8231 = vsub.f32 %v8001, %v8151
      %v8232 = vsub.f32 %v8003, %v8151
      %v8233 = vsub.f32 %v8007, %v8154
      %v8234 = vsub.f32 %v8009, %v8154
      %v8235 = vsub.f32 %v8013, %v8157
      %v8236 = vsub.f32 %v8015, %v8157
      %v8237 = vsub.f32 %v8019, %v8160
      %v8238 = vsub.f32 %v8021, %v8160
      %v8239 = vsub.f32 %v8025, %v8163
      %v8240 = vsub.f32 %v8027, %v8163
      %v8241 = vsub.f32 %v8031, %v8166
      %v8242 = vsub.f32 %v8033, %v8166
      %v8243 = vsub.f32 %v8037, %v8169
      %v8244 = vsub.f32 %v8039, %v8169
      %v8245 = vsub.f32 %v8043, %v8172
      %v8246 = vsub.f32 %v8045, %v8172
      %v8247 = vsub.f32 %v8049, %v8175
      %v8248 = vsub.f32 %v8051, %v8175
      %v8249 = vsub.f32 %v8055, %v8178
      %v8250 = vsub.f32 %v8057, %v8178
      %v8251 = vsub.f32 %v8061, %v8181
      %v8252 = vsub.f32 %v8063, %v8181
      %v8253 = vsub.f32 %v8067, %v8184
      %v8254 = vsub.f32 %v8069, %v8184
      %v8255 = vsub.f32 %v8073, %v8187
      %v8256 = vsub.f32 %v8075, %v8187
      %v8257 = vsub.f32 %v8079, %v8190
      %v8258 = vsub.f32 %v8081, %v8190
      %v8259 = vsub.f32 %v8085, %v8193
      %v8260 = vsub.f32 %v8087, %v8193
      %v8261 = vsub.f32 %v8091, %v8196
      %v8262 = vsub.f32 %v8093, %v8196
      %v8263 = vsub.f32 %v8097, %v8199
      %v8264 = vsub.f32 %v8099, %v8199
      %v8265 = vsub.f32 %v8103, %v8202
      %v8266 = vsub.f32 %v8105, %v8202
      %v8267 = vmul.f32 %v8203, 1.442695
      %v8268 = vpow.pop %v8267
      %v8269 = vmul.f32 %v8204, 1.442695
      %v8270 = vpow.pop %v8269
      %v8271 = vmul.f32 %v8205, 1.442695
      %v8272 = vpow.pop %v8271
      %v8273 = vmul.f32 %v8206, 1.442695
      %v8274 = vpow.pop %v8273
      %v8275 = vmul.f32 %v8207, 1.442695
      %v8276 = vpow.pop %v8275
      %v8277 = vmul.f32 %v8208, 1.442695
      %v8278 = vpow.pop %v8277
      %v8279 = vmul.f32 %v8209, 1.442695
      %v8280 = vpow.pop %v8279
      %v8281 = vmul.f32 %v8210, 1.442695
      %v8282 = vpow.pop %v8281
      %v8283 = vmul.f32 %v8211, 1.442695
      %v8284 = vpow.pop %v8283
      %v8285 = vmul.f32 %v8212, 1.442695
      %v8286 = vpow.pop %v8285
      %v8287 = vmul.f32 %v8213, 1.442695
      %v8288 = vpow.pop %v8287
      %v8289 = vmul.f32 %v8214, 1.442695
      %v8290 = vpow.pop %v8289
      %v8291 = vmul.f32 %v8215, 1.442695
      %v8292 = vpow.pop %v8291
      %v8293 = vmul.f32 %v8216, 1.442695
      %v8294 = vpow.pop %v8293
      %v8295 = vmul.f32 %v8217, 1.442695
      %v8296 = vpow.pop %v8295
      %v8297 = vmul.f32 %v8218, 1.442695
      %v8298 = vpow.pop %v8297
      %v8299 = vmul.f32 %v8219, 1.442695
      %v8300 = vpow.pop %v8299
      %v8301 = vmul.f32 %v8220, 1.442695
      %v8302 = vpow.pop %v8301
      %v8303 = vmul.f32 %v8221, 1.442695
      %v8304 = vpow.pop %v8303
      %v8305 = vmul.f32 %v8222, 1.442695
      %v8306 = vpow.pop %v8305
      %v8307 = vmul.f32 %v8223, 1.442695
      %v8308 = vpow.pop %v8307
      %v8309 = vmul.f32 %v8224, 1.442695
      %v8310 = vpow.pop %v8309
      %v8311 = vmul.f32 %v8225, 1.442695
      %v8312 = vpow.pop %v8311
      %v8313 = vmul.f32 %v8226, 1.442695
      %v8314 = vpow.pop %v8313
      %v8315 = vmul.f32 %v8227, 1.442695
      %v8316 = vpow.pop %v8315
      %v8317 = vmul.f32 %v8228, 1.442695
      %v8318 = vpow.pop %v8317
      %v8319 = vmul.f32 %v8229, 1.442695
      %v8320 = vpow.pop %v8319
      %v8321 = vmul.f32 %v8230, 1.442695
      %v8322 = vpow.pop %v8321
      %v8323 = vmul.f32 %v8231, 1.442695
      %v8324 = vpow.pop %v8323
      %v8325 = vmul.f32 %v8232, 1.442695
      %v8326 = vpow.pop %v8325
      %v8327 = vmul.f32 %v8233, 1.442695
      %v8328 = vpow.pop %v8327
      %v8329 = vmul.f32 %v8234, 1.442695
      %v8330 = vpow.pop %v8329
      %v8331 = vmul.f32 %v8235, 1.442695
      %v8332 = vpow.pop %v8331
      %v8333 = vmul.f32 %v8236, 1.442695
      %v8334 = vpow.pop %v8333
      %v8335 = vmul.f32 %v8237, 1.442695
      %v8336 = vpow.pop %v8335
      %v8337 = vmul.f32 %v8238, 1.442695
      %v8338 = vpow.pop %v8337
      %v8339 = vmul.f32 %v8239, 1.442695
      %v8340 = vpow.pop %v8339
      %v8341 = vmul.f32 %v8240, 1.442695
      %v8342 = vpow.pop %v8341
      %v8343 = vmul.f32 %v8241, 1.442695
      %v8344 = vpow.pop %v8343
      %v8345 = vmul.f32 %v8242, 1.442695
      %v8346 = vpow.pop %v8345
      %v8347 = vmul.f32 %v8243, 1.442695
      %v8348 = vpow.pop %v8347
      %v8349 = vmul.f32 %v8244, 1.442695
      %v8350 = vpow.pop %v8349
      %v8351 = vmul.f32 %v8245, 1.442695
      %v8352 = vpow.pop %v8351
      %v8353 = vmul.f32 %v8246, 1.442695
      %v8354 = vpow.pop %v8353
      %v8355 = vmul.f32 %v8247, 1.442695
      %v8356 = vpow.pop %v8355
      %v8357 = vmul.f32 %v8248, 1.442695
      %v8358 = vpow.pop %v8357
      %v8359 = vmul.f32 %v8249, 1.442695
      %v8360 = vpow.pop %v8359
      %v8361 = vmul.f32 %v8250, 1.442695
      %v8362 = vpow.pop %v8361
      %v8363 = vmul.f32 %v8251, 1.442695
      %v8364 = vpow.pop %v8363
      %v8365 = vmul.f32 %v8252, 1.442695
      %v8366 = vpow.pop %v8365
      %v8367 = vmul.f32 %v8253, 1.442695
      %v8368 = vpow.pop %v8367
      %v8369 = vmul.f32 %v8254, 1.442695
      %v8370 = vpow.pop %v8369
      %v8371 = vmul.f32 %v8255, 1.442695
      %v8372 = vpow.pop %v8371
      %v8373 = vmul.f32 %v8256, 1.442695
      %v8374 = vpow.pop %v8373
      %v8375 = vmul.f32 %v8257, 1.442695
      %v8376 = vpow.pop %v8375
      %v8377 = vmul.f32 %v8258, 1.442695
      %v8378 = vpow.pop %v8377
      %v8379 = vmul.f32 %v8259, 1.442695
      %v8380 = vpow.pop %v8379
      %v8381 = vmul.f32 %v8260, 1.442695
      %v8382 = vpow.pop %v8381
      %v8383 = vmul.f32 %v8261, 1.442695
      %v8384 = vpow.pop %v8383
      %v8385 = vmul.f32 %v8262, 1.442695
      %v8386 = vpow.pop %v8385
      %v8387 = vmul.f32 %v8263, 1.442695
      %v8388 = vpow.pop %v8387
      %v8389 = vmul.f32 %v8264, 1.442695
      %v8390 = vpow.pop %v8389
      %v8391 = vmul.f32 %v8265, 1.442695
      %v8392 = vpow.pop %v8391
      %v8393 = vmul.f32 %v8266, 1.442695
      %v8394 = vpow.pop %v8393
      %v8395 = vadd.f32 %v8268, %v8270
      %8396 = vadd.xlane.f32.xlu0 %v8395
      %v8397 = vpop.xlane.xlu0 %8396
      %v8398 = vadd.f32 %v8272, %v8274
      %8399 = vadd.xlane.f32.xlu0 %v8398
      %v8400 = vpop.xlane.xlu0 %8399
      %v8401 = vadd.f32 %v8276, %v8278
      %8402 = vadd.xlane.f32.xlu0 %v8401
      %v8403 = vpop.xlane.xlu0 %8402
      %v8404 = vadd.f32 %v8280, %v8282
      %8405 = vadd.xlane.f32.xlu0 %v8404
      %v8406 = vpop.xlane.xlu0 %8405
      %v8407 = vadd.f32 %v8284, %v8286
      %8408 = vadd.xlane.f32.xlu0 %v8407
      %v8409 = vpop.xlane.xlu0 %8408
      %v8410 = vadd.f32 %v8288, %v8290
      %8411 = vadd.xlane.f32.xlu0 %v8410
      %v8412 = vpop.xlane.xlu0 %8411
      %v8413 = vadd.f32 %v8292, %v8294
      %8414 = vadd.xlane.f32.xlu0 %v8413
      %v8415 = vpop.xlane.xlu0 %8414
      %v8416 = vadd.f32 %v8296, %v8298
      %8417 = vadd.xlane.f32.xlu0 %v8416
      %v8418 = vpop.xlane.xlu0 %8417
      %v8419 = vadd.f32 %v8300, %v8302
      %8420 = vadd.xlane.f32.xlu0 %v8419
      %v8421 = vpop.xlane.xlu0 %8420
      %v8422 = vadd.f32 %v8304, %v8306
      %8423 = vadd.xlane.f32.xlu0 %v8422
      %v8424 = vpop.xlane.xlu0 %8423
      %v8425 = vadd.f32 %v8308, %v8310
      %8426 = vadd.xlane.f32.xlu0 %v8425
      %v8427 = vpop.xlane.xlu0 %8426
      %v8428 = vadd.f32 %v8312, %v8314
      %8429 = vadd.xlane.f32.xlu0 %v8428
      %v8430 = vpop.xlane.xlu0 %8429
      %v8431 = vadd.f32 %v8316, %v8318
      %8432 = vadd.xlane.f32.xlu0 %v8431
      %v8433 = vpop.xlane.xlu0 %8432
      %v8434 = vadd.f32 %v8320, %v8322
      %8435 = vadd.xlane.f32.xlu0 %v8434
      %v8436 = vpop.xlane.xlu0 %8435
      %v8437 = vadd.f32 %v8324, %v8326
      %8438 = vadd.xlane.f32.xlu0 %v8437
      %v8439 = vpop.xlane.xlu0 %8438
      %v8440 = vadd.f32 %v8328, %v8330
      %8441 = vadd.xlane.f32.xlu0 %v8440
      %v8442 = vpop.xlane.xlu0 %8441
      %v8443 = vadd.f32 %v8332, %v8334
      %8444 = vadd.xlane.f32.xlu0 %v8443
      %v8445 = vpop.xlane.xlu0 %8444
      %v8446 = vadd.f32 %v8336, %v8338
      %8447 = vadd.xlane.f32.xlu0 %v8446
      %v8448 = vpop.xlane.xlu0 %8447
      %v8449 = vadd.f32 %v8340, %v8342
      %8450 = vadd.xlane.f32.xlu0 %v8449
      %v8451 = vpop.xlane.xlu0 %8450
      %v8452 = vadd.f32 %v8344, %v8346
      %8453 = vadd.xlane.f32.xlu0 %v8452
      %v8454 = vpop.xlane.xlu0 %8453
      %v8455 = vadd.f32 %v8348, %v8350
      %8456 = vadd.xlane.f32.xlu0 %v8455
      %v8457 = vpop.xlane.xlu0 %8456
      %v8458 = vadd.f32 %v8352, %v8354
      %8459 = vadd.xlane.f32.xlu0 %v8458
      %v8460 = vpop.xlane.xlu0 %8459
      %v8461 = vadd.f32 %v8356, %v8358
      %8462 = vadd.xlane.f32.xlu0 %v8461
      %v8463 = vpop.xlane.xlu0 %8462
      %v8464 = vadd.f32 %v8360, %v8362
      %8465 = vadd.xlane.f32.xlu0 %v8464
      %v8466 = vpop.xlane.xlu0 %8465
      %v8467 = vadd.f32 %v8364, %v8366
      %8468 = vadd.xlane.f32.xlu0 %v8467
      %v8469 = vpop.xlane.xlu0 %8468
      %v8470 = vadd.f32 %v8368, %v8370
      %8471 = vadd.xlane.f32.xlu0 %v8470
      %v8472 = vpop.xlane.xlu0 %8471
      %v8473 = vadd.f32 %v8372, %v8374
      %8474 = vadd.xlane.f32.xlu0 %v8473
      %v8475 = vpop.xlane.xlu0 %8474
      %v8476 = vadd.f32 %v8376, %v8378
      %8477 = vadd.xlane.f32.xlu0 %v8476
      %v8478 = vpop.xlane.xlu0 %8477
      %v8479 = vadd.f32 %v8380, %v8382
      %8480 = vadd.xlane.f32.xlu0 %v8479
      %v8481 = vpop.xlane.xlu0 %8480
      %v8482 = vadd.f32 %v8384, %v8386
      %8483 = vadd.xlane.f32.xlu0 %v8482
      %v8484 = vpop.xlane.xlu0 %8483
      %v8485 = vadd.f32 %v8388, %v8390
      %8486 = vadd.xlane.f32.xlu0 %v8485
      %v8487 = vpop.xlane.xlu0 %8486
      %v8488 = vadd.f32 %v8392, %v8394
      %8489 = vadd.xlane.f32.xlu0 %v8488
      %v8490 = vpop.xlane.xlu0 %8489
      %v8491 = vrcp.pop %v8397
      %v8492 = vrcp.pop %v8400
      %v8493 = vrcp.pop %v8403
      %v8494 = vrcp.pop %v8406
      %v8495 = vrcp.pop %v8409
      %v8496 = vrcp.pop %v8412
      %v8497 = vrcp.pop %v8415
      %v8498 = vrcp.pop %v8418
      %v8499 = vrcp.pop %v8421
      %v8500 = vrcp.pop %v8424
      %v8501 = vrcp.pop %v8427
      %v8502 = vrcp.pop %v8430
      %v8503 = vrcp.pop %v8433
      %v8504 = vrcp.pop %v8436
      %v8505 = vrcp.pop %v8439
      %v8506 = vrcp.pop %v8442
      %v8507 = vrcp.pop %v8445
      %v8508 = vrcp.pop %v8448
      %v8509 = vrcp.pop %v8451
      %v8510 = vrcp.pop %v8454
      %v8511 = vrcp.pop %v8457
      %v8512 = vrcp.pop %v8460
      %v8513 = vrcp.pop %v8463
      %v8514 = vrcp.pop %v8466
      %v8515 = vrcp.pop %v8469
      %v8516 = vrcp.pop %v8472
      %v8517 = vrcp.pop %v8475
      %v8518 = vrcp.pop %v8478
      %v8519 = vrcp.pop %v8481
      %v8520 = vrcp.pop %v8484
      %v8521 = vrcp.pop %v8487
      %v8522 = vrcp.pop %v8490
      %v8523 = vmul.f32 %v8268, %v8491
      %v8524 = vmul.f32 %v8270, %v8491
      %v8525 = vmul.f32 %v8272, %v8492
      %v8526 = vmul.f32 %v8274, %v8492
      %v8527 = vmul.f32 %v8276, %v8493
      %v8528 = vmul.f32 %v8278, %v8493
      %v8529 = vmul.f32 %v8280, %v8494
      %v8530 = vmul.f32 %v8282, %v8494
      %v8531 = vmul.f32 %v8284, %v8495
      %v8532 = vmul.f32 %v8286, %v8495
      %v8533 = vmul.f32 %v8288, %v8496
      %v8534 = vmul.f32 %v8290, %v8496
      %v8535 = vmul.f32 %v8292, %v8497
      %v8536 = vmul.f32 %v8294, %v8497
      %v8537 = vmul.f32 %v8296, %v8498
      %v8538 = vmul.f32 %v8298, %v8498
      %v8539 = vmul.f32 %v8300, %v8499
      %v8540 = vmul.f32 %v8302, %v8499
      %v8541 = vmul.f32 %v8304, %v8500
      %v8542 = vmul.f32 %v8306, %v8500
      %v8543 = vmul.f32 %v8308, %v8501
      %v8544 = vmul.f32 %v8310, %v8501
      %v8545 = vmul.f32 %v8312, %v8502
      %v8546 = vmul.f32 %v8314, %v8502
      %v8547 = vmul.f32 %v8316, %v8503
      %v8548 = vmul.f32 %v8318, %v8503
      %v8549 = vmul.f32 %v8320, %v8504
      %v8550 = vmul.f32 %v8322, %v8504
      %v8551 = vmul.f32 %v8324, %v8505
      %v8552 = vmul.f32 %v8326, %v8505
      %v8553 = vmul.f32 %v8328, %v8506
      %v8554 = vmul.f32 %v8330, %v8506
      %v8555 = vmul.f32 %v8332, %v8507
      %v8556 = vmul.f32 %v8334, %v8507
      %v8557 = vmul.f32 %v8336, %v8508
      %v8558 = vmul.f32 %v8338, %v8508
      %v8559 = vmul.f32 %v8340, %v8509
      %v8560 = vmul.f32 %v8342, %v8509
      %v8561 = vmul.f32 %v8344, %v8510
      %v8562 = vmul.f32 %v8346, %v8510
      %v8563 = vmul.f32 %v8348, %v8511
      %v8564 = vmul.f32 %v8350, %v8511
      %v8565 = vmul.f32 %v8352, %v8512
      %v8566 = vmul.f32 %v8354, %v8512
      %v8567 = vmul.f32 %v8356, %v8513
      %v8568 = vmul.f32 %v8358, %v8513
      %v8569 = vmul.f32 %v8360, %v8514
      %v8570 = vmul.f32 %v8362, %v8514
      %v8571 = vmul.f32 %v8364, %v8515
      %v8572 = vmul.f32 %v8366, %v8515
      %v8573 = vmul.f32 %v8368, %v8516
      %v8574 = vmul.f32 %v8370, %v8516
      %v8575 = vmul.f32 %v8372, %v8517
      %v8576 = vmul.f32 %v8374, %v8517
      %v8577 = vmul.f32 %v8376, %v8518
      %v8578 = vmul.f32 %v8378, %v8518
      %v8579 = vmul.f32 %v8380, %v8519
      %v8580 = vmul.f32 %v8382, %v8519
      %v8581 = vmul.f32 %v8384, %v8520
      %v8582 = vmul.f32 %v8386, %v8520
      %v8583 = vmul.f32 %v8388, %v8521
      %v8584 = vmul.f32 %v8390, %v8521
      %v8585 = vmul.f32 %v8392, %v8522
      %v8586 = vmul.f32 %v8394, %v8522
      %8587 = vrot.lane.b32.xlu0 %v565, 76
      %v8588 = vpop.permute.xlu0 %8587
      %8589 = vrot.lane.b32.xlu0 %v570, 76
      %v8590 = vpop.permute.xlu0 %8589
      %8591 = vrot.lane.b32.xlu0 %v575, 76
      %v8592 = vpop.permute.xlu0 %8591
      %8593 = vrot.lane.b32.xlu0 %v580, 76
      %v8594 = vpop.permute.xlu0 %8593
      %8595 = vrot.lane.b32.xlu0 %v585, 76
      %v8596 = vpop.permute.xlu0 %8595
      %8597 = vrot.lane.b32.xlu0 %v590, 76
      %v8598 = vpop.permute.xlu0 %8597
      %8599 = vrot.lane.b32.xlu0 %v595, 76
      %v8600 = vpop.permute.xlu0 %8599
      %8601 = vrot.lane.b32.xlu0 %v600, 76
      %v8602 = vpop.permute.xlu0 %8601
      %8603 = vrot.lane.b32.xlu0 %v605, 76
      %v8604 = vpop.permute.xlu0 %8603
      %8605 = vrot.lane.b32.xlu0 %v610, 76
      %v8606 = vpop.permute.xlu0 %8605
      %8607 = vrot.lane.b32.xlu0 %v615, 76
      %v8608 = vpop.permute.xlu0 %8607
      %8609 = vrot.lane.b32.xlu0 %v620, 76
      %v8610 = vpop.permute.xlu0 %8609
      %8611 = vrot.lane.b32.xlu0 %v625, 76
      %v8612 = vpop.permute.xlu0 %8611
      %8613 = vrot.lane.b32.xlu0 %v630, 76
      %v8614 = vpop.permute.xlu0 %8613
      %8615 = vrot.lane.b32.xlu0 %v635, 76
      %v8616 = vpop.permute.xlu0 %8615
      %8617 = vrot.lane.b32.xlu0 %v640, 76
      %v8618 = vpop.permute.xlu0 %8617
      %8619 = vrot.lane.b32.xlu0 %v645, 76
      %v8620 = vpop.permute.xlu0 %8619
      %8621 = vrot.lane.b32.xlu0 %v650, 76
      %v8622 = vpop.permute.xlu0 %8621
      %8623 = vrot.lane.b32.xlu0 %v655, 76
      %v8624 = vpop.permute.xlu0 %8623
      %8625 = vrot.lane.b32.xlu0 %v660, 76
      %v8626 = vpop.permute.xlu0 %8625
      %8627 = vrot.lane.b32.xlu0 %v665, 76
      %v8628 = vpop.permute.xlu0 %8627
      %8629 = vrot.lane.b32.xlu0 %v670, 76
      %v8630 = vpop.permute.xlu0 %8629
      %8631 = vrot.lane.b32.xlu0 %v675, 76
      %v8632 = vpop.permute.xlu0 %8631
      %8633 = vrot.lane.b32.xlu0 %v680, 76
      %v8634 = vpop.permute.xlu0 %8633
      %8635 = vrot.lane.b32.xlu0 %v685, 76
      %v8636 = vpop.permute.xlu0 %8635
      %8637 = vrot.lane.b32.xlu0 %v690, 76
      %v8638 = vpop.permute.xlu0 %8637
      %8639 = vrot.lane.b32.xlu0 %v695, 76
      %v8640 = vpop.permute.xlu0 %8639
      %8641 = vrot.lane.b32.xlu0 %v700, 76
      %v8642 = vpop.permute.xlu0 %8641
      %8643 = vrot.lane.b32.xlu0 %v705, 76
      %v8644 = vpop.permute.xlu0 %8643
      %8645 = vrot.lane.b32.xlu0 %v710, 76
      %v8646 = vpop.permute.xlu0 %8645
      %8647 = vrot.lane.b32.xlu0 %v715, 76
      %v8648 = vpop.permute.xlu0 %8647
      %8649 = vrot.lane.b32.xlu0 %v720, 76
      %v8650 = vpop.permute.xlu0 %8649
      %8683 = vmatprep.subr.mxu0 0.0
      %8684 = vmatpush1.msra.mxu0 %v8618
      %8685 = vmatprep.subr.mxu0 0.0
      %8686 = vmatpush1.msra.mxu0 %v8616
      %8687 = vmatprep.subr.mxu0 0.0
      %8688 = vmatpush1.msra.mxu0 %v8614
      %8689 = vmatprep.subr.mxu0 0.0
      %8690 = vmatpush1.msra.mxu0 %v8612
      %8691 = vmatprep.subr.mxu0 0.0
      %8692 = vmatpush1.msra.mxu0 %v8610
      %8693 = vmatprep.subr.mxu0 0.0
      %8694 = vmatpush1.msra.mxu0 %v8608
      %8695 = vmatprep.subr.mxu0 0.0
      %8696 = vmatpush1.msra.mxu0 %v8606
      %8697 = vmatprep.subr.mxu0 0.0
      %8698 = vmatpush1.msra.mxu0 %v8604
      %8699 = vmatprep.subr.mxu0 0.0
      %8700 = vmatpush1.msra.mxu0 %v8602
      %8701 = vmatprep.subr.mxu0 0.0
      %8702 = vmatpush1.msra.mxu0 %v8600
      %8703 = vmatprep.subr.mxu0 0.0
      %8704 = vmatpush1.msra.mxu0 %v8598
      %8705 = vmatprep.subr.mxu0 0.0
      %8706 = vmatpush1.msra.mxu0 %v8596
      %8707 = vmatprep.subr.mxu0 0.0
      %8708 = vmatpush1.msra.mxu0 %v8594
      %8709 = vmatprep.subr.mxu0 0.0
      %8710 = vmatpush1.msra.mxu0 %v8592
      %8711 = vmatprep.subr.mxu0 0.0
      %8712 = vmatpush1.msra.mxu0 %v8590
      %8713 = vmatprep.subr.mxu0 0.0
      %8714 = vmatpush1.msra.mxu0 %v8588
      %8715 = vmatprep.subr.mxu0 0.0
      %8716 = vmatpush2.msra.mxu0 %v8650
      %8717 = vmatprep.subr.mxu0 0.0
      %8718 = vmatpush2.msra.mxu0 %v8648
      %8719 = vmatprep.subr.mxu0 0.0
      %8720 = vmatpush2.msra.mxu0 %v8646
      %8721 = vmatprep.subr.mxu0 0.0
      %8722 = vmatpush2.msra.mxu0 %v8644
      %8723 = vmatprep.subr.mxu0 0.0
      %8724 = vmatpush2.msra.mxu0 %v8642
      %8725 = vmatprep.subr.mxu0 0.0
      %8726 = vmatpush2.msra.mxu0 %v8640
      %8727 = vmatprep.subr.mxu0 0.0
      %8728 = vmatpush2.msra.mxu0 %v8638
      %8729 = vmatprep.subr.mxu0 0.0
      %8730 = vmatpush2.msra.mxu0 %v8636
      %8731 = vmatprep.subr.mxu0 0.0
      %8732 = vmatpush2.msra.mxu0 %v8634
      %8733 = vmatprep.subr.mxu0 0.0
      %8734 = vmatpush2.msra.mxu0 %v8632
      %8735 = vmatprep.subr.mxu0 0.0
      %8736 = vmatpush2.msra.mxu0 %v8630
      %8737 = vmatprep.subr.mxu0 0.0
      %8738 = vmatpush2.msra.mxu0 %v8628
      %8739 = vmatprep.subr.mxu0 0.0
      %8740 = vmatpush2.msra.mxu0 %v8626
      %8741 = vmatprep.subr.mxu0 0.0
      %8742 = vmatpush2.msra.mxu0 %v8624
      %8743 = vmatprep.subr.mxu0 0.0
      %8744 = vmatpush2.msra.mxu0 %v8622
      %8745 = vmatprep.subr.mxu0 0.0
      %8746 = vmatpush2.msra.mxu0 %v8620
      %8747 = vmatprep.mubr.f32.mxu0 %v8524
      %8748 = vmatmul.mubr.f32.gmra.mxu0 %v8523
      %v8749 = vpop.f32.mrf.mxu0
      %v8750 = vadd.f32 0.0, %v8749
      %v8751 = vpop.f32.mrf.mxu0
      %8752 = vmatprep.mubr.f32.mxu0 %v8526
      %8753 = vmatmul.mubr.f32.gmra.mxu0 %v8525
      %v8754 = vpop.f32.mrf.mxu0
      %v8755 = vadd.f32 0.0, %v8754
      %v8756 = vpop.f32.mrf.mxu0
      %8757 = vmatprep.mubr.f32.mxu0 %v8528
      %8758 = vmatmul.mubr.f32.gmra.mxu0 %v8527
      %v8759 = vpop.f32.mrf.mxu0
      %v8760 = vadd.f32 0.0, %v8759
      %v8761 = vpop.f32.mrf.mxu0
      %8762 = vmatprep.mubr.f32.mxu0 %v8530
      %8763 = vmatmul.mubr.f32.gmra.mxu0 %v8529
      %v8764 = vpop.f32.mrf.mxu0
      %v8765 = vadd.f32 0.0, %v8764
      %v8766 = vpop.f32.mrf.mxu0
      %8767 = vmatprep.mubr.f32.mxu0 %v8532
      %8768 = vmatmul.mubr.f32.gmra.mxu0 %v8531
      %v8769 = vpop.f32.mrf.mxu0
      %v8770 = vadd.f32 0.0, %v8769
      %v8771 = vpop.f32.mrf.mxu0
      %8772 = vmatprep.mubr.f32.mxu0 %v8534
      %8773 = vmatmul.mubr.f32.gmra.mxu0 %v8533
      %v8774 = vpop.f32.mrf.mxu0
      %v8775 = vadd.f32 0.0, %v8774
      %v8776 = vpop.f32.mrf.mxu0
      %8777 = vmatprep.mubr.f32.mxu0 %v8536
      %8778 = vmatmul.mubr.f32.gmra.mxu0 %v8535
      %v8779 = vpop.f32.mrf.mxu0
      %v8780 = vadd.f32 0.0, %v8779
      %v8781 = vpop.f32.mrf.mxu0
      %8782 = vmatprep.mubr.f32.mxu0 %v8538
      %8783 = vmatmul.mubr.f32.gmra.mxu0 %v8537
      %v8784 = vpop.f32.mrf.mxu0
      %v8785 = vadd.f32 0.0, %v8784
      %v8786 = vpop.f32.mrf.mxu0
      %8787 = vmatprep.mubr.f32.mxu0 %v8540
      %8788 = vmatmul.mubr.f32.gmra.mxu0 %v8539
      %v8789 = vpop.f32.mrf.mxu0
      %v8790 = vadd.f32 0.0, %v8789
      %v8791 = vpop.f32.mrf.mxu0
      %8792 = vmatprep.mubr.f32.mxu0 %v8542
      %8793 = vmatmul.mubr.f32.gmra.mxu0 %v8541
      %v8794 = vpop.f32.mrf.mxu0
      %v8795 = vadd.f32 0.0, %v8794
      %v8796 = vpop.f32.mrf.mxu0
      %8797 = vmatprep.mubr.f32.mxu0 %v8544
      %8798 = vmatmul.mubr.f32.gmra.mxu0 %v8543
      %v8799 = vpop.f32.mrf.mxu0
      %v8800 = vadd.f32 0.0, %v8799
      %v8801 = vpop.f32.mrf.mxu0
      %8802 = vmatprep.mubr.f32.mxu0 %v8546
      %8803 = vmatmul.mubr.f32.gmra.mxu0 %v8545
      %v8804 = vpop.f32.mrf.mxu0
      %v8805 = vadd.f32 0.0, %v8804
      %v8806 = vpop.f32.mrf.mxu0
      %8807 = vmatprep.mubr.f32.mxu0 %v8548
      %8808 = vmatmul.mubr.f32.gmra.mxu0 %v8547
      %v8809 = vpop.f32.mrf.mxu0
      %v8810 = vadd.f32 0.0, %v8809
      %v8811 = vpop.f32.mrf.mxu0
      %8812 = vmatprep.mubr.f32.mxu0 %v8550
      %8813 = vmatmul.mubr.f32.gmra.mxu0 %v8549
      %v8814 = vpop.f32.mrf.mxu0
      %v8815 = vadd.f32 0.0, %v8814
      %v8816 = vpop.f32.mrf.mxu0
      %8817 = vmatprep.mubr.f32.mxu0 %v8552
      %8818 = vmatmul.mubr.f32.gmra.mxu0 %v8551
      %v8819 = vpop.f32.mrf.mxu0
      %v8820 = vadd.f32 0.0, %v8819
      %v8821 = vpop.f32.mrf.mxu0
      %8822 = vmatprep.mubr.f32.mxu0 %v8554
      %8823 = vmatmul.mubr.f32.gmra.mxu0 %v8553
      %v8824 = vpop.f32.mrf.mxu0
      %v8825 = vadd.f32 0.0, %v8824
      %v8826 = vpop.f32.mrf.mxu0
      %8827 = vmatprep.mubr.f32.mxu0 %v8556
      %8828 = vmatmul.mubr.f32.gmra.mxu0 %v8555
      %v8829 = vpop.f32.mrf.mxu0
      %v8830 = vadd.f32 0.0, %v8829
      %v8831 = vpop.f32.mrf.mxu0
      %8832 = vmatprep.mubr.f32.mxu0 %v8558
      %8833 = vmatmul.mubr.f32.gmra.mxu0 %v8557
      %v8834 = vpop.f32.mrf.mxu0
      %v8835 = vadd.f32 0.0, %v8834
      %v8836 = vpop.f32.mrf.mxu0
      %8837 = vmatprep.mubr.f32.mxu0 %v8560
      %8838 = vmatmul.mubr.f32.gmra.mxu0 %v8559
      %v8839 = vpop.f32.mrf.mxu0
      %v8840 = vadd.f32 0.0, %v8839
      %v8841 = vpop.f32.mrf.mxu0
      %8842 = vmatprep.mubr.f32.mxu0 %v8562
      %8843 = vmatmul.mubr.f32.gmra.mxu0 %v8561
      %v8844 = vpop.f32.mrf.mxu0
      %v8845 = vadd.f32 0.0, %v8844
      %v8846 = vpop.f32.mrf.mxu0
      %8847 = vmatprep.mubr.f32.mxu0 %v8564
      %8848 = vmatmul.mubr.f32.gmra.mxu0 %v8563
      %v8849 = vpop.f32.mrf.mxu0
      %v8850 = vadd.f32 0.0, %v8849
      %v8851 = vpop.f32.mrf.mxu0
      %8852 = vmatprep.mubr.f32.mxu0 %v8566
      %8853 = vmatmul.mubr.f32.gmra.mxu0 %v8565
      %v8854 = vpop.f32.mrf.mxu0
      %v8855 = vadd.f32 0.0, %v8854
      %v8856 = vpop.f32.mrf.mxu0
      %8857 = vmatprep.mubr.f32.mxu0 %v8568
      %8858 = vmatmul.mubr.f32.gmra.mxu0 %v8567
      %v8859 = vpop.f32.mrf.mxu0
      %v8860 = vadd.f32 0.0, %v8859
      %v8861 = vpop.f32.mrf.mxu0
      %8862 = vmatprep.mubr.f32.mxu0 %v8570
      %8863 = vmatmul.mubr.f32.gmra.mxu0 %v8569
      %v8864 = vpop.f32.mrf.mxu0
      %v8865 = vadd.f32 0.0, %v8864
      %v8866 = vpop.f32.mrf.mxu0
      %8867 = vmatprep.mubr.f32.mxu0 %v8572
      %8868 = vmatmul.mubr.f32.gmra.mxu0 %v8571
      %v8869 = vpop.f32.mrf.mxu0
      %v8870 = vadd.f32 0.0, %v8869
      %v8871 = vpop.f32.mrf.mxu0
      %8872 = vmatprep.mubr.f32.mxu0 %v8574
      %8873 = vmatmul.mubr.f32.gmra.mxu0 %v8573
      %v8874 = vpop.f32.mrf.mxu0
      %v8875 = vadd.f32 0.0, %v8874
      %v8876 = vpop.f32.mrf.mxu0
      %8877 = vmatprep.mubr.f32.mxu0 %v8576
      %8878 = vmatmul.mubr.f32.gmra.mxu0 %v8575
      %v8879 = vpop.f32.mrf.mxu0
      %v8880 = vadd.f32 0.0, %v8879
      %v8881 = vpop.f32.mrf.mxu0
      %8882 = vmatprep.mubr.f32.mxu0 %v8578
      %8883 = vmatmul.mubr.f32.gmra.mxu0 %v8577
      %v8884 = vpop.f32.mrf.mxu0
      %v8885 = vadd.f32 0.0, %v8884
      %v8886 = vpop.f32.mrf.mxu0
      %8887 = vmatprep.mubr.f32.mxu0 %v8580
      %8888 = vmatmul.mubr.f32.gmra.mxu0 %v8579
      %v8889 = vpop.f32.mrf.mxu0
      %v8890 = vadd.f32 0.0, %v8889
      %v8891 = vpop.f32.mrf.mxu0
      %8892 = vmatprep.mubr.f32.mxu0 %v8582
      %8893 = vmatmul.mubr.f32.gmra.mxu0 %v8581
      %v8894 = vpop.f32.mrf.mxu0
      %v8895 = vadd.f32 0.0, %v8894
      %v8896 = vpop.f32.mrf.mxu0
      %8897 = vmatprep.mubr.f32.mxu0 %v8584
      %8898 = vmatmul.mubr.f32.gmra.mxu0 %v8583
      %v8899 = vpop.f32.mrf.mxu0
      %v8900 = vadd.f32 0.0, %v8899
      %v8901 = vpop.f32.mrf.mxu0
      %8902 = vmatprep.mubr.f32.mxu0 %v8586
      %8903 = vmatmul.mubr.f32.gmra.mxu0 %v8585
      %v8904 = vpop.f32.mrf.mxu0
      %v8905 = vadd.f32 0.0, %v8904
      %v8906 = vpop.f32.mrf.mxu0
      %8907 = vdwg.mxu0
      %8908 = vrot.lane.b32.xlu0 %v1055, 104
      %v8909 = vpop.permute.xlu0 %8908
      %8910 = vrot.lane.b32.xlu0 %v1056, 104
      %v8911 = vpop.permute.xlu0 %8910
      %8912 = vrot.lane.b32.xlu0 %v1057, 104
      %v8913 = vpop.permute.xlu0 %8912
      %8914 = vrot.lane.b32.xlu0 %v1058, 104
      %v8915 = vpop.permute.xlu0 %8914
      %8916 = vrot.lane.b32.xlu0 %v1059, 104
      %v8917 = vpop.permute.xlu0 %8916
      %8918 = vrot.lane.b32.xlu0 %v1060, 104
      %v8919 = vpop.permute.xlu0 %8918
      %8920 = vrot.lane.b32.xlu0 %v1061, 104
      %v8921 = vpop.permute.xlu0 %8920
      %8922 = vrot.lane.b32.xlu0 %v1062, 104
      %v8923 = vpop.permute.xlu0 %8922
      %8924 = vrot.lane.b32.xlu0 %v1063, 104
      %v8925 = vpop.permute.xlu0 %8924
      %8926 = vrot.lane.b32.xlu0 %v1064, 104
      %v8927 = vpop.permute.xlu0 %8926
      %8928 = vrot.lane.b32.xlu0 %v1065, 104
      %v8929 = vpop.permute.xlu0 %8928
      %8930 = vrot.lane.b32.xlu0 %v1066, 104
      %v8931 = vpop.permute.xlu0 %8930
      %8932 = vrot.lane.b32.xlu0 %v1067, 104
      %v8933 = vpop.permute.xlu0 %8932
      %8934 = vrot.lane.b32.xlu0 %v1068, 104
      %v8935 = vpop.permute.xlu0 %8934
      %8936 = vrot.lane.b32.xlu0 %v1069, 104
      %v8937 = vpop.permute.xlu0 %8936
      %8938 = vrot.lane.b32.xlu0 %v1070, 104
      %v8939 = vpop.permute.xlu0 %8938
      %8940 = vrot.lane.b32.xlu0 %v1071, 104
      %v8941 = vpop.permute.xlu0 %8940
      %8942 = vrot.lane.b32.xlu0 %v1072, 104
      %v8943 = vpop.permute.xlu0 %8942
      %8944 = vrot.lane.b32.xlu0 %v1073, 104
      %v8945 = vpop.permute.xlu0 %8944
      %8946 = vrot.lane.b32.xlu0 %v1074, 104
      %v8947 = vpop.permute.xlu0 %8946
      %8948 = vrot.lane.b32.xlu0 %v1075, 104
      %v8949 = vpop.permute.xlu0 %8948
      %8950 = vrot.lane.b32.xlu0 %v1076, 104
      %v8951 = vpop.permute.xlu0 %8950
      %8952 = vrot.lane.b32.xlu0 %v1077, 104
      %v8953 = vpop.permute.xlu0 %8952
      %8954 = vrot.lane.b32.xlu0 %v1078, 104
      %v8955 = vpop.permute.xlu0 %8954
      %8956 = vrot.lane.b32.xlu0 %v1079, 104
      %v8957 = vpop.permute.xlu0 %8956
      %8958 = vrot.lane.b32.xlu0 %v1080, 104
      %v8959 = vpop.permute.xlu0 %8958
      %8960 = vrot.lane.b32.xlu0 %v1081, 104
      %v8961 = vpop.permute.xlu0 %8960
      %8962 = vrot.lane.b32.xlu0 %v1082, 104
      %v8963 = vpop.permute.xlu0 %8962
      %8964 = vrot.lane.b32.xlu0 %v1083, 104
      %v8965 = vpop.permute.xlu0 %8964
      %8966 = vrot.lane.b32.xlu0 %v1084, 104
      %v8967 = vpop.permute.xlu0 %8966
      %8968 = vrot.lane.b32.xlu0 %v1085, 104
      %v8969 = vpop.permute.xlu0 %8968
      %8970 = vrot.lane.b32.xlu0 %v1086, 104
      %v8971 = vpop.permute.xlu0 %8970
      %8972 = vrot.lane.b32.xlu0 %v565, 104
      %v8973 = vpop.permute.xlu0 %8972
      %8974 = vrot.lane.b32.xlu0 %v570, 104
      %v8975 = vpop.permute.xlu0 %8974
      %8976 = vrot.lane.b32.xlu0 %v575, 104
      %v8977 = vpop.permute.xlu0 %8976
      %8978 = vrot.lane.b32.xlu0 %v580, 104
      %v8979 = vpop.permute.xlu0 %8978
      %8980 = vrot.lane.b32.xlu0 %v585, 104
      %v8981 = vpop.permute.xlu0 %8980
      %8982 = vrot.lane.b32.xlu0 %v590, 104
      %v8983 = vpop.permute.xlu0 %8982
      %8984 = vrot.lane.b32.xlu0 %v595, 104
      %v8985 = vpop.permute.xlu0 %8984
      %8986 = vrot.lane.b32.xlu0 %v600, 104
      %v8987 = vpop.permute.xlu0 %8986
      %8988 = vrot.lane.b32.xlu0 %v605, 104
      %v8989 = vpop.permute.xlu0 %8988
      %8990 = vrot.lane.b32.xlu0 %v610, 104
      %v8991 = vpop.permute.xlu0 %8990
      %8992 = vrot.lane.b32.xlu0 %v615, 104
      %v8993 = vpop.permute.xlu0 %8992
      %8994 = vrot.lane.b32.xlu0 %v620, 104
      %v8995 = vpop.permute.xlu0 %8994
      %8996 = vrot.lane.b32.xlu0 %v625, 104
      %v8997 = vpop.permute.xlu0 %8996
      %8998 = vrot.lane.b32.xlu0 %v630, 104
      %v8999 = vpop.permute.xlu0 %8998
      %9000 = vrot.lane.b32.xlu0 %v635, 104
      %v9001 = vpop.permute.xlu0 %9000
      %9002 = vrot.lane.b32.xlu0 %v640, 104
      %v9003 = vpop.permute.xlu0 %9002
      %9004 = vrot.lane.b32.xlu0 %v645, 104
      %v9005 = vpop.permute.xlu0 %9004
      %9006 = vrot.lane.b32.xlu0 %v650, 104
      %v9007 = vpop.permute.xlu0 %9006
      %9008 = vrot.lane.b32.xlu0 %v655, 104
      %v9009 = vpop.permute.xlu0 %9008
      %9010 = vrot.lane.b32.xlu0 %v660, 104
      %v9011 = vpop.permute.xlu0 %9010
      %9012 = vrot.lane.b32.xlu0 %v665, 104
      %v9013 = vpop.permute.xlu0 %9012
      %9014 = vrot.lane.b32.xlu0 %v670, 104
      %v9015 = vpop.permute.xlu0 %9014
      %9016 = vrot.lane.b32.xlu0 %v675, 104
      %v9017 = vpop.permute.xlu0 %9016
      %9018 = vrot.lane.b32.xlu0 %v680, 104
      %v9019 = vpop.permute.xlu0 %9018
      %9020 = vrot.lane.b32.xlu0 %v685, 104
      %v9021 = vpop.permute.xlu0 %9020
      %9022 = vrot.lane.b32.xlu0 %v690, 104
      %v9023 = vpop.permute.xlu0 %9022
      %9024 = vrot.lane.b32.xlu0 %v695, 104
      %v9025 = vpop.permute.xlu0 %9024
      %9026 = vrot.lane.b32.xlu0 %v700, 104
      %v9027 = vpop.permute.xlu0 %9026
      %9028 = vrot.lane.b32.xlu0 %v705, 104
      %v9029 = vpop.permute.xlu0 %9028
      %9030 = vrot.lane.b32.xlu0 %v710, 104
      %v9031 = vpop.permute.xlu0 %9030
      %9032 = vrot.lane.b32.xlu0 %v715, 104
      %v9033 = vpop.permute.xlu0 %9032
      %9034 = vrot.lane.b32.xlu0 %v720, 104
      %v9035 = vpop.permute.xlu0 %9034
      %v9036 = vsel %vm1087, %v8909, 0
      %v9038 = vsel %vm1087, %v8911, 0
      %v9040 = vsel %vm1087, %v8913, 0
      %v9042 = vsel %vm1087, %v8915, 0
      %v9044 = vsel %vm1087, %v8917, 0
      %v9046 = vsel %vm1087, %v8919, 0
      %v9048 = vsel %vm1087, %v8921, 0
      %v9050 = vsel %vm1087, %v8923, 0
      %v9052 = vsel %vm1087, %v8925, 0
      %v9054 = vsel %vm1087, %v8927, 0
      %v9056 = vsel %vm1087, %v8929, 0
      %v9058 = vsel %vm1087, %v8931, 0
      %v9060 = vsel %vm1087, %v8933, 0
      %v9062 = vsel %vm1087, %v8935, 0
      %v9064 = vsel %vm1087, %v8937, 0
      %v9066 = vsel %vm1087, %v8939, 0
      %v9068 = vsel %vm1087, %v8941, 0
      %v9070 = vsel %vm1087, %v8943, 0
      %v9072 = vsel %vm1087, %v8945, 0
      %v9074 = vsel %vm1087, %v8947, 0
      %v9076 = vsel %vm1087, %v8949, 0
      %v9078 = vsel %vm1087, %v8951, 0
      %v9080 = vsel %vm1087, %v8953, 0
      %v9082 = vsel %vm1087, %v8955, 0
      %v9084 = vsel %vm1087, %v8957, 0
      %v9086 = vsel %vm1087, %v8959, 0
      %v9088 = vsel %vm1087, %v8961, 0
      %v9090 = vsel %vm1087, %v8963, 0
      %v9092 = vsel %vm1087, %v8965, 0
      %v9094 = vsel %vm1087, %v8967, 0
      %v9096 = vsel %vm1087, %v8969, 0
      %v9098 = vsel %vm1087, %v8971, 0
      %v9100 = vsel %vm1087, %v8973, 0
      %v9102 = vsel %vm1087, %v8975, 0
      %v9104 = vsel %vm1087, %v8977, 0
      %v9106 = vsel %vm1087, %v8979, 0
      %v9108 = vsel %vm1087, %v8981, 0
      %v9110 = vsel %vm1087, %v8983, 0
      %v9112 = vsel %vm1087, %v8985, 0
      %v9114 = vsel %vm1087, %v8987, 0
      %v9116 = vsel %vm1087, %v8989, 0
      %v9118 = vsel %vm1087, %v8991, 0
      %v9120 = vsel %vm1087, %v8993, 0
      %v9122 = vsel %vm1087, %v8995, 0
      %v9124 = vsel %vm1087, %v8997, 0
      %v9126 = vsel %vm1087, %v8999, 0
      %v9128 = vsel %vm1087, %v9001, 0
      %v9130 = vsel %vm1087, %v9003, 0
      %v9132 = vsel %vm1087, %v9005, 0
      %v9134 = vsel %vm1087, %v9007, 0
      %v9136 = vsel %vm1087, %v9009, 0
      %v9138 = vsel %vm1087, %v9011, 0
      %v9140 = vsel %vm1087, %v9013, 0
      %v9142 = vsel %vm1087, %v9015, 0
      %v9144 = vsel %vm1087, %v9017, 0
      %v9146 = vsel %vm1087, %v9019, 0
      %v9148 = vsel %vm1087, %v9021, 0
      %v9150 = vsel %vm1087, %v9023, 0
      %v9152 = vsel %vm1087, %v9025, 0
      %v9154 = vsel %vm1087, %v9027, 0
      %v9156 = vsel %vm1087, %v9029, 0
      %v9158 = vsel %vm1087, %v9031, 0
      %v9160 = vsel %vm1087, %v9033, 0
      %v9162 = vsel %vm1087, %v9035, 0
      %9164 = vmatprep.subr.mxu0 0.0
      %9165 = vmatpush1.xpose.msra.mxu0 %v9130
      %9166 = vmatprep.subr.mxu0 0.0
      %9167 = vmatpush1.xpose.msra.mxu0 %v9128
      %9168 = vmatprep.subr.mxu0 0.0
      %9169 = vmatpush1.xpose.msra.mxu0 %v9126
      %9170 = vmatprep.subr.mxu0 0.0
      %9171 = vmatpush1.xpose.msra.mxu0 %v9124
      %9172 = vmatprep.subr.mxu0 0.0
      %9173 = vmatpush1.xpose.msra.mxu0 %v9122
      %9174 = vmatprep.subr.mxu0 0.0
      %9175 = vmatpush1.xpose.msra.mxu0 %v9120
      %9176 = vmatprep.subr.mxu0 0.0
      %9177 = vmatpush1.xpose.msra.mxu0 %v9118
      %9178 = vmatprep.subr.mxu0 0.0
      %9179 = vmatpush1.xpose.msra.mxu0 %v9116
      %9180 = vmatprep.subr.mxu0 0.0
      %9181 = vmatpush1.xpose.msra.mxu0 %v9114
      %9182 = vmatprep.subr.mxu0 0.0
      %9183 = vmatpush1.xpose.msra.mxu0 %v9112
      %9184 = vmatprep.subr.mxu0 0.0
      %9185 = vmatpush1.xpose.msra.mxu0 %v9110
      %9186 = vmatprep.subr.mxu0 0.0
      %9187 = vmatpush1.xpose.msra.mxu0 %v9108
      %9188 = vmatprep.subr.mxu0 0.0
      %9189 = vmatpush1.xpose.msra.mxu0 %v9106
      %9190 = vmatprep.subr.mxu0 0.0
      %9191 = vmatpush1.xpose.msra.mxu0 %v9104
      %9192 = vmatprep.subr.mxu0 0.0
      %9193 = vmatpush1.xpose.msra.mxu0 %v9102
      %9194 = vmatprep.subr.mxu0 0.0
      %9195 = vmatpush1.xpose.msra.mxu0 %v9100
      %9196 = vmatprep.subr.mxu0 0.0
      %9197 = vmatpush2.xpose.msra.mxu0 %v9162
      %9198 = vmatprep.subr.mxu0 0.0
      %9199 = vmatpush2.xpose.msra.mxu0 %v9160
      %9200 = vmatprep.subr.mxu0 0.0
      %9201 = vmatpush2.xpose.msra.mxu0 %v9158
      %9202 = vmatprep.subr.mxu0 0.0
      %9203 = vmatpush2.xpose.msra.mxu0 %v9156
      %9204 = vmatprep.subr.mxu0 0.0
      %9205 = vmatpush2.xpose.msra.mxu0 %v9154
      %9206 = vmatprep.subr.mxu0 0.0
      %9207 = vmatpush2.xpose.msra.mxu0 %v9152
      %9208 = vmatprep.subr.mxu0 0.0
      %9209 = vmatpush2.xpose.msra.mxu0 %v9150
      %9210 = vmatprep.subr.mxu0 0.0
      %9211 = vmatpush2.xpose.msra.mxu0 %v9148
      %9212 = vmatprep.subr.mxu0 0.0
      %9213 = vmatpush2.xpose.msra.mxu0 %v9146
      %9214 = vmatprep.subr.mxu0 0.0
      %9215 = vmatpush2.xpose.msra.mxu0 %v9144
      %9216 = vmatprep.subr.mxu0 0.0
      %9217 = vmatpush2.xpose.msra.mxu0 %v9142
      %9218 = vmatprep.subr.mxu0 0.0
      %9219 = vmatpush2.xpose.msra.mxu0 %v9140
      %9220 = vmatprep.subr.mxu0 0.0
      %9221 = vmatpush2.xpose.msra.mxu0 %v9138
      %9222 = vmatprep.subr.mxu0 0.0
      %9223 = vmatpush2.xpose.msra.mxu0 %v9136
      %9224 = vmatprep.subr.mxu0 0.0
      %9225 = vmatpush2.xpose.msra.mxu0 %v9134
      %9226 = vmatprep.subr.mxu0 0.0
      %9227 = vmatpush2.xpose.msra.mxu0 %v9132
      %9228 = vmatprep.mubr.f32.mxu0 0.0
      %9229 = vmatmul.mubr.f32.gmra.mxu0 %v9036
      %v9230 = vpop.f32.mrf.mxu0
      %v9231 = vadd.f32 0.0, %v9230
      %v9232 = vpop.f32.mrf.mxu0
      %v9233 = vadd.f32 0.0, %v9232
      %9234 = vmatprep.mubr.f32.mxu0 0.0
      %9235 = vmatmul.mubr.f32.gmra.mxu0 %v9038
      %v9236 = vpop.f32.mrf.mxu0
      %v9237 = vadd.f32 0.0, %v9236
      %v9238 = vpop.f32.mrf.mxu0
      %v9239 = vadd.f32 0.0, %v9238
      %9240 = vmatprep.mubr.f32.mxu0 0.0
      %9241 = vmatmul.mubr.f32.gmra.mxu0 %v9040
      %v9242 = vpop.f32.mrf.mxu0
      %v9243 = vadd.f32 0.0, %v9242
      %v9244 = vpop.f32.mrf.mxu0
      %v9245 = vadd.f32 0.0, %v9244
      %9246 = vmatprep.mubr.f32.mxu0 0.0
      %9247 = vmatmul.mubr.f32.gmra.mxu0 %v9042
      %v9248 = vpop.f32.mrf.mxu0
      %v9249 = vadd.f32 0.0, %v9248
      %v9250 = vpop.f32.mrf.mxu0
      %v9251 = vadd.f32 0.0, %v9250
      %9252 = vmatprep.mubr.f32.mxu0 0.0
      %9253 = vmatmul.mubr.f32.gmra.mxu0 %v9044
      %v9254 = vpop.f32.mrf.mxu0
      %v9255 = vadd.f32 0.0, %v9254
      %v9256 = vpop.f32.mrf.mxu0
      %v9257 = vadd.f32 0.0, %v9256
      %9258 = vmatprep.mubr.f32.mxu0 0.0
      %9259 = vmatmul.mubr.f32.gmra.mxu0 %v9046
      %v9260 = vpop.f32.mrf.mxu0
      %v9261 = vadd.f32 0.0, %v9260
      %v9262 = vpop.f32.mrf.mxu0
      %v9263 = vadd.f32 0.0, %v9262
      %9264 = vmatprep.mubr.f32.mxu0 0.0
      %9265 = vmatmul.mubr.f32.gmra.mxu0 %v9048
      %v9266 = vpop.f32.mrf.mxu0
      %v9267 = vadd.f32 0.0, %v9266
      %v9268 = vpop.f32.mrf.mxu0
      %v9269 = vadd.f32 0.0, %v9268
      %9270 = vmatprep.mubr.f32.mxu0 0.0
      %9271 = vmatmul.mubr.f32.gmra.mxu0 %v9050
      %v9272 = vpop.f32.mrf.mxu0
      %v9273 = vadd.f32 0.0, %v9272
      %v9274 = vpop.f32.mrf.mxu0
      %v9275 = vadd.f32 0.0, %v9274
      %9276 = vmatprep.mubr.f32.mxu0 0.0
      %9277 = vmatmul.mubr.f32.gmra.mxu0 %v9052
      %v9278 = vpop.f32.mrf.mxu0
      %v9279 = vadd.f32 0.0, %v9278
      %v9280 = vpop.f32.mrf.mxu0
      %v9281 = vadd.f32 0.0, %v9280
      %9282 = vmatprep.mubr.f32.mxu0 0.0
      %9283 = vmatmul.mubr.f32.gmra.mxu0 %v9054
      %v9284 = vpop.f32.mrf.mxu0
      %v9285 = vadd.f32 0.0, %v9284
      %v9286 = vpop.f32.mrf.mxu0
      %v9287 = vadd.f32 0.0, %v9286
      %9288 = vmatprep.mubr.f32.mxu0 0.0
      %9289 = vmatmul.mubr.f32.gmra.mxu0 %v9056
      %v9290 = vpop.f32.mrf.mxu0
      %v9291 = vadd.f32 0.0, %v9290
      %v9292 = vpop.f32.mrf.mxu0
      %v9293 = vadd.f32 0.0, %v9292
      %9294 = vmatprep.mubr.f32.mxu0 0.0
      %9295 = vmatmul.mubr.f32.gmra.mxu0 %v9058
      %v9296 = vpop.f32.mrf.mxu0
      %v9297 = vadd.f32 0.0, %v9296
      %v9298 = vpop.f32.mrf.mxu0
      %v9299 = vadd.f32 0.0, %v9298
      %9300 = vmatprep.mubr.f32.mxu0 0.0
      %9301 = vmatmul.mubr.f32.gmra.mxu0 %v9060
      %v9302 = vpop.f32.mrf.mxu0
      %v9303 = vadd.f32 0.0, %v9302
      %v9304 = vpop.f32.mrf.mxu0
      %v9305 = vadd.f32 0.0, %v9304
      %9306 = vmatprep.mubr.f32.mxu0 0.0
      %9307 = vmatmul.mubr.f32.gmra.mxu0 %v9062
      %v9308 = vpop.f32.mrf.mxu0
      %v9309 = vadd.f32 0.0, %v9308
      %v9310 = vpop.f32.mrf.mxu0
      %v9311 = vadd.f32 0.0, %v9310
      %9312 = vmatprep.mubr.f32.mxu0 0.0
      %9313 = vmatmul.mubr.f32.gmra.mxu0 %v9064
      %v9314 = vpop.f32.mrf.mxu0
      %v9315 = vadd.f32 0.0, %v9314
      %v9316 = vpop.f32.mrf.mxu0
      %v9317 = vadd.f32 0.0, %v9316
      %9318 = vmatprep.mubr.f32.mxu0 0.0
      %9319 = vmatmul.mubr.f32.gmra.mxu0 %v9066
      %v9320 = vpop.f32.mrf.mxu0
      %v9321 = vadd.f32 0.0, %v9320
      %v9322 = vpop.f32.mrf.mxu0
      %v9323 = vadd.f32 0.0, %v9322
      %9324 = vmatprep.mubr.f32.mxu0 0.0
      %9325 = vmatmul.mubr.f32.gmra.mxu0 %v9068
      %v9326 = vpop.f32.mrf.mxu0
      %v9327 = vadd.f32 0.0, %v9326
      %v9328 = vpop.f32.mrf.mxu0
      %v9329 = vadd.f32 0.0, %v9328
      %9330 = vmatprep.mubr.f32.mxu0 0.0
      %9331 = vmatmul.mubr.f32.gmra.mxu0 %v9070
      %v9332 = vpop.f32.mrf.mxu0
      %v9333 = vadd.f32 0.0, %v9332
      %v9334 = vpop.f32.mrf.mxu0
      %v9335 = vadd.f32 0.0, %v9334
      %9336 = vmatprep.mubr.f32.mxu0 0.0
      %9337 = vmatmul.mubr.f32.gmra.mxu0 %v9072
      %v9338 = vpop.f32.mrf.mxu0
      %v9339 = vadd.f32 0.0, %v9338
      %v9340 = vpop.f32.mrf.mxu0
      %v9341 = vadd.f32 0.0, %v9340
      %9342 = vmatprep.mubr.f32.mxu0 0.0
      %9343 = vmatmul.mubr.f32.gmra.mxu0 %v9074
      %v9344 = vpop.f32.mrf.mxu0
      %v9345 = vadd.f32 0.0, %v9344
      %v9346 = vpop.f32.mrf.mxu0
      %v9347 = vadd.f32 0.0, %v9346
      %9348 = vmatprep.mubr.f32.mxu0 0.0
      %9349 = vmatmul.mubr.f32.gmra.mxu0 %v9076
      %v9350 = vpop.f32.mrf.mxu0
      %v9351 = vadd.f32 0.0, %v9350
      %v9352 = vpop.f32.mrf.mxu0
      %v9353 = vadd.f32 0.0, %v9352
      %9354 = vmatprep.mubr.f32.mxu0 0.0
      %9355 = vmatmul.mubr.f32.gmra.mxu0 %v9078
      %v9356 = vpop.f32.mrf.mxu0
      %v9357 = vadd.f32 0.0, %v9356
      %v9358 = vpop.f32.mrf.mxu0
      %v9359 = vadd.f32 0.0, %v9358
      %9360 = vmatprep.mubr.f32.mxu0 0.0
      %9361 = vmatmul.mubr.f32.gmra.mxu0 %v9080
      %v9362 = vpop.f32.mrf.mxu0
      %v9363 = vadd.f32 0.0, %v9362
      %v9364 = vpop.f32.mrf.mxu0
      %v9365 = vadd.f32 0.0, %v9364
      %9366 = vmatprep.mubr.f32.mxu0 0.0
      %9367 = vmatmul.mubr.f32.gmra.mxu0 %v9082
      %v9368 = vpop.f32.mrf.mxu0
      %v9369 = vadd.f32 0.0, %v9368
      %v9370 = vpop.f32.mrf.mxu0
      %v9371 = vadd.f32 0.0, %v9370
      %9372 = vmatprep.mubr.f32.mxu0 0.0
      %9373 = vmatmul.mubr.f32.gmra.mxu0 %v9084
      %v9374 = vpop.f32.mrf.mxu0
      %v9375 = vadd.f32 0.0, %v9374
      %v9376 = vpop.f32.mrf.mxu0
      %v9377 = vadd.f32 0.0, %v9376
      %9378 = vmatprep.mubr.f32.mxu0 0.0
      %9379 = vmatmul.mubr.f32.gmra.mxu0 %v9086
      %v9380 = vpop.f32.mrf.mxu0
      %v9381 = vadd.f32 0.0, %v9380
      %v9382 = vpop.f32.mrf.mxu0
      %v9383 = vadd.f32 0.0, %v9382
      %9384 = vmatprep.mubr.f32.mxu0 0.0
      %9385 = vmatmul.mubr.f32.gmra.mxu0 %v9088
      %v9386 = vpop.f32.mrf.mxu0
      %v9387 = vadd.f32 0.0, %v9386
      %v9388 = vpop.f32.mrf.mxu0
      %v9389 = vadd.f32 0.0, %v9388
      %9390 = vmatprep.mubr.f32.mxu0 0.0
      %9391 = vmatmul.mubr.f32.gmra.mxu0 %v9090
      %v9392 = vpop.f32.mrf.mxu0
      %v9393 = vadd.f32 0.0, %v9392
      %v9394 = vpop.f32.mrf.mxu0
      %v9395 = vadd.f32 0.0, %v9394
      %9396 = vmatprep.mubr.f32.mxu0 0.0
      %9397 = vmatmul.mubr.f32.gmra.mxu0 %v9092
      %v9398 = vpop.f32.mrf.mxu0
      %v9399 = vadd.f32 0.0, %v9398
      %v9400 = vpop.f32.mrf.mxu0
      %v9401 = vadd.f32 0.0, %v9400
      %9402 = vmatprep.mubr.f32.mxu0 0.0
      %9403 = vmatmul.mubr.f32.gmra.mxu0 %v9094
      %v9404 = vpop.f32.mrf.mxu0
      %v9405 = vadd.f32 0.0, %v9404
      %v9406 = vpop.f32.mrf.mxu0
      %v9407 = vadd.f32 0.0, %v9406
      %9408 = vmatprep.mubr.f32.mxu0 0.0
      %9409 = vmatmul.mubr.f32.gmra.mxu0 %v9096
      %v9410 = vpop.f32.mrf.mxu0
      %v9411 = vadd.f32 0.0, %v9410
      %v9412 = vpop.f32.mrf.mxu0
      %v9413 = vadd.f32 0.0, %v9412
      %9414 = vmatprep.mubr.f32.mxu0 0.0
      %9415 = vmatmul.mubr.f32.gmra.mxu0 %v9098
      %v9416 = vpop.f32.mrf.mxu0
      %v9417 = vadd.f32 0.0, %v9416
      %v9418 = vpop.f32.mrf.mxu0
      %v9419 = vadd.f32 0.0, %v9418
      %9420 = vdwg.mxu0
      %v9421 = vmax.f32 %v9231, %v9233
      %9422 = vmax.xlane.f32.xlu0 %v9421
      %v9423 = vpop.xlane.xlu0 %9422
      %v9424 = vmax.f32 %v9237, %v9239
      %9425 = vmax.xlane.f32.xlu0 %v9424
      %v9426 = vpop.xlane.xlu0 %9425
      %v9427 = vmax.f32 %v9243, %v9245
      %9428 = vmax.xlane.f32.xlu0 %v9427
      %v9429 = vpop.xlane.xlu0 %9428
      %v9430 = vmax.f32 %v9249, %v9251
      %9431 = vmax.xlane.f32.xlu0 %v9430
      %v9432 = vpop.xlane.xlu0 %9431
      %v9433 = vmax.f32 %v9255, %v9257
      %9434 = vmax.xlane.f32.xlu0 %v9433
      %v9435 = vpop.xlane.xlu0 %9434
      %v9436 = vmax.f32 %v9261, %v9263
      %9437 = vmax.xlane.f32.xlu0 %v9436
      %v9438 = vpop.xlane.xlu0 %9437
      %v9439 = vmax.f32 %v9267, %v9269
      %9440 = vmax.xlane.f32.xlu0 %v9439
      %v9441 = vpop.xlane.xlu0 %9440
      %v9442 = vmax.f32 %v9273, %v9275
      %9443 = vmax.xlane.f32.xlu0 %v9442
      %v9444 = vpop.xlane.xlu0 %9443
      %v9445 = vmax.f32 %v9279, %v9281
      %9446 = vmax.xlane.f32.xlu0 %v9445
      %v9447 = vpop.xlane.xlu0 %9446
      %v9448 = vmax.f32 %v9285, %v9287
      %9449 = vmax.xlane.f32.xlu0 %v9448
      %v9450 = vpop.xlane.xlu0 %9449
      %v9451 = vmax.f32 %v9291, %v9293
      %9452 = vmax.xlane.f32.xlu0 %v9451
      %v9453 = vpop.xlane.xlu0 %9452
      %v9454 = vmax.f32 %v9297, %v9299
      %9455 = vmax.xlane.f32.xlu0 %v9454
      %v9456 = vpop.xlane.xlu0 %9455
      %v9457 = vmax.f32 %v9303, %v9305
      %9458 = vmax.xlane.f32.xlu0 %v9457
      %v9459 = vpop.xlane.xlu0 %9458
      %v9460 = vmax.f32 %v9309, %v9311
      %9461 = vmax.xlane.f32.xlu0 %v9460
      %v9462 = vpop.xlane.xlu0 %9461
      %v9463 = vmax.f32 %v9315, %v9317
      %9464 = vmax.xlane.f32.xlu0 %v9463
      %v9465 = vpop.xlane.xlu0 %9464
      %v9466 = vmax.f32 %v9321, %v9323
      %9467 = vmax.xlane.f32.xlu0 %v9466
      %v9468 = vpop.xlane.xlu0 %9467
      %v9469 = vmax.f32 %v9327, %v9329
      %9470 = vmax.xlane.f32.xlu0 %v9469
      %v9471 = vpop.xlane.xlu0 %9470
      %v9472 = vmax.f32 %v9333, %v9335
      %9473 = vmax.xlane.f32.xlu0 %v9472
      %v9474 = vpop.xlane.xlu0 %9473
      %v9475 = vmax.f32 %v9339, %v9341
      %9476 = vmax.xlane.f32.xlu0 %v9475
      %v9477 = vpop.xlane.xlu0 %9476
      %v9478 = vmax.f32 %v9345, %v9347
      %9479 = vmax.xlane.f32.xlu0 %v9478
      %v9480 = vpop.xlane.xlu0 %9479
      %v9481 = vmax.f32 %v9351, %v9353
      %9482 = vmax.xlane.f32.xlu0 %v9481
      %v9483 = vpop.xlane.xlu0 %9482
      %v9484 = vmax.f32 %v9357, %v9359
      %9485 = vmax.xlane.f32.xlu0 %v9484
      %v9486 = vpop.xlane.xlu0 %9485
      %v9487 = vmax.f32 %v9363, %v9365
      %9488 = vmax.xlane.f32.xlu0 %v9487
      %v9489 = vpop.xlane.xlu0 %9488
      %v9490 = vmax.f32 %v9369, %v9371
      %9491 = vmax.xlane.f32.xlu0 %v9490
      %v9492 = vpop.xlane.xlu0 %9491
      %v9493 = vmax.f32 %v9375, %v9377
      %9494 = vmax.xlane.f32.xlu0 %v9493
      %v9495 = vpop.xlane.xlu0 %9494
      %v9496 = vmax.f32 %v9381, %v9383
      %9497 = vmax.xlane.f32.xlu0 %v9496
      %v9498 = vpop.xlane.xlu0 %9497
      %v9499 = vmax.f32 %v9387, %v9389
      %9500 = vmax.xlane.f32.xlu0 %v9499
      %v9501 = vpop.xlane.xlu0 %9500
      %v9502 = vmax.f32 %v9393, %v9395
      %9503 = vmax.xlane.f32.xlu0 %v9502
      %v9504 = vpop.xlane.xlu0 %9503
      %v9505 = vmax.f32 %v9399, %v9401
      %9506 = vmax.xlane.f32.xlu0 %v9505
      %v9507 = vpop.xlane.xlu0 %9506
      %v9508 = vmax.f32 %v9405, %v9407
      %9509 = vmax.xlane.f32.xlu0 %v9508
      %v9510 = vpop.xlane.xlu0 %9509
      %v9511 = vmax.f32 %v9411, %v9413
      %9512 = vmax.xlane.f32.xlu0 %v9511
      %v9513 = vpop.xlane.xlu0 %9512
      %v9514 = vmax.f32 %v9417, %v9419
      %9515 = vmax.xlane.f32.xlu0 %v9514
      %v9516 = vpop.xlane.xlu0 %9515
      %v9517 = vsub.f32 %v9231, %v9423
      %v9518 = vsub.f32 %v9233, %v9423
      %v9519 = vsub.f32 %v9237, %v9426
      %v9520 = vsub.f32 %v9239, %v9426
      %v9521 = vsub.f32 %v9243, %v9429
      %v9522 = vsub.f32 %v9245, %v9429
      %v9523 = vsub.f32 %v9249, %v9432
      %v9524 = vsub.f32 %v9251, %v9432
      %v9525 = vsub.f32 %v9255, %v9435
      %v9526 = vsub.f32 %v9257, %v9435
      %v9527 = vsub.f32 %v9261, %v9438
      %v9528 = vsub.f32 %v9263, %v9438
      %v9529 = vsub.f32 %v9267, %v9441
      %v9530 = vsub.f32 %v9269, %v9441
      %v9531 = vsub.f32 %v9273, %v9444
      %v9532 = vsub.f32 %v9275, %v9444
      %v9533 = vsub.f32 %v9279, %v9447
      %v9534 = vsub.f32 %v9281, %v9447
      %v9535 = vsub.f32 %v9285, %v9450
      %v9536 = vsub.f32 %v9287, %v9450
      %v9537 = vsub.f32 %v9291, %v9453
      %v9538 = vsub.f32 %v9293, %v9453
      %v9539 = vsub.f32 %v9297, %v9456
      %v9540 = vsub.f32 %v9299, %v9456
      %v9541 = vsub.f32 %v9303, %v9459
      %v9542 = vsub.f32 %v9305, %v9459
      %v9543 = vsub.f32 %v9309, %v9462
      %v9544 = vsub.f32 %v9311, %v9462
      %v9545 = vsub.f32 %v9315, %v9465
      %v9546 = vsub.f32 %v9317, %v9465
      %v9547 = vsub.f32 %v9321, %v9468
      %v9548 = vsub.f32 %v9323, %v9468
      %v9549 = vsub.f32 %v9327, %v9471
      %v9550 = vsub.f32 %v9329, %v9471
      %v9551 = vsub.f32 %v9333, %v9474
      %v9552 = vsub.f32 %v9335, %v9474
      %v9553 = vsub.f32 %v9339, %v9477
      %v9554 = vsub.f32 %v9341, %v9477
      %v9555 = vsub.f32 %v9345, %v9480
      %v9556 = vsub.f32 %v9347, %v9480
      %v9557 = vsub.f32 %v9351, %v9483
      %v9558 = vsub.f32 %v9353, %v9483
      %v9559 = vsub.f32 %v9357, %v9486
      %v9560 = vsub.f32 %v9359, %v9486
      %v9561 = vsub.f32 %v9363, %v9489
      %v9562 = vsub.f32 %v9365, %v9489
      %v9563 = vsub.f32 %v9369, %v9492
      %v9564 = vsub.f32 %v9371, %v9492
      %v9565 = vsub.f32 %v9375, %v9495
      %v9566 = vsub.f32 %v9377, %v9495
      %v9567 = vsub.f32 %v9381, %v9498
      %v9568 = vsub.f32 %v9383, %v9498
      %v9569 = vsub.f32 %v9387, %v9501
      %v9570 = vsub.f32 %v9389, %v9501
      %v9571 = vsub.f32 %v9393, %v9504
      %v9572 = vsub.f32 %v9395, %v9504
      %v9573 = vsub.f32 %v9399, %v9507
      %v9574 = vsub.f32 %v9401, %v9507
      %v9575 = vsub.f32 %v9405, %v9510
      %v9576 = vsub.f32 %v9407, %v9510
      %v9577 = vsub.f32 %v9411, %v9513
      %v9578 = vsub.f32 %v9413, %v9513
      %v9579 = vsub.f32 %v9417, %v9516
      %v9580 = vsub.f32 %v9419, %v9516
      %v9581 = vmul.f32 %v9517, 1.442695
      %v9582 = vpow.pop %v9581
      %v9583 = vmul.f32 %v9518, 1.442695
      %v9584 = vpow.pop %v9583
      %v9585 = vmul.f32 %v9519, 1.442695
      %v9586 = vpow.pop %v9585
      %v9587 = vmul.f32 %v9520, 1.442695
      %v9588 = vpow.pop %v9587
      %v9589 = vmul.f32 %v9521, 1.442695
      %v9590 = vpow.pop %v9589
      %v9591 = vmul.f32 %v9522, 1.442695
      %v9592 = vpow.pop %v9591
      %v9593 = vmul.f32 %v9523, 1.442695
      %v9594 = vpow.pop %v9593
      %v9595 = vmul.f32 %v9524, 1.442695
      %v9596 = vpow.pop %v9595
      %v9597 = vmul.f32 %v9525, 1.442695
      %v9598 = vpow.pop %v9597
      %v9599 = vmul.f32 %v9526, 1.442695
      %v9600 = vpow.pop %v9599
      %v9601 = vmul.f32 %v9527, 1.442695
      %v9602 = vpow.pop %v9601
      %v9603 = vmul.f32 %v9528, 1.442695
      %v9604 = vpow.pop %v9603
      %v9605 = vmul.f32 %v9529, 1.442695
      %v9606 = vpow.pop %v9605
      %v9607 = vmul.f32 %v9530, 1.442695
      %v9608 = vpow.pop %v9607
      %v9609 = vmul.f32 %v9531, 1.442695
      %v9610 = vpow.pop %v9609
      %v9611 = vmul.f32 %v9532, 1.442695
      %v9612 = vpow.pop %v9611
      %v9613 = vmul.f32 %v9533, 1.442695
      %v9614 = vpow.pop %v9613
      %v9615 = vmul.f32 %v9534, 1.442695
      %v9616 = vpow.pop %v9615
      %v9617 = vmul.f32 %v9535, 1.442695
      %v9618 = vpow.pop %v9617
      %v9619 = vmul.f32 %v9536, 1.442695
      %v9620 = vpow.pop %v9619
      %v9621 = vmul.f32 %v9537, 1.442695
      %v9622 = vpow.pop %v9621
      %v9623 = vmul.f32 %v9538, 1.442695
      %v9624 = vpow.pop %v9623
      %v9625 = vmul.f32 %v9539, 1.442695
      %v9626 = vpow.pop %v9625
      %v9627 = vmul.f32 %v9540, 1.442695
      %v9628 = vpow.pop %v9627
      %v9629 = vmul.f32 %v9541, 1.442695
      %v9630 = vpow.pop %v9629
      %v9631 = vmul.f32 %v9542, 1.442695
      %v9632 = vpow.pop %v9631
      %v9633 = vmul.f32 %v9543, 1.442695
      %v9634 = vpow.pop %v9633
      %v9635 = vmul.f32 %v9544, 1.442695
      %v9636 = vpow.pop %v9635
      %v9637 = vmul.f32 %v9545, 1.442695
      %v9638 = vpow.pop %v9637
      %v9639 = vmul.f32 %v9546, 1.442695
      %v9640 = vpow.pop %v9639
      %v9641 = vmul.f32 %v9547, 1.442695
      %v9642 = vpow.pop %v9641
      %v9643 = vmul.f32 %v9548, 1.442695
      %v9644 = vpow.pop %v9643
      %v9645 = vmul.f32 %v9549, 1.442695
      %v9646 = vpow.pop %v9645
      %v9647 = vmul.f32 %v9550, 1.442695
      %v9648 = vpow.pop %v9647
      %v9649 = vmul.f32 %v9551, 1.442695
      %v9650 = vpow.pop %v9649
      %v9651 = vmul.f32 %v9552, 1.442695
      %v9652 = vpow.pop %v9651
      %v9653 = vmul.f32 %v9553, 1.442695
      %v9654 = vpow.pop %v9653
      %v9655 = vmul.f32 %v9554, 1.442695
      %v9656 = vpow.pop %v9655
      %v9657 = vmul.f32 %v9555, 1.442695
      %v9658 = vpow.pop %v9657
      %v9659 = vmul.f32 %v9556, 1.442695
      %v9660 = vpow.pop %v9659
      %v9661 = vmul.f32 %v9557, 1.442695
      %v9662 = vpow.pop %v9661
      %v9663 = vmul.f32 %v9558, 1.442695
      %v9664 = vpow.pop %v9663
      %v9665 = vmul.f32 %v9559, 1.442695
      %v9666 = vpow.pop %v9665
      %v9667 = vmul.f32 %v9560, 1.442695
      %v9668 = vpow.pop %v9667
      %v9669 = vmul.f32 %v9561, 1.442695
      %v9670 = vpow.pop %v9669
      %v9671 = vmul.f32 %v9562, 1.442695
      %v9672 = vpow.pop %v9671
      %v9673 = vmul.f32 %v9563, 1.442695
      %v9674 = vpow.pop %v9673
      %v9675 = vmul.f32 %v9564, 1.442695
      %v9676 = vpow.pop %v9675
      %v9677 = vmul.f32 %v9565, 1.442695
      %v9678 = vpow.pop %v9677
      %v9679 = vmul.f32 %v9566, 1.442695
      %v9680 = vpow.pop %v9679
      %v9681 = vmul.f32 %v9567, 1.442695
      %v9682 = vpow.pop %v9681
      %v9683 = vmul.f32 %v9568, 1.442695
      %v9684 = vpow.pop %v9683
      %v9685 = vmul.f32 %v9569, 1.442695
      %v9686 = vpow.pop %v9685
      %v9687 = vmul.f32 %v9570, 1.442695
      %v9688 = vpow.pop %v9687
      %v9689 = vmul.f32 %v9571, 1.442695
      %v9690 = vpow.pop %v9689
      %v9691 = vmul.f32 %v9572, 1.442695
      %v9692 = vpow.pop %v9691
      %v9693 = vmul.f32 %v9573, 1.442695
      %v9694 = vpow.pop %v9693
      %v9695 = vmul.f32 %v9574, 1.442695
      %v9696 = vpow.pop %v9695
      %v9697 = vmul.f32 %v9575, 1.442695
      %v9698 = vpow.pop %v9697
      %v9699 = vmul.f32 %v9576, 1.442695
      %v9700 = vpow.pop %v9699
      %v9701 = vmul.f32 %v9577, 1.442695
      %v9702 = vpow.pop %v9701
      %v9703 = vmul.f32 %v9578, 1.442695
      %v9704 = vpow.pop %v9703
      %v9705 = vmul.f32 %v9579, 1.442695
      %v9706 = vpow.pop %v9705
      %v9707 = vmul.f32 %v9580, 1.442695
      %v9708 = vpow.pop %v9707
      %v9709 = vadd.f32 %v9582, %v9584
      %9710 = vadd.xlane.f32.xlu0 %v9709
      %v9711 = vpop.xlane.xlu0 %9710
      %v9712 = vadd.f32 %v9586, %v9588
      %9713 = vadd.xlane.f32.xlu0 %v9712
      %v9714 = vpop.xlane.xlu0 %9713
      %v9715 = vadd.f32 %v9590, %v9592
      %9716 = vadd.xlane.f32.xlu0 %v9715
      %v9717 = vpop.xlane.xlu0 %9716
      %v9718 = vadd.f32 %v9594, %v9596
      %9719 = vadd.xlane.f32.xlu0 %v9718
      %v9720 = vpop.xlane.xlu0 %9719
      %v9721 = vadd.f32 %v9598, %v9600
      %9722 = vadd.xlane.f32.xlu0 %v9721
      %v9723 = vpop.xlane.xlu0 %9722
      %v9724 = vadd.f32 %v9602, %v9604
      %9725 = vadd.xlane.f32.xlu0 %v9724
      %v9726 = vpop.xlane.xlu0 %9725
      %v9727 = vadd.f32 %v9606, %v9608
      %9728 = vadd.xlane.f32.xlu0 %v9727
      %v9729 = vpop.xlane.xlu0 %9728
      %v9730 = vadd.f32 %v9610, %v9612
      %9731 = vadd.xlane.f32.xlu0 %v9730
      %v9732 = vpop.xlane.xlu0 %9731
      %v9733 = vadd.f32 %v9614, %v9616
      %9734 = vadd.xlane.f32.xlu0 %v9733
      %v9735 = vpop.xlane.xlu0 %9734
      %v9736 = vadd.f32 %v9618, %v9620
      %9737 = vadd.xlane.f32.xlu0 %v9736
      %v9738 = vpop.xlane.xlu0 %9737
      %v9739 = vadd.f32 %v9622, %v9624
      %9740 = vadd.xlane.f32.xlu0 %v9739
      %v9741 = vpop.xlane.xlu0 %9740
      %v9742 = vadd.f32 %v9626, %v9628
      %9743 = vadd.xlane.f32.xlu0 %v9742
      %v9744 = vpop.xlane.xlu0 %9743
      %v9745 = vadd.f32 %v9630, %v9632
      %9746 = vadd.xlane.f32.xlu0 %v9745
      %v9747 = vpop.xlane.xlu0 %9746
      %v9748 = vadd.f32 %v9634, %v9636
      %9749 = vadd.xlane.f32.xlu0 %v9748
      %v9750 = vpop.xlane.xlu0 %9749
      %v9751 = vadd.f32 %v9638, %v9640
      %9752 = vadd.xlane.f32.xlu0 %v9751
      %v9753 = vpop.xlane.xlu0 %9752
      %v9754 = vadd.f32 %v9642, %v9644
      %9755 = vadd.xlane.f32.xlu0 %v9754
      %v9756 = vpop.xlane.xlu0 %9755
      %v9757 = vadd.f32 %v9646, %v9648
      %9758 = vadd.xlane.f32.xlu0 %v9757
      %v9759 = vpop.xlane.xlu0 %9758
      %v9760 = vadd.f32 %v9650, %v9652
      %9761 = vadd.xlane.f32.xlu0 %v9760
      %v9762 = vpop.xlane.xlu0 %9761
      %v9763 = vadd.f32 %v9654, %v9656
      %9764 = vadd.xlane.f32.xlu0 %v9763
      %v9765 = vpop.xlane.xlu0 %9764
      %v9766 = vadd.f32 %v9658, %v9660
      %9767 = vadd.xlane.f32.xlu0 %v9766
      %v9768 = vpop.xlane.xlu0 %9767
      %v9769 = vadd.f32 %v9662, %v9664
      %9770 = vadd.xlane.f32.xlu0 %v9769
      %v9771 = vpop.xlane.xlu0 %9770
      %v9772 = vadd.f32 %v9666, %v9668
      %9773 = vadd.xlane.f32.xlu0 %v9772
      %v9774 = vpop.xlane.xlu0 %9773
      %v9775 = vadd.f32 %v9670, %v9672
      %9776 = vadd.xlane.f32.xlu0 %v9775
      %v9777 = vpop.xlane.xlu0 %9776
      %v9778 = vadd.f32 %v9674, %v9676
      %9779 = vadd.xlane.f32.xlu0 %v9778
      %v9780 = vpop.xlane.xlu0 %9779
      %v9781 = vadd.f32 %v9678, %v9680
      %9782 = vadd.xlane.f32.xlu0 %v9781
      %v9783 = vpop.xlane.xlu0 %9782
      %v9784 = vadd.f32 %v9682, %v9684
      %9785 = vadd.xlane.f32.xlu0 %v9784
      %v9786 = vpop.xlane.xlu0 %9785
      %v9787 = vadd.f32 %v9686, %v9688
      %9788 = vadd.xlane.f32.xlu0 %v9787
      %v9789 = vpop.xlane.xlu0 %9788
      %v9790 = vadd.f32 %v9690, %v9692
      %9791 = vadd.xlane.f32.xlu0 %v9790
      %v9792 = vpop.xlane.xlu0 %9791
      %v9793 = vadd.f32 %v9694, %v9696
      %9794 = vadd.xlane.f32.xlu0 %v9793
      %v9795 = vpop.xlane.xlu0 %9794
      %v9796 = vadd.f32 %v9698, %v9700
      %9797 = vadd.xlane.f32.xlu0 %v9796
      %v9798 = vpop.xlane.xlu0 %9797
      %v9799 = vadd.f32 %v9702, %v9704
      %9800 = vadd.xlane.f32.xlu0 %v9799
      %v9801 = vpop.xlane.xlu0 %9800
      %v9802 = vadd.f32 %v9706, %v9708
      %9803 = vadd.xlane.f32.xlu0 %v9802
      %v9804 = vpop.xlane.xlu0 %9803
      %v9805 = vrcp.pop %v9711
      %v9806 = vrcp.pop %v9714
      %v9807 = vrcp.pop %v9717
      %v9808 = vrcp.pop %v9720
      %v9809 = vrcp.pop %v9723
      %v9810 = vrcp.pop %v9726
      %v9811 = vrcp.pop %v9729
      %v9812 = vrcp.pop %v9732
      %v9813 = vrcp.pop %v9735
      %v9814 = vrcp.pop %v9738
      %v9815 = vrcp.pop %v9741
      %v9816 = vrcp.pop %v9744
      %v9817 = vrcp.pop %v9747
      %v9818 = vrcp.pop %v9750
      %v9819 = vrcp.pop %v9753
      %v9820 = vrcp.pop %v9756
      %v9821 = vrcp.pop %v9759
      %v9822 = vrcp.pop %v9762
      %v9823 = vrcp.pop %v9765
      %v9824 = vrcp.pop %v9768
      %v9825 = vrcp.pop %v9771
      %v9826 = vrcp.pop %v9774
      %v9827 = vrcp.pop %v9777
      %v9828 = vrcp.pop %v9780
      %v9829 = vrcp.pop %v9783
      %v9830 = vrcp.pop %v9786
      %v9831 = vrcp.pop %v9789
      %v9832 = vrcp.pop %v9792
      %v9833 = vrcp.pop %v9795
      %v9834 = vrcp.pop %v9798
      %v9835 = vrcp.pop %v9801
      %v9836 = vrcp.pop %v9804
      %v9837 = vmul.f32 %v9582, %v9805
      %v9838 = vmul.f32 %v9584, %v9805
      %v9839 = vmul.f32 %v9586, %v9806
      %v9840 = vmul.f32 %v9588, %v9806
      %v9841 = vmul.f32 %v9590, %v9807
      %v9842 = vmul.f32 %v9592, %v9807
      %v9843 = vmul.f32 %v9594, %v9808
      %v9844 = vmul.f32 %v9596, %v9808
      %v9845 = vmul.f32 %v9598, %v9809
      %v9846 = vmul.f32 %v9600, %v9809
      %v9847 = vmul.f32 %v9602, %v9810
      %v9848 = vmul.f32 %v9604, %v9810
      %v9849 = vmul.f32 %v9606, %v9811
      %v9850 = vmul.f32 %v9608, %v9811
      %v9851 = vmul.f32 %v9610, %v9812
      %v9852 = vmul.f32 %v9612, %v9812
      %v9853 = vmul.f32 %v9614, %v9813
      %v9854 = vmul.f32 %v9616, %v9813
      %v9855 = vmul.f32 %v9618, %v9814
      %v9856 = vmul.f32 %v9620, %v9814
      %v9857 = vmul.f32 %v9622, %v9815
      %v9858 = vmul.f32 %v9624, %v9815
      %v9859 = vmul.f32 %v9626, %v9816
      %v9860 = vmul.f32 %v9628, %v9816
      %v9861 = vmul.f32 %v9630, %v9817
      %v9862 = vmul.f32 %v9632, %v9817
      %v9863 = vmul.f32 %v9634, %v9818
      %v9864 = vmul.f32 %v9636, %v9818
      %v9865 = vmul.f32 %v9638, %v9819
      %v9866 = vmul.f32 %v9640, %v9819
      %v9867 = vmul.f32 %v9642, %v9820
      %v9868 = vmul.f32 %v9644, %v9820
      %v9869 = vmul.f32 %v9646, %v9821
      %v9870 = vmul.f32 %v9648, %v9821
      %v9871 = vmul.f32 %v9650, %v9822
      %v9872 = vmul.f32 %v9652, %v9822
      %v9873 = vmul.f32 %v9654, %v9823
      %v9874 = vmul.f32 %v9656, %v9823
      %v9875 = vmul.f32 %v9658, %v9824
      %v9876 = vmul.f32 %v9660, %v9824
      %v9877 = vmul.f32 %v9662, %v9825
      %v9878 = vmul.f32 %v9664, %v9825
      %v9879 = vmul.f32 %v9666, %v9826
      %v9880 = vmul.f32 %v9668, %v9826
      %v9881 = vmul.f32 %v9670, %v9827
      %v9882 = vmul.f32 %v9672, %v9827
      %v9883 = vmul.f32 %v9674, %v9828
      %v9884 = vmul.f32 %v9676, %v9828
      %v9885 = vmul.f32 %v9678, %v9829
      %v9886 = vmul.f32 %v9680, %v9829
      %v9887 = vmul.f32 %v9682, %v9830
      %v9888 = vmul.f32 %v9684, %v9830
      %v9889 = vmul.f32 %v9686, %v9831
      %v9890 = vmul.f32 %v9688, %v9831
      %v9891 = vmul.f32 %v9690, %v9832
      %v9892 = vmul.f32 %v9692, %v9832
      %v9893 = vmul.f32 %v9694, %v9833
      %v9894 = vmul.f32 %v9696, %v9833
      %v9895 = vmul.f32 %v9698, %v9834
      %v9896 = vmul.f32 %v9700, %v9834
      %v9897 = vmul.f32 %v9702, %v9835
      %v9898 = vmul.f32 %v9704, %v9835
      %v9899 = vmul.f32 %v9706, %v9836
      %v9900 = vmul.f32 %v9708, %v9836
      %9901 = vrot.lane.b32.xlu0 %v565, 72
      %v9902 = vpop.permute.xlu0 %9901
      %9903 = vrot.lane.b32.xlu0 %v570, 72
      %v9904 = vpop.permute.xlu0 %9903
      %9905 = vrot.lane.b32.xlu0 %v575, 72
      %v9906 = vpop.permute.xlu0 %9905
      %9907 = vrot.lane.b32.xlu0 %v580, 72
      %v9908 = vpop.permute.xlu0 %9907
      %9909 = vrot.lane.b32.xlu0 %v585, 72
      %v9910 = vpop.permute.xlu0 %9909
      %9911 = vrot.lane.b32.xlu0 %v590, 72
      %v9912 = vpop.permute.xlu0 %9911
      %9913 = vrot.lane.b32.xlu0 %v595, 72
      %v9914 = vpop.permute.xlu0 %9913
      %9915 = vrot.lane.b32.xlu0 %v600, 72
      %v9916 = vpop.permute.xlu0 %9915
      %9917 = vrot.lane.b32.xlu0 %v605, 72
      %v9918 = vpop.permute.xlu0 %9917
      %9919 = vrot.lane.b32.xlu0 %v610, 72
      %v9920 = vpop.permute.xlu0 %9919
      %9921 = vrot.lane.b32.xlu0 %v615, 72
      %v9922 = vpop.permute.xlu0 %9921
      %9923 = vrot.lane.b32.xlu0 %v620, 72
      %v9924 = vpop.permute.xlu0 %9923
      %9925 = vrot.lane.b32.xlu0 %v625, 72
      %v9926 = vpop.permute.xlu0 %9925
      %9927 = vrot.lane.b32.xlu0 %v630, 72
      %v9928 = vpop.permute.xlu0 %9927
      %9929 = vrot.lane.b32.xlu0 %v635, 72
      %v9930 = vpop.permute.xlu0 %9929
      %9931 = vrot.lane.b32.xlu0 %v640, 72
      %v9932 = vpop.permute.xlu0 %9931
      %9933 = vrot.lane.b32.xlu0 %v645, 72
      %v9934 = vpop.permute.xlu0 %9933
      %9935 = vrot.lane.b32.xlu0 %v650, 72
      %v9936 = vpop.permute.xlu0 %9935
      %9937 = vrot.lane.b32.xlu0 %v655, 72
      %v9938 = vpop.permute.xlu0 %9937
      %9939 = vrot.lane.b32.xlu0 %v660, 72
      %v9940 = vpop.permute.xlu0 %9939
      %9941 = vrot.lane.b32.xlu0 %v665, 72
      %v9942 = vpop.permute.xlu0 %9941
      %9943 = vrot.lane.b32.xlu0 %v670, 72
      %v9944 = vpop.permute.xlu0 %9943
      %9945 = vrot.lane.b32.xlu0 %v675, 72
      %v9946 = vpop.permute.xlu0 %9945
      %9947 = vrot.lane.b32.xlu0 %v680, 72
      %v9948 = vpop.permute.xlu0 %9947
      %9949 = vrot.lane.b32.xlu0 %v685, 72
      %v9950 = vpop.permute.xlu0 %9949
      %9951 = vrot.lane.b32.xlu0 %v690, 72
      %v9952 = vpop.permute.xlu0 %9951
      %9953 = vrot.lane.b32.xlu0 %v695, 72
      %v9954 = vpop.permute.xlu0 %9953
      %9955 = vrot.lane.b32.xlu0 %v700, 72
      %v9956 = vpop.permute.xlu0 %9955
      %9957 = vrot.lane.b32.xlu0 %v705, 72
      %v9958 = vpop.permute.xlu0 %9957
      %9959 = vrot.lane.b32.xlu0 %v710, 72
      %v9960 = vpop.permute.xlu0 %9959
      %9961 = vrot.lane.b32.xlu0 %v715, 72
      %v9962 = vpop.permute.xlu0 %9961
      %9963 = vrot.lane.b32.xlu0 %v720, 72
      %v9964 = vpop.permute.xlu0 %9963
      %9997 = vmatprep.subr.mxu0 0.0
      %9998 = vmatpush1.msra.mxu0 %v9932
      %9999 = vmatprep.subr.mxu0 0.0
      %10000 = vmatpush1.msra.mxu0 %v9930
      %10001 = vmatprep.subr.mxu0 0.0
      %10002 = vmatpush1.msra.mxu0 %v9928
      %10003 = vmatprep.subr.mxu0 0.0
      %10004 = vmatpush1.msra.mxu0 %v9926
      %10005 = vmatprep.subr.mxu0 0.0
      %10006 = vmatpush1.msra.mxu0 %v9924
      %10007 = vmatprep.subr.mxu0 0.0
      %10008 = vmatpush1.msra.mxu0 %v9922
      %10009 = vmatprep.subr.mxu0 0.0
      %10010 = vmatpush1.msra.mxu0 %v9920
      %10011 = vmatprep.subr.mxu0 0.0
      %10012 = vmatpush1.msra.mxu0 %v9918
      %10013 = vmatprep.subr.mxu0 0.0
      %10014 = vmatpush1.msra.mxu0 %v9916
      %10015 = vmatprep.subr.mxu0 0.0
      %10016 = vmatpush1.msra.mxu0 %v9914
      %10017 = vmatprep.subr.mxu0 0.0
      %10018 = vmatpush1.msra.mxu0 %v9912
      %10019 = vmatprep.subr.mxu0 0.0
      %10020 = vmatpush1.msra.mxu0 %v9910
      %10021 = vmatprep.subr.mxu0 0.0
      %10022 = vmatpush1.msra.mxu0 %v9908
      %10023 = vmatprep.subr.mxu0 0.0
      %10024 = vmatpush1.msra.mxu0 %v9906
      %10025 = vmatprep.subr.mxu0 0.0
      %10026 = vmatpush1.msra.mxu0 %v9904
      %10027 = vmatprep.subr.mxu0 0.0
      %10028 = vmatpush1.msra.mxu0 %v9902
      %10029 = vmatprep.subr.mxu0 0.0
      %10030 = vmatpush2.msra.mxu0 %v9964
      %10031 = vmatprep.subr.mxu0 0.0
      %10032 = vmatpush2.msra.mxu0 %v9962
      %10033 = vmatprep.subr.mxu0 0.0
      %10034 = vmatpush2.msra.mxu0 %v9960
      %10035 = vmatprep.subr.mxu0 0.0
      %10036 = vmatpush2.msra.mxu0 %v9958
      %10037 = vmatprep.subr.mxu0 0.0
      %10038 = vmatpush2.msra.mxu0 %v9956
      %10039 = vmatprep.subr.mxu0 0.0
      %10040 = vmatpush2.msra.mxu0 %v9954
      %10041 = vmatprep.subr.mxu0 0.0
      %10042 = vmatpush2.msra.mxu0 %v9952
      %10043 = vmatprep.subr.mxu0 0.0
      %10044 = vmatpush2.msra.mxu0 %v9950
      %10045 = vmatprep.subr.mxu0 0.0
      %10046 = vmatpush2.msra.mxu0 %v9948
      %10047 = vmatprep.subr.mxu0 0.0
      %10048 = vmatpush2.msra.mxu0 %v9946
      %10049 = vmatprep.subr.mxu0 0.0
      %10050 = vmatpush2.msra.mxu0 %v9944
      %10051 = vmatprep.subr.mxu0 0.0
      %10052 = vmatpush2.msra.mxu0 %v9942
      %10053 = vmatprep.subr.mxu0 0.0
      %10054 = vmatpush2.msra.mxu0 %v9940
      %10055 = vmatprep.subr.mxu0 0.0
      %10056 = vmatpush2.msra.mxu0 %v9938
      %10057 = vmatprep.subr.mxu0 0.0
      %10058 = vmatpush2.msra.mxu0 %v9936
      %10059 = vmatprep.subr.mxu0 0.0
      %10060 = vmatpush2.msra.mxu0 %v9934
      %10061 = vmatprep.mubr.f32.mxu0 %v9838
      %10062 = vmatmul.mubr.f32.gmra.mxu0 %v9837
      %v10063 = vpop.f32.mrf.mxu0
      %v10064 = vadd.f32 0.0, %v10063
      %v10065 = vpop.f32.mrf.mxu0
      %10066 = vmatprep.mubr.f32.mxu0 %v9840
      %10067 = vmatmul.mubr.f32.gmra.mxu0 %v9839
      %v10068 = vpop.f32.mrf.mxu0
      %v10069 = vadd.f32 0.0, %v10068
      %v10070 = vpop.f32.mrf.mxu0
      %10071 = vmatprep.mubr.f32.mxu0 %v9842
      %10072 = vmatmul.mubr.f32.gmra.mxu0 %v9841
      %v10073 = vpop.f32.mrf.mxu0
      %v10074 = vadd.f32 0.0, %v10073
      %v10075 = vpop.f32.mrf.mxu0
      %10076 = vmatprep.mubr.f32.mxu0 %v9844
      %10077 = vmatmul.mubr.f32.gmra.mxu0 %v9843
      %v10078 = vpop.f32.mrf.mxu0
      %v10079 = vadd.f32 0.0, %v10078
      %v10080 = vpop.f32.mrf.mxu0
      %10081 = vmatprep.mubr.f32.mxu0 %v9846
      %10082 = vmatmul.mubr.f32.gmra.mxu0 %v9845
      %v10083 = vpop.f32.mrf.mxu0
      %v10084 = vadd.f32 0.0, %v10083
      %v10085 = vpop.f32.mrf.mxu0
      %10086 = vmatprep.mubr.f32.mxu0 %v9848
      %10087 = vmatmul.mubr.f32.gmra.mxu0 %v9847
      %v10088 = vpop.f32.mrf.mxu0
      %v10089 = vadd.f32 0.0, %v10088
      %v10090 = vpop.f32.mrf.mxu0
      %10091 = vmatprep.mubr.f32.mxu0 %v9850
      %10092 = vmatmul.mubr.f32.gmra.mxu0 %v9849
      %v10093 = vpop.f32.mrf.mxu0
      %v10094 = vadd.f32 0.0, %v10093
      %v10095 = vpop.f32.mrf.mxu0
      %10096 = vmatprep.mubr.f32.mxu0 %v9852
      %10097 = vmatmul.mubr.f32.gmra.mxu0 %v9851
      %v10098 = vpop.f32.mrf.mxu0
      %v10099 = vadd.f32 0.0, %v10098
      %v10100 = vpop.f32.mrf.mxu0
      %10101 = vmatprep.mubr.f32.mxu0 %v9854
      %10102 = vmatmul.mubr.f32.gmra.mxu0 %v9853
      %v10103 = vpop.f32.mrf.mxu0
      %v10104 = vadd.f32 0.0, %v10103
      %v10105 = vpop.f32.mrf.mxu0
      %10106 = vmatprep.mubr.f32.mxu0 %v9856
      %10107 = vmatmul.mubr.f32.gmra.mxu0 %v9855
      %v10108 = vpop.f32.mrf.mxu0
      %v10109 = vadd.f32 0.0, %v10108
      %v10110 = vpop.f32.mrf.mxu0
      %10111 = vmatprep.mubr.f32.mxu0 %v9858
      %10112 = vmatmul.mubr.f32.gmra.mxu0 %v9857
      %v10113 = vpop.f32.mrf.mxu0
      %v10114 = vadd.f32 0.0, %v10113
      %v10115 = vpop.f32.mrf.mxu0
      %10116 = vmatprep.mubr.f32.mxu0 %v9860
      %10117 = vmatmul.mubr.f32.gmra.mxu0 %v9859
      %v10118 = vpop.f32.mrf.mxu0
      %v10119 = vadd.f32 0.0, %v10118
      %v10120 = vpop.f32.mrf.mxu0
      %10121 = vmatprep.mubr.f32.mxu0 %v9862
      %10122 = vmatmul.mubr.f32.gmra.mxu0 %v9861
      %v10123 = vpop.f32.mrf.mxu0
      %v10124 = vadd.f32 0.0, %v10123
      %v10125 = vpop.f32.mrf.mxu0
      %10126 = vmatprep.mubr.f32.mxu0 %v9864
      %10127 = vmatmul.mubr.f32.gmra.mxu0 %v9863
      %v10128 = vpop.f32.mrf.mxu0
      %v10129 = vadd.f32 0.0, %v10128
      %v10130 = vpop.f32.mrf.mxu0
      %10131 = vmatprep.mubr.f32.mxu0 %v9866
      %10132 = vmatmul.mubr.f32.gmra.mxu0 %v9865
      %v10133 = vpop.f32.mrf.mxu0
      %v10134 = vadd.f32 0.0, %v10133
      %v10135 = vpop.f32.mrf.mxu0
      %10136 = vmatprep.mubr.f32.mxu0 %v9868
      %10137 = vmatmul.mubr.f32.gmra.mxu0 %v9867
      %v10138 = vpop.f32.mrf.mxu0
      %v10139 = vadd.f32 0.0, %v10138
      %v10140 = vpop.f32.mrf.mxu0
      %10141 = vmatprep.mubr.f32.mxu0 %v9870
      %10142 = vmatmul.mubr.f32.gmra.mxu0 %v9869
      %v10143 = vpop.f32.mrf.mxu0
      %v10144 = vadd.f32 0.0, %v10143
      %v10145 = vpop.f32.mrf.mxu0
      %10146 = vmatprep.mubr.f32.mxu0 %v9872
      %10147 = vmatmul.mubr.f32.gmra.mxu0 %v9871
      %v10148 = vpop.f32.mrf.mxu0
      %v10149 = vadd.f32 0.0, %v10148
      %v10150 = vpop.f32.mrf.mxu0
      %10151 = vmatprep.mubr.f32.mxu0 %v9874
      %10152 = vmatmul.mubr.f32.gmra.mxu0 %v9873
      %v10153 = vpop.f32.mrf.mxu0
      %v10154 = vadd.f32 0.0, %v10153
      %v10155 = vpop.f32.mrf.mxu0
      %10156 = vmatprep.mubr.f32.mxu0 %v9876
      %10157 = vmatmul.mubr.f32.gmra.mxu0 %v9875
      %v10158 = vpop.f32.mrf.mxu0
      %v10159 = vadd.f32 0.0, %v10158
      %v10160 = vpop.f32.mrf.mxu0
      %10161 = vmatprep.mubr.f32.mxu0 %v9878
      %10162 = vmatmul.mubr.f32.gmra.mxu0 %v9877
      %v10163 = vpop.f32.mrf.mxu0
      %v10164 = vadd.f32 0.0, %v10163
      %v10165 = vpop.f32.mrf.mxu0
      %10166 = vmatprep.mubr.f32.mxu0 %v9880
      %10167 = vmatmul.mubr.f32.gmra.mxu0 %v9879
      %v10168 = vpop.f32.mrf.mxu0
      %v10169 = vadd.f32 0.0, %v10168
      %v10170 = vpop.f32.mrf.mxu0
      %10171 = vmatprep.mubr.f32.mxu0 %v9882
      %10172 = vmatmul.mubr.f32.gmra.mxu0 %v9881
      %v10173 = vpop.f32.mrf.mxu0
      %v10174 = vadd.f32 0.0, %v10173
      %v10175 = vpop.f32.mrf.mxu0
      %10176 = vmatprep.mubr.f32.mxu0 %v9884
      %10177 = vmatmul.mubr.f32.gmra.mxu0 %v9883
      %v10178 = vpop.f32.mrf.mxu0
      %v10179 = vadd.f32 0.0, %v10178
      %v10180 = vpop.f32.mrf.mxu0
      %10181 = vmatprep.mubr.f32.mxu0 %v9886
      %10182 = vmatmul.mubr.f32.gmra.mxu0 %v9885
      %v10183 = vpop.f32.mrf.mxu0
      %v10184 = vadd.f32 0.0, %v10183
      %v10185 = vpop.f32.mrf.mxu0
      %10186 = vmatprep.mubr.f32.mxu0 %v9888
      %10187 = vmatmul.mubr.f32.gmra.mxu0 %v9887
      %v10188 = vpop.f32.mrf.mxu0
      %v10189 = vadd.f32 0.0, %v10188
      %v10190 = vpop.f32.mrf.mxu0
      %10191 = vmatprep.mubr.f32.mxu0 %v9890
      %10192 = vmatmul.mubr.f32.gmra.mxu0 %v9889
      %v10193 = vpop.f32.mrf.mxu0
      %v10194 = vadd.f32 0.0, %v10193
      %v10195 = vpop.f32.mrf.mxu0
      %10196 = vmatprep.mubr.f32.mxu0 %v9892
      %10197 = vmatmul.mubr.f32.gmra.mxu0 %v9891
      %v10198 = vpop.f32.mrf.mxu0
      %v10199 = vadd.f32 0.0, %v10198
      %v10200 = vpop.f32.mrf.mxu0
      %10201 = vmatprep.mubr.f32.mxu0 %v9894
      %10202 = vmatmul.mubr.f32.gmra.mxu0 %v9893
      %v10203 = vpop.f32.mrf.mxu0
      %v10204 = vadd.f32 0.0, %v10203
      %v10205 = vpop.f32.mrf.mxu0
      %10206 = vmatprep.mubr.f32.mxu0 %v9896
      %10207 = vmatmul.mubr.f32.gmra.mxu0 %v9895
      %v10208 = vpop.f32.mrf.mxu0
      %v10209 = vadd.f32 0.0, %v10208
      %v10210 = vpop.f32.mrf.mxu0
      %10211 = vmatprep.mubr.f32.mxu0 %v9898
      %10212 = vmatmul.mubr.f32.gmra.mxu0 %v9897
      %v10213 = vpop.f32.mrf.mxu0
      %v10214 = vadd.f32 0.0, %v10213
      %v10215 = vpop.f32.mrf.mxu0
      %10216 = vmatprep.mubr.f32.mxu0 %v9900
      %10217 = vmatmul.mubr.f32.gmra.mxu0 %v9899
      %v10218 = vpop.f32.mrf.mxu0
      %v10219 = vadd.f32 0.0, %v10218
      %v10220 = vpop.f32.mrf.mxu0
      %10221 = vdwg.mxu0
      %10222 = vrot.lane.b32.xlu0 %v1055, 100
      %v10223 = vpop.permute.xlu0 %10222
      %10224 = vrot.lane.b32.xlu0 %v1056, 100
      %v10225 = vpop.permute.xlu0 %10224
      %10226 = vrot.lane.b32.xlu0 %v1057, 100
      %v10227 = vpop.permute.xlu0 %10226
      %10228 = vrot.lane.b32.xlu0 %v1058, 100
      %v10229 = vpop.permute.xlu0 %10228
      %10230 = vrot.lane.b32.xlu0 %v1059, 100
      %v10231 = vpop.permute.xlu0 %10230
      %10232 = vrot.lane.b32.xlu0 %v1060, 100
      %v10233 = vpop.permute.xlu0 %10232
      %10234 = vrot.lane.b32.xlu0 %v1061, 100
      %v10235 = vpop.permute.xlu0 %10234
      %10236 = vrot.lane.b32.xlu0 %v1062, 100
      %v10237 = vpop.permute.xlu0 %10236
      %10238 = vrot.lane.b32.xlu0 %v1063, 100
      %v10239 = vpop.permute.xlu0 %10238
      %10240 = vrot.lane.b32.xlu0 %v1064, 100
      %v10241 = vpop.permute.xlu0 %10240
      %10242 = vrot.lane.b32.xlu0 %v1065, 100
      %v10243 = vpop.permute.xlu0 %10242
      %10244 = vrot.lane.b32.xlu0 %v1066, 100
      %v10245 = vpop.permute.xlu0 %10244
      %10246 = vrot.lane.b32.xlu0 %v1067, 100
      %v10247 = vpop.permute.xlu0 %10246
      %10248 = vrot.lane.b32.xlu0 %v1068, 100
      %v10249 = vpop.permute.xlu0 %10248
      %10250 = vrot.lane.b32.xlu0 %v1069, 100
      %v10251 = vpop.permute.xlu0 %10250
      %10252 = vrot.lane.b32.xlu0 %v1070, 100
      %v10253 = vpop.permute.xlu0 %10252
      %10254 = vrot.lane.b32.xlu0 %v1071, 100
      %v10255 = vpop.permute.xlu0 %10254
      %10256 = vrot.lane.b32.xlu0 %v1072, 100
      %v10257 = vpop.permute.xlu0 %10256
      %10258 = vrot.lane.b32.xlu0 %v1073, 100
      %v10259 = vpop.permute.xlu0 %10258
      %10260 = vrot.lane.b32.xlu0 %v1074, 100
      %v10261 = vpop.permute.xlu0 %10260
      %10262 = vrot.lane.b32.xlu0 %v1075, 100
      %v10263 = vpop.permute.xlu0 %10262
      %10264 = vrot.lane.b32.xlu0 %v1076, 100
      %v10265 = vpop.permute.xlu0 %10264
      %10266 = vrot.lane.b32.xlu0 %v1077, 100
      %v10267 = vpop.permute.xlu0 %10266
      %10268 = vrot.lane.b32.xlu0 %v1078, 100
      %v10269 = vpop.permute.xlu0 %10268
      %10270 = vrot.lane.b32.xlu0 %v1079, 100
      %v10271 = vpop.permute.xlu0 %10270
      %10272 = vrot.lane.b32.xlu0 %v1080, 100
      %v10273 = vpop.permute.xlu0 %10272
      %10274 = vrot.lane.b32.xlu0 %v1081, 100
      %v10275 = vpop.permute.xlu0 %10274
      %10276 = vrot.lane.b32.xlu0 %v1082, 100
      %v10277 = vpop.permute.xlu0 %10276
      %10278 = vrot.lane.b32.xlu0 %v1083, 100
      %v10279 = vpop.permute.xlu0 %10278
      %10280 = vrot.lane.b32.xlu0 %v1084, 100
      %v10281 = vpop.permute.xlu0 %10280
      %10282 = vrot.lane.b32.xlu0 %v1085, 100
      %v10283 = vpop.permute.xlu0 %10282
      %10284 = vrot.lane.b32.xlu0 %v1086, 100
      %v10285 = vpop.permute.xlu0 %10284
      %10286 = vrot.lane.b32.xlu0 %v565, 100
      %v10287 = vpop.permute.xlu0 %10286
      %10288 = vrot.lane.b32.xlu0 %v570, 100
      %v10289 = vpop.permute.xlu0 %10288
      %10290 = vrot.lane.b32.xlu0 %v575, 100
      %v10291 = vpop.permute.xlu0 %10290
      %10292 = vrot.lane.b32.xlu0 %v580, 100
      %v10293 = vpop.permute.xlu0 %10292
      %10294 = vrot.lane.b32.xlu0 %v585, 100
      %v10295 = vpop.permute.xlu0 %10294
      %10296 = vrot.lane.b32.xlu0 %v590, 100
      %v10297 = vpop.permute.xlu0 %10296
      %10298 = vrot.lane.b32.xlu0 %v595, 100
      %v10299 = vpop.permute.xlu0 %10298
      %10300 = vrot.lane.b32.xlu0 %v600, 100
      %v10301 = vpop.permute.xlu0 %10300
      %10302 = vrot.lane.b32.xlu0 %v605, 100
      %v10303 = vpop.permute.xlu0 %10302
      %10304 = vrot.lane.b32.xlu0 %v610, 100
      %v10305 = vpop.permute.xlu0 %10304
      %10306 = vrot.lane.b32.xlu0 %v615, 100
      %v10307 = vpop.permute.xlu0 %10306
      %10308 = vrot.lane.b32.xlu0 %v620, 100
      %v10309 = vpop.permute.xlu0 %10308
      %10310 = vrot.lane.b32.xlu0 %v625, 100
      %v10311 = vpop.permute.xlu0 %10310
      %10312 = vrot.lane.b32.xlu0 %v630, 100
      %v10313 = vpop.permute.xlu0 %10312
      %10314 = vrot.lane.b32.xlu0 %v635, 100
      %v10315 = vpop.permute.xlu0 %10314
      %10316 = vrot.lane.b32.xlu0 %v640, 100
      %v10317 = vpop.permute.xlu0 %10316
      %10318 = vrot.lane.b32.xlu0 %v645, 100
      %v10319 = vpop.permute.xlu0 %10318
      %10320 = vrot.lane.b32.xlu0 %v650, 100
      %v10321 = vpop.permute.xlu0 %10320
      %10322 = vrot.lane.b32.xlu0 %v655, 100
      %v10323 = vpop.permute.xlu0 %10322
      %10324 = vrot.lane.b32.xlu0 %v660, 100
      %v10325 = vpop.permute.xlu0 %10324
      %10326 = vrot.lane.b32.xlu0 %v665, 100
      %v10327 = vpop.permute.xlu0 %10326
      %10328 = vrot.lane.b32.xlu0 %v670, 100
      %v10329 = vpop.permute.xlu0 %10328
      %10330 = vrot.lane.b32.xlu0 %v675, 100
      %v10331 = vpop.permute.xlu0 %10330
      %10332 = vrot.lane.b32.xlu0 %v680, 100
      %v10333 = vpop.permute.xlu0 %10332
      %10334 = vrot.lane.b32.xlu0 %v685, 100
      %v10335 = vpop.permute.xlu0 %10334
      %10336 = vrot.lane.b32.xlu0 %v690, 100
      %v10337 = vpop.permute.xlu0 %10336
      %10338 = vrot.lane.b32.xlu0 %v695, 100
      %v10339 = vpop.permute.xlu0 %10338
      %10340 = vrot.lane.b32.xlu0 %v700, 100
      %v10341 = vpop.permute.xlu0 %10340
      %10342 = vrot.lane.b32.xlu0 %v705, 100
      %v10343 = vpop.permute.xlu0 %10342
      %10344 = vrot.lane.b32.xlu0 %v710, 100
      %v10345 = vpop.permute.xlu0 %10344
      %10346 = vrot.lane.b32.xlu0 %v715, 100
      %v10347 = vpop.permute.xlu0 %10346
      %10348 = vrot.lane.b32.xlu0 %v720, 100
      %v10349 = vpop.permute.xlu0 %10348
      %v10350 = vsel %vm1087, %v10223, 0
      %v10352 = vsel %vm1087, %v10225, 0
      %v10354 = vsel %vm1087, %v10227, 0
      %v10356 = vsel %vm1087, %v10229, 0
      %v10358 = vsel %vm1087, %v10231, 0
      %v10360 = vsel %vm1087, %v10233, 0
      %v10362 = vsel %vm1087, %v10235, 0
      %v10364 = vsel %vm1087, %v10237, 0
      %v10366 = vsel %vm1087, %v10239, 0
      %v10368 = vsel %vm1087, %v10241, 0
      %v10370 = vsel %vm1087, %v10243, 0
      %v10372 = vsel %vm1087, %v10245, 0
      %v10374 = vsel %vm1087, %v10247, 0
      %v10376 = vsel %vm1087, %v10249, 0
      %v10378 = vsel %vm1087, %v10251, 0
      %v10380 = vsel %vm1087, %v10253, 0
      %v10382 = vsel %vm1087, %v10255, 0
      %v10384 = vsel %vm1087, %v10257, 0
      %v10386 = vsel %vm1087, %v10259, 0
      %v10388 = vsel %vm1087, %v10261, 0
      %v10390 = vsel %vm1087, %v10263, 0
      %v10392 = vsel %vm1087, %v10265, 0
      %v10394 = vsel %vm1087, %v10267, 0
      %v10396 = vsel %vm1087, %v10269, 0
      %v10398 = vsel %vm1087, %v10271, 0
      %v10400 = vsel %vm1087, %v10273, 0
      %v10402 = vsel %vm1087, %v10275, 0
      %v10404 = vsel %vm1087, %v10277, 0
      %v10406 = vsel %vm1087, %v10279, 0
      %v10408 = vsel %vm1087, %v10281, 0
      %v10410 = vsel %vm1087, %v10283, 0
      %v10412 = vsel %vm1087, %v10285, 0
      %v10414 = vsel %vm1087, %v10287, 0
      %v10416 = vsel %vm1087, %v10289, 0
      %v10418 = vsel %vm1087, %v10291, 0
      %v10420 = vsel %vm1087, %v10293, 0
      %v10422 = vsel %vm1087, %v10295, 0
      %v10424 = vsel %vm1087, %v10297, 0
      %v10426 = vsel %vm1087, %v10299, 0
      %v10428 = vsel %vm1087, %v10301, 0
      %v10430 = vsel %vm1087, %v10303, 0
      %v10432 = vsel %vm1087, %v10305, 0
      %v10434 = vsel %vm1087, %v10307, 0
      %v10436 = vsel %vm1087, %v10309, 0
      %v10438 = vsel %vm1087, %v10311, 0
      %v10440 = vsel %vm1087, %v10313, 0
      %v10442 = vsel %vm1087, %v10315, 0
      %v10444 = vsel %vm1087, %v10317, 0
      %v10446 = vsel %vm1087, %v10319, 0
      %v10448 = vsel %vm1087, %v10321, 0
      %v10450 = vsel %vm1087, %v10323, 0
      %v10452 = vsel %vm1087, %v10325, 0
      %v10454 = vsel %vm1087, %v10327, 0
      %v10456 = vsel %vm1087, %v10329, 0
      %v10458 = vsel %vm1087, %v10331, 0
      %v10460 = vsel %vm1087, %v10333, 0
      %v10462 = vsel %vm1087, %v10335, 0
      %v10464 = vsel %vm1087, %v10337, 0
      %v10466 = vsel %vm1087, %v10339, 0
      %v10468 = vsel %vm1087, %v10341, 0
      %v10470 = vsel %vm1087, %v10343, 0
      %v10472 = vsel %vm1087, %v10345, 0
      %v10474 = vsel %vm1087, %v10347, 0
      %v10476 = vsel %vm1087, %v10349, 0
      %10478 = vmatprep.subr.mxu0 0.0
      %10479 = vmatpush1.xpose.msra.mxu0 %v10444
      %10480 = vmatprep.subr.mxu0 0.0
      %10481 = vmatpush1.xpose.msra.mxu0 %v10442
      %10482 = vmatprep.subr.mxu0 0.0
      %10483 = vmatpush1.xpose.msra.mxu0 %v10440
      %10484 = vmatprep.subr.mxu0 0.0
      %10485 = vmatpush1.xpose.msra.mxu0 %v10438
      %10486 = vmatprep.subr.mxu0 0.0
      %10487 = vmatpush1.xpose.msra.mxu0 %v10436
      %10488 = vmatprep.subr.mxu0 0.0
      %10489 = vmatpush1.xpose.msra.mxu0 %v10434
      %10490 = vmatprep.subr.mxu0 0.0
      %10491 = vmatpush1.xpose.msra.mxu0 %v10432
      %10492 = vmatprep.subr.mxu0 0.0
      %10493 = vmatpush1.xpose.msra.mxu0 %v10430
      %10494 = vmatprep.subr.mxu0 0.0
      %10495 = vmatpush1.xpose.msra.mxu0 %v10428
      %10496 = vmatprep.subr.mxu0 0.0
      %10497 = vmatpush1.xpose.msra.mxu0 %v10426
      %10498 = vmatprep.subr.mxu0 0.0
      %10499 = vmatpush1.xpose.msra.mxu0 %v10424
      %10500 = vmatprep.subr.mxu0 0.0
      %10501 = vmatpush1.xpose.msra.mxu0 %v10422
      %10502 = vmatprep.subr.mxu0 0.0
      %10503 = vmatpush1.xpose.msra.mxu0 %v10420
      %10504 = vmatprep.subr.mxu0 0.0
      %10505 = vmatpush1.xpose.msra.mxu0 %v10418
      %10506 = vmatprep.subr.mxu0 0.0
      %10507 = vmatpush1.xpose.msra.mxu0 %v10416
      %10508 = vmatprep.subr.mxu0 0.0
      %10509 = vmatpush1.xpose.msra.mxu0 %v10414
      %10510 = vmatprep.subr.mxu0 0.0
      %10511 = vmatpush2.xpose.msra.mxu0 %v10476
      %10512 = vmatprep.subr.mxu0 0.0
      %10513 = vmatpush2.xpose.msra.mxu0 %v10474
      %10514 = vmatprep.subr.mxu0 0.0
      %10515 = vmatpush2.xpose.msra.mxu0 %v10472
      %10516 = vmatprep.subr.mxu0 0.0
      %10517 = vmatpush2.xpose.msra.mxu0 %v10470
      %10518 = vmatprep.subr.mxu0 0.0
      %10519 = vmatpush2.xpose.msra.mxu0 %v10468
      %10520 = vmatprep.subr.mxu0 0.0
      %10521 = vmatpush2.xpose.msra.mxu0 %v10466
      %10522 = vmatprep.subr.mxu0 0.0
      %10523 = vmatpush2.xpose.msra.mxu0 %v10464
      %10524 = vmatprep.subr.mxu0 0.0
      %10525 = vmatpush2.xpose.msra.mxu0 %v10462
      %10526 = vmatprep.subr.mxu0 0.0
      %10527 = vmatpush2.xpose.msra.mxu0 %v10460
      %10528 = vmatprep.subr.mxu0 0.0
      %10529 = vmatpush2.xpose.msra.mxu0 %v10458
      %10530 = vmatprep.subr.mxu0 0.0
      %10531 = vmatpush2.xpose.msra.mxu0 %v10456
      %10532 = vmatprep.subr.mxu0 0.0
      %10533 = vmatpush2.xpose.msra.mxu0 %v10454
      %10534 = vmatprep.subr.mxu0 0.0
      %10535 = vmatpush2.xpose.msra.mxu0 %v10452
      %10536 = vmatprep.subr.mxu0 0.0
      %10537 = vmatpush2.xpose.msra.mxu0 %v10450
      %10538 = vmatprep.subr.mxu0 0.0
      %10539 = vmatpush2.xpose.msra.mxu0 %v10448
      %10540 = vmatprep.subr.mxu0 0.0
      %10541 = vmatpush2.xpose.msra.mxu0 %v10446
      %10542 = vmatprep.mubr.f32.mxu0 0.0
      %10543 = vmatmul.mubr.f32.gmra.mxu0 %v10350
      %v10544 = vpop.f32.mrf.mxu0
      %v10545 = vadd.f32 0.0, %v10544
      %v10546 = vpop.f32.mrf.mxu0
      %v10547 = vadd.f32 0.0, %v10546
      %10548 = vmatprep.mubr.f32.mxu0 0.0
      %10549 = vmatmul.mubr.f32.gmra.mxu0 %v10352
      %v10550 = vpop.f32.mrf.mxu0
      %v10551 = vadd.f32 0.0, %v10550
      %v10552 = vpop.f32.mrf.mxu0
      %v10553 = vadd.f32 0.0, %v10552
      %10554 = vmatprep.mubr.f32.mxu0 0.0
      %10555 = vmatmul.mubr.f32.gmra.mxu0 %v10354
      %v10556 = vpop.f32.mrf.mxu0
      %v10557 = vadd.f32 0.0, %v10556
      %v10558 = vpop.f32.mrf.mxu0
      %v10559 = vadd.f32 0.0, %v10558
      %10560 = vmatprep.mubr.f32.mxu0 0.0
      %10561 = vmatmul.mubr.f32.gmra.mxu0 %v10356
      %v10562 = vpop.f32.mrf.mxu0
      %v10563 = vadd.f32 0.0, %v10562
      %v10564 = vpop.f32.mrf.mxu0
      %v10565 = vadd.f32 0.0, %v10564
      %10566 = vmatprep.mubr.f32.mxu0 0.0
      %10567 = vmatmul.mubr.f32.gmra.mxu0 %v10358
      %v10568 = vpop.f32.mrf.mxu0
      %v10569 = vadd.f32 0.0, %v10568
      %v10570 = vpop.f32.mrf.mxu0
      %v10571 = vadd.f32 0.0, %v10570
      %10572 = vmatprep.mubr.f32.mxu0 0.0
      %10573 = vmatmul.mubr.f32.gmra.mxu0 %v10360
      %v10574 = vpop.f32.mrf.mxu0
      %v10575 = vadd.f32 0.0, %v10574
      %v10576 = vpop.f32.mrf.mxu0
      %v10577 = vadd.f32 0.0, %v10576
      %10578 = vmatprep.mubr.f32.mxu0 0.0
      %10579 = vmatmul.mubr.f32.gmra.mxu0 %v10362
      %v10580 = vpop.f32.mrf.mxu0
      %v10581 = vadd.f32 0.0, %v10580
      %v10582 = vpop.f32.mrf.mxu0
      %v10583 = vadd.f32 0.0, %v10582
      %10584 = vmatprep.mubr.f32.mxu0 0.0
      %10585 = vmatmul.mubr.f32.gmra.mxu0 %v10364
      %v10586 = vpop.f32.mrf.mxu0
      %v10587 = vadd.f32 0.0, %v10586
      %v10588 = vpop.f32.mrf.mxu0
      %v10589 = vadd.f32 0.0, %v10588
      %10590 = vmatprep.mubr.f32.mxu0 0.0
      %10591 = vmatmul.mubr.f32.gmra.mxu0 %v10366
      %v10592 = vpop.f32.mrf.mxu0
      %v10593 = vadd.f32 0.0, %v10592
      %v10594 = vpop.f32.mrf.mxu0
      %v10595 = vadd.f32 0.0, %v10594
      %10596 = vmatprep.mubr.f32.mxu0 0.0
      %10597 = vmatmul.mubr.f32.gmra.mxu0 %v10368
      %v10598 = vpop.f32.mrf.mxu0
      %v10599 = vadd.f32 0.0, %v10598
      %v10600 = vpop.f32.mrf.mxu0
      %v10601 = vadd.f32 0.0, %v10600
      %10602 = vmatprep.mubr.f32.mxu0 0.0
      %10603 = vmatmul.mubr.f32.gmra.mxu0 %v10370
      %v10604 = vpop.f32.mrf.mxu0
      %v10605 = vadd.f32 0.0, %v10604
      %v10606 = vpop.f32.mrf.mxu0
      %v10607 = vadd.f32 0.0, %v10606
      %10608 = vmatprep.mubr.f32.mxu0 0.0
      %10609 = vmatmul.mubr.f32.gmra.mxu0 %v10372
      %v10610 = vpop.f32.mrf.mxu0
      %v10611 = vadd.f32 0.0, %v10610
      %v10612 = vpop.f32.mrf.mxu0
      %v10613 = vadd.f32 0.0, %v10612
      %10614 = vmatprep.mubr.f32.mxu0 0.0
      %10615 = vmatmul.mubr.f32.gmra.mxu0 %v10374
      %v10616 = vpop.f32.mrf.mxu0
      %v10617 = vadd.f32 0.0, %v10616
      %v10618 = vpop.f32.mrf.mxu0
      %v10619 = vadd.f32 0.0, %v10618
      %10620 = vmatprep.mubr.f32.mxu0 0.0
      %10621 = vmatmul.mubr.f32.gmra.mxu0 %v10376
      %v10622 = vpop.f32.mrf.mxu0
      %v10623 = vadd.f32 0.0, %v10622
      %v10624 = vpop.f32.mrf.mxu0
      %v10625 = vadd.f32 0.0, %v10624
      %10626 = vmatprep.mubr.f32.mxu0 0.0
      %10627 = vmatmul.mubr.f32.gmra.mxu0 %v10378
      %v10628 = vpop.f32.mrf.mxu0
      %v10629 = vadd.f32 0.0, %v10628
      %v10630 = vpop.f32.mrf.mxu0
      %v10631 = vadd.f32 0.0, %v10630
      %10632 = vmatprep.mubr.f32.mxu0 0.0
      %10633 = vmatmul.mubr.f32.gmra.mxu0 %v10380
      %v10634 = vpop.f32.mrf.mxu0
      %v10635 = vadd.f32 0.0, %v10634
      %v10636 = vpop.f32.mrf.mxu0
      %v10637 = vadd.f32 0.0, %v10636
      %10638 = vmatprep.mubr.f32.mxu0 0.0
      %10639 = vmatmul.mubr.f32.gmra.mxu0 %v10382
      %v10640 = vpop.f32.mrf.mxu0
      %v10641 = vadd.f32 0.0, %v10640
      %v10642 = vpop.f32.mrf.mxu0
      %v10643 = vadd.f32 0.0, %v10642
      %10644 = vmatprep.mubr.f32.mxu0 0.0
      %10645 = vmatmul.mubr.f32.gmra.mxu0 %v10384
      %v10646 = vpop.f32.mrf.mxu0
      %v10647 = vadd.f32 0.0, %v10646
      %v10648 = vpop.f32.mrf.mxu0
      %v10649 = vadd.f32 0.0, %v10648
      %10650 = vmatprep.mubr.f32.mxu0 0.0
      %10651 = vmatmul.mubr.f32.gmra.mxu0 %v10386
      %v10652 = vpop.f32.mrf.mxu0
      %v10653 = vadd.f32 0.0, %v10652
      %v10654 = vpop.f32.mrf.mxu0
      %v10655 = vadd.f32 0.0, %v10654
      %10656 = vmatprep.mubr.f32.mxu0 0.0
      %10657 = vmatmul.mubr.f32.gmra.mxu0 %v10388
      %v10658 = vpop.f32.mrf.mxu0
      %v10659 = vadd.f32 0.0, %v10658
      %v10660 = vpop.f32.mrf.mxu0
      %v10661 = vadd.f32 0.0, %v10660
      %10662 = vmatprep.mubr.f32.mxu0 0.0
      %10663 = vmatmul.mubr.f32.gmra.mxu0 %v10390
      %v10664 = vpop.f32.mrf.mxu0
      %v10665 = vadd.f32 0.0, %v10664
      %v10666 = vpop.f32.mrf.mxu0
      %v10667 = vadd.f32 0.0, %v10666
      %10668 = vmatprep.mubr.f32.mxu0 0.0
      %10669 = vmatmul.mubr.f32.gmra.mxu0 %v10392
      %v10670 = vpop.f32.mrf.mxu0
      %v10671 = vadd.f32 0.0, %v10670
      %v10672 = vpop.f32.mrf.mxu0
      %v10673 = vadd.f32 0.0, %v10672
      %10674 = vmatprep.mubr.f32.mxu0 0.0
      %10675 = vmatmul.mubr.f32.gmra.mxu0 %v10394
      %v10676 = vpop.f32.mrf.mxu0
      %v10677 = vadd.f32 0.0, %v10676
      %v10678 = vpop.f32.mrf.mxu0
      %v10679 = vadd.f32 0.0, %v10678
      %10680 = vmatprep.mubr.f32.mxu0 0.0
      %10681 = vmatmul.mubr.f32.gmra.mxu0 %v10396
      %v10682 = vpop.f32.mrf.mxu0
      %v10683 = vadd.f32 0.0, %v10682
      %v10684 = vpop.f32.mrf.mxu0
      %v10685 = vadd.f32 0.0, %v10684
      %10686 = vmatprep.mubr.f32.mxu0 0.0
      %10687 = vmatmul.mubr.f32.gmra.mxu0 %v10398
      %v10688 = vpop.f32.mrf.mxu0
      %v10689 = vadd.f32 0.0, %v10688
      %v10690 = vpop.f32.mrf.mxu0
      %v10691 = vadd.f32 0.0, %v10690
      %10692 = vmatprep.mubr.f32.mxu0 0.0
      %10693 = vmatmul.mubr.f32.gmra.mxu0 %v10400
      %v10694 = vpop.f32.mrf.mxu0
      %v10695 = vadd.f32 0.0, %v10694
      %v10696 = vpop.f32.mrf.mxu0
      %v10697 = vadd.f32 0.0, %v10696
      %10698 = vmatprep.mubr.f32.mxu0 0.0
      %10699 = vmatmul.mubr.f32.gmra.mxu0 %v10402
      %v10700 = vpop.f32.mrf.mxu0
      %v10701 = vadd.f32 0.0, %v10700
      %v10702 = vpop.f32.mrf.mxu0
      %v10703 = vadd.f32 0.0, %v10702
      %10704 = vmatprep.mubr.f32.mxu0 0.0
      %10705 = vmatmul.mubr.f32.gmra.mxu0 %v10404
      %v10706 = vpop.f32.mrf.mxu0
      %v10707 = vadd.f32 0.0, %v10706
      %v10708 = vpop.f32.mrf.mxu0
      %v10709 = vadd.f32 0.0, %v10708
      %10710 = vmatprep.mubr.f32.mxu0 0.0
      %10711 = vmatmul.mubr.f32.gmra.mxu0 %v10406
      %v10712 = vpop.f32.mrf.mxu0
      %v10713 = vadd.f32 0.0, %v10712
      %v10714 = vpop.f32.mrf.mxu0
      %v10715 = vadd.f32 0.0, %v10714
      %10716 = vmatprep.mubr.f32.mxu0 0.0
      %10717 = vmatmul.mubr.f32.gmra.mxu0 %v10408
      %v10718 = vpop.f32.mrf.mxu0
      %v10719 = vadd.f32 0.0, %v10718
      %v10720 = vpop.f32.mrf.mxu0
      %v10721 = vadd.f32 0.0, %v10720
      %10722 = vmatprep.mubr.f32.mxu0 0.0
      %10723 = vmatmul.mubr.f32.gmra.mxu0 %v10410
      %v10724 = vpop.f32.mrf.mxu0
      %v10725 = vadd.f32 0.0, %v10724
      %v10726 = vpop.f32.mrf.mxu0
      %v10727 = vadd.f32 0.0, %v10726
      %10728 = vmatprep.mubr.f32.mxu0 0.0
      %10729 = vmatmul.mubr.f32.gmra.mxu0 %v10412
      %v10730 = vpop.f32.mrf.mxu0
      %v10731 = vadd.f32 0.0, %v10730
      %v10732 = vpop.f32.mrf.mxu0
      %v10733 = vadd.f32 0.0, %v10732
      %10734 = vdwg.mxu0
      %v10735 = vmax.f32 %v10545, %v10547
      %10736 = vmax.xlane.f32.xlu0 %v10735
      %v10737 = vpop.xlane.xlu0 %10736
      %v10738 = vmax.f32 %v10551, %v10553
      %10739 = vmax.xlane.f32.xlu0 %v10738
      %v10740 = vpop.xlane.xlu0 %10739
      %v10741 = vmax.f32 %v10557, %v10559
      %10742 = vmax.xlane.f32.xlu0 %v10741
      %v10743 = vpop.xlane.xlu0 %10742
      %v10744 = vmax.f32 %v10563, %v10565
      %10745 = vmax.xlane.f32.xlu0 %v10744
      %v10746 = vpop.xlane.xlu0 %10745
      %v10747 = vmax.f32 %v10569, %v10571
      %10748 = vmax.xlane.f32.xlu0 %v10747
      %v10749 = vpop.xlane.xlu0 %10748
      %v10750 = vmax.f32 %v10575, %v10577
      %10751 = vmax.xlane.f32.xlu0 %v10750
      %v10752 = vpop.xlane.xlu0 %10751
      %v10753 = vmax.f32 %v10581, %v10583
      %10754 = vmax.xlane.f32.xlu0 %v10753
      %v10755 = vpop.xlane.xlu0 %10754
      %v10756 = vmax.f32 %v10587, %v10589
      %10757 = vmax.xlane.f32.xlu0 %v10756
      %v10758 = vpop.xlane.xlu0 %10757
      %v10759 = vmax.f32 %v10593, %v10595
      %10760 = vmax.xlane.f32.xlu0 %v10759
      %v10761 = vpop.xlane.xlu0 %10760
      %v10762 = vmax.f32 %v10599, %v10601
      %10763 = vmax.xlane.f32.xlu0 %v10762
      %v10764 = vpop.xlane.xlu0 %10763
      %v10765 = vmax.f32 %v10605, %v10607
      %10766 = vmax.xlane.f32.xlu0 %v10765
      %v10767 = vpop.xlane.xlu0 %10766
      %v10768 = vmax.f32 %v10611, %v10613
      %10769 = vmax.xlane.f32.xlu0 %v10768
      %v10770 = vpop.xlane.xlu0 %10769
      %v10771 = vmax.f32 %v10617, %v10619
      %10772 = vmax.xlane.f32.xlu0 %v10771
      %v10773 = vpop.xlane.xlu0 %10772
      %v10774 = vmax.f32 %v10623, %v10625
      %10775 = vmax.xlane.f32.xlu0 %v10774
      %v10776 = vpop.xlane.xlu0 %10775
      %v10777 = vmax.f32 %v10629, %v10631
      %10778 = vmax.xlane.f32.xlu0 %v10777
      %v10779 = vpop.xlane.xlu0 %10778
      %v10780 = vmax.f32 %v10635, %v10637
      %10781 = vmax.xlane.f32.xlu0 %v10780
      %v10782 = vpop.xlane.xlu0 %10781
      %v10783 = vmax.f32 %v10641, %v10643
      %10784 = vmax.xlane.f32.xlu0 %v10783
      %v10785 = vpop.xlane.xlu0 %10784
      %v10786 = vmax.f32 %v10647, %v10649
      %10787 = vmax.xlane.f32.xlu0 %v10786
      %v10788 = vpop.xlane.xlu0 %10787
      %v10789 = vmax.f32 %v10653, %v10655
      %10790 = vmax.xlane.f32.xlu0 %v10789
      %v10791 = vpop.xlane.xlu0 %10790
      %v10792 = vmax.f32 %v10659, %v10661
      %10793 = vmax.xlane.f32.xlu0 %v10792
      %v10794 = vpop.xlane.xlu0 %10793
      %v10795 = vmax.f32 %v10665, %v10667
      %10796 = vmax.xlane.f32.xlu0 %v10795
      %v10797 = vpop.xlane.xlu0 %10796
      %v10798 = vmax.f32 %v10671, %v10673
      %10799 = vmax.xlane.f32.xlu0 %v10798
      %v10800 = vpop.xlane.xlu0 %10799
      %v10801 = vmax.f32 %v10677, %v10679
      %10802 = vmax.xlane.f32.xlu0 %v10801
      %v10803 = vpop.xlane.xlu0 %10802
      %v10804 = vmax.f32 %v10683, %v10685
      %10805 = vmax.xlane.f32.xlu0 %v10804
      %v10806 = vpop.xlane.xlu0 %10805
      %v10807 = vmax.f32 %v10689, %v10691
      %10808 = vmax.xlane.f32.xlu0 %v10807
      %v10809 = vpop.xlane.xlu0 %10808
      %v10810 = vmax.f32 %v10695, %v10697
      %10811 = vmax.xlane.f32.xlu0 %v10810
      %v10812 = vpop.xlane.xlu0 %10811
      %v10813 = vmax.f32 %v10701, %v10703
      %10814 = vmax.xlane.f32.xlu0 %v10813
      %v10815 = vpop.xlane.xlu0 %10814
      %v10816 = vmax.f32 %v10707, %v10709
      %10817 = vmax.xlane.f32.xlu0 %v10816
      %v10818 = vpop.xlane.xlu0 %10817
      %v10819 = vmax.f32 %v10713, %v10715
      %10820 = vmax.xlane.f32.xlu0 %v10819
      %v10821 = vpop.xlane.xlu0 %10820
      %v10822 = vmax.f32 %v10719, %v10721
      %10823 = vmax.xlane.f32.xlu0 %v10822
      %v10824 = vpop.xlane.xlu0 %10823
      %v10825 = vmax.f32 %v10725, %v10727
      %10826 = vmax.xlane.f32.xlu0 %v10825
      %v10827 = vpop.xlane.xlu0 %10826
      %v10828 = vmax.f32 %v10731, %v10733
      %10829 = vmax.xlane.f32.xlu0 %v10828
      %v10830 = vpop.xlane.xlu0 %10829
      %v10831 = vsub.f32 %v10545, %v10737
      %v10832 = vsub.f32 %v10547, %v10737
      %v10833 = vsub.f32 %v10551, %v10740
      %v10834 = vsub.f32 %v10553, %v10740
      %v10835 = vsub.f32 %v10557, %v10743
      %v10836 = vsub.f32 %v10559, %v10743
      %v10837 = vsub.f32 %v10563, %v10746
      %v10838 = vsub.f32 %v10565, %v10746
      %v10839 = vsub.f32 %v10569, %v10749
      %v10840 = vsub.f32 %v10571, %v10749
      %v10841 = vsub.f32 %v10575, %v10752
      %v10842 = vsub.f32 %v10577, %v10752
      %v10843 = vsub.f32 %v10581, %v10755
      %v10844 = vsub.f32 %v10583, %v10755
      %v10845 = vsub.f32 %v10587, %v10758
      %v10846 = vsub.f32 %v10589, %v10758
      %v10847 = vsub.f32 %v10593, %v10761
      %v10848 = vsub.f32 %v10595, %v10761
      %v10849 = vsub.f32 %v10599, %v10764
      %v10850 = vsub.f32 %v10601, %v10764
      %v10851 = vsub.f32 %v10605, %v10767
      %v10852 = vsub.f32 %v10607, %v10767
      %v10853 = vsub.f32 %v10611, %v10770
      %v10854 = vsub.f32 %v10613, %v10770
      %v10855 = vsub.f32 %v10617, %v10773
      %v10856 = vsub.f32 %v10619, %v10773
      %v10857 = vsub.f32 %v10623, %v10776
      %v10858 = vsub.f32 %v10625, %v10776
      %v10859 = vsub.f32 %v10629, %v10779
      %v10860 = vsub.f32 %v10631, %v10779
      %v10861 = vsub.f32 %v10635, %v10782
      %v10862 = vsub.f32 %v10637, %v10782
      %v10863 = vsub.f32 %v10641, %v10785
      %v10864 = vsub.f32 %v10643, %v10785
      %v10865 = vsub.f32 %v10647, %v10788
      %v10866 = vsub.f32 %v10649, %v10788
      %v10867 = vsub.f32 %v10653, %v10791
      %v10868 = vsub.f32 %v10655, %v10791
      %v10869 = vsub.f32 %v10659, %v10794
      %v10870 = vsub.f32 %v10661, %v10794
      %v10871 = vsub.f32 %v10665, %v10797
      %v10872 = vsub.f32 %v10667, %v10797
      %v10873 = vsub.f32 %v10671, %v10800
      %v10874 = vsub.f32 %v10673, %v10800
      %v10875 = vsub.f32 %v10677, %v10803
      %v10876 = vsub.f32 %v10679, %v10803
      %v10877 = vsub.f32 %v10683, %v10806
      %v10878 = vsub.f32 %v10685, %v10806
      %v10879 = vsub.f32 %v10689, %v10809
      %v10880 = vsub.f32 %v10691, %v10809
      %v10881 = vsub.f32 %v10695, %v10812
      %v10882 = vsub.f32 %v10697, %v10812
      %v10883 = vsub.f32 %v10701, %v10815
      %v10884 = vsub.f32 %v10703, %v10815
      %v10885 = vsub.f32 %v10707, %v10818
      %v10886 = vsub.f32 %v10709, %v10818
      %v10887 = vsub.f32 %v10713, %v10821
      %v10888 = vsub.f32 %v10715, %v10821
      %v10889 = vsub.f32 %v10719, %v10824
      %v10890 = vsub.f32 %v10721, %v10824
      %v10891 = vsub.f32 %v10725, %v10827
      %v10892 = vsub.f32 %v10727, %v10827
      %v10893 = vsub.f32 %v10731, %v10830
      %v10894 = vsub.f32 %v10733, %v10830
      %v10895 = vmul.f32 %v10831, 1.442695
      %v10896 = vpow.pop %v10895
      %v10897 = vmul.f32 %v10832, 1.442695
      %v10898 = vpow.pop %v10897
      %v10899 = vmul.f32 %v10833, 1.442695
      %v10900 = vpow.pop %v10899
      %v10901 = vmul.f32 %v10834, 1.442695
      %v10902 = vpow.pop %v10901
      %v10903 = vmul.f32 %v10835, 1.442695
      %v10904 = vpow.pop %v10903
      %v10905 = vmul.f32 %v10836, 1.442695
      %v10906 = vpow.pop %v10905
      %v10907 = vmul.f32 %v10837, 1.442695
      %v10908 = vpow.pop %v10907
      %v10909 = vmul.f32 %v10838, 1.442695
      %v10910 = vpow.pop %v10909
      %v10911 = vmul.f32 %v10839, 1.442695
      %v10912 = vpow.pop %v10911
      %v10913 = vmul.f32 %v10840, 1.442695
      %v10914 = vpow.pop %v10913
      %v10915 = vmul.f32 %v10841, 1.442695
      %v10916 = vpow.pop %v10915
      %v10917 = vmul.f32 %v10842, 1.442695
      %v10918 = vpow.pop %v10917
      %v10919 = vmul.f32 %v10843, 1.442695
      %v10920 = vpow.pop %v10919
      %v10921 = vmul.f32 %v10844, 1.442695
      %v10922 = vpow.pop %v10921
      %v10923 = vmul.f32 %v10845, 1.442695
      %v10924 = vpow.pop %v10923
      %v10925 = vmul.f32 %v10846, 1.442695
      %v10926 = vpow.pop %v10925
      %v10927 = vmul.f32 %v10847, 1.442695
      %v10928 = vpow.pop %v10927
      %v10929 = vmul.f32 %v10848, 1.442695
      %v10930 = vpow.pop %v10929
      %v10931 = vmul.f32 %v10849, 1.442695
      %v10932 = vpow.pop %v10931
      %v10933 = vmul.f32 %v10850, 1.442695
      %v10934 = vpow.pop %v10933
      %v10935 = vmul.f32 %v10851, 1.442695
      %v10936 = vpow.pop %v10935
      %v10937 = vmul.f32 %v10852, 1.442695
      %v10938 = vpow.pop %v10937
      %v10939 = vmul.f32 %v10853, 1.442695
      %v10940 = vpow.pop %v10939
      %v10941 = vmul.f32 %v10854, 1.442695
      %v10942 = vpow.pop %v10941
      %v10943 = vmul.f32 %v10855, 1.442695
      %v10944 = vpow.pop %v10943
      %v10945 = vmul.f32 %v10856, 1.442695
      %v10946 = vpow.pop %v10945
      %v10947 = vmul.f32 %v10857, 1.442695
      %v10948 = vpow.pop %v10947
      %v10949 = vmul.f32 %v10858, 1.442695
      %v10950 = vpow.pop %v10949
      %v10951 = vmul.f32 %v10859, 1.442695
      %v10952 = vpow.pop %v10951
      %v10953 = vmul.f32 %v10860, 1.442695
      %v10954 = vpow.pop %v10953
      %v10955 = vmul.f32 %v10861, 1.442695
      %v10956 = vpow.pop %v10955
      %v10957 = vmul.f32 %v10862, 1.442695
      %v10958 = vpow.pop %v10957
      %v10959 = vmul.f32 %v10863, 1.442695
      %v10960 = vpow.pop %v10959
      %v10961 = vmul.f32 %v10864, 1.442695
      %v10962 = vpow.pop %v10961
      %v10963 = vmul.f32 %v10865, 1.442695
      %v10964 = vpow.pop %v10963
      %v10965 = vmul.f32 %v10866, 1.442695
      %v10966 = vpow.pop %v10965
      %v10967 = vmul.f32 %v10867, 1.442695
      %v10968 = vpow.pop %v10967
      %v10969 = vmul.f32 %v10868, 1.442695
      %v10970 = vpow.pop %v10969
      %v10971 = vmul.f32 %v10869, 1.442695
      %v10972 = vpow.pop %v10971
      %v10973 = vmul.f32 %v10870, 1.442695
      %v10974 = vpow.pop %v10973
      %v10975 = vmul.f32 %v10871, 1.442695
      %v10976 = vpow.pop %v10975
      %v10977 = vmul.f32 %v10872, 1.442695
      %v10978 = vpow.pop %v10977
      %v10979 = vmul.f32 %v10873, 1.442695
      %v10980 = vpow.pop %v10979
      %v10981 = vmul.f32 %v10874, 1.442695
      %v10982 = vpow.pop %v10981
      %v10983 = vmul.f32 %v10875, 1.442695
      %v10984 = vpow.pop %v10983
      %v10985 = vmul.f32 %v10876, 1.442695
      %v10986 = vpow.pop %v10985
      %v10987 = vmul.f32 %v10877, 1.442695
      %v10988 = vpow.pop %v10987
      %v10989 = vmul.f32 %v10878, 1.442695
      %v10990 = vpow.pop %v10989
      %v10991 = vmul.f32 %v10879, 1.442695
      %v10992 = vpow.pop %v10991
      %v10993 = vmul.f32 %v10880, 1.442695
      %v10994 = vpow.pop %v10993
      %v10995 = vmul.f32 %v10881, 1.442695
      %v10996 = vpow.pop %v10995
      %v10997 = vmul.f32 %v10882, 1.442695
      %v10998 = vpow.pop %v10997
      %v10999 = vmul.f32 %v10883, 1.442695
      %v11000 = vpow.pop %v10999
      %v11001 = vmul.f32 %v10884, 1.442695
      %v11002 = vpow.pop %v11001
      %v11003 = vmul.f32 %v10885, 1.442695
      %v11004 = vpow.pop %v11003
      %v11005 = vmul.f32 %v10886, 1.442695
      %v11006 = vpow.pop %v11005
      %v11007 = vmul.f32 %v10887, 1.442695
      %v11008 = vpow.pop %v11007
      %v11009 = vmul.f32 %v10888, 1.442695
      %v11010 = vpow.pop %v11009
      %v11011 = vmul.f32 %v10889, 1.442695
      %v11012 = vpow.pop %v11011
      %v11013 = vmul.f32 %v10890, 1.442695
      %v11014 = vpow.pop %v11013
      %v11015 = vmul.f32 %v10891, 1.442695
      %v11016 = vpow.pop %v11015
      %v11017 = vmul.f32 %v10892, 1.442695
      %v11018 = vpow.pop %v11017
      %v11019 = vmul.f32 %v10893, 1.442695
      %v11020 = vpow.pop %v11019
      %v11021 = vmul.f32 %v10894, 1.442695
      %v11022 = vpow.pop %v11021
      %v11023 = vadd.f32 %v10896, %v10898
      %11024 = vadd.xlane.f32.xlu0 %v11023
      %v11025 = vpop.xlane.xlu0 %11024
      %v11026 = vadd.f32 %v10900, %v10902
      %11027 = vadd.xlane.f32.xlu0 %v11026
      %v11028 = vpop.xlane.xlu0 %11027
      %v11029 = vadd.f32 %v10904, %v10906
      %11030 = vadd.xlane.f32.xlu0 %v11029
      %v11031 = vpop.xlane.xlu0 %11030
      %v11032 = vadd.f32 %v10908, %v10910
      %11033 = vadd.xlane.f32.xlu0 %v11032
      %v11034 = vpop.xlane.xlu0 %11033
      %v11035 = vadd.f32 %v10912, %v10914
      %11036 = vadd.xlane.f32.xlu0 %v11035
      %v11037 = vpop.xlane.xlu0 %11036
      %v11038 = vadd.f32 %v10916, %v10918
      %11039 = vadd.xlane.f32.xlu0 %v11038
      %v11040 = vpop.xlane.xlu0 %11039
      %v11041 = vadd.f32 %v10920, %v10922
      %11042 = vadd.xlane.f32.xlu0 %v11041
      %v11043 = vpop.xlane.xlu0 %11042
      %v11044 = vadd.f32 %v10924, %v10926
      %11045 = vadd.xlane.f32.xlu0 %v11044
      %v11046 = vpop.xlane.xlu0 %11045
      %v11047 = vadd.f32 %v10928, %v10930
      %11048 = vadd.xlane.f32.xlu0 %v11047
      %v11049 = vpop.xlane.xlu0 %11048
      %v11050 = vadd.f32 %v10932, %v10934
      %11051 = vadd.xlane.f32.xlu0 %v11050
      %v11052 = vpop.xlane.xlu0 %11051
      %v11053 = vadd.f32 %v10936, %v10938
      %11054 = vadd.xlane.f32.xlu0 %v11053
      %v11055 = vpop.xlane.xlu0 %11054
      %v11056 = vadd.f32 %v10940, %v10942
      %11057 = vadd.xlane.f32.xlu0 %v11056
      %v11058 = vpop.xlane.xlu0 %11057
      %v11059 = vadd.f32 %v10944, %v10946
      %11060 = vadd.xlane.f32.xlu0 %v11059
      %v11061 = vpop.xlane.xlu0 %11060
      %v11062 = vadd.f32 %v10948, %v10950
      %11063 = vadd.xlane.f32.xlu0 %v11062
      %v11064 = vpop.xlane.xlu0 %11063
      %v11065 = vadd.f32 %v10952, %v10954
      %11066 = vadd.xlane.f32.xlu0 %v11065
      %v11067 = vpop.xlane.xlu0 %11066
      %v11068 = vadd.f32 %v10956, %v10958
      %11069 = vadd.xlane.f32.xlu0 %v11068
      %v11070 = vpop.xlane.xlu0 %11069
      %v11071 = vadd.f32 %v10960, %v10962
      %11072 = vadd.xlane.f32.xlu0 %v11071
      %v11073 = vpop.xlane.xlu0 %11072
      %v11074 = vadd.f32 %v10964, %v10966
      %11075 = vadd.xlane.f32.xlu0 %v11074
      %v11076 = vpop.xlane.xlu0 %11075
      %v11077 = vadd.f32 %v10968, %v10970
      %11078 = vadd.xlane.f32.xlu0 %v11077
      %v11079 = vpop.xlane.xlu0 %11078
      %v11080 = vadd.f32 %v10972, %v10974
      %11081 = vadd.xlane.f32.xlu0 %v11080
      %v11082 = vpop.xlane.xlu0 %11081
      %v11083 = vadd.f32 %v10976, %v10978
      %11084 = vadd.xlane.f32.xlu0 %v11083
      %v11085 = vpop.xlane.xlu0 %11084
      %v11086 = vadd.f32 %v10980, %v10982
      %11087 = vadd.xlane.f32.xlu0 %v11086
      %v11088 = vpop.xlane.xlu0 %11087
      %v11089 = vadd.f32 %v10984, %v10986
      %11090 = vadd.xlane.f32.xlu0 %v11089
      %v11091 = vpop.xlane.xlu0 %11090
      %v11092 = vadd.f32 %v10988, %v10990
      %11093 = vadd.xlane.f32.xlu0 %v11092
      %v11094 = vpop.xlane.xlu0 %11093
      %v11095 = vadd.f32 %v10992, %v10994
      %11096 = vadd.xlane.f32.xlu0 %v11095
      %v11097 = vpop.xlane.xlu0 %11096
      %v11098 = vadd.f32 %v10996, %v10998
      %11099 = vadd.xlane.f32.xlu0 %v11098
      %v11100 = vpop.xlane.xlu0 %11099
      %v11101 = vadd.f32 %v11000, %v11002
      %11102 = vadd.xlane.f32.xlu0 %v11101
      %v11103 = vpop.xlane.xlu0 %11102
      %v11104 = vadd.f32 %v11004, %v11006
      %11105 = vadd.xlane.f32.xlu0 %v11104
      %v11106 = vpop.xlane.xlu0 %11105
      %v11107 = vadd.f32 %v11008, %v11010
      %11108 = vadd.xlane.f32.xlu0 %v11107
      %v11109 = vpop.xlane.xlu0 %11108
      %v11110 = vadd.f32 %v11012, %v11014
      %11111 = vadd.xlane.f32.xlu0 %v11110
      %v11112 = vpop.xlane.xlu0 %11111
      %v11113 = vadd.f32 %v11016, %v11018
      %11114 = vadd.xlane.f32.xlu0 %v11113
      %v11115 = vpop.xlane.xlu0 %11114
      %v11116 = vadd.f32 %v11020, %v11022
      %11117 = vadd.xlane.f32.xlu0 %v11116
      %v11118 = vpop.xlane.xlu0 %11117
      %v11119 = vrcp.pop %v11025
      %v11120 = vrcp.pop %v11028
      %v11121 = vrcp.pop %v11031
      %v11122 = vrcp.pop %v11034
      %v11123 = vrcp.pop %v11037
      %v11124 = vrcp.pop %v11040
      %v11125 = vrcp.pop %v11043
      %v11126 = vrcp.pop %v11046
      %v11127 = vrcp.pop %v11049
      %v11128 = vrcp.pop %v11052
      %v11129 = vrcp.pop %v11055
      %v11130 = vrcp.pop %v11058
      %v11131 = vrcp.pop %v11061
      %v11132 = vrcp.pop %v11064
      %v11133 = vrcp.pop %v11067
      %v11134 = vrcp.pop %v11070
      %v11135 = vrcp.pop %v11073
      %v11136 = vrcp.pop %v11076
      %v11137 = vrcp.pop %v11079
      %v11138 = vrcp.pop %v11082
      %v11139 = vrcp.pop %v11085
      %v11140 = vrcp.pop %v11088
      %v11141 = vrcp.pop %v11091
      %v11142 = vrcp.pop %v11094
      %v11143 = vrcp.pop %v11097
      %v11144 = vrcp.pop %v11100
      %v11145 = vrcp.pop %v11103
      %v11146 = vrcp.pop %v11106
      %v11147 = vrcp.pop %v11109
      %v11148 = vrcp.pop %v11112
      %v11149 = vrcp.pop %v11115
      %v11150 = vrcp.pop %v11118
      %v11151 = vmul.f32 %v10896, %v11119
      %v11152 = vmul.f32 %v10898, %v11119
      %v11153 = vmul.f32 %v10900, %v11120
      %v11154 = vmul.f32 %v10902, %v11120
      %v11155 = vmul.f32 %v10904, %v11121
      %v11156 = vmul.f32 %v10906, %v11121
      %v11157 = vmul.f32 %v10908, %v11122
      %v11158 = vmul.f32 %v10910, %v11122
      %v11159 = vmul.f32 %v10912, %v11123
      %v11160 = vmul.f32 %v10914, %v11123
      %v11161 = vmul.f32 %v10916, %v11124
      %v11162 = vmul.f32 %v10918, %v11124
      %v11163 = vmul.f32 %v10920, %v11125
      %v11164 = vmul.f32 %v10922, %v11125
      %v11165 = vmul.f32 %v10924, %v11126
      %v11166 = vmul.f32 %v10926, %v11126
      %v11167 = vmul.f32 %v10928, %v11127
      %v11168 = vmul.f32 %v10930, %v11127
      %v11169 = vmul.f32 %v10932, %v11128
      %v11170 = vmul.f32 %v10934, %v11128
      %v11171 = vmul.f32 %v10936, %v11129
      %v11172 = vmul.f32 %v10938, %v11129
      %v11173 = vmul.f32 %v10940, %v11130
      %v11174 = vmul.f32 %v10942, %v11130
      %v11175 = vmul.f32 %v10944, %v11131
      %v11176 = vmul.f32 %v10946, %v11131
      %v11177 = vmul.f32 %v10948, %v11132
      %v11178 = vmul.f32 %v10950, %v11132
      %v11179 = vmul.f32 %v10952, %v11133
      %v11180 = vmul.f32 %v10954, %v11133
      %v11181 = vmul.f32 %v10956, %v11134
      %v11182 = vmul.f32 %v10958, %v11134
      %v11183 = vmul.f32 %v10960, %v11135
      %v11184 = vmul.f32 %v10962, %v11135
      %v11185 = vmul.f32 %v10964, %v11136
      %v11186 = vmul.f32 %v10966, %v11136
      %v11187 = vmul.f32 %v10968, %v11137
      %v11188 = vmul.f32 %v10970, %v11137
      %v11189 = vmul.f32 %v10972, %v11138
      %v11190 = vmul.f32 %v10974, %v11138
      %v11191 = vmul.f32 %v10976, %v11139
      %v11192 = vmul.f32 %v10978, %v11139
      %v11193 = vmul.f32 %v10980, %v11140
      %v11194 = vmul.f32 %v10982, %v11140
      %v11195 = vmul.f32 %v10984, %v11141
      %v11196 = vmul.f32 %v10986, %v11141
      %v11197 = vmul.f32 %v10988, %v11142
      %v11198 = vmul.f32 %v10990, %v11142
      %v11199 = vmul.f32 %v10992, %v11143
      %v11200 = vmul.f32 %v10994, %v11143
      %v11201 = vmul.f32 %v10996, %v11144
      %v11202 = vmul.f32 %v10998, %v11144
      %v11203 = vmul.f32 %v11000, %v11145
      %v11204 = vmul.f32 %v11002, %v11145
      %v11205 = vmul.f32 %v11004, %v11146
      %v11206 = vmul.f32 %v11006, %v11146
      %v11207 = vmul.f32 %v11008, %v11147
      %v11208 = vmul.f32 %v11010, %v11147
      %v11209 = vmul.f32 %v11012, %v11148
      %v11210 = vmul.f32 %v11014, %v11148
      %v11211 = vmul.f32 %v11016, %v11149
      %v11212 = vmul.f32 %v11018, %v11149
      %v11213 = vmul.f32 %v11020, %v11150
      %v11214 = vmul.f32 %v11022, %v11150
      %11215 = vrot.lane.b32.xlu0 %v565, 68
      %v11216 = vpop.permute.xlu0 %11215
      %11217 = vrot.lane.b32.xlu0 %v570, 68
      %v11218 = vpop.permute.xlu0 %11217
      %11219 = vrot.lane.b32.xlu0 %v575, 68
      %v11220 = vpop.permute.xlu0 %11219
      %11221 = vrot.lane.b32.xlu0 %v580, 68
      %v11222 = vpop.permute.xlu0 %11221
      %11223 = vrot.lane.b32.xlu0 %v585, 68
      %v11224 = vpop.permute.xlu0 %11223
      %11225 = vrot.lane.b32.xlu0 %v590, 68
      %v11226 = vpop.permute.xlu0 %11225
      %11227 = vrot.lane.b32.xlu0 %v595, 68
      %v11228 = vpop.permute.xlu0 %11227
      %11229 = vrot.lane.b32.xlu0 %v600, 68
      %v11230 = vpop.permute.xlu0 %11229
      %11231 = vrot.lane.b32.xlu0 %v605, 68
      %v11232 = vpop.permute.xlu0 %11231
      %11233 = vrot.lane.b32.xlu0 %v610, 68
      %v11234 = vpop.permute.xlu0 %11233
      %11235 = vrot.lane.b32.xlu0 %v615, 68
      %v11236 = vpop.permute.xlu0 %11235
      %11237 = vrot.lane.b32.xlu0 %v620, 68
      %v11238 = vpop.permute.xlu0 %11237
      %11239 = vrot.lane.b32.xlu0 %v625, 68
      %v11240 = vpop.permute.xlu0 %11239
      %11241 = vrot.lane.b32.xlu0 %v630, 68
      %v11242 = vpop.permute.xlu0 %11241
      %11243 = vrot.lane.b32.xlu0 %v635, 68
      %v11244 = vpop.permute.xlu0 %11243
      %11245 = vrot.lane.b32.xlu0 %v640, 68
      %v11246 = vpop.permute.xlu0 %11245
      %11247 = vrot.lane.b32.xlu0 %v645, 68
      %v11248 = vpop.permute.xlu0 %11247
      %11249 = vrot.lane.b32.xlu0 %v650, 68
      %v11250 = vpop.permute.xlu0 %11249
      %11251 = vrot.lane.b32.xlu0 %v655, 68
      %v11252 = vpop.permute.xlu0 %11251
      %11253 = vrot.lane.b32.xlu0 %v660, 68
      %v11254 = vpop.permute.xlu0 %11253
      %11255 = vrot.lane.b32.xlu0 %v665, 68
      %v11256 = vpop.permute.xlu0 %11255
      %11257 = vrot.lane.b32.xlu0 %v670, 68
      %v11258 = vpop.permute.xlu0 %11257
      %11259 = vrot.lane.b32.xlu0 %v675, 68
      %v11260 = vpop.permute.xlu0 %11259
      %11261 = vrot.lane.b32.xlu0 %v680, 68
      %v11262 = vpop.permute.xlu0 %11261
      %11263 = vrot.lane.b32.xlu0 %v685, 68
      %v11264 = vpop.permute.xlu0 %11263
      %11265 = vrot.lane.b32.xlu0 %v690, 68
      %v11266 = vpop.permute.xlu0 %11265
      %11267 = vrot.lane.b32.xlu0 %v695, 68
      %v11268 = vpop.permute.xlu0 %11267
      %11269 = vrot.lane.b32.xlu0 %v700, 68
      %v11270 = vpop.permute.xlu0 %11269
      %11271 = vrot.lane.b32.xlu0 %v705, 68
      %v11272 = vpop.permute.xlu0 %11271
      %11273 = vrot.lane.b32.xlu0 %v710, 68
      %v11274 = vpop.permute.xlu0 %11273
      %11275 = vrot.lane.b32.xlu0 %v715, 68
      %v11276 = vpop.permute.xlu0 %11275
      %11277 = vrot.lane.b32.xlu0 %v720, 68
      %v11278 = vpop.permute.xlu0 %11277
      %11311 = vmatprep.subr.mxu0 0.0
      %11312 = vmatpush1.msra.mxu0 %v11246
      %11313 = vmatprep.subr.mxu0 0.0
      %11314 = vmatpush1.msra.mxu0 %v11244
      %11315 = vmatprep.subr.mxu0 0.0
      %11316 = vmatpush1.msra.mxu0 %v11242
      %11317 = vmatprep.subr.mxu0 0.0
      %11318 = vmatpush1.msra.mxu0 %v11240
      %11319 = vmatprep.subr.mxu0 0.0
      %11320 = vmatpush1.msra.mxu0 %v11238
      %11321 = vmatprep.subr.mxu0 0.0
      %11322 = vmatpush1.msra.mxu0 %v11236
      %11323 = vmatprep.subr.mxu0 0.0
      %11324 = vmatpush1.msra.mxu0 %v11234
      %11325 = vmatprep.subr.mxu0 0.0
      %11326 = vmatpush1.msra.mxu0 %v11232
      %11327 = vmatprep.subr.mxu0 0.0
      %11328 = vmatpush1.msra.mxu0 %v11230
      %11329 = vmatprep.subr.mxu0 0.0
      %11330 = vmatpush1.msra.mxu0 %v11228
      %11331 = vmatprep.subr.mxu0 0.0
      %11332 = vmatpush1.msra.mxu0 %v11226
      %11333 = vmatprep.subr.mxu0 0.0
      %11334 = vmatpush1.msra.mxu0 %v11224
      %11335 = vmatprep.subr.mxu0 0.0
      %11336 = vmatpush1.msra.mxu0 %v11222
      %11337 = vmatprep.subr.mxu0 0.0
      %11338 = vmatpush1.msra.mxu0 %v11220
      %11339 = vmatprep.subr.mxu0 0.0
      %11340 = vmatpush1.msra.mxu0 %v11218
      %11341 = vmatprep.subr.mxu0 0.0
      %11342 = vmatpush1.msra.mxu0 %v11216
      %11343 = vmatprep.subr.mxu0 0.0
      %11344 = vmatpush2.msra.mxu0 %v11278
      %11345 = vmatprep.subr.mxu0 0.0
      %11346 = vmatpush2.msra.mxu0 %v11276
      %11347 = vmatprep.subr.mxu0 0.0
      %11348 = vmatpush2.msra.mxu0 %v11274
      %11349 = vmatprep.subr.mxu0 0.0
      %11350 = vmatpush2.msra.mxu0 %v11272
      %11351 = vmatprep.subr.mxu0 0.0
      %11352 = vmatpush2.msra.mxu0 %v11270
      %11353 = vmatprep.subr.mxu0 0.0
      %11354 = vmatpush2.msra.mxu0 %v11268
      %11355 = vmatprep.subr.mxu0 0.0
      %11356 = vmatpush2.msra.mxu0 %v11266
      %11357 = vmatprep.subr.mxu0 0.0
      %11358 = vmatpush2.msra.mxu0 %v11264
      %11359 = vmatprep.subr.mxu0 0.0
      %11360 = vmatpush2.msra.mxu0 %v11262
      %11361 = vmatprep.subr.mxu0 0.0
      %11362 = vmatpush2.msra.mxu0 %v11260
      %11363 = vmatprep.subr.mxu0 0.0
      %11364 = vmatpush2.msra.mxu0 %v11258
      %11365 = vmatprep.subr.mxu0 0.0
      %11366 = vmatpush2.msra.mxu0 %v11256
      %11367 = vmatprep.subr.mxu0 0.0
      %11368 = vmatpush2.msra.mxu0 %v11254
      %11369 = vmatprep.subr.mxu0 0.0
      %11370 = vmatpush2.msra.mxu0 %v11252
      %11371 = vmatprep.subr.mxu0 0.0
      %11372 = vmatpush2.msra.mxu0 %v11250
      %11373 = vmatprep.subr.mxu0 0.0
      %11374 = vmatpush2.msra.mxu0 %v11248
      %11375 = vmatprep.mubr.f32.mxu0 %v11152
      %11376 = vmatmul.mubr.f32.gmra.mxu0 %v11151
      %v11377 = vpop.f32.mrf.mxu0
      %v11378 = vadd.f32 0.0, %v11377
      %v11379 = vpop.f32.mrf.mxu0
      %11380 = vmatprep.mubr.f32.mxu0 %v11154
      %11381 = vmatmul.mubr.f32.gmra.mxu0 %v11153
      %v11382 = vpop.f32.mrf.mxu0
      %v11383 = vadd.f32 0.0, %v11382
      %v11384 = vpop.f32.mrf.mxu0
      %11385 = vmatprep.mubr.f32.mxu0 %v11156
      %11386 = vmatmul.mubr.f32.gmra.mxu0 %v11155
      %v11387 = vpop.f32.mrf.mxu0
      %v11388 = vadd.f32 0.0, %v11387
      %v11389 = vpop.f32.mrf.mxu0
      %11390 = vmatprep.mubr.f32.mxu0 %v11158
      %11391 = vmatmul.mubr.f32.gmra.mxu0 %v11157
      %v11392 = vpop.f32.mrf.mxu0
      %v11393 = vadd.f32 0.0, %v11392
      %v11394 = vpop.f32.mrf.mxu0
      %11395 = vmatprep.mubr.f32.mxu0 %v11160
      %11396 = vmatmul.mubr.f32.gmra.mxu0 %v11159
      %v11397 = vpop.f32.mrf.mxu0
      %v11398 = vadd.f32 0.0, %v11397
      %v11399 = vpop.f32.mrf.mxu0
      %11400 = vmatprep.mubr.f32.mxu0 %v11162
      %11401 = vmatmul.mubr.f32.gmra.mxu0 %v11161
      %v11402 = vpop.f32.mrf.mxu0
      %v11403 = vadd.f32 0.0, %v11402
      %v11404 = vpop.f32.mrf.mxu0
      %11405 = vmatprep.mubr.f32.mxu0 %v11164
      %11406 = vmatmul.mubr.f32.gmra.mxu0 %v11163
      %v11407 = vpop.f32.mrf.mxu0
      %v11408 = vadd.f32 0.0, %v11407
      %v11409 = vpop.f32.mrf.mxu0
      %11410 = vmatprep.mubr.f32.mxu0 %v11166
      %11411 = vmatmul.mubr.f32.gmra.mxu0 %v11165
      %v11412 = vpop.f32.mrf.mxu0
      %v11413 = vadd.f32 0.0, %v11412
      %v11414 = vpop.f32.mrf.mxu0
      %11415 = vmatprep.mubr.f32.mxu0 %v11168
      %11416 = vmatmul.mubr.f32.gmra.mxu0 %v11167
      %v11417 = vpop.f32.mrf.mxu0
      %v11418 = vadd.f32 0.0, %v11417
      %v11419 = vpop.f32.mrf.mxu0
      %11420 = vmatprep.mubr.f32.mxu0 %v11170
      %11421 = vmatmul.mubr.f32.gmra.mxu0 %v11169
      %v11422 = vpop.f32.mrf.mxu0
      %v11423 = vadd.f32 0.0, %v11422
      %v11424 = vpop.f32.mrf.mxu0
      %11425 = vmatprep.mubr.f32.mxu0 %v11172
      %11426 = vmatmul.mubr.f32.gmra.mxu0 %v11171
      %v11427 = vpop.f32.mrf.mxu0
      %v11428 = vadd.f32 0.0, %v11427
      %v11429 = vpop.f32.mrf.mxu0
      %11430 = vmatprep.mubr.f32.mxu0 %v11174
      %11431 = vmatmul.mubr.f32.gmra.mxu0 %v11173
      %v11432 = vpop.f32.mrf.mxu0
      %v11433 = vadd.f32 0.0, %v11432
      %v11434 = vpop.f32.mrf.mxu0
      %11435 = vmatprep.mubr.f32.mxu0 %v11176
      %11436 = vmatmul.mubr.f32.gmra.mxu0 %v11175
      %v11437 = vpop.f32.mrf.mxu0
      %v11438 = vadd.f32 0.0, %v11437
      %v11439 = vpop.f32.mrf.mxu0
      %11440 = vmatprep.mubr.f32.mxu0 %v11178
      %11441 = vmatmul.mubr.f32.gmra.mxu0 %v11177
      %v11442 = vpop.f32.mrf.mxu0
      %v11443 = vadd.f32 0.0, %v11442
      %v11444 = vpop.f32.mrf.mxu0
      %11445 = vmatprep.mubr.f32.mxu0 %v11180
      %11446 = vmatmul.mubr.f32.gmra.mxu0 %v11179
      %v11447 = vpop.f32.mrf.mxu0
      %v11448 = vadd.f32 0.0, %v11447
      %v11449 = vpop.f32.mrf.mxu0
      %11450 = vmatprep.mubr.f32.mxu0 %v11182
      %11451 = vmatmul.mubr.f32.gmra.mxu0 %v11181
      %v11452 = vpop.f32.mrf.mxu0
      %v11453 = vadd.f32 0.0, %v11452
      %v11454 = vpop.f32.mrf.mxu0
      %11455 = vmatprep.mubr.f32.mxu0 %v11184
      %11456 = vmatmul.mubr.f32.gmra.mxu0 %v11183
      %v11457 = vpop.f32.mrf.mxu0
      %v11458 = vadd.f32 0.0, %v11457
      %v11459 = vpop.f32.mrf.mxu0
      %11460 = vmatprep.mubr.f32.mxu0 %v11186
      %11461 = vmatmul.mubr.f32.gmra.mxu0 %v11185
      %v11462 = vpop.f32.mrf.mxu0
      %v11463 = vadd.f32 0.0, %v11462
      %v11464 = vpop.f32.mrf.mxu0
      %11465 = vmatprep.mubr.f32.mxu0 %v11188
      %11466 = vmatmul.mubr.f32.gmra.mxu0 %v11187
      %v11467 = vpop.f32.mrf.mxu0
      %v11468 = vadd.f32 0.0, %v11467
      %v11469 = vpop.f32.mrf.mxu0
      %11470 = vmatprep.mubr.f32.mxu0 %v11190
      %11471 = vmatmul.mubr.f32.gmra.mxu0 %v11189
      %v11472 = vpop.f32.mrf.mxu0
      %v11473 = vadd.f32 0.0, %v11472
      %v11474 = vpop.f32.mrf.mxu0
      %11475 = vmatprep.mubr.f32.mxu0 %v11192
      %11476 = vmatmul.mubr.f32.gmra.mxu0 %v11191
      %v11477 = vpop.f32.mrf.mxu0
      %v11478 = vadd.f32 0.0, %v11477
      %v11479 = vpop.f32.mrf.mxu0
      %11480 = vmatprep.mubr.f32.mxu0 %v11194
      %11481 = vmatmul.mubr.f32.gmra.mxu0 %v11193
      %v11482 = vpop.f32.mrf.mxu0
      %v11483 = vadd.f32 0.0, %v11482
      %v11484 = vpop.f32.mrf.mxu0
      %11485 = vmatprep.mubr.f32.mxu0 %v11196
      %11486 = vmatmul.mubr.f32.gmra.mxu0 %v11195
      %v11487 = vpop.f32.mrf.mxu0
      %v11488 = vadd.f32 0.0, %v11487
      %v11489 = vpop.f32.mrf.mxu0
      %11490 = vmatprep.mubr.f32.mxu0 %v11198
      %11491 = vmatmul.mubr.f32.gmra.mxu0 %v11197
      %v11492 = vpop.f32.mrf.mxu0
      %v11493 = vadd.f32 0.0, %v11492
      %v11494 = vpop.f32.mrf.mxu0
      %11495 = vmatprep.mubr.f32.mxu0 %v11200
      %11496 = vmatmul.mubr.f32.gmra.mxu0 %v11199
      %v11497 = vpop.f32.mrf.mxu0
      %v11498 = vadd.f32 0.0, %v11497
      %v11499 = vpop.f32.mrf.mxu0
      %11500 = vmatprep.mubr.f32.mxu0 %v11202
      %11501 = vmatmul.mubr.f32.gmra.mxu0 %v11201
      %v11502 = vpop.f32.mrf.mxu0
      %v11503 = vadd.f32 0.0, %v11502
      %v11504 = vpop.f32.mrf.mxu0
      %11505 = vmatprep.mubr.f32.mxu0 %v11204
      %11506 = vmatmul.mubr.f32.gmra.mxu0 %v11203
      %v11507 = vpop.f32.mrf.mxu0
      %v11508 = vadd.f32 0.0, %v11507
      %v11509 = vpop.f32.mrf.mxu0
      %11510 = vmatprep.mubr.f32.mxu0 %v11206
      %11511 = vmatmul.mubr.f32.gmra.mxu0 %v11205
      %v11512 = vpop.f32.mrf.mxu0
      %v11513 = vadd.f32 0.0, %v11512
      %v11514 = vpop.f32.mrf.mxu0
      %11515 = vmatprep.mubr.f32.mxu0 %v11208
      %11516 = vmatmul.mubr.f32.gmra.mxu0 %v11207
      %v11517 = vpop.f32.mrf.mxu0
      %v11518 = vadd.f32 0.0, %v11517
      %v11519 = vpop.f32.mrf.mxu0
      %11520 = vmatprep.mubr.f32.mxu0 %v11210
      %11521 = vmatmul.mubr.f32.gmra.mxu0 %v11209
      %v11522 = vpop.f32.mrf.mxu0
      %v11523 = vadd.f32 0.0, %v11522
      %v11524 = vpop.f32.mrf.mxu0
      %11525 = vmatprep.mubr.f32.mxu0 %v11212
      %11526 = vmatmul.mubr.f32.gmra.mxu0 %v11211
      %v11527 = vpop.f32.mrf.mxu0
      %v11528 = vadd.f32 0.0, %v11527
      %v11529 = vpop.f32.mrf.mxu0
      %11530 = vmatprep.mubr.f32.mxu0 %v11214
      %11531 = vmatmul.mubr.f32.gmra.mxu0 %v11213
      %v11532 = vpop.f32.mrf.mxu0
      %v11533 = vadd.f32 0.0, %v11532
      %v11534 = vpop.f32.mrf.mxu0
      %11535 = vdwg.mxu0
      %11568 = vrot.lane.b32.xlu0 %v3494, 4
      %v11569 = vpop.permute.xlu0 %11568
      %11570 = vrot.lane.b32.xlu0 %v3499, 4
      %v11571 = vpop.permute.xlu0 %11570
      %11572 = vrot.lane.b32.xlu0 %v3504, 4
      %v11573 = vpop.permute.xlu0 %11572
      %11574 = vrot.lane.b32.xlu0 %v3509, 4
      %v11575 = vpop.permute.xlu0 %11574
      %11576 = vrot.lane.b32.xlu0 %v3514, 4
      %v11577 = vpop.permute.xlu0 %11576
      %11578 = vrot.lane.b32.xlu0 %v3519, 4
      %v11579 = vpop.permute.xlu0 %11578
      %11580 = vrot.lane.b32.xlu0 %v3524, 4
      %v11581 = vpop.permute.xlu0 %11580
      %11582 = vrot.lane.b32.xlu0 %v3529, 4
      %v11583 = vpop.permute.xlu0 %11582
      %11584 = vrot.lane.b32.xlu0 %v3534, 4
      %v11585 = vpop.permute.xlu0 %11584
      %11586 = vrot.lane.b32.xlu0 %v3539, 4
      %v11587 = vpop.permute.xlu0 %11586
      %11588 = vrot.lane.b32.xlu0 %v3544, 4
      %v11589 = vpop.permute.xlu0 %11588
      %11590 = vrot.lane.b32.xlu0 %v3549, 4
      %v11591 = vpop.permute.xlu0 %11590
      %11592 = vrot.lane.b32.xlu0 %v3554, 4
      %v11593 = vpop.permute.xlu0 %11592
      %11594 = vrot.lane.b32.xlu0 %v3559, 4
      %v11595 = vpop.permute.xlu0 %11594
      %11596 = vrot.lane.b32.xlu0 %v3564, 4
      %v11597 = vpop.permute.xlu0 %11596
      %11598 = vrot.lane.b32.xlu0 %v3569, 4
      %v11599 = vpop.permute.xlu0 %11598
      %11600 = vrot.lane.b32.xlu0 %v3574, 4
      %v11601 = vpop.permute.xlu0 %11600
      %11602 = vrot.lane.b32.xlu0 %v3579, 4
      %v11603 = vpop.permute.xlu0 %11602
      %11604 = vrot.lane.b32.xlu0 %v3584, 4
      %v11605 = vpop.permute.xlu0 %11604
      %11606 = vrot.lane.b32.xlu0 %v3589, 4
      %v11607 = vpop.permute.xlu0 %11606
      %11608 = vrot.lane.b32.xlu0 %v3594, 4
      %v11609 = vpop.permute.xlu0 %11608
      %11610 = vrot.lane.b32.xlu0 %v3599, 4
      %v11611 = vpop.permute.xlu0 %11610
      %11612 = vrot.lane.b32.xlu0 %v3604, 4
      %v11613 = vpop.permute.xlu0 %11612
      %11614 = vrot.lane.b32.xlu0 %v3609, 4
      %v11615 = vpop.permute.xlu0 %11614
      %11616 = vrot.lane.b32.xlu0 %v3614, 4
      %v11617 = vpop.permute.xlu0 %11616
      %11618 = vrot.lane.b32.xlu0 %v3619, 4
      %v11619 = vpop.permute.xlu0 %11618
      %11620 = vrot.lane.b32.xlu0 %v3624, 4
      %v11621 = vpop.permute.xlu0 %11620
      %11622 = vrot.lane.b32.xlu0 %v3629, 4
      %v11623 = vpop.permute.xlu0 %11622
      %11624 = vrot.lane.b32.xlu0 %v3634, 4
      %v11625 = vpop.permute.xlu0 %11624
      %11626 = vrot.lane.b32.xlu0 %v3639, 4
      %v11627 = vpop.permute.xlu0 %11626
      %11628 = vrot.lane.b32.xlu0 %v3644, 4
      %v11629 = vpop.permute.xlu0 %11628
      %11630 = vrot.lane.b32.xlu0 %v3649, 4
      %v11631 = vpop.permute.xlu0 %11630
      %11696 = vrot.lane.b32.xlu0 %v4808, 8
      %v11697 = vpop.permute.xlu0 %11696
      %11698 = vrot.lane.b32.xlu0 %v4813, 8
      %v11699 = vpop.permute.xlu0 %11698
      %11700 = vrot.lane.b32.xlu0 %v4818, 8
      %v11701 = vpop.permute.xlu0 %11700
      %11702 = vrot.lane.b32.xlu0 %v4823, 8
      %v11703 = vpop.permute.xlu0 %11702
      %11704 = vrot.lane.b32.xlu0 %v4828, 8
      %v11705 = vpop.permute.xlu0 %11704
      %11706 = vrot.lane.b32.xlu0 %v4833, 8
      %v11707 = vpop.permute.xlu0 %11706
      %11708 = vrot.lane.b32.xlu0 %v4838, 8
      %v11709 = vpop.permute.xlu0 %11708
      %11710 = vrot.lane.b32.xlu0 %v4843, 8
      %v11711 = vpop.permute.xlu0 %11710
      %11712 = vrot.lane.b32.xlu0 %v4848, 8
      %v11713 = vpop.permute.xlu0 %11712
      %11714 = vrot.lane.b32.xlu0 %v4853, 8
      %v11715 = vpop.permute.xlu0 %11714
      %11716 = vrot.lane.b32.xlu0 %v4858, 8
      %v11717 = vpop.permute.xlu0 %11716
      %11718 = vrot.lane.b32.xlu0 %v4863, 8
      %v11719 = vpop.permute.xlu0 %11718
      %11720 = vrot.lane.b32.xlu0 %v4868, 8
      %v11721 = vpop.permute.xlu0 %11720
      %11722 = vrot.lane.b32.xlu0 %v4873, 8
      %v11723 = vpop.permute.xlu0 %11722
      %11724 = vrot.lane.b32.xlu0 %v4878, 8
      %v11725 = vpop.permute.xlu0 %11724
      %11726 = vrot.lane.b32.xlu0 %v4883, 8
      %v11727 = vpop.permute.xlu0 %11726
      %11728 = vrot.lane.b32.xlu0 %v4888, 8
      %v11729 = vpop.permute.xlu0 %11728
      %11730 = vrot.lane.b32.xlu0 %v4893, 8
      %v11731 = vpop.permute.xlu0 %11730
      %11732 = vrot.lane.b32.xlu0 %v4898, 8
      %v11733 = vpop.permute.xlu0 %11732
      %11734 = vrot.lane.b32.xlu0 %v4903, 8
      %v11735 = vpop.permute.xlu0 %11734
      %11736 = vrot.lane.b32.xlu0 %v4908, 8
      %v11737 = vpop.permute.xlu0 %11736
      %11738 = vrot.lane.b32.xlu0 %v4913, 8
      %v11739 = vpop.permute.xlu0 %11738
      %11740 = vrot.lane.b32.xlu0 %v4918, 8
      %v11741 = vpop.permute.xlu0 %11740
      %11742 = vrot.lane.b32.xlu0 %v4923, 8
      %v11743 = vpop.permute.xlu0 %11742
      %11744 = vrot.lane.b32.xlu0 %v4928, 8
      %v11745 = vpop.permute.xlu0 %11744
      %11746 = vrot.lane.b32.xlu0 %v4933, 8
      %v11747 = vpop.permute.xlu0 %11746
      %11748 = vrot.lane.b32.xlu0 %v4938, 8
      %v11749 = vpop.permute.xlu0 %11748
      %11750 = vrot.lane.b32.xlu0 %v4943, 8
      %v11751 = vpop.permute.xlu0 %11750
      %11752 = vrot.lane.b32.xlu0 %v4948, 8
      %v11753 = vpop.permute.xlu0 %11752
      %11754 = vrot.lane.b32.xlu0 %v4953, 8
      %v11755 = vpop.permute.xlu0 %11754
      %11756 = vrot.lane.b32.xlu0 %v4958, 8
      %v11757 = vpop.permute.xlu0 %11756
      %11758 = vrot.lane.b32.xlu0 %v4963, 8
      %v11759 = vpop.permute.xlu0 %11758
      %11824 = vrot.lane.b32.xlu0 %v6122, 12
      %v11825 = vpop.permute.xlu0 %11824
      %11826 = vrot.lane.b32.xlu0 %v6127, 12
      %v11827 = vpop.permute.xlu0 %11826
      %11828 = vrot.lane.b32.xlu0 %v6132, 12
      %v11829 = vpop.permute.xlu0 %11828
      %11830 = vrot.lane.b32.xlu0 %v6137, 12
      %v11831 = vpop.permute.xlu0 %11830
      %11832 = vrot.lane.b32.xlu0 %v6142, 12
      %v11833 = vpop.permute.xlu0 %11832
      %11834 = vrot.lane.b32.xlu0 %v6147, 12
      %v11835 = vpop.permute.xlu0 %11834
      %11836 = vrot.lane.b32.xlu0 %v6152, 12
      %v11837 = vpop.permute.xlu0 %11836
      %11838 = vrot.lane.b32.xlu0 %v6157, 12
      %v11839 = vpop.permute.xlu0 %11838
      %11840 = vrot.lane.b32.xlu0 %v6162, 12
      %v11841 = vpop.permute.xlu0 %11840
      %11842 = vrot.lane.b32.xlu0 %v6167, 12
      %v11843 = vpop.permute.xlu0 %11842
      %11844 = vrot.lane.b32.xlu0 %v6172, 12
      %v11845 = vpop.permute.xlu0 %11844
      %11846 = vrot.lane.b32.xlu0 %v6177, 12
      %v11847 = vpop.permute.xlu0 %11846
      %11848 = vrot.lane.b32.xlu0 %v6182, 12
      %v11849 = vpop.permute.xlu0 %11848
      %11850 = vrot.lane.b32.xlu0 %v6187, 12
      %v11851 = vpop.permute.xlu0 %11850
      %11852 = vrot.lane.b32.xlu0 %v6192, 12
      %v11853 = vpop.permute.xlu0 %11852
      %11854 = vrot.lane.b32.xlu0 %v6197, 12
      %v11855 = vpop.permute.xlu0 %11854
      %11856 = vrot.lane.b32.xlu0 %v6202, 12
      %v11857 = vpop.permute.xlu0 %11856
      %11858 = vrot.lane.b32.xlu0 %v6207, 12
      %v11859 = vpop.permute.xlu0 %11858
      %11860 = vrot.lane.b32.xlu0 %v6212, 12
      %v11861 = vpop.permute.xlu0 %11860
      %11862 = vrot.lane.b32.xlu0 %v6217, 12
      %v11863 = vpop.permute.xlu0 %11862
      %11864 = vrot.lane.b32.xlu0 %v6222, 12
      %v11865 = vpop.permute.xlu0 %11864
      %11866 = vrot.lane.b32.xlu0 %v6227, 12
      %v11867 = vpop.permute.xlu0 %11866
      %11868 = vrot.lane.b32.xlu0 %v6232, 12
      %v11869 = vpop.permute.xlu0 %11868
      %11870 = vrot.lane.b32.xlu0 %v6237, 12
      %v11871 = vpop.permute.xlu0 %11870
      %11872 = vrot.lane.b32.xlu0 %v6242, 12
      %v11873 = vpop.permute.xlu0 %11872
      %11874 = vrot.lane.b32.xlu0 %v6247, 12
      %v11875 = vpop.permute.xlu0 %11874
      %11876 = vrot.lane.b32.xlu0 %v6252, 12
      %v11877 = vpop.permute.xlu0 %11876
      %11878 = vrot.lane.b32.xlu0 %v6257, 12
      %v11879 = vpop.permute.xlu0 %11878
      %11880 = vrot.lane.b32.xlu0 %v6262, 12
      %v11881 = vpop.permute.xlu0 %11880
      %11882 = vrot.lane.b32.xlu0 %v6267, 12
      %v11883 = vpop.permute.xlu0 %11882
      %11884 = vrot.lane.b32.xlu0 %v6272, 12
      %v11885 = vpop.permute.xlu0 %11884
      %11886 = vrot.lane.b32.xlu0 %v6277, 12
      %v11887 = vpop.permute.xlu0 %11886
      %11952 = vrot.lane.b32.xlu0 %v7436, 16
      %v11953 = vpop.permute.xlu0 %11952
      %11954 = vrot.lane.b32.xlu0 %v7441, 16
      %v11955 = vpop.permute.xlu0 %11954
      %11956 = vrot.lane.b32.xlu0 %v7446, 16
      %v11957 = vpop.permute.xlu0 %11956
      %11958 = vrot.lane.b32.xlu0 %v7451, 16
      %v11959 = vpop.permute.xlu0 %11958
      %11960 = vrot.lane.b32.xlu0 %v7456, 16
      %v11961 = vpop.permute.xlu0 %11960
      %11962 = vrot.lane.b32.xlu0 %v7461, 16
      %v11963 = vpop.permute.xlu0 %11962
      %11964 = vrot.lane.b32.xlu0 %v7466, 16
      %v11965 = vpop.permute.xlu0 %11964
      %11966 = vrot.lane.b32.xlu0 %v7471, 16
      %v11967 = vpop.permute.xlu0 %11966
      %11968 = vrot.lane.b32.xlu0 %v7476, 16
      %v11969 = vpop.permute.xlu0 %11968
      %11970 = vrot.lane.b32.xlu0 %v7481, 16
      %v11971 = vpop.permute.xlu0 %11970
      %11972 = vrot.lane.b32.xlu0 %v7486, 16
      %v11973 = vpop.permute.xlu0 %11972
      %11974 = vrot.lane.b32.xlu0 %v7491, 16
      %v11975 = vpop.permute.xlu0 %11974
      %11976 = vrot.lane.b32.xlu0 %v7496, 16
      %v11977 = vpop.permute.xlu0 %11976
      %11978 = vrot.lane.b32.xlu0 %v7501, 16
      %v11979 = vpop.permute.xlu0 %11978
      %11980 = vrot.lane.b32.xlu0 %v7506, 16
      %v11981 = vpop.permute.xlu0 %11980
      %11982 = vrot.lane.b32.xlu0 %v7511, 16
      %v11983 = vpop.permute.xlu0 %11982
      %11984 = vrot.lane.b32.xlu0 %v7516, 16
      %v11985 = vpop.permute.xlu0 %11984
      %11986 = vrot.lane.b32.xlu0 %v7521, 16
      %v11987 = vpop.permute.xlu0 %11986
      %11988 = vrot.lane.b32.xlu0 %v7526, 16
      %v11989 = vpop.permute.xlu0 %11988
      %11990 = vrot.lane.b32.xlu0 %v7531, 16
      %v11991 = vpop.permute.xlu0 %11990
      %11992 = vrot.lane.b32.xlu0 %v7536, 16
      %v11993 = vpop.permute.xlu0 %11992
      %11994 = vrot.lane.b32.xlu0 %v7541, 16
      %v11995 = vpop.permute.xlu0 %11994
      %11996 = vrot.lane.b32.xlu0 %v7546, 16
      %v11997 = vpop.permute.xlu0 %11996
      %11998 = vrot.lane.b32.xlu0 %v7551, 16
      %v11999 = vpop.permute.xlu0 %11998
      %12000 = vrot.lane.b32.xlu0 %v7556, 16
      %v12001 = vpop.permute.xlu0 %12000
      %12002 = vrot.lane.b32.xlu0 %v7561, 16
      %v12003 = vpop.permute.xlu0 %12002
      %12004 = vrot.lane.b32.xlu0 %v7566, 16
      %v12005 = vpop.permute.xlu0 %12004
      %12006 = vrot.lane.b32.xlu0 %v7571, 16
      %v12007 = vpop.permute.xlu0 %12006
      %12008 = vrot.lane.b32.xlu0 %v7576, 16
      %v12009 = vpop.permute.xlu0 %12008
      %12010 = vrot.lane.b32.xlu0 %v7581, 16
      %v12011 = vpop.permute.xlu0 %12010
      %12012 = vrot.lane.b32.xlu0 %v7586, 16
      %v12013 = vpop.permute.xlu0 %12012
      %12014 = vrot.lane.b32.xlu0 %v7591, 16
      %v12015 = vpop.permute.xlu0 %12014
      %12080 = vrot.lane.b32.xlu0 %v8750, 20
      %v12081 = vpop.permute.xlu0 %12080
      %12082 = vrot.lane.b32.xlu0 %v8755, 20
      %v12083 = vpop.permute.xlu0 %12082
      %12084 = vrot.lane.b32.xlu0 %v8760, 20
      %v12085 = vpop.permute.xlu0 %12084
      %12086 = vrot.lane.b32.xlu0 %v8765, 20
      %v12087 = vpop.permute.xlu0 %12086
      %12088 = vrot.lane.b32.xlu0 %v8770, 20
      %v12089 = vpop.permute.xlu0 %12088
      %12090 = vrot.lane.b32.xlu0 %v8775, 20
      %v12091 = vpop.permute.xlu0 %12090
      %12092 = vrot.lane.b32.xlu0 %v8780, 20
      %v12093 = vpop.permute.xlu0 %12092
      %12094 = vrot.lane.b32.xlu0 %v8785, 20
      %v12095 = vpop.permute.xlu0 %12094
      %12096 = vrot.lane.b32.xlu0 %v8790, 20
      %v12097 = vpop.permute.xlu0 %12096
      %12098 = vrot.lane.b32.xlu0 %v8795, 20
      %v12099 = vpop.permute.xlu0 %12098
      %12100 = vrot.lane.b32.xlu0 %v8800, 20
      %v12101 = vpop.permute.xlu0 %12100
      %12102 = vrot.lane.b32.xlu0 %v8805, 20
      %v12103 = vpop.permute.xlu0 %12102
      %12104 = vrot.lane.b32.xlu0 %v8810, 20
      %v12105 = vpop.permute.xlu0 %12104
      %12106 = vrot.lane.b32.xlu0 %v8815, 20
      %v12107 = vpop.permute.xlu0 %12106
      %12108 = vrot.lane.b32.xlu0 %v8820, 20
      %v12109 = vpop.permute.xlu0 %12108
      %12110 = vrot.lane.b32.xlu0 %v8825, 20
      %v12111 = vpop.permute.xlu0 %12110
      %12112 = vrot.lane.b32.xlu0 %v8830, 20
      %v12113 = vpop.permute.xlu0 %12112
      %12114 = vrot.lane.b32.xlu0 %v8835, 20
      %v12115 = vpop.permute.xlu0 %12114
      %12116 = vrot.lane.b32.xlu0 %v8840, 20
      %v12117 = vpop.permute.xlu0 %12116
      %12118 = vrot.lane.b32.xlu0 %v8845, 20
      %v12119 = vpop.permute.xlu0 %12118
      %12120 = vrot.lane.b32.xlu0 %v8850, 20
      %v12121 = vpop.permute.xlu0 %12120
      %12122 = vrot.lane.b32.xlu0 %v8855, 20
      %v12123 = vpop.permute.xlu0 %12122
      %12124 = vrot.lane.b32.xlu0 %v8860, 20
      %v12125 = vpop.permute.xlu0 %12124
      %12126 = vrot.lane.b32.xlu0 %v8865, 20
      %v12127 = vpop.permute.xlu0 %12126
      %12128 = vrot.lane.b32.xlu0 %v8870, 20
      %v12129 = vpop.permute.xlu0 %12128
      %12130 = vrot.lane.b32.xlu0 %v8875, 20
      %v12131 = vpop.permute.xlu0 %12130
      %12132 = vrot.lane.b32.xlu0 %v8880, 20
      %v12133 = vpop.permute.xlu0 %12132
      %12134 = vrot.lane.b32.xlu0 %v8885, 20
      %v12135 = vpop.permute.xlu0 %12134
      %12136 = vrot.lane.b32.xlu0 %v8890, 20
      %v12137 = vpop.permute.xlu0 %12136
      %12138 = vrot.lane.b32.xlu0 %v8895, 20
      %v12139 = vpop.permute.xlu0 %12138
      %12140 = vrot.lane.b32.xlu0 %v8900, 20
      %v12141 = vpop.permute.xlu0 %12140
      %12142 = vrot.lane.b32.xlu0 %v8905, 20
      %v12143 = vpop.permute.xlu0 %12142
      %12208 = vrot.lane.b32.xlu0 %v10064, 24
      %v12209 = vpop.permute.xlu0 %12208
      %12210 = vrot.lane.b32.xlu0 %v10069, 24
      %v12211 = vpop.permute.xlu0 %12210
      %12212 = vrot.lane.b32.xlu0 %v10074, 24
      %v12213 = vpop.permute.xlu0 %12212
      %12214 = vrot.lane.b32.xlu0 %v10079, 24
      %v12215 = vpop.permute.xlu0 %12214
      %12216 = vrot.lane.b32.xlu0 %v10084, 24
      %v12217 = vpop.permute.xlu0 %12216
      %12218 = vrot.lane.b32.xlu0 %v10089, 24
      %v12219 = vpop.permute.xlu0 %12218
      %12220 = vrot.lane.b32.xlu0 %v10094, 24
      %v12221 = vpop.permute.xlu0 %12220
      %12222 = vrot.lane.b32.xlu0 %v10099, 24
      %v12223 = vpop.permute.xlu0 %12222
      %12224 = vrot.lane.b32.xlu0 %v10104, 24
      %v12225 = vpop.permute.xlu0 %12224
      %12226 = vrot.lane.b32.xlu0 %v10109, 24
      %v12227 = vpop.permute.xlu0 %12226
      %12228 = vrot.lane.b32.xlu0 %v10114, 24
      %v12229 = vpop.permute.xlu0 %12228
      %12230 = vrot.lane.b32.xlu0 %v10119, 24
      %v12231 = vpop.permute.xlu0 %12230
      %12232 = vrot.lane.b32.xlu0 %v10124, 24
      %v12233 = vpop.permute.xlu0 %12232
      %12234 = vrot.lane.b32.xlu0 %v10129, 24
      %v12235 = vpop.permute.xlu0 %12234
      %12236 = vrot.lane.b32.xlu0 %v10134, 24
      %v12237 = vpop.permute.xlu0 %12236
      %12238 = vrot.lane.b32.xlu0 %v10139, 24
      %v12239 = vpop.permute.xlu0 %12238
      %12240 = vrot.lane.b32.xlu0 %v10144, 24
      %v12241 = vpop.permute.xlu0 %12240
      %12242 = vrot.lane.b32.xlu0 %v10149, 24
      %v12243 = vpop.permute.xlu0 %12242
      %12244 = vrot.lane.b32.xlu0 %v10154, 24
      %v12245 = vpop.permute.xlu0 %12244
      %12246 = vrot.lane.b32.xlu0 %v10159, 24
      %v12247 = vpop.permute.xlu0 %12246
      %12248 = vrot.lane.b32.xlu0 %v10164, 24
      %v12249 = vpop.permute.xlu0 %12248
      %12250 = vrot.lane.b32.xlu0 %v10169, 24
      %v12251 = vpop.permute.xlu0 %12250
      %12252 = vrot.lane.b32.xlu0 %v10174, 24
      %v12253 = vpop.permute.xlu0 %12252
      %12254 = vrot.lane.b32.xlu0 %v10179, 24
      %v12255 = vpop.permute.xlu0 %12254
      %12256 = vrot.lane.b32.xlu0 %v10184, 24
      %v12257 = vpop.permute.xlu0 %12256
      %12258 = vrot.lane.b32.xlu0 %v10189, 24
      %v12259 = vpop.permute.xlu0 %12258
      %12260 = vrot.lane.b32.xlu0 %v10194, 24
      %v12261 = vpop.permute.xlu0 %12260
      %12262 = vrot.lane.b32.xlu0 %v10199, 24
      %v12263 = vpop.permute.xlu0 %12262
      %12264 = vrot.lane.b32.xlu0 %v10204, 24
      %v12265 = vpop.permute.xlu0 %12264
      %12266 = vrot.lane.b32.xlu0 %v10209, 24
      %v12267 = vpop.permute.xlu0 %12266
      %12268 = vrot.lane.b32.xlu0 %v10214, 24
      %v12269 = vpop.permute.xlu0 %12268
      %12270 = vrot.lane.b32.xlu0 %v10219, 24
      %v12271 = vpop.permute.xlu0 %12270
      %12336 = vrot.lane.b32.xlu0 %v11378, 28
      %v12337 = vpop.permute.xlu0 %12336
      %12338 = vrot.lane.b32.xlu0 %v11383, 28
      %v12339 = vpop.permute.xlu0 %12338
      %12340 = vrot.lane.b32.xlu0 %v11388, 28
      %v12341 = vpop.permute.xlu0 %12340
      %12342 = vrot.lane.b32.xlu0 %v11393, 28
      %v12343 = vpop.permute.xlu0 %12342
      %12344 = vrot.lane.b32.xlu0 %v11398, 28
      %v12345 = vpop.permute.xlu0 %12344
      %12346 = vrot.lane.b32.xlu0 %v11403, 28
      %v12347 = vpop.permute.xlu0 %12346
      %12348 = vrot.lane.b32.xlu0 %v11408, 28
      %v12349 = vpop.permute.xlu0 %12348
      %12350 = vrot.lane.b32.xlu0 %v11413, 28
      %v12351 = vpop.permute.xlu0 %12350
      %12352 = vrot.lane.b32.xlu0 %v11418, 28
      %v12353 = vpop.permute.xlu0 %12352
      %12354 = vrot.lane.b32.xlu0 %v11423, 28
      %v12355 = vpop.permute.xlu0 %12354
      %12356 = vrot.lane.b32.xlu0 %v11428, 28
      %v12357 = vpop.permute.xlu0 %12356
      %12358 = vrot.lane.b32.xlu0 %v11433, 28
      %v12359 = vpop.permute.xlu0 %12358
      %12360 = vrot.lane.b32.xlu0 %v11438, 28
      %v12361 = vpop.permute.xlu0 %12360
      %12362 = vrot.lane.b32.xlu0 %v11443, 28
      %v12363 = vpop.permute.xlu0 %12362
      %12364 = vrot.lane.b32.xlu0 %v11448, 28
      %v12365 = vpop.permute.xlu0 %12364
      %12366 = vrot.lane.b32.xlu0 %v11453, 28
      %v12367 = vpop.permute.xlu0 %12366
      %12368 = vrot.lane.b32.xlu0 %v11458, 28
      %v12369 = vpop.permute.xlu0 %12368
      %12370 = vrot.lane.b32.xlu0 %v11463, 28
      %v12371 = vpop.permute.xlu0 %12370
      %12372 = vrot.lane.b32.xlu0 %v11468, 28
      %v12373 = vpop.permute.xlu0 %12372
      %12374 = vrot.lane.b32.xlu0 %v11473, 28
      %v12375 = vpop.permute.xlu0 %12374
      %12376 = vrot.lane.b32.xlu0 %v11478, 28
      %v12377 = vpop.permute.xlu0 %12376
      %12378 = vrot.lane.b32.xlu0 %v11483, 28
      %v12379 = vpop.permute.xlu0 %12378
      %12380 = vrot.lane.b32.xlu0 %v11488, 28
      %v12381 = vpop.permute.xlu0 %12380
      %12382 = vrot.lane.b32.xlu0 %v11493, 28
      %v12383 = vpop.permute.xlu0 %12382
      %12384 = vrot.lane.b32.xlu0 %v11498, 28
      %v12385 = vpop.permute.xlu0 %12384
      %12386 = vrot.lane.b32.xlu0 %v11503, 28
      %v12387 = vpop.permute.xlu0 %12386
      %12388 = vrot.lane.b32.xlu0 %v11508, 28
      %v12389 = vpop.permute.xlu0 %12388
      %12390 = vrot.lane.b32.xlu0 %v11513, 28
      %v12391 = vpop.permute.xlu0 %12390
      %12392 = vrot.lane.b32.xlu0 %v11518, 28
      %v12393 = vpop.permute.xlu0 %12392
      %12394 = vrot.lane.b32.xlu0 %v11523, 28
      %v12395 = vpop.permute.xlu0 %12394
      %12396 = vrot.lane.b32.xlu0 %v11528, 28
      %v12397 = vpop.permute.xlu0 %12396
      %12398 = vrot.lane.b32.xlu0 %v11533, 28
      %v12399 = vpop.permute.xlu0 %12398
      %v12432 = vsel %vm1087, %v2180, %v11569
      %v12433 = vsel %vm1087, %v2185, %v11571
      %v12434 = vsel %vm1087, %v2190, %v11573
      %v12435 = vsel %vm1087, %v2195, %v11575
      %v12436 = vsel %vm1087, %v2200, %v11577
      %v12437 = vsel %vm1087, %v2205, %v11579
      %v12438 = vsel %vm1087, %v2210, %v11581
      %v12439 = vsel %vm1087, %v2215, %v11583
      %v12440 = vsel %vm1087, %v2220, %v11585
      %v12441 = vsel %vm1087, %v2225, %v11587
      %v12442 = vsel %vm1087, %v2230, %v11589
      %v12443 = vsel %vm1087, %v2235, %v11591
      %v12444 = vsel %vm1087, %v2240, %v11593
      %v12445 = vsel %vm1087, %v2245, %v11595
      %v12446 = vsel %vm1087, %v2250, %v11597
      %v12447 = vsel %vm1087, %v2255, %v11599
      %v12448 = vsel %vm1087, %v2260, %v11601
      %v12449 = vsel %vm1087, %v2265, %v11603
      %v12450 = vsel %vm1087, %v2270, %v11605
      %v12451 = vsel %vm1087, %v2275, %v11607
      %v12452 = vsel %vm1087, %v2280, %v11609
      %v12453 = vsel %vm1087, %v2285, %v11611
      %v12454 = vsel %vm1087, %v2290, %v11613
      %v12455 = vsel %vm1087, %v2295, %v11615
      %v12456 = vsel %vm1087, %v2300, %v11617
      %v12457 = vsel %vm1087, %v2305, %v11619
      %v12458 = vsel %vm1087, %v2310, %v11621
      %v12459 = vsel %vm1087, %v2315, %v11623
      %v12460 = vsel %vm1087, %v2320, %v11625
      %v12461 = vsel %vm1087, %v2325, %v11627
      %v12462 = vsel %vm1087, %v2330, %v11629
      %v12463 = vsel %vm1087, %v2335, %v11631
      %vm12464 = vcmask 64512
      %v12465 = vsel %vm12464, %v12432, %v11697
      %v12466 = vsel %vm12464, %v12433, %v11699
      %v12467 = vsel %vm12464, %v12434, %v11701
      %v12468 = vsel %vm12464, %v12435, %v11703
      %v12469 = vsel %vm12464, %v12436, %v11705
      %v12470 = vsel %vm12464, %v12437, %v11707
      %v12471 = vsel %vm12464, %v12438, %v11709
      %v12472 = vsel %vm12464, %v12439, %v11711
      %v12473 = vsel %vm12464, %v12440, %v11713
      %v12474 = vsel %vm12464, %v12441, %v11715
      %v12475 = vsel %vm12464, %v12442, %v11717
      %v12476 = vsel %vm12464, %v12443, %v11719
      %v12477 = vsel %vm12464, %v12444, %v11721
      %v12478 = vsel %vm12464, %v12445, %v11723
      %v12479 = vsel %vm12464, %v12446, %v11725
      %v12480 = vsel %vm12464, %v12447, %v11727
      %v12481 = vsel %vm12464, %v12448, %v11729
      %v12482 = vsel %vm12464, %v12449, %v11731
      %v12483 = vsel %vm12464, %v12450, %v11733
      %v12484 = vsel %vm12464, %v12451, %v11735
      %v12485 = vsel %vm12464, %v12452, %v11737
      %v12486 = vsel %vm12464, %v12453, %v11739
      %v12487 = vsel %vm12464, %v12454, %v11741
      %v12488 = vsel %vm12464, %v12455, %v11743
      %v12489 = vsel %vm12464, %v12456, %v11745
      %v12490 = vsel %vm12464, %v12457, %v11747
      %v12491 = vsel %vm12464, %v12458, %v11749
      %v12492 = vsel %vm12464, %v12459, %v11751
      %v12493 = vsel %vm12464, %v12460, %v11753
      %v12494 = vsel %vm12464, %v12461, %v11755
      %v12495 = vsel %vm12464, %v12462, %v11757
      %v12496 = vsel %vm12464, %v12463, %v11759
      %vm12497 = vcmask 97280
      %v12498 = vsel %vm12497, %v12465, %v11825
      %v12499 = vsel %vm12497, %v12466, %v11827
      %v12500 = vsel %vm12497, %v12467, %v11829
      %v12501 = vsel %vm12497, %v12468, %v11831
      %v12502 = vsel %vm12497, %v12469, %v11833
      %v12503 = vsel %vm12497, %v12470, %v11835
      %v12504 = vsel %vm12497, %v12471, %v11837
      %v12505 = vsel %vm12497, %v12472, %v11839
      %v12506 = vsel %vm12497, %v12473, %v11841
      %v12507 = vsel %vm12497, %v12474, %v11843
      %v12508 = vsel %vm12497, %v12475, %v11845
      %v12509 = vsel %vm12497, %v12476, %v11847
      %v12510 = vsel %vm12497, %v12477, %v11849
      %v12511 = vsel %vm12497, %v12478, %v11851
      %v12512 = vsel %vm12497, %v12479, %v11853
      %v12513 = vsel %vm12497, %v12480, %v11855
      %v12514 = vsel %vm12497, %v12481, %v11857
      %v12515 = vsel %vm12497, %v12482, %v11859
      %v12516 = vsel %vm12497, %v12483, %v11861
      %v12517 = vsel %vm12497, %v12484, %v11863
      %v12518 = vsel %vm12497, %v12485, %v11865
      %v12519 = vsel %vm12497, %v12486, %v11867
      %v12520 = vsel %vm12497, %v12487, %v11869
      %v12521 = vsel %vm12497, %v12488, %v11871
      %v12522 = vsel %vm12497, %v12489, %v11873
      %v12523 = vsel %vm12497, %v12490, %v11875
      %v12524 = vsel %vm12497, %v12491, %v11877
      %v12525 = vsel %vm12497, %v12492, %v11879
      %v12526 = vsel %vm12497, %v12493, %v11881
      %v12527 = vsel %vm12497, %v12494, %v11883
      %v12528 = vsel %vm12497, %v12495, %v11885
      %v12529 = vsel %vm12497, %v12496, %v11887
      %vm12530 = vcmask 130048
      %v12531 = vsel %vm12530, %v12498, %v11953
      %v12532 = vsel %vm12530, %v12499, %v11955
      %v12533 = vsel %vm12530, %v12500, %v11957
      %v12534 = vsel %vm12530, %v12501, %v11959
      %v12535 = vsel %vm12530, %v12502, %v11961
      %v12536 = vsel %vm12530, %v12503, %v11963
      %v12537 = vsel %vm12530, %v12504, %v11965
      %v12538 = vsel %vm12530, %v12505, %v11967
      %v12539 = vsel %vm12530, %v12506, %v11969
      %v12540 = vsel %vm12530, %v12507, %v11971
      %v12541 = vsel %vm12530, %v12508, %v11973
      %v12542 = vsel %vm12530, %v12509, %v11975
      %v12543 = vsel %vm12530, %v12510, %v11977
      %v12544 = vsel %vm12530, %v12511, %v11979
      %v12545 = vsel %vm12530, %v12512, %v11981
      %v12546 = vsel %vm12530, %v12513, %v11983
      %v12547 = vsel %vm12530, %v12514, %v11985
      %v12548 = vsel %vm12530, %v12515, %v11987
      %v12549 = vsel %vm12530, %v12516, %v11989
      %v12550 = vsel %vm12530, %v12517, %v11991
      %v12551 = vsel %vm12530, %v12518, %v11993
      %v12552 = vsel %vm12530, %v12519, %v11995
      %v12553 = vsel %vm12530, %v12520, %v11997
      %v12554 = vsel %vm12530, %v12521, %v11999
      %v12555 = vsel %vm12530, %v12522, %v12001
      %v12556 = vsel %vm12530, %v12523, %v12003
      %v12557 = vsel %vm12530, %v12524, %v12005
      %v12558 = vsel %vm12530, %v12525, %v12007
      %v12559 = vsel %vm12530, %v12526, %v12009
      %v12560 = vsel %vm12530, %v12527, %v12011
      %v12561 = vsel %vm12530, %v12528, %v12013
      %v12562 = vsel %vm12530, %v12529, %v12015
      %vm12563 = vcmask 162816
      %v12564 = vsel %vm12563, %v12531, %v12081
      %v12565 = vsel %vm12563, %v12532, %v12083
      %v12566 = vsel %vm12563, %v12533, %v12085
      %v12567 = vsel %vm12563, %v12534, %v12087
      %v12568 = vsel %vm12563, %v12535, %v12089
      %v12569 = vsel %vm12563, %v12536, %v12091
      %v12570 = vsel %vm12563, %v12537, %v12093
      %v12571 = vsel %vm12563, %v12538, %v12095
      %v12572 = vsel %vm12563, %v12539, %v12097
      %v12573 = vsel %vm12563, %v12540, %v12099
      %v12574 = vsel %vm12563, %v12541, %v12101
      %v12575 = vsel %vm12563, %v12542, %v12103
      %v12576 = vsel %vm12563, %v12543, %v12105
      %v12577 = vsel %vm12563, %v12544, %v12107
      %v12578 = vsel %vm12563, %v12545, %v12109
      %v12579 = vsel %vm12563, %v12546, %v12111
      %v12580 = vsel %vm12563, %v12547, %v12113
      %v12581 = vsel %vm12563, %v12548, %v12115
      %v12582 = vsel %vm12563, %v12549, %v12117
      %v12583 = vsel %vm12563, %v12550, %v12119
      %v12584 = vsel %vm12563, %v12551, %v12121
      %v12585 = vsel %vm12563, %v12552, %v12123
      %v12586 = vsel %vm12563, %v12553, %v12125
      %v12587 = vsel %vm12563, %v12554, %v12127
      %v12588 = vsel %vm12563, %v12555, %v12129
      %v12589 = vsel %vm12563, %v12556, %v12131
      %v12590 = vsel %vm12563, %v12557, %v12133
      %v12591 = vsel %vm12563, %v12558, %v12135
      %v12592 = vsel %vm12563, %v12559, %v12137
      %v12593 = vsel %vm12563, %v12560, %v12139
      %v12594 = vsel %vm12563, %v12561, %v12141
      %v12595 = vsel %vm12563, %v12562, %v12143
      %vm12596 = vcmask 195584
      %v12597 = vsel %vm12596, %v12564, %v12209
      %v12598 = vsel %vm12596, %v12565, %v12211
      %v12599 = vsel %vm12596, %v12566, %v12213
      %v12600 = vsel %vm12596, %v12567, %v12215
      %v12601 = vsel %vm12596, %v12568, %v12217
      %v12602 = vsel %vm12596, %v12569, %v12219
      %v12603 = vsel %vm12596, %v12570, %v12221
      %v12604 = vsel %vm12596, %v12571, %v12223
      %v12605 = vsel %vm12596, %v12572, %v12225
      %v12606 = vsel %vm12596, %v12573, %v12227
      %v12607 = vsel %vm12596, %v12574, %v12229
      %v12608 = vsel %vm12596, %v12575, %v12231
      %v12609 = vsel %vm12596, %v12576, %v12233
      %v12610 = vsel %vm12596, %v12577, %v12235
      %v12611 = vsel %vm12596, %v12578, %v12237
      %v12612 = vsel %vm12596, %v12579, %v12239
      %v12613 = vsel %vm12596, %v12580, %v12241
      %v12614 = vsel %vm12596, %v12581, %v12243
      %v12615 = vsel %vm12596, %v12582, %v12245
      %v12616 = vsel %vm12596, %v12583, %v12247
      %v12617 = vsel %vm12596, %v12584, %v12249
      %v12618 = vsel %vm12596, %v12585, %v12251
      %v12619 = vsel %vm12596, %v12586, %v12253
      %v12620 = vsel %vm12596, %v12587, %v12255
      %v12621 = vsel %vm12596, %v12588, %v12257
      %v12622 = vsel %vm12596, %v12589, %v12259
      %v12623 = vsel %vm12596, %v12590, %v12261
      %v12624 = vsel %vm12596, %v12591, %v12263
      %v12625 = vsel %vm12596, %v12592, %v12265
      %v12626 = vsel %vm12596, %v12593, %v12267
      %v12627 = vsel %vm12596, %v12594, %v12269
      %v12628 = vsel %vm12596, %v12595, %v12271
      %vm12629 = vcmask 228352
      %v12630 = vsel %vm12629, %v12597, %v12337
      %v12631 = vsel %vm12629, %v12598, %v12339
      %v12632 = vsel %vm12629, %v12599, %v12341
      %v12633 = vsel %vm12629, %v12600, %v12343
      %v12634 = vsel %vm12629, %v12601, %v12345
      %v12635 = vsel %vm12629, %v12602, %v12347
      %v12636 = vsel %vm12629, %v12603, %v12349
      %v12637 = vsel %vm12629, %v12604, %v12351
      %v12638 = vsel %vm12629, %v12605, %v12353
      %v12639 = vsel %vm12629, %v12606, %v12355
      %v12640 = vsel %vm12629, %v12607, %v12357
      %v12641 = vsel %vm12629, %v12608, %v12359
      %v12642 = vsel %vm12629, %v12609, %v12361
      %v12643 = vsel %vm12629, %v12610, %v12363
      %v12644 = vsel %vm12629, %v12611, %v12365
      %v12645 = vsel %vm12629, %v12612, %v12367
      %v12646 = vsel %vm12629, %v12613, %v12369
      %v12647 = vsel %vm12629, %v12614, %v12371
      %v12648 = vsel %vm12629, %v12615, %v12373
      %v12649 = vsel %vm12629, %v12616, %v12375
      %v12650 = vsel %vm12629, %v12617, %v12377
      %v12651 = vsel %vm12629, %v12618, %v12379
      %v12652 = vsel %vm12629, %v12619, %v12381
      %v12653 = vsel %vm12629, %v12620, %v12383
      %v12654 = vsel %vm12629, %v12621, %v12385
      %v12655 = vsel %vm12629, %v12622, %v12387
      %v12656 = vsel %vm12629, %v12623, %v12389
      %v12657 = vsel %vm12629, %v12624, %v12391
      %v12658 = vsel %vm12629, %v12625, %v12393
      %v12659 = vsel %vm12629, %v12626, %v12395
      %v12660 = vsel %vm12629, %v12627, %v12397
      %v12661 = vsel %vm12629, %v12628, %v12399
      %v12662 = vld [vmem:[%s6] sm:$0xff]
      %v12663 = vld [vmem:[%s6 + $0x8] sm:$0xff]
      %v12664 = vld [vmem:[%s6 + $0x10] sm:$0xff]
      %v12665 = vld [vmem:[%s6 + $0x18] sm:$0xff]
      %v12666 = vld [vmem:[%s7] sm:$0x1]
      %v12668 = vlaneseq
      %v12669 = vshrl.u32 %v12668, 7
      %v12670 = vsub.s32 0, %v12669
      %v12671 = vrot.slane %v12666, %v12670
      %v12674 = vsel %vm401, %v12630, 0
      %v12677 = vsel %vm401, %v12631, 0
      %v12680 = vsel %vm401, %v12632, 0
      %v12683 = vsel %vm401, %v12633, 0
      %v12686 = vsel %vm401, %v12634, 0
      %v12689 = vsel %vm401, %v12635, 0
      %v12692 = vsel %vm401, %v12636, 0
      %v12695 = vsel %vm401, %v12637, 0
      %v12698 = vsel %vm401, %v12638, 0
      %v12701 = vsel %vm401, %v12639, 0
      %v12704 = vsel %vm401, %v12640, 0
      %v12707 = vsel %vm401, %v12641, 0
      %v12710 = vsel %vm401, %v12642, 0
      %v12713 = vsel %vm401, %v12643, 0
      %v12716 = vsel %vm401, %v12644, 0
      %v12719 = vsel %vm401, %v12645, 0
      %v12722 = vsel %vm401, %v12646, 0
      %v12725 = vsel %vm401, %v12647, 0
      %v12728 = vsel %vm401, %v12648, 0
      %v12731 = vsel %vm401, %v12649, 0
      %v12734 = vsel %vm401, %v12650, 0
      %v12737 = vsel %vm401, %v12651, 0
      %v12740 = vsel %vm401, %v12652, 0
      %v12743 = vsel %vm401, %v12653, 0
      %v12746 = vsel %vm401, %v12654, 0
      %v12749 = vsel %vm401, %v12655, 0
      %v12752 = vsel %vm401, %v12656, 0
      %v12755 = vsel %vm401, %v12657, 0
      %v12758 = vsel %vm401, %v12658, 0
      %v12761 = vsel %vm401, %v12659, 0
      %v12764 = vsel %vm401, %v12660, 0
      %v12767 = vsel %vm401, %v12661, 0
      %12769 = vmatprep.subr.mxu0 0.0
      %12770 = vmatpush1.msra.mxu0 0.0
      %12771 = vmatprep.subr.mxu0 0.0
      %12772 = vmatpush1.msra.mxu0 0.0
      %12773 = vmatprep.subr.mxu0 0.0
      %12774 = vmatpush1.msra.mxu0 0.0
      %12775 = vmatprep.subr.mxu0 0.0
      %12776 = vmatpush1.msra.mxu0 0.0
      %12777 = vmatprep.subr.mxu0 0.0
      %12778 = vmatpush1.msra.mxu0 0.0
      %12779 = vmatprep.subr.mxu0 0.0
      %12780 = vmatpush1.msra.mxu0 0.0
      %12781 = vmatprep.subr.mxu0 0.0
      %12782 = vmatpush1.msra.mxu0 0.0
      %12783 = vmatprep.subr.mxu0 0.0
      %12784 = vmatpush1.msra.mxu0 0.0
      %12785 = vmatprep.subr.mxu0 0.0
      %12786 = vmatpush1.msra.mxu0 0.0
      %12787 = vmatprep.subr.mxu0 0.0
      %12788 = vmatpush1.msra.mxu0 0.0
      %12789 = vmatprep.subr.mxu0 0.0
      %12790 = vmatpush1.msra.mxu0 0.0
      %12791 = vmatprep.subr.mxu0 0.0
      %12792 = vmatpush1.msra.mxu0 0.0
      %12793 = vmatprep.subr.mxu0 0.0
      %12794 = vmatpush1.msra.mxu0 %v12665
      %12795 = vmatprep.subr.mxu0 0.0
      %12796 = vmatpush1.msra.mxu0 %v12664
      %12797 = vmatprep.subr.mxu0 0.0
      %12798 = vmatpush1.msra.mxu0 %v12663
      %12799 = vmatprep.subr.mxu0 0.0
      %12800 = vmatpush1.msra.mxu0 %v12662
      %12801 = vmatprep.subr.mxu0 0.0
      %12802 = vmatpush2.msra.mxu0 0.0
      %12803 = vmatprep.subr.mxu0 0.0
      %12804 = vmatpush2.msra.mxu0 0.0
      %12805 = vmatprep.subr.mxu0 0.0
      %12806 = vmatpush2.msra.mxu0 0.0
      %12807 = vmatprep.subr.mxu0 0.0
      %12808 = vmatpush2.msra.mxu0 0.0
      %12809 = vmatprep.subr.mxu0 0.0
      %12810 = vmatpush2.msra.mxu0 0.0
      %12811 = vmatprep.subr.mxu0 0.0
      %12812 = vmatpush2.msra.mxu0 0.0
      %12813 = vmatprep.subr.mxu0 0.0
      %12814 = vmatpush2.msra.mxu0 0.0
      %12815 = vmatprep.subr.mxu0 0.0
      %12816 = vmatpush2.msra.mxu0 0.0
      %12817 = vmatprep.subr.mxu0 0.0
      %12818 = vmatpush2.msra.mxu0 0.0
      %12819 = vmatprep.subr.mxu0 0.0
      %12820 = vmatpush2.msra.mxu0 0.0
      %12821 = vmatprep.subr.mxu0 0.0
      %12822 = vmatpush2.msra.mxu0 0.0
      %12823 = vmatprep.subr.mxu0 0.0
      %12824 = vmatpush2.msra.mxu0 0.0
      %12825 = vmatprep.subr.mxu0 0.0
      %12826 = vmatpush2.msra.mxu0 0.0
      %12827 = vmatprep.subr.mxu0 0.0
      %12828 = vmatpush2.msra.mxu0 0.0
      %12829 = vmatprep.subr.mxu0 0.0
      %12830 = vmatpush2.msra.mxu0 0.0
      %12831 = vmatprep.subr.mxu0 0.0
      %12832 = vmatpush2.msra.mxu0 0.0
      %12833 = vmatprep.mubr.f32.mxu0 0.0
      %12834 = vmatmul.mubr.f32.gmra.mxu0 %v12674
      %v12835 = vpop.f32.mrf.mxu0
      %v12836 = vadd.f32 %v12671, %v12835
      %v12837 = vpop.f32.mrf.mxu0
      %12838 = vmatprep.mubr.f32.mxu0 0.0
      %12839 = vmatmul.mubr.f32.gmra.mxu0 %v12677
      %v12840 = vpop.f32.mrf.mxu0
      %v12841 = vadd.f32 %v12671, %v12840
      %v12842 = vpop.f32.mrf.mxu0
      %12843 = vmatprep.mubr.f32.mxu0 0.0
      %12844 = vmatmul.mubr.f32.gmra.mxu0 %v12680
      %v12845 = vpop.f32.mrf.mxu0
      %v12846 = vadd.f32 %v12671, %v12845
      %v12847 = vpop.f32.mrf.mxu0
      %12848 = vmatprep.mubr.f32.mxu0 0.0
      %12849 = vmatmul.mubr.f32.gmra.mxu0 %v12683
      %v12850 = vpop.f32.mrf.mxu0
      %v12851 = vadd.f32 %v12671, %v12850
      %v12852 = vpop.f32.mrf.mxu0
      %12853 = vmatprep.mubr.f32.mxu0 0.0
      %12854 = vmatmul.mubr.f32.gmra.mxu0 %v12686
      %v12855 = vpop.f32.mrf.mxu0
      %v12856 = vadd.f32 %v12671, %v12855
      %v12857 = vpop.f32.mrf.mxu0
      %12858 = vmatprep.mubr.f32.mxu0 0.0
      %12859 = vmatmul.mubr.f32.gmra.mxu0 %v12689
      %v12860 = vpop.f32.mrf.mxu0
      %v12861 = vadd.f32 %v12671, %v12860
      %v12862 = vpop.f32.mrf.mxu0
      %12863 = vmatprep.mubr.f32.mxu0 0.0
      %12864 = vmatmul.mubr.f32.gmra.mxu0 %v12692
      %v12865 = vpop.f32.mrf.mxu0
      %v12866 = vadd.f32 %v12671, %v12865
      %v12867 = vpop.f32.mrf.mxu0
      %12868 = vmatprep.mubr.f32.mxu0 0.0
      %12869 = vmatmul.mubr.f32.gmra.mxu0 %v12695
      %v12870 = vpop.f32.mrf.mxu0
      %v12871 = vadd.f32 %v12671, %v12870
      %v12872 = vpop.f32.mrf.mxu0
      %12873 = vmatprep.mubr.f32.mxu0 0.0
      %12874 = vmatmul.mubr.f32.gmra.mxu0 %v12698
      %v12875 = vpop.f32.mrf.mxu0
      %v12876 = vadd.f32 %v12671, %v12875
      %v12877 = vpop.f32.mrf.mxu0
      %12878 = vmatprep.mubr.f32.mxu0 0.0
      %12879 = vmatmul.mubr.f32.gmra.mxu0 %v12701
      %v12880 = vpop.f32.mrf.mxu0
      %v12881 = vadd.f32 %v12671, %v12880
      %v12882 = vpop.f32.mrf.mxu0
      %12883 = vmatprep.mubr.f32.mxu0 0.0
      %12884 = vmatmul.mubr.f32.gmra.mxu0 %v12704
      %v12885 = vpop.f32.mrf.mxu0
      %v12886 = vadd.f32 %v12671, %v12885
      %v12887 = vpop.f32.mrf.mxu0
      %12888 = vmatprep.mubr.f32.mxu0 0.0
      %12889 = vmatmul.mubr.f32.gmra.mxu0 %v12707
      %v12890 = vpop.f32.mrf.mxu0
      %v12891 = vadd.f32 %v12671, %v12890
      %v12892 = vpop.f32.mrf.mxu0
      %12893 = vmatprep.mubr.f32.mxu0 0.0
      %12894 = vmatmul.mubr.f32.gmra.mxu0 %v12710
      %v12895 = vpop.f32.mrf.mxu0
      %v12896 = vadd.f32 %v12671, %v12895
      %v12897 = vpop.f32.mrf.mxu0
      %12898 = vmatprep.mubr.f32.mxu0 0.0
      %12899 = vmatmul.mubr.f32.gmra.mxu0 %v12713
      %v12900 = vpop.f32.mrf.mxu0
      %v12901 = vadd.f32 %v12671, %v12900
      %v12902 = vpop.f32.mrf.mxu0
      %12903 = vmatprep.mubr.f32.mxu0 0.0
      %12904 = vmatmul.mubr.f32.gmra.mxu0 %v12716
      %v12905 = vpop.f32.mrf.mxu0
      %v12906 = vadd.f32 %v12671, %v12905
      %v12907 = vpop.f32.mrf.mxu0
      %12908 = vmatprep.mubr.f32.mxu0 0.0
      %12909 = vmatmul.mubr.f32.gmra.mxu0 %v12719
      %v12910 = vpop.f32.mrf.mxu0
      %v12911 = vadd.f32 %v12671, %v12910
      %v12912 = vpop.f32.mrf.mxu0
      %12913 = vmatprep.mubr.f32.mxu0 0.0
      %12914 = vmatmul.mubr.f32.gmra.mxu0 %v12722
      %v12915 = vpop.f32.mrf.mxu0
      %v12916 = vadd.f32 %v12671, %v12915
      %v12917 = vpop.f32.mrf.mxu0
      %12918 = vmatprep.mubr.f32.mxu0 0.0
      %12919 = vmatmul.mubr.f32.gmra.mxu0 %v12725
      %v12920 = vpop.f32.mrf.mxu0
      %v12921 = vadd.f32 %v12671, %v12920
      %v12922 = vpop.f32.mrf.mxu0
      %12923 = vmatprep.mubr.f32.mxu0 0.0
      %12924 = vmatmul.mubr.f32.gmra.mxu0 %v12728
      %v12925 = vpop.f32.mrf.mxu0
      %v12926 = vadd.f32 %v12671, %v12925
      %v12927 = vpop.f32.mrf.mxu0
      %12928 = vmatprep.mubr.f32.mxu0 0.0
      %12929 = vmatmul.mubr.f32.gmra.mxu0 %v12731
      %v12930 = vpop.f32.mrf.mxu0
      %v12931 = vadd.f32 %v12671, %v12930
      %v12932 = vpop.f32.mrf.mxu0
      %12933 = vmatprep.mubr.f32.mxu0 0.0
      %12934 = vmatmul.mubr.f32.gmra.mxu0 %v12734
      %v12935 = vpop.f32.mrf.mxu0
      %v12936 = vadd.f32 %v12671, %v12935
      %v12937 = vpop.f32.mrf.mxu0
      %12938 = vmatprep.mubr.f32.mxu0 0.0
      %12939 = vmatmul.mubr.f32.gmra.mxu0 %v12737
      %v12940 = vpop.f32.mrf.mxu0
      %v12941 = vadd.f32 %v12671, %v12940
      %v12942 = vpop.f32.mrf.mxu0
      %12943 = vmatprep.mubr.f32.mxu0 0.0
      %12944 = vmatmul.mubr.f32.gmra.mxu0 %v12740
      %v12945 = vpop.f32.mrf.mxu0
      %v12946 = vadd.f32 %v12671, %v12945
      %v12947 = vpop.f32.mrf.mxu0
      %12948 = vmatprep.mubr.f32.mxu0 0.0
      %12949 = vmatmul.mubr.f32.gmra.mxu0 %v12743
      %v12950 = vpop.f32.mrf.mxu0
      %v12951 = vadd.f32 %v12671, %v12950
      %v12952 = vpop.f32.mrf.mxu0
      %12953 = vmatprep.mubr.f32.mxu0 0.0
      %12954 = vmatmul.mubr.f32.gmra.mxu0 %v12746
      %v12955 = vpop.f32.mrf.mxu0
      %v12956 = vadd.f32 %v12671, %v12955
      %v12957 = vpop.f32.mrf.mxu0
      %12958 = vmatprep.mubr.f32.mxu0 0.0
      %12959 = vmatmul.mubr.f32.gmra.mxu0 %v12749
      %v12960 = vpop.f32.mrf.mxu0
      %v12961 = vadd.f32 %v12671, %v12960
      %v12962 = vpop.f32.mrf.mxu0
      %12963 = vmatprep.mubr.f32.mxu0 0.0
      %12964 = vmatmul.mubr.f32.gmra.mxu0 %v12752
      %v12965 = vpop.f32.mrf.mxu0
      %v12966 = vadd.f32 %v12671, %v12965
      %v12967 = vpop.f32.mrf.mxu0
      %12968 = vmatprep.mubr.f32.mxu0 0.0
      %12969 = vmatmul.mubr.f32.gmra.mxu0 %v12755
      %v12970 = vpop.f32.mrf.mxu0
      %v12971 = vadd.f32 %v12671, %v12970
      %v12972 = vpop.f32.mrf.mxu0
      %12973 = vmatprep.mubr.f32.mxu0 0.0
      %12974 = vmatmul.mubr.f32.gmra.mxu0 %v12758
      %v12975 = vpop.f32.mrf.mxu0
      %v12976 = vadd.f32 %v12671, %v12975
      %v12977 = vpop.f32.mrf.mxu0
      %12978 = vmatprep.mubr.f32.mxu0 0.0
      %12979 = vmatmul.mubr.f32.gmra.mxu0 %v12761
      %v12980 = vpop.f32.mrf.mxu0
      %v12981 = vadd.f32 %v12671, %v12980
      %v12982 = vpop.f32.mrf.mxu0
      %12983 = vmatprep.mubr.f32.mxu0 0.0
      %12984 = vmatmul.mubr.f32.gmra.mxu0 %v12764
      %v12985 = vpop.f32.mrf.mxu0
      %v12986 = vadd.f32 %v12671, %v12985
      %v12987 = vpop.f32.mrf.mxu0
      %12988 = vmatprep.mubr.f32.mxu0 0.0
      %12989 = vmatmul.mubr.f32.gmra.mxu0 %v12767
      %v12990 = vpop.f32.mrf.mxu0
      %v12991 = vadd.f32 %v12671, %v12990
      %v12992 = vpop.f32.mrf.mxu0
      %12993 = vdwg.mxu0
      %12994 = vst.msk [vmem:[%s325] sm:$0xff] %vm401, %v12836
      %12995 = vst.msk [vmem:[%s325 + $0x8] sm:$0xff] %vm401, %v12841
      %12996 = vst.msk [vmem:[%s325 + $0x10] sm:$0xff] %vm401, %v12846
      %12997 = vst.msk [vmem:[%s325 + $0x18] sm:$0xff] %vm401, %v12851
      %12998 = vst.msk [vmem:[%s325 + $0x20] sm:$0xff] %vm401, %v12856
      %12999 = vst.msk [vmem:[%s325 + $0x28] sm:$0xff] %vm401, %v12861
      %13000 = vst.msk [vmem:[%s325 + $0x30] sm:$0xff] %vm401, %v12866
      %13001 = vst.msk [vmem:[%s325 + $0x38] sm:$0xff] %vm401, %v12871
      %13002 = vst.msk [vmem:[%s325 + $0x40] sm:$0xff] %vm401, %v12876
      %13003 = vst.msk [vmem:[%s325 + $0x48] sm:$0xff] %vm401, %v12881
      %13004 = vst.msk [vmem:[%s325 + $0x50] sm:$0xff] %vm401, %v12886
      %13005 = vst.msk [vmem:[%s325 + $0x58] sm:$0xff] %vm401, %v12891
      %13006 = vst.msk [vmem:[%s325 + $0x60] sm:$0xff] %vm401, %v12896
      %13007 = vst.msk [vmem:[%s325 + $0x68] sm:$0xff] %vm401, %v12901
      %13008 = vst.msk [vmem:[%s325 + $0x70] sm:$0xff] %vm401, %v12906
      %13009 = vst.msk [vmem:[%s325 + $0x78] sm:$0xff] %vm401, %v12911
      %13010 = vst.msk [vmem:[%s325 + $0x80] sm:$0xff] %vm401, %v12916
      %13011 = vst.msk [vmem:[%s325 + $0x88] sm:$0xff] %vm401, %v12921
      %13012 = vst.msk [vmem:[%s325 + $0x90] sm:$0xff] %vm401, %v12926
      %13013 = vst.msk [vmem:[%s325 + $0x98] sm:$0xff] %vm401, %v12931
      %13014 = vst.msk [vmem:[%s325 + $0xa0] sm:$0xff] %vm401, %v12936
      %13015 = vst.msk [vmem:[%s325 + $0xa8] sm:$0xff] %vm401, %v12941
      %13016 = vst.msk [vmem:[%s325 + $0xb0] sm:$0xff] %vm401, %v12946
      %13017 = vst.msk [vmem:[%s325 + $0xb8] sm:$0xff] %vm401, %v12951
      %13018 = vst.msk [vmem:[%s325 + $0xc0] sm:$0xff] %vm401, %v12956
      %13019 = vst.msk [vmem:[%s325 + $0xc8] sm:$0xff] %vm401, %v12961
      %13020 = vst.msk [vmem:[%s325 + $0xd0] sm:$0xff] %vm401, %v12966
      %13021 = vst.msk [vmem:[%s325 + $0xd8] sm:$0xff] %vm401, %v12971
      %13022 = vst.msk [vmem:[%s325 + $0xe0] sm:$0xff] %vm401, %v12976
      %13023 = vst.msk [vmem:[%s325 + $0xe8] sm:$0xff] %vm401, %v12981
      %13024 = vst.msk [vmem:[%s325 + $0xf0] sm:$0xff] %vm401, %v12986
      %13025 = vst.msk [vmem:[%s325 + $0xf8] sm:$0xff] %vm401, %v12991
      %p13026 = scmp.lt.s32.totalorder %s19, 1
      %s13027 = scalar_select %p13026, %s19, 1
      %s13028 = smul.addr %s13027, 32
      %s13029 = smul.addr %s13028, 8
      %s13030 = scalar_lea.vmem %s8, %s13029
      // Predicated region
      $region53: #{tpu_custom_call.1} parent=51 // pred_check
        %p13031 = pneg %p215
      $region54: #{tpu_custom_call.1} parent=51 // pred_check_branch
        %13033 = sbr.rel (%p13031) target = $region56
      $region55: #{tpu_custom_call.1} parent=51 // pred_region
        _
      $region56: #{tpu_custom_call.1} parent=51 // pred_fallthru
        _
    $region52: #{tpu_custom_call.1} parent=5 // pred_fallthru
      _
    %p13034 = scmp.le.s32.totalorder 2, %s14
    // Predicated region
    $region57: #{tpu_custom_call.1} parent=5 // pred_check
      %p13035 = pneg %p13034
    $region58: #{tpu_custom_call.1} parent=5 // pred_check_branch
      %13037 = sbr.rel (%p13035) target = $region60
    $region59: #{tpu_custom_call.1} parent=5 // pred_region
      %s13038 = ssub.s32 %s14, 2
      // Predicated region
      $region61: #{tpu_custom_call.1} parent=59 // pred_check
        %p13039 = pneg %p221
      $region62: #{tpu_custom_call.1} parent=59 // pred_check_branch
        %13041 = sbr.rel (%p13039) target = $region64
      $region63: #{tpu_custom_call.1} parent=59 // pred_region
        %p13042 = scmp.lt.s32.totalorder %s20, 1
        %s13043 = scalar_select %p13042, %s20, 1
        %s13044 = smul.addr %s13043, 32
        %s13045 = smul.addr %s13044, 8
        %s13046 = scalar_lea.vmem %s8, %s13045
      $region64: #{tpu_custom_call.1} parent=59 // pred_fallthru
        _
    $region60: #{tpu_custom_call.1} parent=5 // pred_fallthru
      _
  $region6: #{tpu_custom_call.1} parent=0 // loop_footer
    %s18 = sadd.s32 1, %s14
  $region7: #{tpu_custom_call.1} parent=0 // loop_footer_branch
    %13 = sbr.rel target = $region3
  $region8: #{tpu_custom_call.1} parent=0 // loop_exit
    _

</llo_original>
